<compile_context>
chip_gen: v7x
topology: tpu7x:2x2x1
jax: 0.10.0
libtpu: 0.0.40
codegen_flags: <defaults>
</compile_context>

<pallas_src>
import functools
import math

import jax
import jax.numpy as jnp
from jax.experimental import pallas as pl
from jax.experimental.pallas import tpu as pltpu

LANE = 128


def _round_up(x, m):
    return (x + m - 1) // m * m


def _pad_axis(a, axis, new):
    pads = [(0, 0)] * a.ndim
    pads[axis] = (0, new - a.shape[axis])
    return jnp.pad(a, pads)


# ----------------------------------------------------------------------------
# Fused DoubleConv kernel: conv3x3+BN+ReLU -> bf16 VMEM scratch -> conv3x3+BN+ReLU
# In-kernel layout: (flat padded spatial, channels padded to 128 lanes).
# ----------------------------------------------------------------------------
def double_conv_kernel(x_ref, w1_ref, b1_ref, w2_ref, b2_ref, o_ref, mid_ref,
                       *, H, W, Wp, halo, fold1):
    Hp = H + 2
    n_flat = Hp * Wp
    # tap t = 3*dy + dx reads flat position p + shifts[t]
    shifts = [(dy - 1) * Wp + (dx - 1) for dy in range(3) for dx in range(3)]
    cmid_p = mid_ref.shape[1]

    def conv3x3(load_patch, w_ref, b_ref, n_taps):
        acc = None
        for t in range(n_taps):
            # bf16 MXU operands, f32 accumulation.  BN scale is folded into the
            # weights; conv bias + BN shift are folded into the f32 bias.
            contrib = jnp.dot(load_patch(t), w_ref[t],
                              preferred_element_type=jnp.float32)
            acc = contrib if acc is None else acc + contrib
        return jnp.maximum(acc + b_ref[...], 0.0)

    # ---- conv1 + BN1 + ReLU -------------------------------------------------
    if fold1:
        # All nine taps were pre-expanded on the host along lanes:
        # one K = 9*Cin matmul, no halo and no shifted loads for conv1.
        mid = conv3x3(lambda t: x_ref[0], w1_ref, b1_ref, 1)
    else:
        mid = conv3x3(lambda t: x_ref[0, pl.ds(halo + shifts[t], n_flat), :],
                      w1_ref, b1_ref, 9)

    # Zero the 1-pixel ring (and the Wp alignment-pad columns) so conv2 sees
    # zero padding.  The mask is generated in-kernel: row/col of each flat
    # position are recovered with an exact f32 multiply + truncate (values are
    # far below 2^24), avoiding vector integer div/mod and any mask DMA.
    idx = jax.lax.broadcasted_iota(jnp.int32, (n_flat, 1), 0)
    row = ((idx.astype(jnp.float32) + 0.5) * (1.0 / Wp)).astype(jnp.int32)
    col = idx - row * Wp
    inside = ((row >= 1) & (row <= H) & (col >= 1) & (col <= W))
    mid = (mid * inside.astype(jnp.float32)).astype(mid_ref.dtype)

    # Only the halo head/tail rows of the scratch need zeroing (the bulk store
    # below overwrites everything else every step).  Unconditional on purpose:
    # it is tiny (2*halo rows) and a pl.program_id(0)==0 guard would leave the
    # second TensorCore's private scratch uninitialized when the batch axis is
    # split across cores.
    zeros_halo = jnp.zeros((halo, cmid_p), mid_ref.dtype)
    mid_ref[pl.ds(0, halo), :] = zeros_halo
    mid_ref[pl.ds(halo + n_flat, halo), :] = zeros_halo
    mid_ref[pl.ds(halo, n_flat), :] = mid

    # ---- conv2 + BN2 + ReLU -------------------------------------------------
    # TODO(synk): also tap-fold conv2 when 9*Cmid <= 128 (needs an in-kernel
    #             lane-concat of narrow views); kept per-tap here.
    out = conv3x3(lambda t: mid_ref[pl.ds(halo + shifts[t], n_flat), :],
                  w2_ref, b2_ref, 9)
    o_ref[0] = out.astype(o_ref.dtype)


# ----------------------------------------------------------------------------
# Host-side parameter preprocessing
# ----------------------------------------------------------------------------
def _fold_bn(w, b, gamma, beta, mean, var, eps=1e-5):
    """Fold inference-mode BN into the conv.  w: (Cout, Cin, 3, 3) torch layout.
    Returns taps (9, Cin, Cout) and effective bias (Cout,), both f32."""
    s = gamma / jnp.sqrt(var + eps)
    taps = jnp.transpose(w, (2, 3, 1, 0)).reshape(9, w.shape[1], w.shape[0])
    taps = taps * s[None, None, :]
    bias = b * s + beta - mean * s
    return taps, bias


# ----------------------------------------------------------------------------
# Forward wrapper
# ----------------------------------------------------------------------------
def double_conv_forward(x_nchw, params, eps=1e-5):
    B, Cin, H, W = x_nchw.shape
    w1, b1 = _fold_bn(params["w1"], params["b1"], *params["bn1"], eps=eps)
    w2, b2 = _fold_bn(params["w2"], params["b2"], *params["bn2"], eps=eps)
    Cmid, Cout = w1.shape[-1], w2.shape[-1]
    cmid_p = _round_up(Cmid, LANE)
    cout_p = _round_up(Cout, LANE)

    # Flattening grid: (Hp, Wp) with a 1-pixel zero ring; Wp padded to a
    # multiple of 8 so the (dy-1)*Wp tap offsets stay sublane-aligned.
    Hp = H + 2
    Wp = _round_up(W + 2, 8)
    n_flat = Hp * Wp
    halo = _round_up(Wp + 1, 16)          # covers max |shift|; bf16-tile aligned
    n_buf = n_flat + 2 * halo

    # Single NCHW -> NHWC conversion; everything below is cheap layout prep.
    x_nhwc = jnp.transpose(x_nchw, (0, 2, 3, 1))
    xg = jnp.pad(x_nhwc, ((0, 0), (1, 1), (1, Wp - W - 1), (0, 0)))  # (B,Hp,Wp,Cin)

    fold1 = (9 * Cin) <= LANE
    if fold1:
        # Tiny channels: host-side im2col over the 9 taps only, so conv1 is a
        # single K=9*Cin matmul (same DMA bytes: channels are lane-padded to
        # 128 either way) and the input needs no halo rows.
        k1_p = _round_up(9 * Cin, LANE)
        xg2 = jnp.pad(xg, ((0, 0), (1, 1), (1, 1), (0, 0)))
        x_taps = jnp.concatenate(
            [xg2[:, dy:dy + Hp, dx:dx + Wp, :]
             for dy in range(3) for dx in range(3)], axis=-1)
        x_in = _pad_axis(x_taps, 3, k1_p).reshape(B, n_flat, k1_p)
        x_in = x_in.astype(jnp.bfloat16)
        w1_p = _pad_axis(_pad_axis(w1.reshape(9 * Cin, Cmid), 0, k1_p),
                         1, cmid_p)[None].astype(jnp.bfloat16)   # (1, k1_p, cmid_p)
        x_spec = pl.BlockSpec((1, n_flat, k1_p), lambda b: (b, 0, 0))
        w1_spec = pl.BlockSpec((1, k1_p, cmid_p), lambda b: (0, 0, 0))
    else:
        cin_p = _round_up(Cin, LANE)
        x_in = _pad_axis(xg, 3, cin_p).reshape(B, n_flat, cin_p)
        x_in = jnp.pad(x_in, ((0, 0), (halo, halo), (0, 0))).astype(jnp.bfloat16)
        w1_p = _pad_axis(_pad_axis(w1, 1, cin_p), 2, cmid_p).astype(jnp.bfloat16)
        x_spec = pl.BlockSpec((1, n_buf, cin_p), lambda b: (b, 0, 0))
        w1_spec = pl.BlockSpec((9, cin_p, cmid_p), lambda b: (0, 0, 0))

    w2_p = _pad_axis(_pad_axis(w2, 1, cmid_p), 2, cout_p).astype(jnp.bfloat16)
    b1_p = _pad_axis(b1, 0, cmid_p).reshape(1, cmid_p)
    b2_p = _pad_axis(b2, 0, cout_p).reshape(1, cout_p)

    kernel = functools.partial(double_conv_kernel, H=H, W=W, Wp=Wp, halo=halo,
                               fold1=fold1)
    out_flat = pl.pallas_call(
        kernel,
        out_shape=jax.ShapeDtypeStruct((B, n_flat, cout_p), jnp.bfloat16),
        grid=(B,),
        in_specs=[
            x_spec,
            w1_spec,
            pl.BlockSpec((1, cmid_p), lambda b: (0, 0)),
            pl.BlockSpec((9, cmid_p, cout_p), lambda b: (0, 0, 0)),
            pl.BlockSpec((1, cout_p), lambda b: (0, 0)),
        ],
        out_specs=pl.BlockSpec((1, n_flat, cout_p), lambda b: (b, 0, 0)),
        scratch_shapes=[pltpu.VMEM((n_buf, cmid_p), jnp.bfloat16)],
        compiler_params=pltpu.CompilerParams(
            dimension_semantics=("parallel",)),
    )(x_in, w1_p, b1_p, w2_p, b2_p)

    out = out_flat.reshape(B, Hp, Wp, cout_p)[:, 1:H + 1, 1:W + 1, :Cout]
    return jnp.transpose(out, (0, 3, 1, 2)).astype(jnp.float32)


# ----------------------------------------------------------------------------
# Pure-JAX reference (mirrors the kernel's BN folding and bf16 operand casts)
# ----------------------------------------------------------------------------
def double_conv_reference(x_nchw, params, eps=1e-5):
    w1, b1 = _fold_bn(params["w1"], params["b1"], *params["bn1"], eps=eps)
    w2, b2 = _fold_bn(params["w2"], params["b2"], *params["bn2"], eps=eps)
    x = jnp.transpose(x_nchw, (0, 2, 3, 1))

    def conv_bn_relu(a, taps, bias):
        _, Hh, Wh, _ = a.shape
        ap = jnp.pad(a, ((0, 0), (1, 1), (1, 1), (0, 0)))
        acc = None
        for t in range(9):
            dy, dx = divmod(t, 3)
            patch = ap[:, dy:dy + Hh, dx:dx + Wh, :].astype(jnp.bfloat16)
            c = jax.lax.dot_general(
                patch, taps[t].astype(jnp.bfloat16),
                dimension_numbers=(((3,), (0,)), ((), ())),
                preferred_element_type=jnp.float32)
            acc = c if acc is None else acc + c
        return jnp.maximum(acc + bias.reshape(1, 1, 1, -1), 0.0)

    y = conv_bn_relu(conv_bn_relu(x, w1, b1), w2, b2)
    return jnp.transpose(y, (0, 3, 1, 2))


# ----------------------------------------------------------------------------
# Deterministic synthetic parameters
# ----------------------------------------------------------------------------
def init_params(in_channels, out_channels, seed=42):
    cmid = out_channels // 2
    ks = iter(jax.random.split(jax.random.PRNGKey(seed), 16))

    def u(shape, scale):
        return jax.random.uniform(next(ks), shape, jnp.float32, -scale, scale)

    def bn(c):
        gamma = 1.0 + 0.1 * u((c,), 1.0)
        beta = 0.1 * u((c,), 1.0)
        mean = 0.1 * u((c,), 1.0)
        var = 1.0 + 0.5 * jax.random.uniform(next(ks), (c,), jnp.float32, 0.0, 1.0)
        return (gamma, beta, mean, var)

    k1 = 1.0 / math.sqrt(in_channels * 9)
    k2 = 1.0 / math.sqrt(cmid * 9)
    return {
        "w1": u((cmid, in_channels, 3, 3), k1),
        "b1": u((cmid,), k1),
        "bn1": bn(cmid),
        "w2": u((out_channels, cmid, 3, 3), k2),
        "b2": u((out_channels,), k2),
        "bn2": bn(out_channels),
    }


if __name__ == "__main__":
    B, Cin, Cout, H, W = 2, 4, 8, 16, 16

    x = jax.random.normal(jax.random.PRNGKey(0), (B, Cin, H, W), jnp.float32)
    params = init_params(Cin, Cout)

    out = double_conv_forward(x, params)
    out = jax.block_until_ready(out)

    assert out.shape == (B, Cout, H, W), out.shape
    assert bool(jnp.all(jnp.isfinite(out)))

    ref = double_conv_reference(x, params)
    max_err = float(jnp.max(jnp.abs(out - ref)))
    assert max_err < 5e-2, f"max abs err vs reference: {max_err}"

    print("KERNEL_OK")
</pallas_src>

<mosaic_0001>
module attributes {stable_mosaic.version = 11 : i64} {
  func.func @double_conv_kernel(%arg0: i32, %arg1: memref<1x432x128xbf16, #tpu.memory_space<vmem>>, %arg2: memref<1x128x128xbf16, #tpu.memory_space<vmem>>, %arg3: memref<1x128xf32, #tpu.memory_space<vmem>>, %arg4: memref<9x128x128xbf16, #tpu.memory_space<vmem>>, %arg5: memref<1x128xf32, #tpu.memory_space<vmem>>, %arg6: memref<1x432x128xbf16, #tpu.memory_space<vmem>>, %arg7: memref<496x128xbf16, #tpu.memory_space<vmem>>) attributes {dimension_semantics = [#tpu.dimension_semantics<parallel>], iteration_bounds = array<i64: 2>, scalar_prefetch = 0 : i64, scratch_operands = 1 : i64, tpu.core_type = #tpu.core_type<tc>, window_params = [{transform_indices = @transform_0, window_bounds = array<i64: 1, 432, 128>}, {pipeline_mode = #tpu.pipeline_mode<synchronous>, transform_indices = @transform_1, window_bounds = array<i64: 1, 128, 128>}, {pipeline_mode = #tpu.pipeline_mode<synchronous>, transform_indices = @transform_2, window_bounds = array<i64: 1, 128>}, {pipeline_mode = #tpu.pipeline_mode<synchronous>, transform_indices = @transform_3, window_bounds = array<i64: 9, 128, 128>}, {pipeline_mode = #tpu.pipeline_mode<synchronous>, transform_indices = @transform_4, window_bounds = array<i64: 1, 128>}, {transform_indices = @transform_5, window_bounds = array<i64: 1, 432, 128>}]} {
    %c0 = arith.constant 0 : index
    %c0_0 = arith.constant 0 : index
    %c0_1 = arith.constant 0 : index
    %0 = vector.load %arg1[%c0, %c0_0, %c0_1] : memref<1x432x128xbf16, #tpu.memory_space<vmem>>, vector<1x432x128xbf16>
    %1 = vector.shape_cast %0 : vector<1x432x128xbf16> to vector<432x128xbf16>
    %c0_2 = arith.constant 0 : index
    %c0_3 = arith.constant 0 : index
    %c0_4 = arith.constant 0 : index
    %2 = vector.load %arg2[%c0_2, %c0_3, %c0_4] : memref<1x128x128xbf16, #tpu.memory_space<vmem>>, vector<1x128x128xbf16>
    %3 = vector.shape_cast %2 : vector<1x128x128xbf16> to vector<128x128xbf16>
    %cst = arith.constant dense<0.000000e+00> : vector<432x128xf32>
    %4 = tpu.matmul %1, %3, %cst {dimension_numbers = #tpu.dot_dimension_numbers<[1], [0], [0], [1], [0, 0, 1, 1], [], []>} : vector<432x128xbf16>, vector<128x128xbf16>, vector<432x128xf32> -> vector<432x128xf32>
    %c0_5 = arith.constant 0 : index
    %c0_6 = arith.constant 0 : index
    %5 = vector.load %arg3[%c0_5, %c0_6] : memref<1x128xf32, #tpu.memory_space<vmem>>, vector<1x128xf32>
    %6 = vector.broadcast %5 : vector<1x128xf32> to vector<432x128xf32>
    %7 = arith.addf %4, %6 : vector<432x128xf32>
    %cst_7 = arith.constant 0.000000e+00 : f32
    %8 = vector.broadcast %cst_7 : f32 to vector<432x128xf32>
    %9 = arith.maximumf %7, %8 : vector<432x128xf32>
    %10 = tpu.iota {dimensions = array<i32: 0>} : vector<432x1xi32>
    %11 = arith.sitofp %10 : vector<432x1xi32> to vector<432x1xf32>
    %cst_8 = arith.constant 5.000000e-01 : f32
    %12 = vector.broadcast %cst_8 : f32 to vector<432x1xf32>
    %13 = arith.addf %11, %12 : vector<432x1xf32>
    %cst_9 = arith.constant 0.0416666679 : f32
    %14 = vector.broadcast %cst_9 : f32 to vector<432x1xf32>
    %15 = arith.mulf %13, %14 : vector<432x1xf32>
    %16 = arith.fptosi %15 : vector<432x1xf32> to vector<432x1xi32>
    %c24_i32 = arith.constant 24 : i32
    %17 = vector.broadcast %c24_i32 : i32 to vector<432x1xi32>
    %18 = arith.muli %16, %17 : vector<432x1xi32>
    %19 = arith.subi %10, %18 : vector<432x1xi32>
    %c1_i32 = arith.constant 1 : i32
    %20 = vector.broadcast %c1_i32 : i32 to vector<432x1xi32>
    %21 = arith.cmpi sge, %16, %20 : vector<432x1xi32>
    %c16_i32 = arith.constant 16 : i32
    %22 = vector.broadcast %c16_i32 : i32 to vector<432x1xi32>
    %23 = arith.cmpi sle, %16, %22 : vector<432x1xi32>
    %24 = arith.andi %21, %23 : vector<432x1xi1>
    %c1_i32_10 = arith.constant 1 : i32
    %25 = vector.broadcast %c1_i32_10 : i32 to vector<432x1xi32>
    %26 = arith.cmpi sge, %19, %25 : vector<432x1xi32>
    %27 = arith.andi %24, %26 : vector<432x1xi1>
    %c16_i32_11 = arith.constant 16 : i32
    %28 = vector.broadcast %c16_i32_11 : i32 to vector<432x1xi32>
    %29 = arith.cmpi sle, %19, %28 : vector<432x1xi32>
    %30 = arith.andi %27, %29 : vector<432x1xi1>
    %31 = arith.extui %30 : vector<432x1xi1> to vector<432x1xi32>
    %32 = arith.sitofp %31 : vector<432x1xi32> to vector<432x1xf32>
    %33 = vector.broadcast %32 : vector<432x1xf32> to vector<432x128xf32>
    %34 = arith.mulf %9, %33 : vector<432x128xf32>
    %35 = arith.truncf %34 : vector<432x128xf32> to vector<432x128xbf16>
    %cst_12 = arith.constant 0.000000e+00 : bf16
    %36 = vector.broadcast %cst_12 : bf16 to vector<32x128xbf16>
    %c0_13 = arith.constant 0 : index
    %c0_14 = arith.constant 0 : index
    %37 = vector.load %arg7[%c0_13, %c0_14] : memref<496x128xbf16, #tpu.memory_space<vmem>>, vector<32x128xbf16>
    tpu.vector_store %arg7[%c0_13, %c0_14], %36 {strides = array<i32>} : memref<496x128xbf16, #tpu.memory_space<vmem>>, vector<32x128xbf16>,
    %c464 = arith.constant 464 : index
    %c0_15 = arith.constant 0 : index
    %38 = vector.load %arg7[%c464, %c0_15] : memref<496x128xbf16, #tpu.memory_space<vmem>>, vector<32x128xbf16>
    tpu.vector_store %arg7[%c464, %c0_15], %36 {strides = array<i32>} : memref<496x128xbf16, #tpu.memory_space<vmem>>, vector<32x128xbf16>,
    %c32 = arith.constant 32 : index
    %c0_16 = arith.constant 0 : index
    %39 = vector.load %arg7[%c32, %c0_16] : memref<496x128xbf16, #tpu.memory_space<vmem>>, vector<432x128xbf16>
    tpu.vector_store %arg7[%c32, %c0_16], %35 {strides = array<i32>} : memref<496x128xbf16, #tpu.memory_space<vmem>>, vector<432x128xbf16>,
    %c7 = arith.constant 7 : index
    %c0_17 = arith.constant 0 : index
    %40 = vector.load %arg7[%c7, %c0_17] : memref<496x128xbf16, #tpu.memory_space<vmem>>, vector<432x128xbf16>
    %c0_18 = arith.constant 0 : index
    %c0_19 = arith.constant 0 : index
    %c0_20 = arith.constant 0 : index
    %41 = vector.load %arg4[%c0_18, %c0_19, %c0_20] : memref<9x128x128xbf16, #tpu.memory_space<vmem>>, vector<1x128x128xbf16>
    %42 = vector.shape_cast %41 : vector<1x128x128xbf16> to vector<128x128xbf16>
    %cst_21 = arith.constant dense<0.000000e+00> : vector<432x128xf32>
    %43 = tpu.matmul %40, %42, %cst_21 {dimension_numbers = #tpu.dot_dimension_numbers<[1], [0], [0], [1], [0, 0, 1, 1], [], []>} : vector<432x128xbf16>, vector<128x128xbf16>, vector<432x128xf32> -> vector<432x128xf32>
    %c8 = arith.constant 8 : index
    %c0_22 = arith.constant 0 : index
    %44 = vector.load %arg7[%c8, %c0_22] : memref<496x128xbf16, #tpu.memory_space<vmem>>, vector<432x128xbf16>
    %c1 = arith.constant 1 : index
    %c0_23 = arith.constant 0 : index
    %c0_24 = arith.constant 0 : index
    %45 = vector.load %arg4[%c1, %c0_23, %c0_24] : memref<9x128x128xbf16, #tpu.memory_space<vmem>>, vector<1x128x128xbf16>
    %46 = vector.shape_cast %45 : vector<1x128x128xbf16> to vector<128x128xbf16>
    %cst_25 = arith.constant dense<0.000000e+00> : vector<432x128xf32>
    %47 = tpu.matmul %44, %46, %cst_25 {dimension_numbers = #tpu.dot_dimension_numbers<[1], [0], [0], [1], [0, 0, 1, 1], [], []>} : vector<432x128xbf16>, vector<128x128xbf16>, vector<432x128xf32> -> vector<432x128xf32>
    %48 = arith.addf %43, %47 : vector<432x128xf32>
    %c9 = arith.constant 9 : index
    %c0_26 = arith.constant 0 : index
    %49 = vector.load %arg7[%c9, %c0_26] : memref<496x128xbf16, #tpu.memory_space<vmem>>, vector<432x128xbf16>
    %c2 = arith.constant 2 : index
    %c0_27 = arith.constant 0 : index
    %c0_28 = arith.constant 0 : index
    %50 = vector.load %arg4[%c2, %c0_27, %c0_28] : memref<9x128x128xbf16, #tpu.memory_space<vmem>>, vector<1x128x128xbf16>
    %51 = vector.shape_cast %50 : vector<1x128x128xbf16> to vector<128x128xbf16>
    %cst_29 = arith.constant dense<0.000000e+00> : vector<432x128xf32>
    %52 = tpu.matmul %49, %51, %cst_29 {dimension_numbers = #tpu.dot_dimension_numbers<[1], [0], [0], [1], [0, 0, 1, 1], [], []>} : vector<432x128xbf16>, vector<128x128xbf16>, vector<432x128xf32> -> vector<432x128xf32>
    %53 = arith.addf %48, %52 : vector<432x128xf32>
    %c31 = arith.constant 31 : index
    %c0_30 = arith.constant 0 : index
    %54 = vector.load %arg7[%c31, %c0_30] : memref<496x128xbf16, #tpu.memory_space<vmem>>, vector<432x128xbf16>
    %c3 = arith.constant 3 : index
    %c0_31 = arith.constant 0 : index
    %c0_32 = arith.constant 0 : index
    %55 = vector.load %arg4[%c3, %c0_31, %c0_32] : memref<9x128x128xbf16, #tpu.memory_space<vmem>>, vector<1x128x128xbf16>
    %56 = vector.shape_cast %55 : vector<1x128x128xbf16> to vector<128x128xbf16>
    %cst_33 = arith.constant dense<0.000000e+00> : vector<432x128xf32>
    %57 = tpu.matmul %54, %56, %cst_33 {dimension_numbers = #tpu.dot_dimension_numbers<[1], [0], [0], [1], [0, 0, 1, 1], [], []>} : vector<432x128xbf16>, vector<128x128xbf16>, vector<432x128xf32> -> vector<432x128xf32>
    %58 = arith.addf %53, %57 : vector<432x128xf32>
    %c32_34 = arith.constant 32 : index
    %c0_35 = arith.constant 0 : index
    %59 = vector.load %arg7[%c32_34, %c0_35] : memref<496x128xbf16, #tpu.memory_space<vmem>>, vector<432x128xbf16>
    %c4 = arith.constant 4 : index
    %c0_36 = arith.constant 0 : index
    %c0_37 = arith.constant 0 : index
    %60 = vector.load %arg4[%c4, %c0_36, %c0_37] : memref<9x128x128xbf16, #tpu.memory_space<vmem>>, vector<1x128x128xbf16>
    %61 = vector.shape_cast %60 : vector<1x128x128xbf16> to vector<128x128xbf16>
    %cst_38 = arith.constant dense<0.000000e+00> : vector<432x128xf32>
    %62 = tpu.matmul %59, %61, %cst_38 {dimension_numbers = #tpu.dot_dimension_numbers<[1], [0], [0], [1], [0, 0, 1, 1], [], []>} : vector<432x128xbf16>, vector<128x128xbf16>, vector<432x128xf32> -> vector<432x128xf32>
    %63 = arith.addf %58, %62 : vector<432x128xf32>
    %c33 = arith.constant 33 : index
    %c0_39 = arith.constant 0 : index
    %64 = vector.load %arg7[%c33, %c0_39] : memref<496x128xbf16, #tpu.memory_space<vmem>>, vector<432x128xbf16>
    %c5 = arith.constant 5 : index
    %c0_40 = arith.constant 0 : index
    %c0_41 = arith.constant 0 : index
    %65 = vector.load %arg4[%c5, %c0_40, %c0_41] : memref<9x128x128xbf16, #tpu.memory_space<vmem>>, vector<1x128x128xbf16>
    %66 = vector.shape_cast %65 : vector<1x128x128xbf16> to vector<128x128xbf16>
    %cst_42 = arith.constant dense<0.000000e+00> : vector<432x128xf32>
    %67 = tpu.matmul %64, %66, %cst_42 {dimension_numbers = #tpu.dot_dimension_numbers<[1], [0], [0], [1], [0, 0, 1, 1], [], []>} : vector<432x128xbf16>, vector<128x128xbf16>, vector<432x128xf32> -> vector<432x128xf32>
    %68 = arith.addf %63, %67 : vector<432x128xf32>
    %c55 = arith.constant 55 : index
    %c0_43 = arith.constant 0 : index
    %69 = vector.load %arg7[%c55, %c0_43] : memref<496x128xbf16, #tpu.memory_space<vmem>>, vector<432x128xbf16>
    %c6 = arith.constant 6 : index
    %c0_44 = arith.constant 0 : index
    %c0_45 = arith.constant 0 : index
    %70 = vector.load %arg4[%c6, %c0_44, %c0_45] : memref<9x128x128xbf16, #tpu.memory_space<vmem>>, vector<1x128x128xbf16>
    %71 = vector.shape_cast %70 : vector<1x128x128xbf16> to vector<128x128xbf16>
    %cst_46 = arith.constant dense<0.000000e+00> : vector<432x128xf32>
    %72 = tpu.matmul %69, %71, %cst_46 {dimension_numbers = #tpu.dot_dimension_numbers<[1], [0], [0], [1], [0, 0, 1, 1], [], []>} : vector<432x128xbf16>, vector<128x128xbf16>, vector<432x128xf32> -> vector<432x128xf32>
    %73 = arith.addf %68, %72 : vector<432x128xf32>
    %c56 = arith.constant 56 : index
    %c0_47 = arith.constant 0 : index
    %74 = vector.load %arg7[%c56, %c0_47] : memref<496x128xbf16, #tpu.memory_space<vmem>>, vector<432x128xbf16>
    %c7_48 = arith.constant 7 : index
    %c0_49 = arith.constant 0 : index
    %c0_50 = arith.constant 0 : index
    %75 = vector.load %arg4[%c7_48, %c0_49, %c0_50] : memref<9x128x128xbf16, #tpu.memory_space<vmem>>, vector<1x128x128xbf16>
    %76 = vector.shape_cast %75 : vector<1x128x128xbf16> to vector<128x128xbf16>
    %cst_51 = arith.constant dense<0.000000e+00> : vector<432x128xf32>
    %77 = tpu.matmul %74, %76, %cst_51 {dimension_numbers = #tpu.dot_dimension_numbers<[1], [0], [0], [1], [0, 0, 1, 1], [], []>} : vector<432x128xbf16>, vector<128x128xbf16>, vector<432x128xf32> -> vector<432x128xf32>
    %78 = arith.addf %73, %77 : vector<432x128xf32>
    %c57 = arith.constant 57 : index
    %c0_52 = arith.constant 0 : index
    %79 = vector.load %arg7[%c57, %c0_52] : memref<496x128xbf16, #tpu.memory_space<vmem>>, vector<432x128xbf16>
    %c8_53 = arith.constant 8 : index
    %c0_54 = arith.constant 0 : index
    %c0_55 = arith.constant 0 : index
    %80 = vector.load %arg4[%c8_53, %c0_54, %c0_55] : memref<9x128x128xbf16, #tpu.memory_space<vmem>>, vector<1x128x128xbf16>
    %81 = vector.shape_cast %80 : vector<1x128x128xbf16> to vector<128x128xbf16>
    %cst_56 = arith.constant dense<0.000000e+00> : vector<432x128xf32>
    %82 = tpu.matmul %79, %81, %cst_56 {dimension_numbers = #tpu.dot_dimension_numbers<[1], [0], [0], [1], [0, 0, 1, 1], [], []>} : vector<432x128xbf16>, vector<128x128xbf16>, vector<432x128xf32> -> vector<432x128xf32>
    %83 = arith.addf %78, %82 : vector<432x128xf32>
    %c0_57 = arith.constant 0 : index
    %c0_58 = arith.constant 0 : index
    %84 = vector.load %arg5[%c0_57, %c0_58] : memref<1x128xf32, #tpu.memory_space<vmem>>, vector<1x128xf32>
    %85 = vector.broadcast %84 : vector<1x128xf32> to vector<432x128xf32>
    %86 = arith.addf %83, %85 : vector<432x128xf32>
    %cst_59 = arith.constant 0.000000e+00 : f32
    %87 = vector.broadcast %cst_59 : f32 to vector<432x128xf32>
    %88 = arith.maximumf %86, %87 : vector<432x128xf32>
    %89 = arith.truncf %88 : vector<432x128xf32> to vector<432x128xbf16>
    %c0_60 = arith.constant 0 : index
    %c0_61 = arith.constant 0 : index
    %c0_62 = arith.constant 0 : index
    %90 = vector.load %arg6[%c0_60, %c0_61, %c0_62] : memref<1x432x128xbf16, #tpu.memory_space<vmem>>, vector<1x432x128xbf16>
    %91 = vector.shape_cast %90 : vector<1x432x128xbf16> to vector<432x128xbf16>
    %92 = vector.shape_cast %89 : vector<432x128xbf16> to vector<1x432x128xbf16>
    tpu.vector_store %arg6[%c0_60, %c0_61, %c0_62], %92 {strides = array<i32>} : memref<1x432x128xbf16, #tpu.memory_space<vmem>>, vector<1x432x128xbf16>,
    return
  }
  func.func @transform_0(%arg0: i32) -> (i32, i32, i32) {
    %c0_i32 = arith.constant 0 : i32
    %c0_i32_0 = arith.constant 0 : i32
    %c0_i32_1 = arith.constant 0 : i32
    return %arg0, %c0_i32, %c0_i32_0 : i32, i32, i32
  }
  func.func @transform_1(%arg0: i32) -> (i32, i32, i32) {
    %c0_i32 = arith.constant 0 : i32
    %c0_i32_0 = arith.constant 0 : i32
    %c0_i32_1 = arith.constant 0 : i32
    %c0_i32_2 = arith.constant 0 : i32
    return %c0_i32, %c0_i32_0, %c0_i32_1 : i32, i32, i32
  }
  func.func @transform_2(%arg0: i32) -> (i32, i32) {
    %c0_i32 = arith.constant 0 : i32
    %c0_i32_0 = arith.constant 0 : i32
    %c0_i32_1 = arith.constant 0 : i32
    return %c0_i32, %c0_i32_0 : i32, i32
  }
  func.func @transform_3(%arg0: i32) -> (i32, i32, i32) {
    %c0_i32 = arith.constant 0 : i32
    %c0_i32_0 = arith.constant 0 : i32
    %c0_i32_1 = arith.constant 0 : i32
    %c0_i32_2 = arith.constant 0 : i32
    return %c0_i32, %c0_i32_0, %c0_i32_1 : i32, i32, i32
  }
  func.func @transform_4(%arg0: i32) -> (i32, i32) {
    %c0_i32 = arith.constant 0 : i32
    %c0_i32_0 = arith.constant 0 : i32
    %c0_i32_1 = arith.constant 0 : i32
    return %c0_i32, %c0_i32_0 : i32, i32
  }
  func.func @transform_5(%arg0: i32) -> (i32, i32, i32) {
    %c0_i32 = arith.constant 0 : i32
    %c0_i32_0 = arith.constant 0 : i32
    %c0_i32_1 = arith.constant 0 : i32
    return %arg0, %c0_i32, %c0_i32_0 : i32, i32, i32
  }
}

</mosaic_0001>

<llo_original>
// kernel: tpu_custom_call.1
$region0: #{tpu_custom_call.1}
  #allocation0 [shape = 'u32[]', space=smem, size = 0x4, offset = 0x4, fixed_abs, tag = 'smem constant byte address 0x4 - core index']
  #allocation1 [shape = 'u32[144,128]{1,0:T(1,128)}', space=vmem, size = 0x12000, scoped, tag = 'internal scratch']
  #allocation2 [shape = 'bf16[496,128]{1,0:T(16,128)(2,1)}', space=vmem, size = 0x1f000, scoped, tag = 'scratch operand']
  %s0 = inlined_call_operand.hbm [shape: bf16[2,432,128], index: 0, kind: input, shape index: {}]
  %s1 = inlined_call_operand.hbm [shape: bf16[1,128,128], index: 1, kind: input, shape index: {}]
  %s2 = inlined_call_operand.vmem [shape: f32[1,128], index: 2, kind: input, shape index: {}]
  %s3 = inlined_call_operand.hbm [shape: bf16[9,128,128], index: 3, kind: input, shape index: {}]
  %s4 = inlined_call_operand.vmem [shape: f32[1,128], index: 4, kind: input, shape index: {}]
  %s5 = inlined_call_operand.hbm [shape: bf16[2,432,128], index: 5, kind: output, shape index: {}]
  %s6 = sld [smem:[#allocation0]]
  $region65: #{tpu_custom_call.1} parent=0
    _
  %s8 = ssub.s32 1, %s6
  %s9 = scalar_select 0, %s8, %s6
  $region1: #{tpu_custom_call.1} parent=0
    #allocation3 [shape = 'u8[221184]{0}', space=vmem, size = 0x36000, scoped, tag = 'input window, operand 0']
    #allocation4 [shape = 's32[2]{0}', space=sflag, size = 0x8, scoped, tag = 'scoped memory for tpu_custom_call.1']
    #allocation5 [shape = 's32[2]{0}', space=sflag, size = 0x8, scoped, tag = 'scoped memory for tpu_custom_call.1']
    #allocation6 [shape = 'u8[32768]{0}', space=vmem, size = 0x8000, scoped, tag = 'input window, operand 1, single buffered']
    #allocation7 [shape = 's32[1]{0}', space=sflag, size = 0x4, scoped, tag = 'scoped memory for tpu_custom_call.1']
    #allocation8 [shape = 'u8[294912]{0}', space=vmem, size = 0x48000, scoped, tag = 'input window, operand 3, single buffered']
    #allocation9 [shape = 'u8[221184]{0}', space=vmem, size = 0x36000, scoped, tag = 'output window, operand 0']
    %10 = vsyncpa [#allocation4], 0
    %s11 = scalar_lea.sflag [#allocation4], 1
    %12 = vsyncpa %s11, 0
    %13 = vsyncpa [#allocation7], 0
    %14 = vsyncpa [#allocation5], 0
    %s15 = scalar_lea.sflag [#allocation5], 1
    %16 = vsyncpa %s15, 0
    loop: start=0, step=1, limit=4
    $region2: #{tpu_custom_call.1} parent=1 // loop_pre_header
      _
    $region3: #{tpu_custom_call.1} parent=1 // loop_header
      %s18 = sphi 0, %s22
      %p19 = scmp.ge.s32.totalorder %s18, 4
      %s28 = sphi 0, %s30
      %s31 = sphi 0, %s28
      %s32 = sphi 0, %s31
      %s48 = sphi 0, %s32
      %s52 = sphi 0, %s52
      %s54 = sphi 0, %s52
      %s55 = sphi 0, %s54
      %s69 = sphi 0, %s55
      %s73 = sphi 0, %s73
      %s75 = sphi 0, %s73
      %s76 = sphi 0, %s75
      %s90 = sphi 0, %s76
      %s94 = sphi 0, %s94
      %s96 = sphi 0, %s94
      %s97 = sphi 0, %s96
      %s111 = sphi 0, %s97
      %s115 = sphi 0, %s115
      %s117 = sphi 0, %s115
      %s118 = sphi 0, %s117
      %s132 = sphi 0, %s118
      %s138 = sphi 0, %s140
      %s141 = sphi 0, %s138
      %s142 = sphi 0, %s141
      %s158 = sphi 0, %s142
    $region4: #{tpu_custom_call.1} parent=1 // loop_header_branch
      %21 = sbr.rel (%p19) target = $region8
    $region5: #{tpu_custom_call.1} parent=1 // loop_body
      %s23 = ssub.s32 %s18, 1
      %s24 = ssub.s32 %s18, 2
      %s25 = sadd.s32 %s18, 1
      %s26 = ssub.s32 %s18, %s25
      %p27 = scmp.eq.s32.totalorder %s26, 0
      %s29 = sadd.s32 %s28, 1
      %s30 = scalar_select %p27, %s28, %s29
      %p33 = pneg %p27
      %p34 = scmp.eq.s32.totalorder %s18, 1
      %p35 = por %p33, %p34
      %p36 = scmp.ne.s32.totalorder %s28, %s31
      %p37 = scmp.eq.s32.totalorder %s18, 0
      %p38 = por %p36, %p37
      %p39 = scmp.ne.s32.totalorder %s28, %s31
      %p40 = scmp.eq.s32.totalorder %s23, 1
      %p41 = por %p39, %p40
      %p42 = scmp.ne.s32.totalorder %s31, %s32
      %p43 = scmp.eq.s32.totalorder %s23, 0
      %p44 = por %p42, %p43
      %p45 = scmp.ne.s32.totalorder %s31, %s32
      %p46 = scmp.eq.s32.totalorder %s24, 1
      %p47 = por %p45, %p46
      %p49 = scmp.ne.s32.totalorder %s32, %s48
      %p50 = scmp.eq.s32.totalorder %s24, 0
      %p51 = por %p49, %p50
      %s53 = sadd.s32 %s52, 1
      %p56 = scmp.eq.s32.totalorder %s18, 1
      %p57 = scmp.ne.s32.totalorder %s52, %s54
      %p58 = scmp.eq.s32.totalorder %s18, 0
      %p59 = por %p57, %p58
      %p60 = scmp.ne.s32.totalorder %s52, %s54
      %p61 = scmp.eq.s32.totalorder %s23, 1
      %p62 = por %p60, %p61
      %p63 = scmp.ne.s32.totalorder %s54, %s55
      %p64 = scmp.eq.s32.totalorder %s23, 0
      %p65 = por %p63, %p64
      %p66 = scmp.ne.s32.totalorder %s54, %s55
      %p67 = scmp.eq.s32.totalorder %s24, 1
      %p68 = por %p66, %p67
      %p70 = scmp.ne.s32.totalorder %s55, %s69
      %p71 = scmp.eq.s32.totalorder %s24, 0
      %p72 = por %p70, %p71
      %s74 = sadd.s32 %s73, 1
      %p77 = scmp.eq.s32.totalorder %s18, 1
      %p78 = scmp.ne.s32.totalorder %s73, %s75
      %p79 = scmp.eq.s32.totalorder %s18, 0
      %p80 = por %p78, %p79
      %p81 = scmp.ne.s32.totalorder %s73, %s75
      %p82 = scmp.eq.s32.totalorder %s23, 1
      %p83 = por %p81, %p82
      %p84 = scmp.ne.s32.totalorder %s75, %s76
      %p85 = scmp.eq.s32.totalorder %s23, 0
      %p86 = por %p84, %p85
      %p87 = scmp.ne.s32.totalorder %s75, %s76
      %p88 = scmp.eq.s32.totalorder %s24, 1
      %p89 = por %p87, %p88
      %p91 = scmp.ne.s32.totalorder %s76, %s90
      %p92 = scmp.eq.s32.totalorder %s24, 0
      %p93 = por %p91, %p92
      %s95 = sadd.s32 %s94, 1
      %p98 = scmp.eq.s32.totalorder %s18, 1
      %p99 = scmp.ne.s32.totalorder %s94, %s96
      %p100 = scmp.eq.s32.totalorder %s18, 0
      %p101 = por %p99, %p100
      %p102 = scmp.ne.s32.totalorder %s94, %s96
      %p103 = scmp.eq.s32.totalorder %s23, 1
      %p104 = por %p102, %p103
      %p105 = scmp.ne.s32.totalorder %s96, %s97
      %p106 = scmp.eq.s32.totalorder %s23, 0
      %p107 = por %p105, %p106
      %p108 = scmp.ne.s32.totalorder %s96, %s97
      %p109 = scmp.eq.s32.totalorder %s24, 1
      %p110 = por %p108, %p109
      %p112 = scmp.ne.s32.totalorder %s97, %s111
      %p113 = scmp.eq.s32.totalorder %s24, 0
      %p114 = por %p112, %p113
      %s116 = sadd.s32 %s115, 1
      %p119 = scmp.eq.s32.totalorder %s18, 1
      %p120 = scmp.ne.s32.totalorder %s115, %s117
      %p121 = scmp.eq.s32.totalorder %s18, 0
      %p122 = por %p120, %p121
      %p123 = scmp.ne.s32.totalorder %s115, %s117
      %p124 = scmp.eq.s32.totalorder %s23, 1
      %p125 = por %p123, %p124
      %p126 = scmp.ne.s32.totalorder %s117, %s118
      %p127 = scmp.eq.s32.totalorder %s23, 0
      %p128 = por %p126, %p127
      %p129 = scmp.ne.s32.totalorder %s117, %s118
      %p130 = scmp.eq.s32.totalorder %s24, 1
      %p131 = por %p129, %p130
      %p133 = scmp.ne.s32.totalorder %s118, %s132
      %p134 = scmp.eq.s32.totalorder %s24, 0
      %p135 = por %p133, %p134
      %s136 = ssub.s32 %s18, %s25
      %p137 = scmp.eq.s32.totalorder %s136, 0
      %s139 = sadd.s32 %s138, 1
      %s140 = scalar_select %p137, %s138, %s139
      %p143 = pneg %p137
      %p144 = scmp.eq.s32.totalorder %s18, 1
      %p145 = por %p143, %p144
      %p146 = scmp.ne.s32.totalorder %s138, %s141
      %p147 = scmp.eq.s32.totalorder %s18, 0
      %p148 = por %p146, %p147
      %p149 = scmp.ne.s32.totalorder %s138, %s141
      %p150 = scmp.eq.s32.totalorder %s23, 1
      %p151 = por %p149, %p150
      %p152 = scmp.ne.s32.totalorder %s141, %s142
      %p153 = scmp.eq.s32.totalorder %s23, 0
      %p154 = por %p152, %p153
      %p155 = scmp.ne.s32.totalorder %s141, %s142
      %p156 = scmp.eq.s32.totalorder %s24, 1
      %p157 = por %p155, %p156
      %p159 = scmp.ne.s32.totalorder %s142, %s158
      %p160 = scmp.eq.s32.totalorder %s24, 0
      %p161 = por %p159, %p160
      %p162 = scmp.le.s32.totalorder 1, %s18
      %p163 = scmp.lt.s32.totalorder %s18, 3
      %p164 = pnand %p162, %p163
      %p165 = pneg %p164
      // Predicated region
      $region9: #{tpu_custom_call.1} parent=5 // pred_check
        _
      $region10: #{tpu_custom_call.1} parent=5 // pred_check_branch
        %167 = sbr.rel (%p164) target = $region12
      $region11: #{tpu_custom_call.1} parent=5 // pred_region
        %s168 = ssub.s32 %s18, 1
        // Predicated region
        $region13: #{tpu_custom_call.1} parent=11 // pred_check
          %p169 = pneg %p65
        $region14: #{tpu_custom_call.1} parent=11 // pred_check_branch
          %171 = sbr.rel (%p169) target = $region16
        $region15: #{tpu_custom_call.1} parent=11 // pred_region
          %s173 = ssub.s32 1024, 1024
          %174 = vsyncadd [#allocation7], %s173
          %s175 = sshll.u32 [#allocation6], 4
          %s176 = int_to_ptr.vmem [resolvable:$true] %s175
          %181 = dma.hbm_to_vmem [thread:$0]  %s1, 1024, %s176, [#allocation7], 64, 64, 4
        $region16: #{tpu_custom_call.1} parent=11 // pred_fallthru
          _
        // Predicated region
        $region17: #{tpu_custom_call.1} parent=11 // pred_check
          %p182 = pneg %p86
        $region18: #{tpu_custom_call.1} parent=11 // pred_check_branch
          %184 = sbr.rel (%p182) target = $region20
        $region19: #{tpu_custom_call.1} parent=11 // pred_region
          _
        $region20: #{tpu_custom_call.1} parent=11 // pred_fallthru
          _
        // Predicated region
        $region21: #{tpu_custom_call.1} parent=11 // pred_check
          %p185 = pneg %p107
        $region22: #{tpu_custom_call.1} parent=11 // pred_check_branch
          %187 = sbr.rel (%p185) target = $region24
        $region23: #{tpu_custom_call.1} parent=11 // pred_region
          %s189 = ssub.s32 9216, 9216
          %190 = vsyncadd [#allocation7], %s189
          %s191 = sshll.u32 [#allocation8], 4
          %s192 = int_to_ptr.vmem [resolvable:$true] %s191
          %197 = dma.hbm_to_vmem [thread:$0]  %s3, 9216, %s192, [#allocation7], 64, 64, 4
        $region24: #{tpu_custom_call.1} parent=11 // pred_fallthru
          _
        // Predicated region
        $region25: #{tpu_custom_call.1} parent=11 // pred_check
          %p198 = pneg %p128
        $region26: #{tpu_custom_call.1} parent=11 // pred_check_branch
          %200 = sbr.rel (%p198) target = $region28
        $region27: #{tpu_custom_call.1} parent=11 // pred_region
          _
        $region28: #{tpu_custom_call.1} parent=11 // pred_fallthru
          _
      $region12: #{tpu_custom_call.1} parent=5 // pred_fallthru
        _
      %p201 = scmp.lt.s32.totalorder %s18, 2
      // Predicated region
      $region29: #{tpu_custom_call.1} parent=5 // pred_check
        %p202 = pneg %p201
      $region30: #{tpu_custom_call.1} parent=5 // pred_check_branch
        %204 = sbr.rel (%p202) target = $region32
      $region31: #{tpu_custom_call.1} parent=5 // pred_region
        // Predicated region
        $region33: #{tpu_custom_call.1} parent=31 // pred_check
          %p205 = pneg %p38
        $region34: #{tpu_custom_call.1} parent=31 // pred_check_branch
          %207 = sbr.rel (%p205) target = $region36
        $region35: #{tpu_custom_call.1} parent=31 // pred_region
          %s208 = sand.u32 %s28, 1
          %s209 = scalar_lea.sflag [#allocation4], %s208
          %s210 = sand.u32 %s28, 1
          %s211 = smul.addr %s210, 216
          %s212 = scalar_lea.vmem [#allocation3], %s211
          %s214 = ssub.s32 3456, 3456
          %215 = vsyncadd %s209, %s214
          %s216 = smul.addr %s18, 54
          %s217 = smul.addr %s216, 64
          %s218 = scalar_lea.hbm %s0, %s217
          %s219 = sshll.u32 %s212, 4
          %s220 = int_to_ptr.vmem [resolvable:$true] %s219
          %225 = dma.hbm_to_vmem [thread:$0]  %s218, 3456, %s220, %s209, 64, 64, 4
        $region36: #{tpu_custom_call.1} parent=31 // pred_fallthru
          _
      $region32: #{tpu_custom_call.1} parent=5 // pred_fallthru
        _
      %p226 = scmp.le.s32.totalorder 1, %s18
      %p227 = scmp.lt.s32.totalorder %s18, 3
      %p228 = pnand %p226, %p227
      %p229 = pneg %p228
      // Predicated region
      $region37: #{tpu_custom_call.1} parent=5 // pred_check
        _
      $region38: #{tpu_custom_call.1} parent=5 // pred_check_branch
        %231 = sbr.rel (%p228) target = $region40
      $region39: #{tpu_custom_call.1} parent=5 // pred_region
        %s232 = ssub.s32 %s18, 1
        %s233 = sand.u32 %s31, 1
        %s234 = scalar_lea.sflag [#allocation4], %s233
        %s235 = sand.u32 %s31, 1
        %s236 = smul.addr %s235, 216
        %s237 = scalar_lea.vmem [#allocation3], %s236
        // Predicated region
        $region41: #{tpu_custom_call.1} parent=39 // pred_check
          %p238 = pneg %p44
        $region42: #{tpu_custom_call.1} parent=39 // pred_check_branch
          %240 = sbr.rel (%p238) target = $region44
        $region43: #{tpu_custom_call.1} parent=39 // pred_region
          %241 = dma.done %s234, 3456
        $region44: #{tpu_custom_call.1} parent=39 // pred_fallthru
          _
        // Predicated region
        $region45: #{tpu_custom_call.1} parent=39 // pred_check
          %p242 = pneg %p65
        $region46: #{tpu_custom_call.1} parent=39 // pred_check_branch
          %244 = sbr.rel (%p242) target = $region48
        $region47: #{tpu_custom_call.1} parent=39 // pred_region
          %245 = dma.done [#allocation7], 1024
        $region48: #{tpu_custom_call.1} parent=39 // pred_fallthru
          _
        // Predicated region
        $region49: #{tpu_custom_call.1} parent=39 // pred_check
          %p246 = pneg %p107
        $region50: #{tpu_custom_call.1} parent=39 // pred_check_branch
          %248 = sbr.rel (%p246) target = $region52
        $region51: #{tpu_custom_call.1} parent=39 // pred_region
          %249 = dma.done [#allocation7], 9216
        $region52: #{tpu_custom_call.1} parent=39 // pred_fallthru
          _
        %s250 = sand.u32 %s31, 1
        %s251 = scalar_lea.sflag [#allocation4], %s250
        %s252 = sand.u32 %s31, 1
        %s253 = smul.addr %s252, 216
        %s254 = scalar_lea.vmem [#allocation3], %s253
        %p255 = pneg %p44
        %p256 = pneg %p41
        %p257 = pneg %p65
        %p258 = pneg %p62
        %p259 = pneg %p86
        %p260 = pneg %p83
        %p261 = pneg %p107
        %p262 = pneg %p104
        %p263 = pneg %p128
        %p264 = pneg %p125
        %p265 = pneg %p154
        %p266 = pneg %p151
        %s267 = sand.u32 %s141, 1
        %s268 = scalar_lea.sflag [#allocation5], %s267
        %s269 = sand.u32 %s141, 1
        %s270 = smul.addr %s269, 216
        %s271 = scalar_lea.vmem [#allocation9], %s270
        %v273 = vld [vmem:[%s237] sm:$0xf]
        %v274 = vld [vmem:[%s237 + $0x4] sm:$0xf]
        %v275 = vld [vmem:[%s237 + $0x8] sm:$0xf]
        %v276 = vld [vmem:[%s237 + $0xc] sm:$0xf]
        %v277 = vld [vmem:[%s237 + $0x10] sm:$0xf]
        %v278 = vld [vmem:[%s237 + $0x14] sm:$0xf]
        %v279 = vld [vmem:[%s237 + $0x18] sm:$0xf]
        %v280 = vld [vmem:[%s237 + $0x1c] sm:$0xf]
        %v281 = vld [vmem:[%s237 + $0x20] sm:$0xf]
        %v282 = vld [vmem:[%s237 + $0x24] sm:$0xf]
        %v283 = vld [vmem:[%s237 + $0x28] sm:$0xf]
        %v284 = vld [vmem:[%s237 + $0x2c] sm:$0xf]
        %v285 = vld [vmem:[%s237 + $0x30] sm:$0xf]
        %v286 = vld [vmem:[%s237 + $0x34] sm:$0xf]
        %v287 = vld [vmem:[%s237 + $0x38] sm:$0xf]
        %v288 = vld [vmem:[%s237 + $0x3c] sm:$0xf]
        %v289 = vld [vmem:[%s237 + $0x40] sm:$0xf]
        %v290 = vld [vmem:[%s237 + $0x44] sm:$0xf]
        %v291 = vld [vmem:[%s237 + $0x48] sm:$0xf]
        %v292 = vld [vmem:[%s237 + $0x4c] sm:$0xf]
        %v293 = vld [vmem:[%s237 + $0x50] sm:$0xf]
        %v294 = vld [vmem:[%s237 + $0x54] sm:$0xf]
        %v295 = vld [vmem:[%s237 + $0x58] sm:$0xf]
        %v296 = vld [vmem:[%s237 + $0x5c] sm:$0xf]
        %v297 = vld [vmem:[%s237 + $0x60] sm:$0xf]
        %v298 = vld [vmem:[%s237 + $0x64] sm:$0xf]
        %v299 = vld [vmem:[%s237 + $0x68] sm:$0xf]
        %v300 = vld [vmem:[%s237 + $0x6c] sm:$0xf]
        %v301 = vld [vmem:[%s237 + $0x70] sm:$0xf]
        %v302 = vld [vmem:[%s237 + $0x74] sm:$0xf]
        %v303 = vld [vmem:[%s237 + $0x78] sm:$0xf]
        %v304 = vld [vmem:[%s237 + $0x7c] sm:$0xf]
        %v305 = vld [vmem:[%s237 + $0x80] sm:$0xf]
        %v306 = vld [vmem:[%s237 + $0x84] sm:$0xf]
        %v307 = vld [vmem:[%s237 + $0x88] sm:$0xf]
        %v308 = vld [vmem:[%s237 + $0x8c] sm:$0xf]
        %v309 = vld [vmem:[%s237 + $0x90] sm:$0xf]
        %v310 = vld [vmem:[%s237 + $0x94] sm:$0xf]
        %v311 = vld [vmem:[%s237 + $0x98] sm:$0xf]
        %v312 = vld [vmem:[%s237 + $0x9c] sm:$0xf]
        %v313 = vld [vmem:[%s237 + $0xa0] sm:$0xf]
        %v314 = vld [vmem:[%s237 + $0xa4] sm:$0xf]
        %v315 = vld [vmem:[%s237 + $0xa8] sm:$0xf]
        %v316 = vld [vmem:[%s237 + $0xac] sm:$0xf]
        %v317 = vld [vmem:[%s237 + $0xb0] sm:$0xf]
        %v318 = vld [vmem:[%s237 + $0xb4] sm:$0xf]
        %v319 = vld [vmem:[%s237 + $0xb8] sm:$0xf]
        %v320 = vld [vmem:[%s237 + $0xbc] sm:$0xf]
        %v321 = vld [vmem:[%s237 + $0xc0] sm:$0xf]
        %v322 = vld [vmem:[%s237 + $0xc4] sm:$0xf]
        %v323 = vld [vmem:[%s237 + $0xc8] sm:$0xf]
        %v324 = vld [vmem:[%s237 + $0xcc] sm:$0xf]
        %v325 = vld [vmem:[%s237 + $0xd0] sm:$0xf]
        %v326 = vld [vmem:[%s237 + $0xd4] sm:$0xf]
        %v327 = vld [vmem:[#allocation6] sm:$0xf]
        %v328 = vld [vmem:[#allocation6 + $0x4] sm:$0xf]
        %v329 = vld [vmem:[#allocation6 + $0x8] sm:$0xf]
        %v330 = vld [vmem:[#allocation6 + $0xc] sm:$0xf]
        %v331 = vld [vmem:[#allocation6 + $0x10] sm:$0xf]
        %v332 = vld [vmem:[#allocation6 + $0x14] sm:$0xf]
        %v333 = vld [vmem:[#allocation6 + $0x18] sm:$0xf]
        %v334 = vld [vmem:[#allocation6 + $0x1c] sm:$0xf]
        %v335 = vld [vmem:[#allocation6 + $0x20] sm:$0xf]
        %v336 = vld [vmem:[#allocation6 + $0x24] sm:$0xf]
        %v337 = vld [vmem:[#allocation6 + $0x28] sm:$0xf]
        %v338 = vld [vmem:[#allocation6 + $0x2c] sm:$0xf]
        %v339 = vld [vmem:[#allocation6 + $0x30] sm:$0xf]
        %v340 = vld [vmem:[#allocation6 + $0x34] sm:$0xf]
        %v341 = vld [vmem:[#allocation6 + $0x38] sm:$0xf]
        %v342 = vld [vmem:[#allocation6 + $0x3c] sm:$0xf]
        %v343 = vld [vmem:[%s2] sm:$0x1]
        %v345 = vlaneseq
        %v346 = vshrl.u32 %v345, 7
        %v347 = vsub.s32 0, %v346
        %v348 = vrot.slane %v343, %v347
        %v404 = vunpack.c.l.b16 %v273
        %v405 = vunpack.c.l.b16 %v274
        %v406 = vunpack.c.l.b16 %v275
        %v407 = vunpack.c.l.b16 %v276
        %v408 = vunpack.c.l.b16 %v277
        %v409 = vunpack.c.l.b16 %v278
        %v410 = vunpack.c.l.b16 %v279
        %v411 = vunpack.c.l.b16 %v280
        %v412 = vunpack.c.l.b16 %v281
        %v413 = vunpack.c.l.b16 %v282
        %v414 = vunpack.c.l.b16 %v283
        %v415 = vunpack.c.l.b16 %v284
        %v416 = vunpack.c.l.b16 %v285
        %v417 = vunpack.c.l.b16 %v286
        %v418 = vunpack.c.l.b16 %v287
        %v419 = vunpack.c.l.b16 %v288
        %v420 = vunpack.c.l.b16 %v289
        %v421 = vunpack.c.l.b16 %v290
        %v422 = vunpack.c.l.b16 %v291
        %v423 = vunpack.c.l.b16 %v292
        %v424 = vunpack.c.l.b16 %v293
        %v425 = vunpack.c.l.b16 %v294
        %v426 = vunpack.c.l.b16 %v295
        %v427 = vunpack.c.l.b16 %v296
        %v428 = vunpack.c.l.b16 %v297
        %v429 = vunpack.c.l.b16 %v298
        %v430 = vunpack.c.l.b16 %v299
        %v431 = vunpack.c.l.b16 %v300
        %v432 = vunpack.c.l.b16 %v301
        %v433 = vunpack.c.l.b16 %v302
        %v434 = vunpack.c.l.b16 %v303
        %v435 = vunpack.c.l.b16 %v304
        %v436 = vunpack.c.l.b16 %v305
        %v437 = vunpack.c.l.b16 %v306
        %v438 = vunpack.c.l.b16 %v307
        %v439 = vunpack.c.l.b16 %v308
        %v440 = vunpack.c.l.b16 %v309
        %v441 = vunpack.c.l.b16 %v310
        %v442 = vunpack.c.l.b16 %v311
        %v443 = vunpack.c.l.b16 %v312
        %v444 = vunpack.c.l.b16 %v313
        %v445 = vunpack.c.l.b16 %v314
        %v446 = vunpack.c.l.b16 %v315
        %v447 = vunpack.c.l.b16 %v316
        %v448 = vunpack.c.l.b16 %v317
        %v449 = vunpack.c.l.b16 %v318
        %v450 = vunpack.c.l.b16 %v319
        %v451 = vunpack.c.l.b16 %v320
        %v452 = vunpack.c.l.b16 %v321
        %v453 = vunpack.c.l.b16 %v322
        %v454 = vunpack.c.l.b16 %v323
        %v455 = vunpack.c.l.b16 %v324
        %v456 = vunpack.c.l.b16 %v325
        %v457 = vunpack.c.l.b16 %v326
        %v458 = vpack.c.b16 %v405, %v404
        %v459 = vpack.c.b16 %v407, %v406
        %v460 = vpack.c.b16 %v409, %v408
        %v461 = vpack.c.b16 %v411, %v410
        %v462 = vpack.c.b16 %v413, %v412
        %v463 = vpack.c.b16 %v415, %v414
        %v464 = vpack.c.b16 %v417, %v416
        %v465 = vpack.c.b16 %v419, %v418
        %v466 = vpack.c.b16 %v421, %v420
        %v467 = vpack.c.b16 %v423, %v422
        %v468 = vpack.c.b16 %v425, %v424
        %v469 = vpack.c.b16 %v427, %v426
        %v470 = vpack.c.b16 %v429, %v428
        %v471 = vpack.c.b16 %v431, %v430
        %v472 = vpack.c.b16 %v433, %v432
        %v473 = vpack.c.b16 %v435, %v434
        %v474 = vpack.c.b16 %v437, %v436
        %v475 = vpack.c.b16 %v439, %v438
        %v476 = vpack.c.b16 %v441, %v440
        %v477 = vpack.c.b16 %v443, %v442
        %v478 = vpack.c.b16 %v445, %v444
        %v479 = vpack.c.b16 %v447, %v446
        %v480 = vpack.c.b16 %v449, %v448
        %v481 = vpack.c.b16 %v451, %v450
        %v482 = vpack.c.b16 %v453, %v452
        %v483 = vpack.c.b16 %v455, %v454
        %v484 = vpack.c.b16 %v457, %v456
        %v528 = vunpack.c.l.b16 %v327
        %v529 = vunpack.c.l.b16 %v328
        %v530 = vunpack.c.l.b16 %v329
        %v531 = vunpack.c.l.b16 %v330
        %v532 = vunpack.c.l.b16 %v331
        %v533 = vunpack.c.l.b16 %v332
        %v534 = vunpack.c.l.b16 %v333
        %v535 = vunpack.c.l.b16 %v334
        %v536 = vunpack.c.l.b16 %v335
        %v537 = vunpack.c.l.b16 %v336
        %v538 = vunpack.c.l.b16 %v337
        %v539 = vunpack.c.l.b16 %v338
        %v540 = vunpack.c.l.b16 %v339
        %v541 = vunpack.c.l.b16 %v340
        %v542 = vunpack.c.l.b16 %v341
        %v543 = vunpack.c.l.b16 %v342
        %v544 = vpack.c.b16 %v529, %v528
        %v545 = vpack.c.b16 %v531, %v530
        %v546 = vpack.c.b16 %v533, %v532
        %v547 = vpack.c.b16 %v535, %v534
        %v548 = vpack.c.b16 %v537, %v536
        %v549 = vpack.c.b16 %v539, %v538
        %v550 = vpack.c.b16 %v541, %v540
        %v551 = vpack.c.b16 %v543, %v542
        %560 = vmatprep.subr.bf16.mxu0 0
        %561 = vmatpush1.bf16.msra.mxu0 %v544
        %562 = vmatprep.subr.bf16.mxu0 0
        %563 = vmatpush1.bf16.msra.mxu0 %v545
        %564 = vmatprep.subr.bf16.mxu0 0
        %565 = vmatpush1.bf16.msra.mxu0 %v546
        %566 = vmatprep.subr.bf16.mxu0 0
        %567 = vmatpush1.bf16.msra.mxu0 %v547
        %568 = vmatprep.subr.bf16.mxu0 0
        %569 = vmatpush1.bf16.msra.mxu0 %v548
        %570 = vmatprep.subr.bf16.mxu0 0
        %571 = vmatpush1.bf16.msra.mxu0 %v549
        %572 = vmatprep.subr.bf16.mxu0 0
        %573 = vmatpush1.bf16.msra.mxu0 %v550
        %574 = vmatprep.subr.bf16.mxu0 0
        %575 = vmatpush1.bf16.msra.mxu0 %v551
        %576 = vmatprep.subr.bf16.mxu0 0
        %577 = vmatpush1.bf16.msra.mxu0 0
        %578 = vmatprep.subr.bf16.mxu0 0
        %579 = vmatpush1.bf16.msra.mxu0 0
        %580 = vmatprep.subr.bf16.mxu0 0
        %581 = vmatpush1.bf16.msra.mxu0 0
        %582 = vmatprep.subr.bf16.mxu0 0
        %583 = vmatpush1.bf16.msra.mxu0 0
        %584 = vmatprep.subr.bf16.mxu0 0
        %585 = vmatpush1.bf16.msra.mxu0 0
        %586 = vmatprep.subr.bf16.mxu0 0
        %587 = vmatpush1.bf16.msra.mxu0 0
        %588 = vmatprep.subr.bf16.mxu0 0
        %589 = vmatpush1.bf16.msra.mxu0 0
        %590 = vmatprep.subr.bf16.mxu0 0
        %591 = vmatpush1.bf16.msra.mxu0 0
        %592 = vmatprep.mubr.bf16.mxu0 0
        %593 = vmatmul.mubr.bf16.gmra.mrb[0].mxu0 %v458
        %v594 = vpop.f32.mrb[0].mxu0
        %v595 = vadd.f32 %v348, %v594
        %v596 = vpop.f32.mrb[0].mxu0
        %v597 = vpop.f32.mrb[0].mxu0
        %v598 = vadd.f32 %v348, %v597
        %v599 = vpop.f32.mrb[0].mxu0
        %600 = vmatprep.mubr.bf16.mxu0 0
        %601 = vmatmul.mubr.bf16.gmra.mrb[0].mxu0 %v459
        %v602 = vpop.f32.mrb[0].mxu0
        %v603 = vadd.f32 %v348, %v602
        %v604 = vpop.f32.mrb[0].mxu0
        %v605 = vpop.f32.mrb[0].mxu0
        %v606 = vadd.f32 %v348, %v605
        %v607 = vpop.f32.mrb[0].mxu0
        %608 = vmatprep.mubr.bf16.mxu0 0
        %609 = vmatmul.mubr.bf16.gmra.mrb[0].mxu0 %v460
        %v610 = vpop.f32.mrb[0].mxu0
        %v611 = vadd.f32 %v348, %v610
        %v612 = vpop.f32.mrb[0].mxu0
        %v613 = vpop.f32.mrb[0].mxu0
        %v614 = vadd.f32 %v348, %v613
        %v615 = vpop.f32.mrb[0].mxu0
        %616 = vmatprep.mubr.bf16.mxu0 0
        %617 = vmatmul.mubr.bf16.gmra.mrb[0].mxu0 %v461
        %v618 = vpop.f32.mrb[0].mxu0
        %v619 = vadd.f32 %v348, %v618
        %v620 = vpop.f32.mrb[0].mxu0
        %v621 = vpop.f32.mrb[0].mxu0
        %v622 = vadd.f32 %v348, %v621
        %v623 = vpop.f32.mrb[0].mxu0
        %624 = vmatprep.mubr.bf16.mxu0 0
        %625 = vmatmul.mubr.bf16.gmra.mrb[0].mxu0 %v462
        %v626 = vpop.f32.mrb[0].mxu0
        %v627 = vadd.f32 %v348, %v626
        %v628 = vpop.f32.mrb[0].mxu0
        %v629 = vpop.f32.mrb[0].mxu0
        %v630 = vadd.f32 %v348, %v629
        %v631 = vpop.f32.mrb[0].mxu0
        %632 = vmatprep.mubr.bf16.mxu0 0
        %633 = vmatmul.mubr.bf16.gmra.mrb[0].mxu0 %v463
        %v634 = vpop.f32.mrb[0].mxu0
        %v635 = vadd.f32 %v348, %v634
        %v636 = vpop.f32.mrb[0].mxu0
        %v637 = vpop.f32.mrb[0].mxu0
        %v638 = vadd.f32 %v348, %v637
        %v639 = vpop.f32.mrb[0].mxu0
        %640 = vmatprep.mubr.bf16.mxu0 0
        %641 = vmatmul.mubr.bf16.gmra.mrb[0].mxu0 %v464
        %v642 = vpop.f32.mrb[0].mxu0
        %v643 = vadd.f32 %v348, %v642
        %v644 = vpop.f32.mrb[0].mxu0
        %v645 = vpop.f32.mrb[0].mxu0
        %v646 = vadd.f32 %v348, %v645
        %v647 = vpop.f32.mrb[0].mxu0
        %648 = vmatprep.mubr.bf16.mxu0 0
        %649 = vmatmul.mubr.bf16.gmra.mrb[0].mxu0 %v465
        %v650 = vpop.f32.mrb[0].mxu0
        %v651 = vadd.f32 %v348, %v650
        %v652 = vpop.f32.mrb[0].mxu0
        %v653 = vpop.f32.mrb[0].mxu0
        %v654 = vadd.f32 %v348, %v653
        %v655 = vpop.f32.mrb[0].mxu0
        %656 = vmatprep.mubr.bf16.mxu0 0
        %657 = vmatmul.mubr.bf16.gmra.mrb[0].mxu0 %v466
        %v658 = vpop.f32.mrb[0].mxu0
        %v659 = vadd.f32 %v348, %v658
        %v660 = vpop.f32.mrb[0].mxu0
        %v661 = vpop.f32.mrb[0].mxu0
        %v662 = vadd.f32 %v348, %v661
        %v663 = vpop.f32.mrb[0].mxu0
        %664 = vmatprep.mubr.bf16.mxu0 0
        %665 = vmatmul.mubr.bf16.gmra.mrb[0].mxu0 %v467
        %v666 = vpop.f32.mrb[0].mxu0
        %v667 = vadd.f32 %v348, %v666
        %v668 = vpop.f32.mrb[0].mxu0
        %v669 = vpop.f32.mrb[0].mxu0
        %v670 = vadd.f32 %v348, %v669
        %v671 = vpop.f32.mrb[0].mxu0
        %672 = vmatprep.mubr.bf16.mxu0 0
        %673 = vmatmul.mubr.bf16.gmra.mrb[0].mxu0 %v468
        %v674 = vpop.f32.mrb[0].mxu0
        %v675 = vadd.f32 %v348, %v674
        %v676 = vpop.f32.mrb[0].mxu0
        %v677 = vpop.f32.mrb[0].mxu0
        %v678 = vadd.f32 %v348, %v677
        %v679 = vpop.f32.mrb[0].mxu0
        %680 = vmatprep.mubr.bf16.mxu0 0
        %681 = vmatmul.mubr.bf16.gmra.mrb[0].mxu0 %v469
        %v682 = vpop.f32.mrb[0].mxu0
        %v683 = vadd.f32 %v348, %v682
        %v684 = vpop.f32.mrb[0].mxu0
        %v685 = vpop.f32.mrb[0].mxu0
        %v686 = vadd.f32 %v348, %v685
        %v687 = vpop.f32.mrb[0].mxu0
        %688 = vmatprep.mubr.bf16.mxu0 0
        %689 = vmatmul.mubr.bf16.gmra.mrb[0].mxu0 %v470
        %v690 = vpop.f32.mrb[0].mxu0
        %v691 = vadd.f32 %v348, %v690
        %v692 = vpop.f32.mrb[0].mxu0
        %v693 = vpop.f32.mrb[0].mxu0
        %v694 = vadd.f32 %v348, %v693
        %v695 = vpop.f32.mrb[0].mxu0
        %696 = vmatprep.mubr.bf16.mxu0 0
        %697 = vmatmul.mubr.bf16.gmra.mrb[0].mxu0 %v471
        %v698 = vpop.f32.mrb[0].mxu0
        %v699 = vadd.f32 %v348, %v698
        %v700 = vpop.f32.mrb[0].mxu0
        %v701 = vpop.f32.mrb[0].mxu0
        %v702 = vadd.f32 %v348, %v701
        %v703 = vpop.f32.mrb[0].mxu0
        %704 = vmatprep.mubr.bf16.mxu0 0
        %705 = vmatmul.mubr.bf16.gmra.mrb[0].mxu0 %v472
        %v706 = vpop.f32.mrb[0].mxu0
        %v707 = vadd.f32 %v348, %v706
        %v708 = vpop.f32.mrb[0].mxu0
        %v709 = vpop.f32.mrb[0].mxu0
        %v710 = vadd.f32 %v348, %v709
        %v711 = vpop.f32.mrb[0].mxu0
        %712 = vmatprep.mubr.bf16.mxu0 0
        %713 = vmatmul.mubr.bf16.gmra.mrb[0].mxu0 %v473
        %v714 = vpop.f32.mrb[0].mxu0
        %v715 = vadd.f32 %v348, %v714
        %v716 = vpop.f32.mrb[0].mxu0
        %v717 = vpop.f32.mrb[0].mxu0
        %v718 = vadd.f32 %v348, %v717
        %v719 = vpop.f32.mrb[0].mxu0
        %720 = vmatprep.mubr.bf16.mxu0 0
        %721 = vmatmul.mubr.bf16.gmra.mrb[0].mxu0 %v474
        %v722 = vpop.f32.mrb[0].mxu0
        %v723 = vadd.f32 %v348, %v722
        %v724 = vpop.f32.mrb[0].mxu0
        %v725 = vpop.f32.mrb[0].mxu0
        %v726 = vadd.f32 %v348, %v725
        %v727 = vpop.f32.mrb[0].mxu0
        %728 = vmatprep.mubr.bf16.mxu0 0
        %729 = vmatmul.mubr.bf16.gmra.mrb[0].mxu0 %v475
        %v730 = vpop.f32.mrb[0].mxu0
        %v731 = vadd.f32 %v348, %v730
        %v732 = vpop.f32.mrb[0].mxu0
        %v733 = vpop.f32.mrb[0].mxu0
        %v734 = vadd.f32 %v348, %v733
        %v735 = vpop.f32.mrb[0].mxu0
        %736 = vmatprep.mubr.bf16.mxu0 0
        %737 = vmatmul.mubr.bf16.gmra.mrb[0].mxu0 %v476
        %v738 = vpop.f32.mrb[0].mxu0
        %v739 = vadd.f32 %v348, %v738
        %v740 = vpop.f32.mrb[0].mxu0
        %v741 = vpop.f32.mrb[0].mxu0
        %v742 = vadd.f32 %v348, %v741
        %v743 = vpop.f32.mrb[0].mxu0
        %744 = vmatprep.mubr.bf16.mxu0 0
        %745 = vmatmul.mubr.bf16.gmra.mrb[0].mxu0 %v477
        %v746 = vpop.f32.mrb[0].mxu0
        %v747 = vadd.f32 %v348, %v746
        %v748 = vpop.f32.mrb[0].mxu0
        %v749 = vpop.f32.mrb[0].mxu0
        %v750 = vadd.f32 %v348, %v749
        %v751 = vpop.f32.mrb[0].mxu0
        %752 = vmatprep.mubr.bf16.mxu0 0
        %753 = vmatmul.mubr.bf16.gmra.mrb[0].mxu0 %v478
        %v754 = vpop.f32.mrb[0].mxu0
        %v755 = vadd.f32 %v348, %v754
        %v756 = vpop.f32.mrb[0].mxu0
        %v757 = vpop.f32.mrb[0].mxu0
        %v758 = vadd.f32 %v348, %v757
        %v759 = vpop.f32.mrb[0].mxu0
        %760 = vmatprep.mubr.bf16.mxu0 0
        %761 = vmatmul.mubr.bf16.gmra.mrb[0].mxu0 %v479
        %v762 = vpop.f32.mrb[0].mxu0
        %v763 = vadd.f32 %v348, %v762
        %v764 = vpop.f32.mrb[0].mxu0
        %v765 = vpop.f32.mrb[0].mxu0
        %v766 = vadd.f32 %v348, %v765
        %v767 = vpop.f32.mrb[0].mxu0
        %768 = vmatprep.mubr.bf16.mxu0 0
        %769 = vmatmul.mubr.bf16.gmra.mrb[0].mxu0 %v480
        %v770 = vpop.f32.mrb[0].mxu0
        %v771 = vadd.f32 %v348, %v770
        %v772 = vpop.f32.mrb[0].mxu0
        %v773 = vpop.f32.mrb[0].mxu0
        %v774 = vadd.f32 %v348, %v773
        %v775 = vpop.f32.mrb[0].mxu0
        %776 = vmatprep.mubr.bf16.mxu0 0
        %777 = vmatmul.mubr.bf16.gmra.mrb[0].mxu0 %v481
        %v778 = vpop.f32.mrb[0].mxu0
        %v779 = vadd.f32 %v348, %v778
        %v780 = vpop.f32.mrb[0].mxu0
        %v781 = vpop.f32.mrb[0].mxu0
        %v782 = vadd.f32 %v348, %v781
        %v783 = vpop.f32.mrb[0].mxu0
        %784 = vmatprep.mubr.bf16.mxu0 0
        %785 = vmatmul.mubr.bf16.gmra.mrb[0].mxu0 %v482
        %v786 = vpop.f32.mrb[0].mxu0
        %v787 = vadd.f32 %v348, %v786
        %v788 = vpop.f32.mrb[0].mxu0
        %v789 = vpop.f32.mrb[0].mxu0
        %v790 = vadd.f32 %v348, %v789
        %v791 = vpop.f32.mrb[0].mxu0
        %792 = vmatprep.mubr.bf16.mxu0 0
        %793 = vmatmul.mubr.bf16.gmra.mrb[0].mxu0 %v483
        %v794 = vpop.f32.mrb[0].mxu0
        %v795 = vadd.f32 %v348, %v794
        %v796 = vpop.f32.mrb[0].mxu0
        %v797 = vpop.f32.mrb[0].mxu0
        %v798 = vadd.f32 %v348, %v797
        %v799 = vpop.f32.mrb[0].mxu0
        %800 = vmatprep.mubr.bf16.mxu0 0
        %801 = vmatmul.mubr.bf16.gmra.mrb[0].mxu0 %v484
        %v802 = vpop.f32.mrb[0].mxu0
        %v803 = vadd.f32 %v348, %v802
        %v804 = vpop.f32.mrb[0].mxu0
        %v805 = vpop.f32.mrb[0].mxu0
        %v806 = vadd.f32 %v348, %v805
        %v807 = vpop.f32.mrb[0].mxu0
        %808 = vdwg.mxu0
        %v809 = vmax.f32 %v595, 0.0
        %v810 = vmax.f32 %v598, 0.0
        %v811 = vmax.f32 %v603, 0.0
        %v812 = vmax.f32 %v606, 0.0
        %v813 = vmax.f32 %v611, 0.0
        %v814 = vmax.f32 %v614, 0.0
        %v815 = vmax.f32 %v619, 0.0
        %v816 = vmax.f32 %v622, 0.0
        %v817 = vmax.f32 %v627, 0.0
        %v818 = vmax.f32 %v630, 0.0
        %v819 = vmax.f32 %v635, 0.0
        %v820 = vmax.f32 %v638, 0.0
        %v821 = vmax.f32 %v643, 0.0
        %v822 = vmax.f32 %v646, 0.0
        %v823 = vmax.f32 %v651, 0.0
        %v824 = vmax.f32 %v654, 0.0
        %v825 = vmax.f32 %v659, 0.0
        %v826 = vmax.f32 %v662, 0.0
        %v827 = vmax.f32 %v667, 0.0
        %v828 = vmax.f32 %v670, 0.0
        %v829 = vmax.f32 %v675, 0.0
        %v830 = vmax.f32 %v678, 0.0
        %v831 = vmax.f32 %v683, 0.0
        %v832 = vmax.f32 %v686, 0.0
        %v833 = vmax.f32 %v691, 0.0
        %v834 = vmax.f32 %v694, 0.0
        %v835 = vmax.f32 %v699, 0.0
        %v836 = vmax.f32 %v702, 0.0
        %v837 = vmax.f32 %v707, 0.0
        %v838 = vmax.f32 %v710, 0.0
        %v839 = vmax.f32 %v715, 0.0
        %v840 = vmax.f32 %v718, 0.0
        %v841 = vmax.f32 %v723, 0.0
        %v842 = vmax.f32 %v726, 0.0
        %v843 = vmax.f32 %v731, 0.0
        %v844 = vmax.f32 %v734, 0.0
        %v845 = vmax.f32 %v739, 0.0
        %v846 = vmax.f32 %v742, 0.0
        %v847 = vmax.f32 %v747, 0.0
        %v848 = vmax.f32 %v750, 0.0
        %v849 = vmax.f32 %v755, 0.0
        %v850 = vmax.f32 %v758, 0.0
        %v851 = vmax.f32 %v763, 0.0
        %v852 = vmax.f32 %v766, 0.0
        %v853 = vmax.f32 %v771, 0.0
        %v854 = vmax.f32 %v774, 0.0
        %v855 = vmax.f32 %v779, 0.0
        %v856 = vmax.f32 %v782, 0.0
        %v857 = vmax.f32 %v787, 0.0
        %v858 = vmax.f32 %v790, 0.0
        %v859 = vmax.f32 %v795, 0.0
        %v860 = vmax.f32 %v798, 0.0
        %v861 = vmax.f32 %v803, 0.0
        %v862 = vmax.f32 %v806, 0.0
        %v863 = vlaneseq
        %v864 = vshrl.u32 %v863, 7
        %v865 = vadd.s32 %v864, 8
        %v866 = vadd.s32 %v864, 16
        %v867 = vadd.s32 %v864, 24
        %v868 = vadd.s32 %v864, 32
        %v869 = vadd.s32 %v864, 40
        %v870 = vadd.s32 %v864, 48
        %v871 = vadd.s32 %v864, 56
        %v872 = vadd.s32 %v864, 64
        %v873 = vadd.s32 %v864, 72
        %v874 = vadd.s32 %v864, 80
        %v875 = vadd.s32 %v864, 88
        %v876 = vadd.s32 %v864, 96
        %v877 = vadd.s32 %v864, 104
        %v878 = vadd.s32 %v864, 112
        %v879 = vadd.s32 %v864, 120
        %v880 = vadd.s32 %v864, 128
        %v881 = vadd.s32 %v864, 136
        %v882 = vadd.s32 %v864, 144
        %v883 = vadd.s32 %v864, 152
        %v884 = vadd.s32 %v864, 160
        %v885 = vadd.s32 %v864, 168
        %v886 = vadd.s32 %v864, 176
        %v887 = vadd.s32 %v864, 184
        %v888 = vadd.s32 %v864, 192
        %v889 = vadd.s32 %v864, 200
        %v890 = vadd.s32 %v864, 208
        %v891 = vadd.s32 %v864, 216
        %v892 = vadd.s32 %v864, 224
        %v893 = vadd.s32 %v864, 232
        %v894 = vadd.s32 %v864, 240
        %v895 = vadd.s32 %v864, 248
        %v896 = vadd.s32 %v864, 256
        %v897 = vadd.s32 %v864, 264
        %v898 = vadd.s32 %v864, 272
        %v899 = vadd.s32 %v864, 280
        %v900 = vadd.s32 %v864, 288
        %v901 = vadd.s32 %v864, 296
        %v902 = vadd.s32 %v864, 304
        %v903 = vadd.s32 %v864, 312
        %v904 = vadd.s32 %v864, 320
        %v905 = vadd.s32 %v864, 328
        %v906 = vadd.s32 %v864, 336
        %v907 = vadd.s32 %v864, 344
        %v908 = vadd.s32 %v864, 352
        %v909 = vadd.s32 %v864, 360
        %v910 = vadd.s32 %v864, 368
        %v911 = vadd.s32 %v864, 376
        %v912 = vadd.s32 %v864, 384
        %v913 = vadd.s32 %v864, 392
        %v914 = vadd.s32 %v864, 400
        %v915 = vadd.s32 %v864, 408
        %v916 = vadd.s32 %v864, 416
        %v917 = vadd.s32 %v864, 424
        %v918 = vcvt.s32.f32 %v864
        %v919 = vcvt.s32.f32 %v865
        %v920 = vcvt.s32.f32 %v866
        %v921 = vcvt.s32.f32 %v867
        %v922 = vcvt.s32.f32 %v868
        %v923 = vcvt.s32.f32 %v869
        %v924 = vcvt.s32.f32 %v870
        %v925 = vcvt.s32.f32 %v871
        %v926 = vcvt.s32.f32 %v872
        %v927 = vcvt.s32.f32 %v873
        %v928 = vcvt.s32.f32 %v874
        %v929 = vcvt.s32.f32 %v875
        %v930 = vcvt.s32.f32 %v876
        %v931 = vcvt.s32.f32 %v877
        %v932 = vcvt.s32.f32 %v878
        %v933 = vcvt.s32.f32 %v879
        %v934 = vcvt.s32.f32 %v880
        %v935 = vcvt.s32.f32 %v881
        %v936 = vcvt.s32.f32 %v882
        %v937 = vcvt.s32.f32 %v883
        %v938 = vcvt.s32.f32 %v884
        %v939 = vcvt.s32.f32 %v885
        %v940 = vcvt.s32.f32 %v886
        %v941 = vcvt.s32.f32 %v887
        %v942 = vcvt.s32.f32 %v888
        %v943 = vcvt.s32.f32 %v889
        %v944 = vcvt.s32.f32 %v890
        %v945 = vcvt.s32.f32 %v891
        %v946 = vcvt.s32.f32 %v892
        %v947 = vcvt.s32.f32 %v893
        %v948 = vcvt.s32.f32 %v894
        %v949 = vcvt.s32.f32 %v895
        %v950 = vcvt.s32.f32 %v896
        %v951 = vcvt.s32.f32 %v897
        %v952 = vcvt.s32.f32 %v898
        %v953 = vcvt.s32.f32 %v899
        %v954 = vcvt.s32.f32 %v900
        %v955 = vcvt.s32.f32 %v901
        %v956 = vcvt.s32.f32 %v902
        %v957 = vcvt.s32.f32 %v903
        %v958 = vcvt.s32.f32 %v904
        %v959 = vcvt.s32.f32 %v905
        %v960 = vcvt.s32.f32 %v906
        %v961 = vcvt.s32.f32 %v907
        %v962 = vcvt.s32.f32 %v908
        %v963 = vcvt.s32.f32 %v909
        %v964 = vcvt.s32.f32 %v910
        %v965 = vcvt.s32.f32 %v911
        %v966 = vcvt.s32.f32 %v912
        %v967 = vcvt.s32.f32 %v913
        %v968 = vcvt.s32.f32 %v914
        %v969 = vcvt.s32.f32 %v915
        %v970 = vcvt.s32.f32 %v916
        %v971 = vcvt.s32.f32 %v917
        %v972 = vadd.f32 %v918, 0.5
        %v973 = vadd.f32 %v919, 0.5
        %v974 = vadd.f32 %v920, 0.5
        %v975 = vadd.f32 %v921, 0.5
        %v976 = vadd.f32 %v922, 0.5
        %v977 = vadd.f32 %v923, 0.5
        %v978 = vadd.f32 %v924, 0.5
        %v979 = vadd.f32 %v925, 0.5
        %v980 = vadd.f32 %v926, 0.5
        %v981 = vadd.f32 %v927, 0.5
        %v982 = vadd.f32 %v928, 0.5
        %v983 = vadd.f32 %v929, 0.5
        %v984 = vadd.f32 %v930, 0.5
        %v985 = vadd.f32 %v931, 0.5
        %v986 = vadd.f32 %v932, 0.5
        %v987 = vadd.f32 %v933, 0.5
        %v988 = vadd.f32 %v934, 0.5
        %v989 = vadd.f32 %v935, 0.5
        %v990 = vadd.f32 %v936, 0.5
        %v991 = vadd.f32 %v937, 0.5
        %v992 = vadd.f32 %v938, 0.5
        %v993 = vadd.f32 %v939, 0.5
        %v994 = vadd.f32 %v940, 0.5
        %v995 = vadd.f32 %v941, 0.5
        %v996 = vadd.f32 %v942, 0.5
        %v997 = vadd.f32 %v943, 0.5
        %v998 = vadd.f32 %v944, 0.5
        %v999 = vadd.f32 %v945, 0.5
        %v1000 = vadd.f32 %v946, 0.5
        %v1001 = vadd.f32 %v947, 0.5
        %v1002 = vadd.f32 %v948, 0.5
        %v1003 = vadd.f32 %v949, 0.5
        %v1004 = vadd.f32 %v950, 0.5
        %v1005 = vadd.f32 %v951, 0.5
        %v1006 = vadd.f32 %v952, 0.5
        %v1007 = vadd.f32 %v953, 0.5
        %v1008 = vadd.f32 %v954, 0.5
        %v1009 = vadd.f32 %v955, 0.5
        %v1010 = vadd.f32 %v956, 0.5
        %v1011 = vadd.f32 %v957, 0.5
        %v1012 = vadd.f32 %v958, 0.5
        %v1013 = vadd.f32 %v959, 0.5
        %v1014 = vadd.f32 %v960, 0.5
        %v1015 = vadd.f32 %v961, 0.5
        %v1016 = vadd.f32 %v962, 0.5
        %v1017 = vadd.f32 %v963, 0.5
        %v1018 = vadd.f32 %v964, 0.5
        %v1019 = vadd.f32 %v965, 0.5
        %v1020 = vadd.f32 %v966, 0.5
        %v1021 = vadd.f32 %v967, 0.5
        %v1022 = vadd.f32 %v968, 0.5
        %v1023 = vadd.f32 %v969, 0.5
        %v1024 = vadd.f32 %v970, 0.5
        %v1025 = vadd.f32 %v971, 0.5
        %v1026 = vmul.f32 %v972, 0.041666668
        %v1027 = vmul.f32 %v973, 0.041666668
        %v1028 = vmul.f32 %v974, 0.041666668
        %v1029 = vmul.f32 %v975, 0.041666668
        %v1030 = vmul.f32 %v976, 0.041666668
        %v1031 = vmul.f32 %v977, 0.041666668
        %v1032 = vmul.f32 %v978, 0.041666668
        %v1033 = vmul.f32 %v979, 0.041666668
        %v1034 = vmul.f32 %v980, 0.041666668
        %v1035 = vmul.f32 %v981, 0.041666668
        %v1036 = vmul.f32 %v982, 0.041666668
        %v1037 = vmul.f32 %v983, 0.041666668
        %v1038 = vmul.f32 %v984, 0.041666668
        %v1039 = vmul.f32 %v985, 0.041666668
        %v1040 = vmul.f32 %v986, 0.041666668
        %v1041 = vmul.f32 %v987, 0.041666668
        %v1042 = vmul.f32 %v988, 0.041666668
        %v1043 = vmul.f32 %v989, 0.041666668
        %v1044 = vmul.f32 %v990, 0.041666668
        %v1045 = vmul.f32 %v991, 0.041666668
        %v1046 = vmul.f32 %v992, 0.041666668
        %v1047 = vmul.f32 %v993, 0.041666668
        %v1048 = vmul.f32 %v994, 0.041666668
        %v1049 = vmul.f32 %v995, 0.041666668
        %v1050 = vmul.f32 %v996, 0.041666668
        %v1051 = vmul.f32 %v997, 0.041666668
        %v1052 = vmul.f32 %v998, 0.041666668
        %v1053 = vmul.f32 %v999, 0.041666668
        %v1054 = vmul.f32 %v1000, 0.041666668
        %v1055 = vmul.f32 %v1001, 0.041666668
        %v1056 = vmul.f32 %v1002, 0.041666668
        %v1057 = vmul.f32 %v1003, 0.041666668
        %v1058 = vmul.f32 %v1004, 0.041666668
        %v1059 = vmul.f32 %v1005, 0.041666668
        %v1060 = vmul.f32 %v1006, 0.041666668
        %v1061 = vmul.f32 %v1007, 0.041666668
        %v1062 = vmul.f32 %v1008, 0.041666668
        %v1063 = vmul.f32 %v1009, 0.041666668
        %v1064 = vmul.f32 %v1010, 0.041666668
        %v1065 = vmul.f32 %v1011, 0.041666668
        %v1066 = vmul.f32 %v1012, 0.041666668
        %v1067 = vmul.f32 %v1013, 0.041666668
        %v1068 = vmul.f32 %v1014, 0.041666668
        %v1069 = vmul.f32 %v1015, 0.041666668
        %v1070 = vmul.f32 %v1016, 0.041666668
        %v1071 = vmul.f32 %v1017, 0.041666668
        %v1072 = vmul.f32 %v1018, 0.041666668
        %v1073 = vmul.f32 %v1019, 0.041666668
        %v1074 = vmul.f32 %v1020, 0.041666668
        %v1075 = vmul.f32 %v1021, 0.041666668
        %v1076 = vmul.f32 %v1022, 0.041666668
        %v1077 = vmul.f32 %v1023, 0.041666668
        %v1078 = vmul.f32 %v1024, 0.041666668
        %v1079 = vmul.f32 %v1025, 0.041666668
        %v1080 = vcvt.f32.s32.to.zero.pseudo %v1026
        %v1081 = vcvt.f32.s32.to.zero.pseudo %v1027
        %v1082 = vcvt.f32.s32.to.zero.pseudo %v1028
        %v1083 = vcvt.f32.s32.to.zero.pseudo %v1029
        %v1084 = vcvt.f32.s32.to.zero.pseudo %v1030
        %v1085 = vcvt.f32.s32.to.zero.pseudo %v1031
        %v1086 = vcvt.f32.s32.to.zero.pseudo %v1032
        %v1087 = vcvt.f32.s32.to.zero.pseudo %v1033
        %v1088 = vcvt.f32.s32.to.zero.pseudo %v1034
        %v1089 = vcvt.f32.s32.to.zero.pseudo %v1035
        %v1090 = vcvt.f32.s32.to.zero.pseudo %v1036
        %v1091 = vcvt.f32.s32.to.zero.pseudo %v1037
        %v1092 = vcvt.f32.s32.to.zero.pseudo %v1038
        %v1093 = vcvt.f32.s32.to.zero.pseudo %v1039
        %v1094 = vcvt.f32.s32.to.zero.pseudo %v1040
        %v1095 = vcvt.f32.s32.to.zero.pseudo %v1041
        %v1096 = vcvt.f32.s32.to.zero.pseudo %v1042
        %v1097 = vcvt.f32.s32.to.zero.pseudo %v1043
        %v1098 = vcvt.f32.s32.to.zero.pseudo %v1044
        %v1099 = vcvt.f32.s32.to.zero.pseudo %v1045
        %v1100 = vcvt.f32.s32.to.zero.pseudo %v1046
        %v1101 = vcvt.f32.s32.to.zero.pseudo %v1047
        %v1102 = vcvt.f32.s32.to.zero.pseudo %v1048
        %v1103 = vcvt.f32.s32.to.zero.pseudo %v1049
        %v1104 = vcvt.f32.s32.to.zero.pseudo %v1050
        %v1105 = vcvt.f32.s32.to.zero.pseudo %v1051
        %v1106 = vcvt.f32.s32.to.zero.pseudo %v1052
        %v1107 = vcvt.f32.s32.to.zero.pseudo %v1053
        %v1108 = vcvt.f32.s32.to.zero.pseudo %v1054
        %v1109 = vcvt.f32.s32.to.zero.pseudo %v1055
        %v1110 = vcvt.f32.s32.to.zero.pseudo %v1056
        %v1111 = vcvt.f32.s32.to.zero.pseudo %v1057
        %v1112 = vcvt.f32.s32.to.zero.pseudo %v1058
        %v1113 = vcvt.f32.s32.to.zero.pseudo %v1059
        %v1114 = vcvt.f32.s32.to.zero.pseudo %v1060
        %v1115 = vcvt.f32.s32.to.zero.pseudo %v1061
        %v1116 = vcvt.f32.s32.to.zero.pseudo %v1062
        %v1117 = vcvt.f32.s32.to.zero.pseudo %v1063
        %v1118 = vcvt.f32.s32.to.zero.pseudo %v1064
        %v1119 = vcvt.f32.s32.to.zero.pseudo %v1065
        %v1120 = vcvt.f32.s32.to.zero.pseudo %v1066
        %v1121 = vcvt.f32.s32.to.zero.pseudo %v1067
        %v1122 = vcvt.f32.s32.to.zero.pseudo %v1068
        %v1123 = vcvt.f32.s32.to.zero.pseudo %v1069
        %v1124 = vcvt.f32.s32.to.zero.pseudo %v1070
        %v1125 = vcvt.f32.s32.to.zero.pseudo %v1071
        %v1126 = vcvt.f32.s32.to.zero.pseudo %v1072
        %v1127 = vcvt.f32.s32.to.zero.pseudo %v1073
        %v1128 = vcvt.f32.s32.to.zero.pseudo %v1074
        %v1129 = vcvt.f32.s32.to.zero.pseudo %v1075
        %v1130 = vcvt.f32.s32.to.zero.pseudo %v1076
        %v1131 = vcvt.f32.s32.to.zero.pseudo %v1077
        %v1132 = vcvt.f32.s32.to.zero.pseudo %v1078
        %v1133 = vcvt.f32.s32.to.zero.pseudo %v1079
        %v1134 = vmul.u32 %v1080, 24
        %v1135 = vmul.u32 %v1081, 24
        %v1136 = vmul.u32 %v1082, 24
        %v1137 = vmul.u32 %v1083, 24
        %v1138 = vmul.u32 %v1084, 24
        %v1139 = vmul.u32 %v1085, 24
        %v1140 = vmul.u32 %v1086, 24
        %v1141 = vmul.u32 %v1087, 24
        %v1142 = vmul.u32 %v1088, 24
        %v1143 = vmul.u32 %v1089, 24
        %v1144 = vmul.u32 %v1090, 24
        %v1145 = vmul.u32 %v1091, 24
        %v1146 = vmul.u32 %v1092, 24
        %v1147 = vmul.u32 %v1093, 24
        %v1148 = vmul.u32 %v1094, 24
        %v1149 = vmul.u32 %v1095, 24
        %v1150 = vmul.u32 %v1096, 24
        %v1151 = vmul.u32 %v1097, 24
        %v1152 = vmul.u32 %v1098, 24
        %v1153 = vmul.u32 %v1099, 24
        %v1154 = vmul.u32 %v1100, 24
        %v1155 = vmul.u32 %v1101, 24
        %v1156 = vmul.u32 %v1102, 24
        %v1157 = vmul.u32 %v1103, 24
        %v1158 = vmul.u32 %v1104, 24
        %v1159 = vmul.u32 %v1105, 24
        %v1160 = vmul.u32 %v1106, 24
        %v1161 = vmul.u32 %v1107, 24
        %v1162 = vmul.u32 %v1108, 24
        %v1163 = vmul.u32 %v1109, 24
        %v1164 = vmul.u32 %v1110, 24
        %v1165 = vmul.u32 %v1111, 24
        %v1166 = vmul.u32 %v1112, 24
        %v1167 = vmul.u32 %v1113, 24
        %v1168 = vmul.u32 %v1114, 24
        %v1169 = vmul.u32 %v1115, 24
        %v1170 = vmul.u32 %v1116, 24
        %v1171 = vmul.u32 %v1117, 24
        %v1172 = vmul.u32 %v1118, 24
        %v1173 = vmul.u32 %v1119, 24
        %v1174 = vmul.u32 %v1120, 24
        %v1175 = vmul.u32 %v1121, 24
        %v1176 = vmul.u32 %v1122, 24
        %v1177 = vmul.u32 %v1123, 24
        %v1178 = vmul.u32 %v1124, 24
        %v1179 = vmul.u32 %v1125, 24
        %v1180 = vmul.u32 %v1126, 24
        %v1181 = vmul.u32 %v1127, 24
        %v1182 = vmul.u32 %v1128, 24
        %v1183 = vmul.u32 %v1129, 24
        %v1184 = vmul.u32 %v1130, 24
        %v1185 = vmul.u32 %v1131, 24
        %v1186 = vmul.u32 %v1132, 24
        %v1187 = vmul.u32 %v1133, 24
        %v1188 = vsub.s32 %v864, %v1134
        %v1189 = vsub.s32 %v865, %v1135
        %v1190 = vsub.s32 %v866, %v1136
        %v1191 = vsub.s32 %v867, %v1137
        %v1192 = vsub.s32 %v868, %v1138
        %v1193 = vsub.s32 %v869, %v1139
        %v1194 = vsub.s32 %v870, %v1140
        %v1195 = vsub.s32 %v871, %v1141
        %v1196 = vsub.s32 %v872, %v1142
        %v1197 = vsub.s32 %v873, %v1143
        %v1198 = vsub.s32 %v874, %v1144
        %v1199 = vsub.s32 %v875, %v1145
        %v1200 = vsub.s32 %v876, %v1146
        %v1201 = vsub.s32 %v877, %v1147
        %v1202 = vsub.s32 %v878, %v1148
        %v1203 = vsub.s32 %v879, %v1149
        %v1204 = vsub.s32 %v880, %v1150
        %v1205 = vsub.s32 %v881, %v1151
        %v1206 = vsub.s32 %v882, %v1152
        %v1207 = vsub.s32 %v883, %v1153
        %v1208 = vsub.s32 %v884, %v1154
        %v1209 = vsub.s32 %v885, %v1155
        %v1210 = vsub.s32 %v886, %v1156
        %v1211 = vsub.s32 %v887, %v1157
        %v1212 = vsub.s32 %v888, %v1158
        %v1213 = vsub.s32 %v889, %v1159
        %v1214 = vsub.s32 %v890, %v1160
        %v1215 = vsub.s32 %v891, %v1161
        %v1216 = vsub.s32 %v892, %v1162
        %v1217 = vsub.s32 %v893, %v1163
        %v1218 = vsub.s32 %v894, %v1164
        %v1219 = vsub.s32 %v895, %v1165
        %v1220 = vsub.s32 %v896, %v1166
        %v1221 = vsub.s32 %v897, %v1167
        %v1222 = vsub.s32 %v898, %v1168
        %v1223 = vsub.s32 %v899, %v1169
        %v1224 = vsub.s32 %v900, %v1170
        %v1225 = vsub.s32 %v901, %v1171
        %v1226 = vsub.s32 %v902, %v1172
        %v1227 = vsub.s32 %v903, %v1173
        %v1228 = vsub.s32 %v904, %v1174
        %v1229 = vsub.s32 %v905, %v1175
        %v1230 = vsub.s32 %v906, %v1176
        %v1231 = vsub.s32 %v907, %v1177
        %v1232 = vsub.s32 %v908, %v1178
        %v1233 = vsub.s32 %v909, %v1179
        %v1234 = vsub.s32 %v910, %v1180
        %v1235 = vsub.s32 %v911, %v1181
        %v1236 = vsub.s32 %v912, %v1182
        %v1237 = vsub.s32 %v913, %v1183
        %v1238 = vsub.s32 %v914, %v1184
        %v1239 = vsub.s32 %v915, %v1185
        %v1240 = vsub.s32 %v916, %v1186
        %v1241 = vsub.s32 %v917, %v1187
        %vm1242 = vcmp.ge.s32.totalorder %v1080, 1
        %vm1243 = vcmp.ge.s32.totalorder %v1081, 1
        %vm1244 = vcmp.ge.s32.totalorder %v1082, 1
        %vm1245 = vcmp.ge.s32.totalorder %v1083, 1
        %vm1246 = vcmp.ge.s32.totalorder %v1084, 1
        %vm1247 = vcmp.ge.s32.totalorder %v1085, 1
        %vm1248 = vcmp.ge.s32.totalorder %v1086, 1
        %vm1249 = vcmp.ge.s32.totalorder %v1087, 1
        %vm1250 = vcmp.ge.s32.totalorder %v1088, 1
        %vm1251 = vcmp.ge.s32.totalorder %v1089, 1
        %vm1252 = vcmp.ge.s32.totalorder %v1090, 1
        %vm1253 = vcmp.ge.s32.totalorder %v1091, 1
        %vm1254 = vcmp.ge.s32.totalorder %v1092, 1
        %vm1255 = vcmp.ge.s32.totalorder %v1093, 1
        %vm1256 = vcmp.ge.s32.totalorder %v1094, 1
        %vm1257 = vcmp.ge.s32.totalorder %v1095, 1
        %vm1258 = vcmp.ge.s32.totalorder %v1096, 1
        %vm1259 = vcmp.ge.s32.totalorder %v1097, 1
        %vm1260 = vcmp.ge.s32.totalorder %v1098, 1
        %vm1261 = vcmp.ge.s32.totalorder %v1099, 1
        %vm1262 = vcmp.ge.s32.totalorder %v1100, 1
        %vm1263 = vcmp.ge.s32.totalorder %v1101, 1
        %vm1264 = vcmp.ge.s32.totalorder %v1102, 1
        %vm1265 = vcmp.ge.s32.totalorder %v1103, 1
        %vm1266 = vcmp.ge.s32.totalorder %v1104, 1
        %vm1267 = vcmp.ge.s32.totalorder %v1105, 1
        %vm1268 = vcmp.ge.s32.totalorder %v1106, 1
        %vm1269 = vcmp.ge.s32.totalorder %v1107, 1
        %vm1270 = vcmp.ge.s32.totalorder %v1108, 1
        %vm1271 = vcmp.ge.s32.totalorder %v1109, 1
        %vm1272 = vcmp.ge.s32.totalorder %v1110, 1
        %vm1273 = vcmp.ge.s32.totalorder %v1111, 1
        %vm1274 = vcmp.ge.s32.totalorder %v1112, 1
        %vm1275 = vcmp.ge.s32.totalorder %v1113, 1
        %vm1276 = vcmp.ge.s32.totalorder %v1114, 1
        %vm1277 = vcmp.ge.s32.totalorder %v1115, 1
        %vm1278 = vcmp.ge.s32.totalorder %v1116, 1
        %vm1279 = vcmp.ge.s32.totalorder %v1117, 1
        %vm1280 = vcmp.ge.s32.totalorder %v1118, 1
        %vm1281 = vcmp.ge.s32.totalorder %v1119, 1
        %vm1282 = vcmp.ge.s32.totalorder %v1120, 1
        %vm1283 = vcmp.ge.s32.totalorder %v1121, 1
        %vm1284 = vcmp.ge.s32.totalorder %v1122, 1
        %vm1285 = vcmp.ge.s32.totalorder %v1123, 1
        %vm1286 = vcmp.ge.s32.totalorder %v1124, 1
        %vm1287 = vcmp.ge.s32.totalorder %v1125, 1
        %vm1288 = vcmp.ge.s32.totalorder %v1126, 1
        %vm1289 = vcmp.ge.s32.totalorder %v1127, 1
        %vm1290 = vcmp.ge.s32.totalorder %v1128, 1
        %vm1291 = vcmp.ge.s32.totalorder %v1129, 1
        %vm1292 = vcmp.ge.s32.totalorder %v1130, 1
        %vm1293 = vcmp.ge.s32.totalorder %v1131, 1
        %vm1294 = vcmp.ge.s32.totalorder %v1132, 1
        %vm1295 = vcmp.ge.s32.totalorder %v1133, 1
        %vm1296 = vcmp.le.s32.totalorder %v1080, 16
        %vm1297 = vcmp.le.s32.totalorder %v1081, 16
        %vm1298 = vcmp.le.s32.totalorder %v1082, 16
        %vm1299 = vcmp.le.s32.totalorder %v1083, 16
        %vm1300 = vcmp.le.s32.totalorder %v1084, 16
        %vm1301 = vcmp.le.s32.totalorder %v1085, 16
        %vm1302 = vcmp.le.s32.totalorder %v1086, 16
        %vm1303 = vcmp.le.s32.totalorder %v1087, 16
        %vm1304 = vcmp.le.s32.totalorder %v1088, 16
        %vm1305 = vcmp.le.s32.totalorder %v1089, 16
        %vm1306 = vcmp.le.s32.totalorder %v1090, 16
        %vm1307 = vcmp.le.s32.totalorder %v1091, 16
        %vm1308 = vcmp.le.s32.totalorder %v1092, 16
        %vm1309 = vcmp.le.s32.totalorder %v1093, 16
        %vm1310 = vcmp.le.s32.totalorder %v1094, 16
        %vm1311 = vcmp.le.s32.totalorder %v1095, 16
        %vm1312 = vcmp.le.s32.totalorder %v1096, 16
        %vm1313 = vcmp.le.s32.totalorder %v1097, 16
        %vm1314 = vcmp.le.s32.totalorder %v1098, 16
        %vm1315 = vcmp.le.s32.totalorder %v1099, 16
        %vm1316 = vcmp.le.s32.totalorder %v1100, 16
        %vm1317 = vcmp.le.s32.totalorder %v1101, 16
        %vm1318 = vcmp.le.s32.totalorder %v1102, 16
        %vm1319 = vcmp.le.s32.totalorder %v1103, 16
        %vm1320 = vcmp.le.s32.totalorder %v1104, 16
        %vm1321 = vcmp.le.s32.totalorder %v1105, 16
        %vm1322 = vcmp.le.s32.totalorder %v1106, 16
        %vm1323 = vcmp.le.s32.totalorder %v1107, 16
        %vm1324 = vcmp.le.s32.totalorder %v1108, 16
        %vm1325 = vcmp.le.s32.totalorder %v1109, 16
        %vm1326 = vcmp.le.s32.totalorder %v1110, 16
        %vm1327 = vcmp.le.s32.totalorder %v1111, 16
        %vm1328 = vcmp.le.s32.totalorder %v1112, 16
        %vm1329 = vcmp.le.s32.totalorder %v1113, 16
        %vm1330 = vcmp.le.s32.totalorder %v1114, 16
        %vm1331 = vcmp.le.s32.totalorder %v1115, 16
        %vm1332 = vcmp.le.s32.totalorder %v1116, 16
        %vm1333 = vcmp.le.s32.totalorder %v1117, 16
        %vm1334 = vcmp.le.s32.totalorder %v1118, 16
        %vm1335 = vcmp.le.s32.totalorder %v1119, 16
        %vm1336 = vcmp.le.s32.totalorder %v1120, 16
        %vm1337 = vcmp.le.s32.totalorder %v1121, 16
        %vm1338 = vcmp.le.s32.totalorder %v1122, 16
        %vm1339 = vcmp.le.s32.totalorder %v1123, 16
        %vm1340 = vcmp.le.s32.totalorder %v1124, 16
        %vm1341 = vcmp.le.s32.totalorder %v1125, 16
        %vm1342 = vcmp.le.s32.totalorder %v1126, 16
        %vm1343 = vcmp.le.s32.totalorder %v1127, 16
        %vm1344 = vcmp.le.s32.totalorder %v1128, 16
        %vm1345 = vcmp.le.s32.totalorder %v1129, 16
        %vm1346 = vcmp.le.s32.totalorder %v1130, 16
        %vm1347 = vcmp.le.s32.totalorder %v1131, 16
        %vm1348 = vcmp.le.s32.totalorder %v1132, 16
        %vm1349 = vcmp.le.s32.totalorder %v1133, 16
        %vm1350 = vmand %vm1242, %vm1296
        %vm1351 = vmand %vm1243, %vm1297
        %vm1352 = vmand %vm1244, %vm1298
        %vm1353 = vmand %vm1245, %vm1299
        %vm1354 = vmand %vm1246, %vm1300
        %vm1355 = vmand %vm1247, %vm1301
        %vm1356 = vmand %vm1248, %vm1302
        %vm1357 = vmand %vm1249, %vm1303
        %vm1358 = vmand %vm1250, %vm1304
        %vm1359 = vmand %vm1251, %vm1305
        %vm1360 = vmand %vm1252, %vm1306
        %vm1361 = vmand %vm1253, %vm1307
        %vm1362 = vmand %vm1254, %vm1308
        %vm1363 = vmand %vm1255, %vm1309
        %vm1364 = vmand %vm1256, %vm1310
        %vm1365 = vmand %vm1257, %vm1311
        %vm1366 = vmand %vm1258, %vm1312
        %vm1367 = vmand %vm1259, %vm1313
        %vm1368 = vmand %vm1260, %vm1314
        %vm1369 = vmand %vm1261, %vm1315
        %vm1370 = vmand %vm1262, %vm1316
        %vm1371 = vmand %vm1263, %vm1317
        %vm1372 = vmand %vm1264, %vm1318
        %vm1373 = vmand %vm1265, %vm1319
        %vm1374 = vmand %vm1266, %vm1320
        %vm1375 = vmand %vm1267, %vm1321
        %vm1376 = vmand %vm1268, %vm1322
        %vm1377 = vmand %vm1269, %vm1323
        %vm1378 = vmand %vm1270, %vm1324
        %vm1379 = vmand %vm1271, %vm1325
        %vm1380 = vmand %vm1272, %vm1326
        %vm1381 = vmand %vm1273, %vm1327
        %vm1382 = vmand %vm1274, %vm1328
        %vm1383 = vmand %vm1275, %vm1329
        %vm1384 = vmand %vm1276, %vm1330
        %vm1385 = vmand %vm1277, %vm1331
        %vm1386 = vmand %vm1278, %vm1332
        %vm1387 = vmand %vm1279, %vm1333
        %vm1388 = vmand %vm1280, %vm1334
        %vm1389 = vmand %vm1281, %vm1335
        %vm1390 = vmand %vm1282, %vm1336
        %vm1391 = vmand %vm1283, %vm1337
        %vm1392 = vmand %vm1284, %vm1338
        %vm1393 = vmand %vm1285, %vm1339
        %vm1394 = vmand %vm1286, %vm1340
        %vm1395 = vmand %vm1287, %vm1341
        %vm1396 = vmand %vm1288, %vm1342
        %vm1397 = vmand %vm1289, %vm1343
        %vm1398 = vmand %vm1290, %vm1344
        %vm1399 = vmand %vm1291, %vm1345
        %vm1400 = vmand %vm1292, %vm1346
        %vm1401 = vmand %vm1293, %vm1347
        %vm1402 = vmand %vm1294, %vm1348
        %vm1403 = vmand %vm1295, %vm1349
        %vm1404 = vcmp.ge.s32.totalorder %v1188, 1
        %vm1405 = vcmp.ge.s32.totalorder %v1189, 1
        %vm1406 = vcmp.ge.s32.totalorder %v1190, 1
        %vm1407 = vcmp.ge.s32.totalorder %v1191, 1
        %vm1408 = vcmp.ge.s32.totalorder %v1192, 1
        %vm1409 = vcmp.ge.s32.totalorder %v1193, 1
        %vm1410 = vcmp.ge.s32.totalorder %v1194, 1
        %vm1411 = vcmp.ge.s32.totalorder %v1195, 1
        %vm1412 = vcmp.ge.s32.totalorder %v1196, 1
        %vm1413 = vcmp.ge.s32.totalorder %v1197, 1
        %vm1414 = vcmp.ge.s32.totalorder %v1198, 1
        %vm1415 = vcmp.ge.s32.totalorder %v1199, 1
        %vm1416 = vcmp.ge.s32.totalorder %v1200, 1
        %vm1417 = vcmp.ge.s32.totalorder %v1201, 1
        %vm1418 = vcmp.ge.s32.totalorder %v1202, 1
        %vm1419 = vcmp.ge.s32.totalorder %v1203, 1
        %vm1420 = vcmp.ge.s32.totalorder %v1204, 1
        %vm1421 = vcmp.ge.s32.totalorder %v1205, 1
        %vm1422 = vcmp.ge.s32.totalorder %v1206, 1
        %vm1423 = vcmp.ge.s32.totalorder %v1207, 1
        %vm1424 = vcmp.ge.s32.totalorder %v1208, 1
        %vm1425 = vcmp.ge.s32.totalorder %v1209, 1
        %vm1426 = vcmp.ge.s32.totalorder %v1210, 1
        %vm1427 = vcmp.ge.s32.totalorder %v1211, 1
        %vm1428 = vcmp.ge.s32.totalorder %v1212, 1
        %vm1429 = vcmp.ge.s32.totalorder %v1213, 1
        %vm1430 = vcmp.ge.s32.totalorder %v1214, 1
        %vm1431 = vcmp.ge.s32.totalorder %v1215, 1
        %vm1432 = vcmp.ge.s32.totalorder %v1216, 1
        %vm1433 = vcmp.ge.s32.totalorder %v1217, 1
        %vm1434 = vcmp.ge.s32.totalorder %v1218, 1
        %vm1435 = vcmp.ge.s32.totalorder %v1219, 1
        %vm1436 = vcmp.ge.s32.totalorder %v1220, 1
        %vm1437 = vcmp.ge.s32.totalorder %v1221, 1
        %vm1438 = vcmp.ge.s32.totalorder %v1222, 1
        %vm1439 = vcmp.ge.s32.totalorder %v1223, 1
        %vm1440 = vcmp.ge.s32.totalorder %v1224, 1
        %vm1441 = vcmp.ge.s32.totalorder %v1225, 1
        %vm1442 = vcmp.ge.s32.totalorder %v1226, 1
        %vm1443 = vcmp.ge.s32.totalorder %v1227, 1
        %vm1444 = vcmp.ge.s32.totalorder %v1228, 1
        %vm1445 = vcmp.ge.s32.totalorder %v1229, 1
        %vm1446 = vcmp.ge.s32.totalorder %v1230, 1
        %vm1447 = vcmp.ge.s32.totalorder %v1231, 1
        %vm1448 = vcmp.ge.s32.totalorder %v1232, 1
        %vm1449 = vcmp.ge.s32.totalorder %v1233, 1
        %vm1450 = vcmp.ge.s32.totalorder %v1234, 1
        %vm1451 = vcmp.ge.s32.totalorder %v1235, 1
        %vm1452 = vcmp.ge.s32.totalorder %v1236, 1
        %vm1453 = vcmp.ge.s32.totalorder %v1237, 1
        %vm1454 = vcmp.ge.s32.totalorder %v1238, 1
        %vm1455 = vcmp.ge.s32.totalorder %v1239, 1
        %vm1456 = vcmp.ge.s32.totalorder %v1240, 1
        %vm1457 = vcmp.ge.s32.totalorder %v1241, 1
        %vm1458 = vmand %vm1350, %vm1404
        %vm1459 = vmand %vm1351, %vm1405
        %vm1460 = vmand %vm1352, %vm1406
        %vm1461 = vmand %vm1353, %vm1407
        %vm1462 = vmand %vm1354, %vm1408
        %vm1463 = vmand %vm1355, %vm1409
        %vm1464 = vmand %vm1356, %vm1410
        %vm1465 = vmand %vm1357, %vm1411
        %vm1466 = vmand %vm1358, %vm1412
        %vm1467 = vmand %vm1359, %vm1413
        %vm1468 = vmand %vm1360, %vm1414
        %vm1469 = vmand %vm1361, %vm1415
        %vm1470 = vmand %vm1362, %vm1416
        %vm1471 = vmand %vm1363, %vm1417
        %vm1472 = vmand %vm1364, %vm1418
        %vm1473 = vmand %vm1365, %vm1419
        %vm1474 = vmand %vm1366, %vm1420
        %vm1475 = vmand %vm1367, %vm1421
        %vm1476 = vmand %vm1368, %vm1422
        %vm1477 = vmand %vm1369, %vm1423
        %vm1478 = vmand %vm1370, %vm1424
        %vm1479 = vmand %vm1371, %vm1425
        %vm1480 = vmand %vm1372, %vm1426
        %vm1481 = vmand %vm1373, %vm1427
        %vm1482 = vmand %vm1374, %vm1428
        %vm1483 = vmand %vm1375, %vm1429
        %vm1484 = vmand %vm1376, %vm1430
        %vm1485 = vmand %vm1377, %vm1431
        %vm1486 = vmand %vm1378, %vm1432
        %vm1487 = vmand %vm1379, %vm1433
        %vm1488 = vmand %vm1380, %vm1434
        %vm1489 = vmand %vm1381, %vm1435
        %vm1490 = vmand %vm1382, %vm1436
        %vm1491 = vmand %vm1383, %vm1437
        %vm1492 = vmand %vm1384, %vm1438
        %vm1493 = vmand %vm1385, %vm1439
        %vm1494 = vmand %vm1386, %vm1440
        %vm1495 = vmand %vm1387, %vm1441
        %vm1496 = vmand %vm1388, %vm1442
        %vm1497 = vmand %vm1389, %vm1443
        %vm1498 = vmand %vm1390, %vm1444
        %vm1499 = vmand %vm1391, %vm1445
        %vm1500 = vmand %vm1392, %vm1446
        %vm1501 = vmand %vm1393, %vm1447
        %vm1502 = vmand %vm1394, %vm1448
        %vm1503 = vmand %vm1395, %vm1449
        %vm1504 = vmand %vm1396, %vm1450
        %vm1505 = vmand %vm1397, %vm1451
        %vm1506 = vmand %vm1398, %vm1452
        %vm1507 = vmand %vm1399, %vm1453
        %vm1508 = vmand %vm1400, %vm1454
        %vm1509 = vmand %vm1401, %vm1455
        %vm1510 = vmand %vm1402, %vm1456
        %vm1511 = vmand %vm1403, %vm1457
        %vm1512 = vcmp.le.s32.totalorder %v1188, 16
        %vm1513 = vcmp.le.s32.totalorder %v1189, 16
        %vm1514 = vcmp.le.s32.totalorder %v1190, 16
        %vm1515 = vcmp.le.s32.totalorder %v1191, 16
        %vm1516 = vcmp.le.s32.totalorder %v1192, 16
        %vm1517 = vcmp.le.s32.totalorder %v1193, 16
        %vm1518 = vcmp.le.s32.totalorder %v1194, 16
        %vm1519 = vcmp.le.s32.totalorder %v1195, 16
        %vm1520 = vcmp.le.s32.totalorder %v1196, 16
        %vm1521 = vcmp.le.s32.totalorder %v1197, 16
        %vm1522 = vcmp.le.s32.totalorder %v1198, 16
        %vm1523 = vcmp.le.s32.totalorder %v1199, 16
        %vm1524 = vcmp.le.s32.totalorder %v1200, 16
        %vm1525 = vcmp.le.s32.totalorder %v1201, 16
        %vm1526 = vcmp.le.s32.totalorder %v1202, 16
        %vm1527 = vcmp.le.s32.totalorder %v1203, 16
        %vm1528 = vcmp.le.s32.totalorder %v1204, 16
        %vm1529 = vcmp.le.s32.totalorder %v1205, 16
        %vm1530 = vcmp.le.s32.totalorder %v1206, 16
        %vm1531 = vcmp.le.s32.totalorder %v1207, 16
        %vm1532 = vcmp.le.s32.totalorder %v1208, 16
        %vm1533 = vcmp.le.s32.totalorder %v1209, 16
        %vm1534 = vcmp.le.s32.totalorder %v1210, 16
        %vm1535 = vcmp.le.s32.totalorder %v1211, 16
        %vm1536 = vcmp.le.s32.totalorder %v1212, 16
        %vm1537 = vcmp.le.s32.totalorder %v1213, 16
        %vm1538 = vcmp.le.s32.totalorder %v1214, 16
        %vm1539 = vcmp.le.s32.totalorder %v1215, 16
        %vm1540 = vcmp.le.s32.totalorder %v1216, 16
        %vm1541 = vcmp.le.s32.totalorder %v1217, 16
        %vm1542 = vcmp.le.s32.totalorder %v1218, 16
        %vm1543 = vcmp.le.s32.totalorder %v1219, 16
        %vm1544 = vcmp.le.s32.totalorder %v1220, 16
        %vm1545 = vcmp.le.s32.totalorder %v1221, 16
        %vm1546 = vcmp.le.s32.totalorder %v1222, 16
        %vm1547 = vcmp.le.s32.totalorder %v1223, 16
        %vm1548 = vcmp.le.s32.totalorder %v1224, 16
        %vm1549 = vcmp.le.s32.totalorder %v1225, 16
        %vm1550 = vcmp.le.s32.totalorder %v1226, 16
        %vm1551 = vcmp.le.s32.totalorder %v1227, 16
        %vm1552 = vcmp.le.s32.totalorder %v1228, 16
        %vm1553 = vcmp.le.s32.totalorder %v1229, 16
        %vm1554 = vcmp.le.s32.totalorder %v1230, 16
        %vm1555 = vcmp.le.s32.totalorder %v1231, 16
        %vm1556 = vcmp.le.s32.totalorder %v1232, 16
        %vm1557 = vcmp.le.s32.totalorder %v1233, 16
        %vm1558 = vcmp.le.s32.totalorder %v1234, 16
        %vm1559 = vcmp.le.s32.totalorder %v1235, 16
        %vm1560 = vcmp.le.s32.totalorder %v1236, 16
        %vm1561 = vcmp.le.s32.totalorder %v1237, 16
        %vm1562 = vcmp.le.s32.totalorder %v1238, 16
        %vm1563 = vcmp.le.s32.totalorder %v1239, 16
        %vm1564 = vcmp.le.s32.totalorder %v1240, 16
        %vm1565 = vcmp.le.s32.totalorder %v1241, 16
        %vm1566 = vmand %vm1458, %vm1512
        %vm1567 = vmand %vm1459, %vm1513
        %vm1568 = vmand %vm1460, %vm1514
        %vm1569 = vmand %vm1461, %vm1515
        %vm1570 = vmand %vm1462, %vm1516
        %vm1571 = vmand %vm1463, %vm1517
        %vm1572 = vmand %vm1464, %vm1518
        %vm1573 = vmand %vm1465, %vm1519
        %vm1574 = vmand %vm1466, %vm1520
        %vm1575 = vmand %vm1467, %vm1521
        %vm1576 = vmand %vm1468, %vm1522
        %vm1577 = vmand %vm1469, %vm1523
        %vm1578 = vmand %vm1470, %vm1524
        %vm1579 = vmand %vm1471, %vm1525
        %vm1580 = vmand %vm1472, %vm1526
        %vm1581 = vmand %vm1473, %vm1527
        %vm1582 = vmand %vm1474, %vm1528
        %vm1583 = vmand %vm1475, %vm1529
        %vm1584 = vmand %vm1476, %vm1530
        %vm1585 = vmand %vm1477, %vm1531
        %vm1586 = vmand %vm1478, %vm1532
        %vm1587 = vmand %vm1479, %vm1533
        %vm1588 = vmand %vm1480, %vm1534
        %vm1589 = vmand %vm1481, %vm1535
        %vm1590 = vmand %vm1482, %vm1536
        %vm1591 = vmand %vm1483, %vm1537
        %vm1592 = vmand %vm1484, %vm1538
        %vm1593 = vmand %vm1485, %vm1539
        %vm1594 = vmand %vm1486, %vm1540
        %vm1595 = vmand %vm1487, %vm1541
        %vm1596 = vmand %vm1488, %vm1542
        %vm1597 = vmand %vm1489, %vm1543
        %vm1598 = vmand %vm1490, %vm1544
        %vm1599 = vmand %vm1491, %vm1545
        %vm1600 = vmand %vm1492, %vm1546
        %vm1601 = vmand %vm1493, %vm1547
        %vm1602 = vmand %vm1494, %vm1548
        %vm1603 = vmand %vm1495, %vm1549
        %vm1604 = vmand %vm1496, %vm1550
        %vm1605 = vmand %vm1497, %vm1551
        %vm1606 = vmand %vm1498, %vm1552
        %vm1607 = vmand %vm1499, %vm1553
        %vm1608 = vmand %vm1500, %vm1554
        %vm1609 = vmand %vm1501, %vm1555
        %vm1610 = vmand %vm1502, %vm1556
        %vm1611 = vmand %vm1503, %vm1557
        %vm1612 = vmand %vm1504, %vm1558
        %vm1613 = vmand %vm1505, %vm1559
        %vm1614 = vmand %vm1506, %vm1560
        %vm1615 = vmand %vm1507, %vm1561
        %vm1616 = vmand %vm1508, %vm1562
        %vm1617 = vmand %vm1509, %vm1563
        %vm1618 = vmand %vm1510, %vm1564
        %vm1619 = vmand %vm1511, %vm1565
        %v1620 = vsel %vm1566, 1, 0
        %v1621 = vsel %vm1567, 1, 0
        %v1622 = vsel %vm1568, 1, 0
        %v1623 = vsel %vm1569, 1, 0
        %v1624 = vsel %vm1570, 1, 0
        %v1625 = vsel %vm1571, 1, 0
        %v1626 = vsel %vm1572, 1, 0
        %v1627 = vsel %vm1573, 1, 0
        %v1628 = vsel %vm1574, 1, 0
        %v1629 = vsel %vm1575, 1, 0
        %v1630 = vsel %vm1576, 1, 0
        %v1631 = vsel %vm1577, 1, 0
        %v1632 = vsel %vm1578, 1, 0
        %v1633 = vsel %vm1579, 1, 0
        %v1634 = vsel %vm1580, 1, 0
        %v1635 = vsel %vm1581, 1, 0
        %v1636 = vsel %vm1582, 1, 0
        %v1637 = vsel %vm1583, 1, 0
        %v1638 = vsel %vm1584, 1, 0
        %v1639 = vsel %vm1585, 1, 0
        %v1640 = vsel %vm1586, 1, 0
        %v1641 = vsel %vm1587, 1, 0
        %v1642 = vsel %vm1588, 1, 0
        %v1643 = vsel %vm1589, 1, 0
        %v1644 = vsel %vm1590, 1, 0
        %v1645 = vsel %vm1591, 1, 0
        %v1646 = vsel %vm1592, 1, 0
        %v1647 = vsel %vm1593, 1, 0
        %v1648 = vsel %vm1594, 1, 0
        %v1649 = vsel %vm1595, 1, 0
        %v1650 = vsel %vm1596, 1, 0
        %v1651 = vsel %vm1597, 1, 0
        %v1652 = vsel %vm1598, 1, 0
        %v1653 = vsel %vm1599, 1, 0
        %v1654 = vsel %vm1600, 1, 0
        %v1655 = vsel %vm1601, 1, 0
        %v1656 = vsel %vm1602, 1, 0
        %v1657 = vsel %vm1603, 1, 0
        %v1658 = vsel %vm1604, 1, 0
        %v1659 = vsel %vm1605, 1, 0
        %v1660 = vsel %vm1606, 1, 0
        %v1661 = vsel %vm1607, 1, 0
        %v1662 = vsel %vm1608, 1, 0
        %v1663 = vsel %vm1609, 1, 0
        %v1664 = vsel %vm1610, 1, 0
        %v1665 = vsel %vm1611, 1, 0
        %v1666 = vsel %vm1612, 1, 0
        %v1667 = vsel %vm1613, 1, 0
        %v1668 = vsel %vm1614, 1, 0
        %v1669 = vsel %vm1615, 1, 0
        %v1670 = vsel %vm1616, 1, 0
        %v1671 = vsel %vm1617, 1, 0
        %v1672 = vsel %vm1618, 1, 0
        %v1673 = vsel %vm1619, 1, 0
        %v1674 = vcvt.s32.f32 %v1620
        %v1675 = vcvt.s32.f32 %v1621
        %v1676 = vcvt.s32.f32 %v1622
        %v1677 = vcvt.s32.f32 %v1623
        %v1678 = vcvt.s32.f32 %v1624
        %v1679 = vcvt.s32.f32 %v1625
        %v1680 = vcvt.s32.f32 %v1626
        %v1681 = vcvt.s32.f32 %v1627
        %v1682 = vcvt.s32.f32 %v1628
        %v1683 = vcvt.s32.f32 %v1629
        %v1684 = vcvt.s32.f32 %v1630
        %v1685 = vcvt.s32.f32 %v1631
        %v1686 = vcvt.s32.f32 %v1632
        %v1687 = vcvt.s32.f32 %v1633
        %v1688 = vcvt.s32.f32 %v1634
        %v1689 = vcvt.s32.f32 %v1635
        %v1690 = vcvt.s32.f32 %v1636
        %v1691 = vcvt.s32.f32 %v1637
        %v1692 = vcvt.s32.f32 %v1638
        %v1693 = vcvt.s32.f32 %v1639
        %v1694 = vcvt.s32.f32 %v1640
        %v1695 = vcvt.s32.f32 %v1641
        %v1696 = vcvt.s32.f32 %v1642
        %v1697 = vcvt.s32.f32 %v1643
        %v1698 = vcvt.s32.f32 %v1644
        %v1699 = vcvt.s32.f32 %v1645
        %v1700 = vcvt.s32.f32 %v1646
        %v1701 = vcvt.s32.f32 %v1647
        %v1702 = vcvt.s32.f32 %v1648
        %v1703 = vcvt.s32.f32 %v1649
        %v1704 = vcvt.s32.f32 %v1650
        %v1705 = vcvt.s32.f32 %v1651
        %v1706 = vcvt.s32.f32 %v1652
        %v1707 = vcvt.s32.f32 %v1653
        %v1708 = vcvt.s32.f32 %v1654
        %v1709 = vcvt.s32.f32 %v1655
        %v1710 = vcvt.s32.f32 %v1656
        %v1711 = vcvt.s32.f32 %v1657
        %v1712 = vcvt.s32.f32 %v1658
        %v1713 = vcvt.s32.f32 %v1659
        %v1714 = vcvt.s32.f32 %v1660
        %v1715 = vcvt.s32.f32 %v1661
        %v1716 = vcvt.s32.f32 %v1662
        %v1717 = vcvt.s32.f32 %v1663
        %v1718 = vcvt.s32.f32 %v1664
        %v1719 = vcvt.s32.f32 %v1665
        %v1720 = vcvt.s32.f32 %v1666
        %v1721 = vcvt.s32.f32 %v1667
        %v1722 = vcvt.s32.f32 %v1668
        %v1723 = vcvt.s32.f32 %v1669
        %v1724 = vcvt.s32.f32 %v1670
        %v1725 = vcvt.s32.f32 %v1671
        %v1726 = vcvt.s32.f32 %v1672
        %v1727 = vcvt.s32.f32 %v1673
        %v1728 = vmul.f32 %v809, %v1674
        %v1729 = vmul.f32 %v810, %v1675
        %v1730 = vmul.f32 %v811, %v1676
        %v1731 = vmul.f32 %v812, %v1677
        %v1732 = vmul.f32 %v813, %v1678
        %v1733 = vmul.f32 %v814, %v1679
        %v1734 = vmul.f32 %v815, %v1680
        %v1735 = vmul.f32 %v816, %v1681
        %v1736 = vmul.f32 %v817, %v1682
        %v1737 = vmul.f32 %v818, %v1683
        %v1738 = vmul.f32 %v819, %v1684
        %v1739 = vmul.f32 %v820, %v1685
        %v1740 = vmul.f32 %v821, %v1686
        %v1741 = vmul.f32 %v822, %v1687
        %v1742 = vmul.f32 %v823, %v1688
        %v1743 = vmul.f32 %v824, %v1689
        %v1744 = vmul.f32 %v825, %v1690
        %v1745 = vmul.f32 %v826, %v1691
        %v1746 = vmul.f32 %v827, %v1692
        %v1747 = vmul.f32 %v828, %v1693
        %v1748 = vmul.f32 %v829, %v1694
        %v1749 = vmul.f32 %v830, %v1695
        %v1750 = vmul.f32 %v831, %v1696
        %v1751 = vmul.f32 %v832, %v1697
        %v1752 = vmul.f32 %v833, %v1698
        %v1753 = vmul.f32 %v834, %v1699
        %v1754 = vmul.f32 %v835, %v1700
        %v1755 = vmul.f32 %v836, %v1701
        %v1756 = vmul.f32 %v837, %v1702
        %v1757 = vmul.f32 %v838, %v1703
        %v1758 = vmul.f32 %v839, %v1704
        %v1759 = vmul.f32 %v840, %v1705
        %v1760 = vmul.f32 %v841, %v1706
        %v1761 = vmul.f32 %v842, %v1707
        %v1762 = vmul.f32 %v843, %v1708
        %v1763 = vmul.f32 %v844, %v1709
        %v1764 = vmul.f32 %v845, %v1710
        %v1765 = vmul.f32 %v846, %v1711
        %v1766 = vmul.f32 %v847, %v1712
        %v1767 = vmul.f32 %v848, %v1713
        %v1768 = vmul.f32 %v849, %v1714
        %v1769 = vmul.f32 %v850, %v1715
        %v1770 = vmul.f32 %v851, %v1716
        %v1771 = vmul.f32 %v852, %v1717
        %v1772 = vmul.f32 %v853, %v1718
        %v1773 = vmul.f32 %v854, %v1719
        %v1774 = vmul.f32 %v855, %v1720
        %v1775 = vmul.f32 %v856, %v1721
        %v1776 = vmul.f32 %v857, %v1722
        %v1777 = vmul.f32 %v858, %v1723
        %v1778 = vmul.f32 %v859, %v1724
        %v1779 = vmul.f32 %v860, %v1725
        %v1780 = vmul.f32 %v861, %v1726
        %v1781 = vmul.f32 %v862, %v1727
        %v1782 = vpack.c.bf16 %v1729, %v1728
        %v1783 = vpack.c.bf16 %v1731, %v1730
        %v1784 = vpack.c.bf16 %v1733, %v1732
        %v1785 = vpack.c.bf16 %v1735, %v1734
        %v1786 = vpack.c.bf16 %v1737, %v1736
        %v1787 = vpack.c.bf16 %v1739, %v1738
        %v1788 = vpack.c.bf16 %v1741, %v1740
        %v1789 = vpack.c.bf16 %v1743, %v1742
        %v1790 = vpack.c.bf16 %v1745, %v1744
        %v1791 = vpack.c.bf16 %v1747, %v1746
        %v1792 = vpack.c.bf16 %v1749, %v1748
        %v1793 = vpack.c.bf16 %v1751, %v1750
        %v1794 = vpack.c.bf16 %v1753, %v1752
        %v1795 = vpack.c.bf16 %v1755, %v1754
        %v1796 = vpack.c.bf16 %v1757, %v1756
        %v1797 = vpack.c.bf16 %v1759, %v1758
        %v1798 = vpack.c.bf16 %v1761, %v1760
        %v1799 = vpack.c.bf16 %v1763, %v1762
        %v1800 = vpack.c.bf16 %v1765, %v1764
        %v1801 = vpack.c.bf16 %v1767, %v1766
        %v1802 = vpack.c.bf16 %v1769, %v1768
        %v1803 = vpack.c.bf16 %v1771, %v1770
        %v1804 = vpack.c.bf16 %v1773, %v1772
        %v1805 = vpack.c.bf16 %v1775, %v1774
        %v1806 = vpack.c.bf16 %v1777, %v1776
        %v1807 = vpack.c.bf16 %v1779, %v1778
        %v1808 = vpack.c.bf16 %v1781, %v1780
        %1809 = vst [vmem:[#allocation2] sm:$0xff] 0
        %1810 = vst [vmem:[#allocation2 + $0x8] sm:$0xff] 0
        %1811 = vst [vmem:[#allocation2 + $0xe8] sm:$0xff] 0
        %1812 = vst [vmem:[#allocation2 + $0xf0] sm:$0xff] 0
        %1813 = vst [vmem:[#allocation2 + $0x10] sm:$0xff] %v1782
        %1814 = vst [vmem:[#allocation2 + $0x18] sm:$0xff] %v1783
        %1815 = vst [vmem:[#allocation2 + $0x20] sm:$0xff] %v1784
        %1816 = vst [vmem:[#allocation2 + $0x28] sm:$0xff] %v1785
        %1817 = vst [vmem:[#allocation2 + $0x30] sm:$0xff] %v1786
        %1818 = vst [vmem:[#allocation2 + $0x38] sm:$0xff] %v1787
        %1819 = vst [vmem:[#allocation2 + $0x40] sm:$0xff] %v1788
        %1820 = vst [vmem:[#allocation2 + $0x48] sm:$0xff] %v1789
        %1821 = vst [vmem:[#allocation2 + $0x50] sm:$0xff] %v1790
        %1822 = vst [vmem:[#allocation2 + $0x58] sm:$0xff] %v1791
        %1823 = vst [vmem:[#allocation2 + $0x60] sm:$0xff] %v1792
        %1824 = vst [vmem:[#allocation2 + $0x68] sm:$0xff] %v1793
        %1825 = vst [vmem:[#allocation2 + $0x70] sm:$0xff] %v1794
        %1826 = vst [vmem:[#allocation2 + $0x78] sm:$0xff] %v1795
        %1827 = vst [vmem:[#allocation2 + $0x80] sm:$0xff] %v1796
        %1828 = vst [vmem:[#allocation2 + $0x88] sm:$0xff] %v1797
        %1829 = vst [vmem:[#allocation2 + $0x90] sm:$0xff] %v1798
        %1830 = vst [vmem:[#allocation2 + $0x98] sm:$0xff] %v1799
        %1831 = vst [vmem:[#allocation2 + $0xa0] sm:$0xff] %v1800
        %1832 = vst [vmem:[#allocation2 + $0xa8] sm:$0xff] %v1801
        %1833 = vst [vmem:[#allocation2 + $0xb0] sm:$0xff] %v1802
        %1834 = vst [vmem:[#allocation2 + $0xb8] sm:$0xff] %v1803
        %1835 = vst [vmem:[#allocation2 + $0xc0] sm:$0xff] %v1804
        %1836 = vst [vmem:[#allocation2 + $0xc8] sm:$0xff] %v1805
        %1837 = vst [vmem:[#allocation2 + $0xd0] sm:$0xff] %v1806
        %1838 = vst [vmem:[#allocation2 + $0xd8] sm:$0xff] %v1807
        %1839 = vst [vmem:[#allocation2 + $0xe0] sm:$0xff] %v1808
        %v1840 = vld [vmem:[#allocation2] sm:$0xf8]
        %v1841 = vld [vmem:[#allocation2 + $0x8] sm:$0xff]
        %v1842 = vld [vmem:[#allocation2 + $0x10] sm:$0xff]
        %v1843 = vld [vmem:[#allocation2 + $0x18] sm:$0xff]
        %v1844 = vld [vmem:[#allocation2 + $0x20] sm:$0xff]
        %v1845 = vld [vmem:[#allocation2 + $0x28] sm:$0xff]
        %v1846 = vld [vmem:[#allocation2 + $0x30] sm:$0xff]
        %v1847 = vld [vmem:[#allocation2 + $0x38] sm:$0xff]
        %v1848 = vld [vmem:[#allocation2 + $0x40] sm:$0xff]
        %v1849 = vld [vmem:[#allocation2 + $0x48] sm:$0xff]
        %v1850 = vld [vmem:[#allocation2 + $0x50] sm:$0xff]
        %v1851 = vld [vmem:[#allocation2 + $0x58] sm:$0xff]
        %v1852 = vld [vmem:[#allocation2 + $0x60] sm:$0xff]
        %v1853 = vld [vmem:[#allocation2 + $0x68] sm:$0xff]
        %v1854 = vld [vmem:[#allocation2 + $0x70] sm:$0xff]
        %v1855 = vld [vmem:[#allocation2 + $0x78] sm:$0xff]
        %v1856 = vld [vmem:[#allocation2 + $0x80] sm:$0xff]
        %v1857 = vld [vmem:[#allocation2 + $0x88] sm:$0xff]
        %v1858 = vld [vmem:[#allocation2 + $0x90] sm:$0xff]
        %v1859 = vld [vmem:[#allocation2 + $0x98] sm:$0xff]
        %v1860 = vld [vmem:[#allocation2 + $0xa0] sm:$0xff]
        %v1861 = vld [vmem:[#allocation2 + $0xa8] sm:$0xff]
        %v1862 = vld [vmem:[#allocation2 + $0xb0] sm:$0xff]
        %v1863 = vld [vmem:[#allocation2 + $0xb8] sm:$0xff]
        %v1864 = vld [vmem:[#allocation2 + $0xc0] sm:$0xff]
        %v1865 = vld [vmem:[#allocation2 + $0xc8] sm:$0xff]
        %v1866 = vld [vmem:[#allocation2 + $0xd0] sm:$0xff]
        %v1867 = vld [vmem:[#allocation2 + $0xd8] sm:$0xf]
        %v1868 = vld [vmem:[#allocation8] sm:$0xf]
        %v1869 = vld [vmem:[#allocation8 + $0x4] sm:$0xf]
        %v1870 = vld [vmem:[#allocation8 + $0x8] sm:$0xf]
        %v1871 = vld [vmem:[#allocation8 + $0xc] sm:$0xf]
        %v1872 = vld [vmem:[#allocation8 + $0x10] sm:$0xf]
        %v1873 = vld [vmem:[#allocation8 + $0x14] sm:$0xf]
        %v1874 = vld [vmem:[#allocation8 + $0x18] sm:$0xf]
        %v1875 = vld [vmem:[#allocation8 + $0x1c] sm:$0xf]
        %v1876 = vld [vmem:[#allocation8 + $0x20] sm:$0xf]
        %v1877 = vld [vmem:[#allocation8 + $0x24] sm:$0xf]
        %v1878 = vld [vmem:[#allocation8 + $0x28] sm:$0xf]
        %v1879 = vld [vmem:[#allocation8 + $0x2c] sm:$0xf]
        %v1880 = vld [vmem:[#allocation8 + $0x30] sm:$0xf]
        %v1881 = vld [vmem:[#allocation8 + $0x34] sm:$0xf]
        %v1882 = vld [vmem:[#allocation8 + $0x38] sm:$0xf]
        %v1883 = vld [vmem:[#allocation8 + $0x3c] sm:$0xf]
        %v1884 = vld [vmem:[#allocation2] sm:$0xf0]
        %s1885 = scalar_lea.vmem [#allocation8], 64
        %v1886 = vld [vmem:[%s1885] sm:$0xf]
        %v1887 = vld [vmem:[%s1885 + $0x4] sm:$0xf]
        %v1888 = vld [vmem:[%s1885 + $0x8] sm:$0xf]
        %v1889 = vld [vmem:[%s1885 + $0xc] sm:$0xf]
        %v1890 = vld [vmem:[%s1885 + $0x10] sm:$0xf]
        %v1891 = vld [vmem:[%s1885 + $0x14] sm:$0xf]
        %v1892 = vld [vmem:[%s1885 + $0x18] sm:$0xf]
        %v1893 = vld [vmem:[%s1885 + $0x1c] sm:$0xf]
        %v1894 = vld [vmem:[%s1885 + $0x20] sm:$0xf]
        %v1895 = vld [vmem:[%s1885 + $0x24] sm:$0xf]
        %v1896 = vld [vmem:[%s1885 + $0x28] sm:$0xf]
        %v1897 = vld [vmem:[%s1885 + $0x2c] sm:$0xf]
        %v1898 = vld [vmem:[%s1885 + $0x30] sm:$0xf]
        %v1899 = vld [vmem:[%s1885 + $0x34] sm:$0xf]
        %v1900 = vld [vmem:[%s1885 + $0x38] sm:$0xf]
        %v1901 = vld [vmem:[%s1885 + $0x3c] sm:$0xf]
        %vm1930 = vcmask 1043456
        %v1931 = vrot.slane %v1884, 4
        %v1932 = vrot.slane %v1841, 4
        %v1933 = vsel %vm1930, %v1931, %v1932
        %v1934 = vrot.slane %v1842, 4
        %v1935 = vsel %vm1930, %v1932, %v1934
        %v1936 = vrot.slane %v1843, 4
        %v1937 = vsel %vm1930, %v1934, %v1936
        %v1938 = vrot.slane %v1844, 4
        %v1939 = vsel %vm1930, %v1936, %v1938
        %v1940 = vrot.slane %v1845, 4
        %v1941 = vsel %vm1930, %v1938, %v1940
        %v1942 = vrot.slane %v1846, 4
        %v1943 = vsel %vm1930, %v1940, %v1942
        %v1944 = vrot.slane %v1847, 4
        %v1945 = vsel %vm1930, %v1942, %v1944
        %v1946 = vrot.slane %v1848, 4
        %v1947 = vsel %vm1930, %v1944, %v1946
        %v1948 = vrot.slane %v1849, 4
        %v1949 = vsel %vm1930, %v1946, %v1948
        %v1950 = vrot.slane %v1850, 4
        %v1951 = vsel %vm1930, %v1948, %v1950
        %v1952 = vrot.slane %v1851, 4
        %v1953 = vsel %vm1930, %v1950, %v1952
        %v1954 = vrot.slane %v1852, 4
        %v1955 = vsel %vm1930, %v1952, %v1954
        %v1956 = vrot.slane %v1853, 4
        %v1957 = vsel %vm1930, %v1954, %v1956
        %v1958 = vrot.slane %v1854, 4
        %v1959 = vsel %vm1930, %v1956, %v1958
        %v1960 = vrot.slane %v1855, 4
        %v1961 = vsel %vm1930, %v1958, %v1960
        %v1962 = vrot.slane %v1856, 4
        %v1963 = vsel %vm1930, %v1960, %v1962
        %v1964 = vrot.slane %v1857, 4
        %v1965 = vsel %vm1930, %v1962, %v1964
        %v1966 = vrot.slane %v1858, 4
        %v1967 = vsel %vm1930, %v1964, %v1966
        %v1968 = vrot.slane %v1859, 4
        %v1969 = vsel %vm1930, %v1966, %v1968
        %v1970 = vrot.slane %v1860, 4
        %v1971 = vsel %vm1930, %v1968, %v1970
        %v1972 = vrot.slane %v1861, 4
        %v1973 = vsel %vm1930, %v1970, %v1972
        %v1974 = vrot.slane %v1862, 4
        %v1975 = vsel %vm1930, %v1972, %v1974
        %v1976 = vrot.slane %v1863, 4
        %v1977 = vsel %vm1930, %v1974, %v1976
        %v1978 = vrot.slane %v1864, 4
        %v1979 = vsel %vm1930, %v1976, %v1978
        %v1980 = vrot.slane %v1865, 4
        %v1981 = vsel %vm1930, %v1978, %v1980
        %v1982 = vrot.slane %v1866, 4
        %v1983 = vsel %vm1930, %v1980, %v1982
        %v1984 = vrot.slane %v1867, 4
        %v1985 = vsel %vm1930, %v1982, %v1984
        %v2029 = vunpack.c.l.b16 %v1886
        %v2030 = vunpack.c.l.b16 %v1887
        %v2031 = vunpack.c.l.b16 %v1888
        %v2032 = vunpack.c.l.b16 %v1889
        %v2033 = vunpack.c.l.b16 %v1890
        %v2034 = vunpack.c.l.b16 %v1891
        %v2035 = vunpack.c.l.b16 %v1892
        %v2036 = vunpack.c.l.b16 %v1893
        %v2037 = vunpack.c.l.b16 %v1894
        %v2038 = vunpack.c.l.b16 %v1895
        %v2039 = vunpack.c.l.b16 %v1896
        %v2040 = vunpack.c.l.b16 %v1897
        %v2041 = vunpack.c.l.b16 %v1898
        %v2042 = vunpack.c.l.b16 %v1899
        %v2043 = vunpack.c.l.b16 %v1900
        %v2044 = vunpack.c.l.b16 %v1901
        %v2045 = vpack.c.b16 %v2030, %v2029
        %v2046 = vpack.c.b16 %v2032, %v2031
        %v2047 = vpack.c.b16 %v2034, %v2033
        %v2048 = vpack.c.b16 %v2036, %v2035
        %v2049 = vpack.c.b16 %v2038, %v2037
        %v2050 = vpack.c.b16 %v2040, %v2039
        %v2051 = vpack.c.b16 %v2042, %v2041
        %v2052 = vpack.c.b16 %v2044, %v2043
        %2061 = vmatprep.subr.bf16.mxu0 0
        %2062 = vmatpush1.bf16.msra.mxu0 %v2045
        %2063 = vmatprep.subr.bf16.mxu0 0
        %2064 = vmatpush1.bf16.msra.mxu0 %v2046
        %2065 = vmatprep.subr.bf16.mxu0 0
        %2066 = vmatpush1.bf16.msra.mxu0 %v2047
        %2067 = vmatprep.subr.bf16.mxu0 0
        %2068 = vmatpush1.bf16.msra.mxu0 %v2048
        %2069 = vmatprep.subr.bf16.mxu0 0
        %2070 = vmatpush1.bf16.msra.mxu0 %v2049
        %2071 = vmatprep.subr.bf16.mxu0 0
        %2072 = vmatpush1.bf16.msra.mxu0 %v2050
        %2073 = vmatprep.subr.bf16.mxu0 0
        %2074 = vmatpush1.bf16.msra.mxu0 %v2051
        %2075 = vmatprep.subr.bf16.mxu0 0
        %2076 = vmatpush1.bf16.msra.mxu0 %v2052
        %2077 = vmatprep.subr.bf16.mxu0 0
        %2078 = vmatpush1.bf16.msra.mxu0 0
        %2079 = vmatprep.subr.bf16.mxu0 0
        %2080 = vmatpush1.bf16.msra.mxu0 0
        %2081 = vmatprep.subr.bf16.mxu0 0
        %2082 = vmatpush1.bf16.msra.mxu0 0
        %2083 = vmatprep.subr.bf16.mxu0 0
        %2084 = vmatpush1.bf16.msra.mxu0 0
        %2085 = vmatprep.subr.bf16.mxu0 0
        %2086 = vmatpush1.bf16.msra.mxu0 0
        %2087 = vmatprep.subr.bf16.mxu0 0
        %2088 = vmatpush1.bf16.msra.mxu0 0
        %2089 = vmatprep.subr.bf16.mxu0 0
        %2090 = vmatpush1.bf16.msra.mxu0 0
        %2091 = vmatprep.subr.bf16.mxu0 0
        %2092 = vmatpush1.bf16.msra.mxu0 0
        %2093 = vmatprep.mubr.bf16.mxu0 0
        %2094 = vmatmul.mubr.bf16.gmra.mrb[0].mxu0 %v1933
        %v2095 = vpop.f32.mrb[0].mxu0
        %v2096 = vadd.f32 0.0, %v2095
        %v2097 = vpop.f32.mrb[0].mxu0
        %v2098 = vpop.f32.mrb[0].mxu0
        %v2099 = vadd.f32 0.0, %v2098
        %v2100 = vpop.f32.mrb[0].mxu0
        %2101 = vmatprep.mubr.bf16.mxu0 0
        %2102 = vmatmul.mubr.bf16.gmra.mrb[0].mxu0 %v1935
        %v2103 = vpop.f32.mrb[0].mxu0
        %v2104 = vadd.f32 0.0, %v2103
        %v2105 = vpop.f32.mrb[0].mxu0
        %v2106 = vpop.f32.mrb[0].mxu0
        %v2107 = vadd.f32 0.0, %v2106
        %v2108 = vpop.f32.mrb[0].mxu0
        %2109 = vmatprep.mubr.bf16.mxu0 0
        %2110 = vmatmul.mubr.bf16.gmra.mrb[0].mxu0 %v1937
        %v2111 = vpop.f32.mrb[0].mxu0
        %v2112 = vadd.f32 0.0, %v2111
        %v2113 = vpop.f32.mrb[0].mxu0
        %v2114 = vpop.f32.mrb[0].mxu0
        %v2115 = vadd.f32 0.0, %v2114
        %v2116 = vpop.f32.mrb[0].mxu0
        %2117 = vmatprep.mubr.bf16.mxu0 0
        %2118 = vmatmul.mubr.bf16.gmra.mrb[0].mxu0 %v1939
        %v2119 = vpop.f32.mrb[0].mxu0
        %v2120 = vadd.f32 0.0, %v2119
        %v2121 = vpop.f32.mrb[0].mxu0
        %v2122 = vpop.f32.mrb[0].mxu0
        %v2123 = vadd.f32 0.0, %v2122
        %v2124 = vpop.f32.mrb[0].mxu0
        %2125 = vmatprep.mubr.bf16.mxu0 0
        %2126 = vmatmul.mubr.bf16.gmra.mrb[0].mxu0 %v1941
        %v2127 = vpop.f32.mrb[0].mxu0
        %v2128 = vadd.f32 0.0, %v2127
        %v2129 = vpop.f32.mrb[0].mxu0
        %v2130 = vpop.f32.mrb[0].mxu0
        %v2131 = vadd.f32 0.0, %v2130
        %v2132 = vpop.f32.mrb[0].mxu0
        %2133 = vmatprep.mubr.bf16.mxu0 0
        %2134 = vmatmul.mubr.bf16.gmra.mrb[0].mxu0 %v1943
        %v2135 = vpop.f32.mrb[0].mxu0
        %v2136 = vadd.f32 0.0, %v2135
        %v2137 = vpop.f32.mrb[0].mxu0
        %v2138 = vpop.f32.mrb[0].mxu0
        %v2139 = vadd.f32 0.0, %v2138
        %v2140 = vpop.f32.mrb[0].mxu0
        %2141 = vmatprep.mubr.bf16.mxu0 0
        %2142 = vmatmul.mubr.bf16.gmra.mrb[0].mxu0 %v1945
        %v2143 = vpop.f32.mrb[0].mxu0
        %v2144 = vadd.f32 0.0, %v2143
        %v2145 = vpop.f32.mrb[0].mxu0
        %v2146 = vpop.f32.mrb[0].mxu0
        %v2147 = vadd.f32 0.0, %v2146
        %v2148 = vpop.f32.mrb[0].mxu0
        %2149 = vmatprep.mubr.bf16.mxu0 0
        %2150 = vmatmul.mubr.bf16.gmra.mrb[0].mxu0 %v1947
        %v2151 = vpop.f32.mrb[0].mxu0
        %v2152 = vadd.f32 0.0, %v2151
        %v2153 = vpop.f32.mrb[0].mxu0
        %v2154 = vpop.f32.mrb[0].mxu0
        %v2155 = vadd.f32 0.0, %v2154
        %v2156 = vpop.f32.mrb[0].mxu0
        %2157 = vmatprep.mubr.bf16.mxu0 0
        %2158 = vmatmul.mubr.bf16.gmra.mrb[0].mxu0 %v1949
        %v2159 = vpop.f32.mrb[0].mxu0
        %v2160 = vadd.f32 0.0, %v2159
        %v2161 = vpop.f32.mrb[0].mxu0
        %v2162 = vpop.f32.mrb[0].mxu0
        %v2163 = vadd.f32 0.0, %v2162
        %v2164 = vpop.f32.mrb[0].mxu0
        %2165 = vmatprep.mubr.bf16.mxu0 0
        %2166 = vmatmul.mubr.bf16.gmra.mrb[0].mxu0 %v1951
        %v2167 = vpop.f32.mrb[0].mxu0
        %v2168 = vadd.f32 0.0, %v2167
        %v2169 = vpop.f32.mrb[0].mxu0
        %v2170 = vpop.f32.mrb[0].mxu0
        %v2171 = vadd.f32 0.0, %v2170
        %v2172 = vpop.f32.mrb[0].mxu0
        %2173 = vmatprep.mubr.bf16.mxu0 0
        %2174 = vmatmul.mubr.bf16.gmra.mrb[0].mxu0 %v1953
        %v2175 = vpop.f32.mrb[0].mxu0
        %v2176 = vadd.f32 0.0, %v2175
        %v2177 = vpop.f32.mrb[0].mxu0
        %v2178 = vpop.f32.mrb[0].mxu0
        %v2179 = vadd.f32 0.0, %v2178
        %v2180 = vpop.f32.mrb[0].mxu0
        %2181 = vmatprep.mubr.bf16.mxu0 0
        %2182 = vmatmul.mubr.bf16.gmra.mrb[0].mxu0 %v1955
        %v2183 = vpop.f32.mrb[0].mxu0
        %v2184 = vadd.f32 0.0, %v2183
        %v2185 = vpop.f32.mrb[0].mxu0
        %v2186 = vpop.f32.mrb[0].mxu0
        %v2187 = vadd.f32 0.0, %v2186
        %v2188 = vpop.f32.mrb[0].mxu0
        %2189 = vmatprep.mubr.bf16.mxu0 0
        %2190 = vmatmul.mubr.bf16.gmra.mrb[0].mxu0 %v1957
        %v2191 = vpop.f32.mrb[0].mxu0
        %v2192 = vadd.f32 0.0, %v2191
        %v2193 = vpop.f32.mrb[0].mxu0
        %v2194 = vpop.f32.mrb[0].mxu0
        %v2195 = vadd.f32 0.0, %v2194
        %v2196 = vpop.f32.mrb[0].mxu0
        %2197 = vmatprep.mubr.bf16.mxu0 0
        %2198 = vmatmul.mubr.bf16.gmra.mrb[0].mxu0 %v1959
        %v2199 = vpop.f32.mrb[0].mxu0
        %v2200 = vadd.f32 0.0, %v2199
        %v2201 = vpop.f32.mrb[0].mxu0
        %v2202 = vpop.f32.mrb[0].mxu0
        %v2203 = vadd.f32 0.0, %v2202
        %v2204 = vpop.f32.mrb[0].mxu0
        %2205 = vmatprep.mubr.bf16.mxu0 0
        %2206 = vmatmul.mubr.bf16.gmra.mrb[0].mxu0 %v1961
        %v2207 = vpop.f32.mrb[0].mxu0
        %v2208 = vadd.f32 0.0, %v2207
        %v2209 = vpop.f32.mrb[0].mxu0
        %v2210 = vpop.f32.mrb[0].mxu0
        %v2211 = vadd.f32 0.0, %v2210
        %v2212 = vpop.f32.mrb[0].mxu0
        %2213 = vmatprep.mubr.bf16.mxu0 0
        %2214 = vmatmul.mubr.bf16.gmra.mrb[0].mxu0 %v1963
        %v2215 = vpop.f32.mrb[0].mxu0
        %v2216 = vadd.f32 0.0, %v2215
        %v2217 = vpop.f32.mrb[0].mxu0
        %v2218 = vpop.f32.mrb[0].mxu0
        %v2219 = vadd.f32 0.0, %v2218
        %v2220 = vpop.f32.mrb[0].mxu0
        %2221 = vmatprep.mubr.bf16.mxu0 0
        %2222 = vmatmul.mubr.bf16.gmra.mrb[0].mxu0 %v1965
        %v2223 = vpop.f32.mrb[0].mxu0
        %v2224 = vadd.f32 0.0, %v2223
        %v2225 = vpop.f32.mrb[0].mxu0
        %v2226 = vpop.f32.mrb[0].mxu0
        %v2227 = vadd.f32 0.0, %v2226
        %v2228 = vpop.f32.mrb[0].mxu0
        %2229 = vmatprep.mubr.bf16.mxu0 0
        %2230 = vmatmul.mubr.bf16.gmra.mrb[0].mxu0 %v1967
        %v2231 = vpop.f32.mrb[0].mxu0
        %v2232 = vadd.f32 0.0, %v2231
        %v2233 = vpop.f32.mrb[0].mxu0
        %v2234 = vpop.f32.mrb[0].mxu0
        %v2235 = vadd.f32 0.0, %v2234
        %v2236 = vpop.f32.mrb[0].mxu0
        %2237 = vmatprep.mubr.bf16.mxu0 0
        %2238 = vmatmul.mubr.bf16.gmra.mrb[0].mxu0 %v1969
        %v2239 = vpop.f32.mrb[0].mxu0
        %v2240 = vadd.f32 0.0, %v2239
        %v2241 = vpop.f32.mrb[0].mxu0
        %v2242 = vpop.f32.mrb[0].mxu0
        %v2243 = vadd.f32 0.0, %v2242
        %v2244 = vpop.f32.mrb[0].mxu0
        %2245 = vmatprep.mubr.bf16.mxu0 0
        %2246 = vmatmul.mubr.bf16.gmra.mrb[0].mxu0 %v1971
        %v2247 = vpop.f32.mrb[0].mxu0
        %v2248 = vadd.f32 0.0, %v2247
        %v2249 = vpop.f32.mrb[0].mxu0
        %v2250 = vpop.f32.mrb[0].mxu0
        %v2251 = vadd.f32 0.0, %v2250
        %v2252 = vpop.f32.mrb[0].mxu0
        %2253 = vmatprep.mubr.bf16.mxu0 0
        %2254 = vmatmul.mubr.bf16.gmra.mrb[0].mxu0 %v1973
        %v2255 = vpop.f32.mrb[0].mxu0
        %v2256 = vadd.f32 0.0, %v2255
        %v2257 = vpop.f32.mrb[0].mxu0
        %v2258 = vpop.f32.mrb[0].mxu0
        %v2259 = vadd.f32 0.0, %v2258
        %v2260 = vpop.f32.mrb[0].mxu0
        %2261 = vmatprep.mubr.bf16.mxu0 0
        %2262 = vmatmul.mubr.bf16.gmra.mrb[0].mxu0 %v1975
        %v2263 = vpop.f32.mrb[0].mxu0
        %v2264 = vadd.f32 0.0, %v2263
        %v2265 = vpop.f32.mrb[0].mxu0
        %v2266 = vpop.f32.mrb[0].mxu0
        %v2267 = vadd.f32 0.0, %v2266
        %v2268 = vpop.f32.mrb[0].mxu0
        %2269 = vmatprep.mubr.bf16.mxu0 0
        %2270 = vmatmul.mubr.bf16.gmra.mrb[0].mxu0 %v1977
        %v2271 = vpop.f32.mrb[0].mxu0
        %v2272 = vadd.f32 0.0, %v2271
        %v2273 = vpop.f32.mrb[0].mxu0
        %v2274 = vpop.f32.mrb[0].mxu0
        %v2275 = vadd.f32 0.0, %v2274
        %v2276 = vpop.f32.mrb[0].mxu0
        %2277 = vmatprep.mubr.bf16.mxu0 0
        %2278 = vmatmul.mubr.bf16.gmra.mrb[0].mxu0 %v1979
        %v2279 = vpop.f32.mrb[0].mxu0
        %v2280 = vadd.f32 0.0, %v2279
        %v2281 = vpop.f32.mrb[0].mxu0
        %v2282 = vpop.f32.mrb[0].mxu0
        %v2283 = vadd.f32 0.0, %v2282
        %v2284 = vpop.f32.mrb[0].mxu0
        %2285 = vmatprep.mubr.bf16.mxu0 0
        %2286 = vmatmul.mubr.bf16.gmra.mrb[0].mxu0 %v1981
        %v2287 = vpop.f32.mrb[0].mxu0
        %v2288 = vadd.f32 0.0, %v2287
        %v2289 = vpop.f32.mrb[0].mxu0
        %v2290 = vpop.f32.mrb[0].mxu0
        %v2291 = vadd.f32 0.0, %v2290
        %v2292 = vpop.f32.mrb[0].mxu0
        %2293 = vmatprep.mubr.bf16.mxu0 0
        %2294 = vmatmul.mubr.bf16.gmra.mrb[0].mxu0 %v1983
        %v2295 = vpop.f32.mrb[0].mxu0
        %v2296 = vadd.f32 0.0, %v2295
        %v2297 = vpop.f32.mrb[0].mxu0
        %v2298 = vpop.f32.mrb[0].mxu0
        %v2299 = vadd.f32 0.0, %v2298
        %v2300 = vpop.f32.mrb[0].mxu0
        %2301 = vmatprep.mubr.bf16.mxu0 0
        %2302 = vmatmul.mubr.bf16.gmra.mrb[0].mxu0 %v1985
        %v2303 = vpop.f32.mrb[0].mxu0
        %v2304 = vadd.f32 0.0, %v2303
        %v2305 = vpop.f32.mrb[0].mxu0
        %v2306 = vpop.f32.mrb[0].mxu0
        %v2307 = vadd.f32 0.0, %v2306
        %v2308 = vpop.f32.mrb[0].mxu0
        %2309 = vdwg.mxu0
        %vm2310 = vsmask.f32 4352
        %v2312 = vshrl.u32 %v1840, 16
        %v2314 = vrot.slane %v2312, 3
        %v2315 = vshll.u32 %v1840, 16
        %v2317 = vrot.slane %v2315, 4
        %v2318 = vor.u32 %v2314, %v2317
        %v2320 = vshrl.u32 %v1841, 16
        %v2322 = vrot.slane %v2320, 3
        %v2323 = vshll.u32 %v1841, 16
        %v2325 = vrot.slane %v2323, 4
        %v2326 = vor.u32 %v2322, %v2325
        %v2327 = vsel %vm2310, %v2318, %v2326
        %v2329 = vshrl.u32 %v1842, 16
        %v2331 = vrot.slane %v2329, 3
        %v2332 = vshll.u32 %v1842, 16
        %v2334 = vrot.slane %v2332, 4
        %v2335 = vor.u32 %v2331, %v2334
        %v2336 = vsel %vm2310, %v2326, %v2335
        %v2338 = vshrl.u32 %v1843, 16
        %v2340 = vrot.slane %v2338, 3
        %v2341 = vshll.u32 %v1843, 16
        %v2343 = vrot.slane %v2341, 4
        %v2344 = vor.u32 %v2340, %v2343
        %v2345 = vsel %vm2310, %v2335, %v2344
        %v2347 = vshrl.u32 %v1844, 16
        %v2349 = vrot.slane %v2347, 3
        %v2350 = vshll.u32 %v1844, 16
        %v2352 = vrot.slane %v2350, 4
        %v2353 = vor.u32 %v2349, %v2352
        %v2354 = vsel %vm2310, %v2344, %v2353
        %v2356 = vshrl.u32 %v1845, 16
        %v2358 = vrot.slane %v2356, 3
        %v2359 = vshll.u32 %v1845, 16
        %v2361 = vrot.slane %v2359, 4
        %v2362 = vor.u32 %v2358, %v2361
        %v2363 = vsel %vm2310, %v2353, %v2362
        %v2365 = vshrl.u32 %v1846, 16
        %v2367 = vrot.slane %v2365, 3
        %v2368 = vshll.u32 %v1846, 16
        %v2370 = vrot.slane %v2368, 4
        %v2371 = vor.u32 %v2367, %v2370
        %v2372 = vsel %vm2310, %v2362, %v2371
        %v2374 = vshrl.u32 %v1847, 16
        %v2376 = vrot.slane %v2374, 3
        %v2377 = vshll.u32 %v1847, 16
        %v2379 = vrot.slane %v2377, 4
        %v2380 = vor.u32 %v2376, %v2379
        %v2381 = vsel %vm2310, %v2371, %v2380
        %v2383 = vshrl.u32 %v1848, 16
        %v2385 = vrot.slane %v2383, 3
        %v2386 = vshll.u32 %v1848, 16
        %v2388 = vrot.slane %v2386, 4
        %v2389 = vor.u32 %v2385, %v2388
        %v2390 = vsel %vm2310, %v2380, %v2389
        %v2392 = vshrl.u32 %v1849, 16
        %v2394 = vrot.slane %v2392, 3
        %v2395 = vshll.u32 %v1849, 16
        %v2397 = vrot.slane %v2395, 4
        %v2398 = vor.u32 %v2394, %v2397
        %v2399 = vsel %vm2310, %v2389, %v2398
        %v2401 = vshrl.u32 %v1850, 16
        %v2403 = vrot.slane %v2401, 3
        %v2404 = vshll.u32 %v1850, 16
        %v2406 = vrot.slane %v2404, 4
        %v2407 = vor.u32 %v2403, %v2406
        %v2408 = vsel %vm2310, %v2398, %v2407
        %v2410 = vshrl.u32 %v1851, 16
        %v2412 = vrot.slane %v2410, 3
        %v2413 = vshll.u32 %v1851, 16
        %v2415 = vrot.slane %v2413, 4
        %v2416 = vor.u32 %v2412, %v2415
        %v2417 = vsel %vm2310, %v2407, %v2416
        %v2419 = vshrl.u32 %v1852, 16
        %v2421 = vrot.slane %v2419, 3
        %v2422 = vshll.u32 %v1852, 16
        %v2424 = vrot.slane %v2422, 4
        %v2425 = vor.u32 %v2421, %v2424
        %v2426 = vsel %vm2310, %v2416, %v2425
        %v2428 = vshrl.u32 %v1853, 16
        %v2430 = vrot.slane %v2428, 3
        %v2431 = vshll.u32 %v1853, 16
        %v2433 = vrot.slane %v2431, 4
        %v2434 = vor.u32 %v2430, %v2433
        %v2435 = vsel %vm2310, %v2425, %v2434
        %v2437 = vshrl.u32 %v1854, 16
        %v2439 = vrot.slane %v2437, 3
        %v2440 = vshll.u32 %v1854, 16
        %v2442 = vrot.slane %v2440, 4
        %v2443 = vor.u32 %v2439, %v2442
        %v2444 = vsel %vm2310, %v2434, %v2443
        %v2446 = vshrl.u32 %v1855, 16
        %v2448 = vrot.slane %v2446, 3
        %v2449 = vshll.u32 %v1855, 16
        %v2451 = vrot.slane %v2449, 4
        %v2452 = vor.u32 %v2448, %v2451
        %v2453 = vsel %vm2310, %v2443, %v2452
        %v2455 = vshrl.u32 %v1856, 16
        %v2457 = vrot.slane %v2455, 3
        %v2458 = vshll.u32 %v1856, 16
        %v2460 = vrot.slane %v2458, 4
        %v2461 = vor.u32 %v2457, %v2460
        %v2462 = vsel %vm2310, %v2452, %v2461
        %v2464 = vshrl.u32 %v1857, 16
        %v2466 = vrot.slane %v2464, 3
        %v2467 = vshll.u32 %v1857, 16
        %v2469 = vrot.slane %v2467, 4
        %v2470 = vor.u32 %v2466, %v2469
        %v2471 = vsel %vm2310, %v2461, %v2470
        %v2473 = vshrl.u32 %v1858, 16
        %v2475 = vrot.slane %v2473, 3
        %v2476 = vshll.u32 %v1858, 16
        %v2478 = vrot.slane %v2476, 4
        %v2479 = vor.u32 %v2475, %v2478
        %v2480 = vsel %vm2310, %v2470, %v2479
        %v2482 = vshrl.u32 %v1859, 16
        %v2484 = vrot.slane %v2482, 3
        %v2485 = vshll.u32 %v1859, 16
        %v2487 = vrot.slane %v2485, 4
        %v2488 = vor.u32 %v2484, %v2487
        %v2489 = vsel %vm2310, %v2479, %v2488
        %v2491 = vshrl.u32 %v1860, 16
        %v2493 = vrot.slane %v2491, 3
        %v2494 = vshll.u32 %v1860, 16
        %v2496 = vrot.slane %v2494, 4
        %v2497 = vor.u32 %v2493, %v2496
        %v2498 = vsel %vm2310, %v2488, %v2497
        %v2500 = vshrl.u32 %v1861, 16
        %v2502 = vrot.slane %v2500, 3
        %v2503 = vshll.u32 %v1861, 16
        %v2505 = vrot.slane %v2503, 4
        %v2506 = vor.u32 %v2502, %v2505
        %v2507 = vsel %vm2310, %v2497, %v2506
        %v2509 = vshrl.u32 %v1862, 16
        %v2511 = vrot.slane %v2509, 3
        %v2512 = vshll.u32 %v1862, 16
        %v2514 = vrot.slane %v2512, 4
        %v2515 = vor.u32 %v2511, %v2514
        %v2516 = vsel %vm2310, %v2506, %v2515
        %v2518 = vshrl.u32 %v1863, 16
        %v2520 = vrot.slane %v2518, 3
        %v2521 = vshll.u32 %v1863, 16
        %v2523 = vrot.slane %v2521, 4
        %v2524 = vor.u32 %v2520, %v2523
        %v2525 = vsel %vm2310, %v2515, %v2524
        %v2527 = vshrl.u32 %v1864, 16
        %v2529 = vrot.slane %v2527, 3
        %v2530 = vshll.u32 %v1864, 16
        %v2532 = vrot.slane %v2530, 4
        %v2533 = vor.u32 %v2529, %v2532
        %v2534 = vsel %vm2310, %v2524, %v2533
        %v2536 = vshrl.u32 %v1865, 16
        %v2538 = vrot.slane %v2536, 3
        %v2539 = vshll.u32 %v1865, 16
        %v2541 = vrot.slane %v2539, 4
        %v2542 = vor.u32 %v2538, %v2541
        %v2543 = vsel %vm2310, %v2533, %v2542
        %v2545 = vshrl.u32 %v1866, 16
        %v2547 = vrot.slane %v2545, 3
        %v2548 = vshll.u32 %v1866, 16
        %v2550 = vrot.slane %v2548, 4
        %v2551 = vor.u32 %v2547, %v2550
        %v2552 = vsel %vm2310, %v2542, %v2551
        %v2554 = vshrl.u32 %v1867, 16
        %v2556 = vrot.slane %v2554, 3
        %v2557 = vshll.u32 %v1867, 16
        %v2559 = vrot.slane %v2557, 4
        %v2560 = vor.u32 %v2556, %v2559
        %v2561 = vsel %vm2310, %v2551, %v2560
        %v2605 = vunpack.c.l.b16 %v1868
        %v2606 = vunpack.c.l.b16 %v1869
        %v2607 = vunpack.c.l.b16 %v1870
        %v2608 = vunpack.c.l.b16 %v1871
        %v2609 = vunpack.c.l.b16 %v1872
        %v2610 = vunpack.c.l.b16 %v1873
        %v2611 = vunpack.c.l.b16 %v1874
        %v2612 = vunpack.c.l.b16 %v1875
        %v2613 = vunpack.c.l.b16 %v1876
        %v2614 = vunpack.c.l.b16 %v1877
        %v2615 = vunpack.c.l.b16 %v1878
        %v2616 = vunpack.c.l.b16 %v1879
        %v2617 = vunpack.c.l.b16 %v1880
        %v2618 = vunpack.c.l.b16 %v1881
        %v2619 = vunpack.c.l.b16 %v1882
        %v2620 = vunpack.c.l.b16 %v1883
        %v2621 = vpack.c.b16 %v2606, %v2605
        %v2622 = vpack.c.b16 %v2608, %v2607
        %v2623 = vpack.c.b16 %v2610, %v2609
        %v2624 = vpack.c.b16 %v2612, %v2611
        %v2625 = vpack.c.b16 %v2614, %v2613
        %v2626 = vpack.c.b16 %v2616, %v2615
        %v2627 = vpack.c.b16 %v2618, %v2617
        %v2628 = vpack.c.b16 %v2620, %v2619
        %2637 = vmatprep.subr.bf16.mxu0 0
        %2638 = vmatpush1.bf16.msra.mxu0 %v2621
        %2639 = vmatprep.subr.bf16.mxu0 0
        %2640 = vmatpush1.bf16.msra.mxu0 %v2622
        %2641 = vmatprep.subr.bf16.mxu0 0
        %2642 = vmatpush1.bf16.msra.mxu0 %v2623
        %2643 = vmatprep.subr.bf16.mxu0 0
        %2644 = vmatpush1.bf16.msra.mxu0 %v2624
        %2645 = vmatprep.subr.bf16.mxu0 0
        %2646 = vmatpush1.bf16.msra.mxu0 %v2625
        %2647 = vmatprep.subr.bf16.mxu0 0
        %2648 = vmatpush1.bf16.msra.mxu0 %v2626
        %2649 = vmatprep.subr.bf16.mxu0 0
        %2650 = vmatpush1.bf16.msra.mxu0 %v2627
        %2651 = vmatprep.subr.bf16.mxu0 0
        %2652 = vmatpush1.bf16.msra.mxu0 %v2628
        %2653 = vmatprep.subr.bf16.mxu0 0
        %2654 = vmatpush1.bf16.msra.mxu0 0
        %2655 = vmatprep.subr.bf16.mxu0 0
        %2656 = vmatpush1.bf16.msra.mxu0 0
        %2657 = vmatprep.subr.bf16.mxu0 0
        %2658 = vmatpush1.bf16.msra.mxu0 0
        %2659 = vmatprep.subr.bf16.mxu0 0
        %2660 = vmatpush1.bf16.msra.mxu0 0
        %2661 = vmatprep.subr.bf16.mxu0 0
        %2662 = vmatpush1.bf16.msra.mxu0 0
        %2663 = vmatprep.subr.bf16.mxu0 0
        %2664 = vmatpush1.bf16.msra.mxu0 0
        %2665 = vmatprep.subr.bf16.mxu0 0
        %2666 = vmatpush1.bf16.msra.mxu0 0
        %2667 = vmatprep.subr.bf16.mxu0 0
        %2668 = vmatpush1.bf16.msra.mxu0 0
        %2669 = vmatprep.mubr.bf16.mxu0 0
        %2670 = vmatmul.mubr.bf16.gmra.mrb[0].mxu0 %v2327
        %v2671 = vpop.f32.mrb[0].mxu0
        %v2672 = vadd.f32 %v2096, %v2671
        %v2673 = vpop.f32.mrb[0].mxu0
        %v2674 = vpop.f32.mrb[0].mxu0
        %v2675 = vadd.f32 %v2099, %v2674
        %v2676 = vpop.f32.mrb[0].mxu0
        %2677 = vmatprep.mubr.bf16.mxu0 0
        %2678 = vmatmul.mubr.bf16.gmra.mrb[0].mxu0 %v2336
        %v2679 = vpop.f32.mrb[0].mxu0
        %v2680 = vadd.f32 %v2104, %v2679
        %v2681 = vpop.f32.mrb[0].mxu0
        %v2682 = vpop.f32.mrb[0].mxu0
        %v2683 = vadd.f32 %v2107, %v2682
        %v2684 = vpop.f32.mrb[0].mxu0
        %2685 = vmatprep.mubr.bf16.mxu0 0
        %2686 = vmatmul.mubr.bf16.gmra.mrb[0].mxu0 %v2345
        %v2687 = vpop.f32.mrb[0].mxu0
        %v2688 = vadd.f32 %v2112, %v2687
        %v2689 = vpop.f32.mrb[0].mxu0
        %v2690 = vpop.f32.mrb[0].mxu0
        %v2691 = vadd.f32 %v2115, %v2690
        %v2692 = vpop.f32.mrb[0].mxu0
        %2693 = vmatprep.mubr.bf16.mxu0 0
        %2694 = vmatmul.mubr.bf16.gmra.mrb[0].mxu0 %v2354
        %v2695 = vpop.f32.mrb[0].mxu0
        %v2696 = vadd.f32 %v2120, %v2695
        %v2697 = vpop.f32.mrb[0].mxu0
        %v2698 = vpop.f32.mrb[0].mxu0
        %v2699 = vadd.f32 %v2123, %v2698
        %v2700 = vpop.f32.mrb[0].mxu0
        %2701 = vmatprep.mubr.bf16.mxu0 0
        %2702 = vmatmul.mubr.bf16.gmra.mrb[0].mxu0 %v2363
        %v2703 = vpop.f32.mrb[0].mxu0
        %v2704 = vadd.f32 %v2128, %v2703
        %v2705 = vpop.f32.mrb[0].mxu0
        %v2706 = vpop.f32.mrb[0].mxu0
        %v2707 = vadd.f32 %v2131, %v2706
        %v2708 = vpop.f32.mrb[0].mxu0
        %2709 = vmatprep.mubr.bf16.mxu0 0
        %2710 = vmatmul.mubr.bf16.gmra.mrb[0].mxu0 %v2372
        %v2711 = vpop.f32.mrb[0].mxu0
        %v2712 = vadd.f32 %v2136, %v2711
        %v2713 = vpop.f32.mrb[0].mxu0
        %v2714 = vpop.f32.mrb[0].mxu0
        %v2715 = vadd.f32 %v2139, %v2714
        %v2716 = vpop.f32.mrb[0].mxu0
        %2717 = vmatprep.mubr.bf16.mxu0 0
        %2718 = vmatmul.mubr.bf16.gmra.mrb[0].mxu0 %v2381
        %v2719 = vpop.f32.mrb[0].mxu0
        %v2720 = vadd.f32 %v2144, %v2719
        %v2721 = vpop.f32.mrb[0].mxu0
        %v2722 = vpop.f32.mrb[0].mxu0
        %v2723 = vadd.f32 %v2147, %v2722
        %v2724 = vpop.f32.mrb[0].mxu0
        %2725 = vmatprep.mubr.bf16.mxu0 0
        %2726 = vmatmul.mubr.bf16.gmra.mrb[0].mxu0 %v2390
        %v2727 = vpop.f32.mrb[0].mxu0
        %v2728 = vadd.f32 %v2152, %v2727
        %v2729 = vpop.f32.mrb[0].mxu0
        %v2730 = vpop.f32.mrb[0].mxu0
        %v2731 = vadd.f32 %v2155, %v2730
        %v2732 = vpop.f32.mrb[0].mxu0
        %2733 = vmatprep.mubr.bf16.mxu0 0
        %2734 = vmatmul.mubr.bf16.gmra.mrb[0].mxu0 %v2399
        %v2735 = vpop.f32.mrb[0].mxu0
        %v2736 = vadd.f32 %v2160, %v2735
        %v2737 = vpop.f32.mrb[0].mxu0
        %v2738 = vpop.f32.mrb[0].mxu0
        %v2739 = vadd.f32 %v2163, %v2738
        %v2740 = vpop.f32.mrb[0].mxu0
        %2741 = vmatprep.mubr.bf16.mxu0 0
        %2742 = vmatmul.mubr.bf16.gmra.mrb[0].mxu0 %v2408
        %v2743 = vpop.f32.mrb[0].mxu0
        %v2744 = vadd.f32 %v2168, %v2743
        %v2745 = vpop.f32.mrb[0].mxu0
        %v2746 = vpop.f32.mrb[0].mxu0
        %v2747 = vadd.f32 %v2171, %v2746
        %v2748 = vpop.f32.mrb[0].mxu0
        %2749 = vmatprep.mubr.bf16.mxu0 0
        %2750 = vmatmul.mubr.bf16.gmra.mrb[0].mxu0 %v2417
        %v2751 = vpop.f32.mrb[0].mxu0
        %v2752 = vadd.f32 %v2176, %v2751
        %v2753 = vpop.f32.mrb[0].mxu0
        %v2754 = vpop.f32.mrb[0].mxu0
        %v2755 = vadd.f32 %v2179, %v2754
        %v2756 = vpop.f32.mrb[0].mxu0
        %2757 = vmatprep.mubr.bf16.mxu0 0
        %2758 = vmatmul.mubr.bf16.gmra.mrb[0].mxu0 %v2426
        %v2759 = vpop.f32.mrb[0].mxu0
        %v2760 = vadd.f32 %v2184, %v2759
        %v2761 = vpop.f32.mrb[0].mxu0
        %v2762 = vpop.f32.mrb[0].mxu0
        %v2763 = vadd.f32 %v2187, %v2762
        %v2764 = vpop.f32.mrb[0].mxu0
        %2765 = vmatprep.mubr.bf16.mxu0 0
        %2766 = vmatmul.mubr.bf16.gmra.mrb[0].mxu0 %v2435
        %v2767 = vpop.f32.mrb[0].mxu0
        %v2768 = vadd.f32 %v2192, %v2767
        %v2769 = vpop.f32.mrb[0].mxu0
        %v2770 = vpop.f32.mrb[0].mxu0
        %v2771 = vadd.f32 %v2195, %v2770
        %v2772 = vpop.f32.mrb[0].mxu0
        %2773 = vmatprep.mubr.bf16.mxu0 0
        %2774 = vmatmul.mubr.bf16.gmra.mrb[0].mxu0 %v2444
        %v2775 = vpop.f32.mrb[0].mxu0
        %v2776 = vadd.f32 %v2200, %v2775
        %v2777 = vpop.f32.mrb[0].mxu0
        %v2778 = vpop.f32.mrb[0].mxu0
        %v2779 = vadd.f32 %v2203, %v2778
        %v2780 = vpop.f32.mrb[0].mxu0
        %2781 = vmatprep.mubr.bf16.mxu0 0
        %2782 = vmatmul.mubr.bf16.gmra.mrb[0].mxu0 %v2453
        %v2783 = vpop.f32.mrb[0].mxu0
        %v2784 = vadd.f32 %v2208, %v2783
        %v2785 = vpop.f32.mrb[0].mxu0
        %v2786 = vpop.f32.mrb[0].mxu0
        %v2787 = vadd.f32 %v2211, %v2786
        %v2788 = vpop.f32.mrb[0].mxu0
        %2789 = vmatprep.mubr.bf16.mxu0 0
        %2790 = vmatmul.mubr.bf16.gmra.mrb[0].mxu0 %v2462
        %v2791 = vpop.f32.mrb[0].mxu0
        %v2792 = vadd.f32 %v2216, %v2791
        %v2793 = vpop.f32.mrb[0].mxu0
        %v2794 = vpop.f32.mrb[0].mxu0
        %v2795 = vadd.f32 %v2219, %v2794
        %v2796 = vpop.f32.mrb[0].mxu0
        %2797 = vmatprep.mubr.bf16.mxu0 0
        %2798 = vmatmul.mubr.bf16.gmra.mrb[0].mxu0 %v2471
        %v2799 = vpop.f32.mrb[0].mxu0
        %v2800 = vadd.f32 %v2224, %v2799
        %v2801 = vpop.f32.mrb[0].mxu0
        %v2802 = vpop.f32.mrb[0].mxu0
        %v2803 = vadd.f32 %v2227, %v2802
        %v2804 = vpop.f32.mrb[0].mxu0
        %2805 = vmatprep.mubr.bf16.mxu0 0
        %2806 = vmatmul.mubr.bf16.gmra.mrb[0].mxu0 %v2480
        %v2807 = vpop.f32.mrb[0].mxu0
        %v2808 = vadd.f32 %v2232, %v2807
        %v2809 = vpop.f32.mrb[0].mxu0
        %v2810 = vpop.f32.mrb[0].mxu0
        %v2811 = vadd.f32 %v2235, %v2810
        %v2812 = vpop.f32.mrb[0].mxu0
        %2813 = vmatprep.mubr.bf16.mxu0 0
        %2814 = vmatmul.mubr.bf16.gmra.mrb[0].mxu0 %v2489
        %v2815 = vpop.f32.mrb[0].mxu0
        %v2816 = vadd.f32 %v2240, %v2815
        %v2817 = vpop.f32.mrb[0].mxu0
        %v2818 = vpop.f32.mrb[0].mxu0
        %v2819 = vadd.f32 %v2243, %v2818
        %v2820 = vpop.f32.mrb[0].mxu0
        %2821 = vmatprep.mubr.bf16.mxu0 0
        %2822 = vmatmul.mubr.bf16.gmra.mrb[0].mxu0 %v2498
        %v2823 = vpop.f32.mrb[0].mxu0
        %v2824 = vadd.f32 %v2248, %v2823
        %v2825 = vpop.f32.mrb[0].mxu0
        %v2826 = vpop.f32.mrb[0].mxu0
        %v2827 = vadd.f32 %v2251, %v2826
        %v2828 = vpop.f32.mrb[0].mxu0
        %2829 = vmatprep.mubr.bf16.mxu0 0
        %2830 = vmatmul.mubr.bf16.gmra.mrb[0].mxu0 %v2507
        %v2831 = vpop.f32.mrb[0].mxu0
        %v2832 = vadd.f32 %v2256, %v2831
        %v2833 = vpop.f32.mrb[0].mxu0
        %v2834 = vpop.f32.mrb[0].mxu0
        %v2835 = vadd.f32 %v2259, %v2834
        %v2836 = vpop.f32.mrb[0].mxu0
        %2837 = vmatprep.mubr.bf16.mxu0 0
        %2838 = vmatmul.mubr.bf16.gmra.mrb[0].mxu0 %v2516
        %v2839 = vpop.f32.mrb[0].mxu0
        %v2840 = vadd.f32 %v2264, %v2839
        %v2841 = vpop.f32.mrb[0].mxu0
        %v2842 = vpop.f32.mrb[0].mxu0
        %v2843 = vadd.f32 %v2267, %v2842
        %v2844 = vpop.f32.mrb[0].mxu0
        %2845 = vmatprep.mubr.bf16.mxu0 0
        %2846 = vmatmul.mubr.bf16.gmra.mrb[0].mxu0 %v2525
        %v2847 = vpop.f32.mrb[0].mxu0
        %v2848 = vadd.f32 %v2272, %v2847
        %v2849 = vpop.f32.mrb[0].mxu0
        %v2850 = vpop.f32.mrb[0].mxu0
        %v2851 = vadd.f32 %v2275, %v2850
        %v2852 = vpop.f32.mrb[0].mxu0
        %2853 = vmatprep.mubr.bf16.mxu0 0
        %2854 = vmatmul.mubr.bf16.gmra.mrb[0].mxu0 %v2534
        %v2855 = vpop.f32.mrb[0].mxu0
        %v2856 = vadd.f32 %v2280, %v2855
        %v2857 = vpop.f32.mrb[0].mxu0
        %v2858 = vpop.f32.mrb[0].mxu0
        %v2859 = vadd.f32 %v2283, %v2858
        %v2860 = vpop.f32.mrb[0].mxu0
        %2861 = vmatprep.mubr.bf16.mxu0 0
        %2862 = vmatmul.mubr.bf16.gmra.mrb[0].mxu0 %v2543
        %v2863 = vpop.f32.mrb[0].mxu0
        %v2864 = vadd.f32 %v2288, %v2863
        %v2865 = vpop.f32.mrb[0].mxu0
        %v2866 = vpop.f32.mrb[0].mxu0
        %v2867 = vadd.f32 %v2291, %v2866
        %v2868 = vpop.f32.mrb[0].mxu0
        %2869 = vmatprep.mubr.bf16.mxu0 0
        %2870 = vmatmul.mubr.bf16.gmra.mrb[0].mxu0 %v2552
        %v2871 = vpop.f32.mrb[0].mxu0
        %v2872 = vadd.f32 %v2296, %v2871
        %v2873 = vpop.f32.mrb[0].mxu0
        %v2874 = vpop.f32.mrb[0].mxu0
        %v2875 = vadd.f32 %v2299, %v2874
        %v2876 = vpop.f32.mrb[0].mxu0
        %2877 = vmatprep.mubr.bf16.mxu0 0
        %2878 = vmatmul.mubr.bf16.gmra.mrb[0].mxu0 %v2561
        %v2879 = vpop.f32.mrb[0].mxu0
        %v2880 = vadd.f32 %v2304, %v2879
        %v2881 = vpop.f32.mrb[0].mxu0
        %v2882 = vpop.f32.mrb[0].mxu0
        %v2883 = vadd.f32 %v2307, %v2882
        %v2884 = vpop.f32.mrb[0].mxu0
        %2885 = vdwg.mxu0
        %v2886 = vld [vmem:[#allocation2 + $0xd8] sm:$0x1f]
        %s2887 = scalar_lea.vmem [#allocation8], 128
        %v2888 = vld [vmem:[%s2887] sm:$0xf]
        %v2889 = vld [vmem:[%s2887 + $0x4] sm:$0xf]
        %v2890 = vld [vmem:[%s2887 + $0x8] sm:$0xf]
        %v2891 = vld [vmem:[%s2887 + $0xc] sm:$0xf]
        %v2892 = vld [vmem:[%s2887 + $0x10] sm:$0xf]
        %v2893 = vld [vmem:[%s2887 + $0x14] sm:$0xf]
        %v2894 = vld [vmem:[%s2887 + $0x18] sm:$0xf]
        %v2895 = vld [vmem:[%s2887 + $0x1c] sm:$0xf]
        %v2896 = vld [vmem:[%s2887 + $0x20] sm:$0xf]
        %v2897 = vld [vmem:[%s2887 + $0x24] sm:$0xf]
        %v2898 = vld [vmem:[%s2887 + $0x28] sm:$0xf]
        %v2899 = vld [vmem:[%s2887 + $0x2c] sm:$0xf]
        %v2900 = vld [vmem:[%s2887 + $0x30] sm:$0xf]
        %v2901 = vld [vmem:[%s2887 + $0x34] sm:$0xf]
        %v2902 = vld [vmem:[%s2887 + $0x38] sm:$0xf]
        %v2903 = vld [vmem:[%s2887 + $0x3c] sm:$0xf]
        %vm2904 = vsmask.f32 3328
        %v2906 = vshrl.u32 %v1884, 16
        %v2908 = vrot.slane %v2906, 4
        %v2909 = vshll.u32 %v1884, 16
        %v2911 = vrot.slane %v2909, 5
        %v2912 = vor.u32 %v2908, %v2911
        %v2913 = vrot.slane %v2320, 4
        %v2914 = vrot.slane %v2323, 5
        %v2915 = vor.u32 %v2913, %v2914
        %v2916 = vsel %vm2904, %v2912, %v2915
        %v2917 = vrot.slane %v2329, 4
        %v2918 = vrot.slane %v2332, 5
        %v2919 = vor.u32 %v2917, %v2918
        %v2920 = vsel %vm2904, %v2915, %v2919
        %v2921 = vrot.slane %v2338, 4
        %v2922 = vrot.slane %v2341, 5
        %v2923 = vor.u32 %v2921, %v2922
        %v2924 = vsel %vm2904, %v2919, %v2923
        %v2925 = vrot.slane %v2347, 4
        %v2926 = vrot.slane %v2350, 5
        %v2927 = vor.u32 %v2925, %v2926
        %v2928 = vsel %vm2904, %v2923, %v2927
        %v2929 = vrot.slane %v2356, 4
        %v2930 = vrot.slane %v2359, 5
        %v2931 = vor.u32 %v2929, %v2930
        %v2932 = vsel %vm2904, %v2927, %v2931
        %v2933 = vrot.slane %v2365, 4
        %v2934 = vrot.slane %v2368, 5
        %v2935 = vor.u32 %v2933, %v2934
        %v2936 = vsel %vm2904, %v2931, %v2935
        %v2937 = vrot.slane %v2374, 4
        %v2938 = vrot.slane %v2377, 5
        %v2939 = vor.u32 %v2937, %v2938
        %v2940 = vsel %vm2904, %v2935, %v2939
        %v2941 = vrot.slane %v2383, 4
        %v2942 = vrot.slane %v2386, 5
        %v2943 = vor.u32 %v2941, %v2942
        %v2944 = vsel %vm2904, %v2939, %v2943
        %v2945 = vrot.slane %v2392, 4
        %v2946 = vrot.slane %v2395, 5
        %v2947 = vor.u32 %v2945, %v2946
        %v2948 = vsel %vm2904, %v2943, %v2947
        %v2949 = vrot.slane %v2401, 4
        %v2950 = vrot.slane %v2404, 5
        %v2951 = vor.u32 %v2949, %v2950
        %v2952 = vsel %vm2904, %v2947, %v2951
        %v2953 = vrot.slane %v2410, 4
        %v2954 = vrot.slane %v2413, 5
        %v2955 = vor.u32 %v2953, %v2954
        %v2956 = vsel %vm2904, %v2951, %v2955
        %v2957 = vrot.slane %v2419, 4
        %v2958 = vrot.slane %v2422, 5
        %v2959 = vor.u32 %v2957, %v2958
        %v2960 = vsel %vm2904, %v2955, %v2959
        %v2961 = vrot.slane %v2428, 4
        %v2962 = vrot.slane %v2431, 5
        %v2963 = vor.u32 %v2961, %v2962
        %v2964 = vsel %vm2904, %v2959, %v2963
        %v2965 = vrot.slane %v2437, 4
        %v2966 = vrot.slane %v2440, 5
        %v2967 = vor.u32 %v2965, %v2966
        %v2968 = vsel %vm2904, %v2963, %v2967
        %v2969 = vrot.slane %v2446, 4
        %v2970 = vrot.slane %v2449, 5
        %v2971 = vor.u32 %v2969, %v2970
        %v2972 = vsel %vm2904, %v2967, %v2971
        %v2973 = vrot.slane %v2455, 4
        %v2974 = vrot.slane %v2458, 5
        %v2975 = vor.u32 %v2973, %v2974
        %v2976 = vsel %vm2904, %v2971, %v2975
        %v2977 = vrot.slane %v2464, 4
        %v2978 = vrot.slane %v2467, 5
        %v2979 = vor.u32 %v2977, %v2978
        %v2980 = vsel %vm2904, %v2975, %v2979
        %v2981 = vrot.slane %v2473, 4
        %v2982 = vrot.slane %v2476, 5
        %v2983 = vor.u32 %v2981, %v2982
        %v2984 = vsel %vm2904, %v2979, %v2983
        %v2985 = vrot.slane %v2482, 4
        %v2986 = vrot.slane %v2485, 5
        %v2987 = vor.u32 %v2985, %v2986
        %v2988 = vsel %vm2904, %v2983, %v2987
        %v2989 = vrot.slane %v2491, 4
        %v2990 = vrot.slane %v2494, 5
        %v2991 = vor.u32 %v2989, %v2990
        %v2992 = vsel %vm2904, %v2987, %v2991
        %v2993 = vrot.slane %v2500, 4
        %v2994 = vrot.slane %v2503, 5
        %v2995 = vor.u32 %v2993, %v2994
        %v2996 = vsel %vm2904, %v2991, %v2995
        %v2997 = vrot.slane %v2509, 4
        %v2998 = vrot.slane %v2512, 5
        %v2999 = vor.u32 %v2997, %v2998
        %v3000 = vsel %vm2904, %v2995, %v2999
        %v3001 = vrot.slane %v2518, 4
        %v3002 = vrot.slane %v2521, 5
        %v3003 = vor.u32 %v3001, %v3002
        %v3004 = vsel %vm2904, %v2999, %v3003
        %v3005 = vrot.slane %v2527, 4
        %v3006 = vrot.slane %v2530, 5
        %v3007 = vor.u32 %v3005, %v3006
        %v3008 = vsel %vm2904, %v3003, %v3007
        %v3009 = vrot.slane %v2536, 4
        %v3010 = vrot.slane %v2539, 5
        %v3011 = vor.u32 %v3009, %v3010
        %v3012 = vsel %vm2904, %v3007, %v3011
        %v3013 = vrot.slane %v2545, 4
        %v3014 = vrot.slane %v2548, 5
        %v3015 = vor.u32 %v3013, %v3014
        %v3016 = vsel %vm2904, %v3011, %v3015
        %v3018 = vshrl.u32 %v2886, 16
        %v3020 = vrot.slane %v3018, 4
        %v3021 = vshll.u32 %v2886, 16
        %v3023 = vrot.slane %v3021, 5
        %v3024 = vor.u32 %v3020, %v3023
        %v3025 = vsel %vm2904, %v3015, %v3024
        %v3069 = vunpack.c.l.b16 %v2888
        %v3070 = vunpack.c.l.b16 %v2889
        %v3071 = vunpack.c.l.b16 %v2890
        %v3072 = vunpack.c.l.b16 %v2891
        %v3073 = vunpack.c.l.b16 %v2892
        %v3074 = vunpack.c.l.b16 %v2893
        %v3075 = vunpack.c.l.b16 %v2894
        %v3076 = vunpack.c.l.b16 %v2895
        %v3077 = vunpack.c.l.b16 %v2896
        %v3078 = vunpack.c.l.b16 %v2897
        %v3079 = vunpack.c.l.b16 %v2898
        %v3080 = vunpack.c.l.b16 %v2899
        %v3081 = vunpack.c.l.b16 %v2900
        %v3082 = vunpack.c.l.b16 %v2901
        %v3083 = vunpack.c.l.b16 %v2902
        %v3084 = vunpack.c.l.b16 %v2903
        %v3085 = vpack.c.b16 %v3070, %v3069
        %v3086 = vpack.c.b16 %v3072, %v3071
        %v3087 = vpack.c.b16 %v3074, %v3073
        %v3088 = vpack.c.b16 %v3076, %v3075
        %v3089 = vpack.c.b16 %v3078, %v3077
        %v3090 = vpack.c.b16 %v3080, %v3079
        %v3091 = vpack.c.b16 %v3082, %v3081
        %v3092 = vpack.c.b16 %v3084, %v3083
        %3101 = vmatprep.subr.bf16.mxu0 0
        %3102 = vmatpush1.bf16.msra.mxu0 %v3085
        %3103 = vmatprep.subr.bf16.mxu0 0
        %3104 = vmatpush1.bf16.msra.mxu0 %v3086
        %3105 = vmatprep.subr.bf16.mxu0 0
        %3106 = vmatpush1.bf16.msra.mxu0 %v3087
        %3107 = vmatprep.subr.bf16.mxu0 0
        %3108 = vmatpush1.bf16.msra.mxu0 %v3088
        %3109 = vmatprep.subr.bf16.mxu0 0
        %3110 = vmatpush1.bf16.msra.mxu0 %v3089
        %3111 = vmatprep.subr.bf16.mxu0 0
        %3112 = vmatpush1.bf16.msra.mxu0 %v3090
        %3113 = vmatprep.subr.bf16.mxu0 0
        %3114 = vmatpush1.bf16.msra.mxu0 %v3091
        %3115 = vmatprep.subr.bf16.mxu0 0
        %3116 = vmatpush1.bf16.msra.mxu0 %v3092
        %3117 = vmatprep.subr.bf16.mxu0 0
        %3118 = vmatpush1.bf16.msra.mxu0 0
        %3119 = vmatprep.subr.bf16.mxu0 0
        %3120 = vmatpush1.bf16.msra.mxu0 0
        %3121 = vmatprep.subr.bf16.mxu0 0
        %3122 = vmatpush1.bf16.msra.mxu0 0
        %3123 = vmatprep.subr.bf16.mxu0 0
        %3124 = vmatpush1.bf16.msra.mxu0 0
        %3125 = vmatprep.subr.bf16.mxu0 0
        %3126 = vmatpush1.bf16.msra.mxu0 0
        %3127 = vmatprep.subr.bf16.mxu0 0
        %3128 = vmatpush1.bf16.msra.mxu0 0
        %3129 = vmatprep.subr.bf16.mxu0 0
        %3130 = vmatpush1.bf16.msra.mxu0 0
        %3131 = vmatprep.subr.bf16.mxu0 0
        %3132 = vmatpush1.bf16.msra.mxu0 0
        %3133 = vmatprep.mubr.bf16.mxu0 0
        %3134 = vmatmul.mubr.bf16.gmra.mrb[0].mxu0 %v2916
        %v3135 = vpop.f32.mrb[0].mxu0
        %v3136 = vadd.f32 0.0, %v3135
        %v3137 = vpop.f32.mrb[0].mxu0
        %v3138 = vpop.f32.mrb[0].mxu0
        %v3139 = vadd.f32 0.0, %v3138
        %v3140 = vpop.f32.mrb[0].mxu0
        %3141 = vmatprep.mubr.bf16.mxu0 0
        %3142 = vmatmul.mubr.bf16.gmra.mrb[0].mxu0 %v2920
        %v3143 = vpop.f32.mrb[0].mxu0
        %v3144 = vadd.f32 0.0, %v3143
        %v3145 = vpop.f32.mrb[0].mxu0
        %v3146 = vpop.f32.mrb[0].mxu0
        %v3147 = vadd.f32 0.0, %v3146
        %v3148 = vpop.f32.mrb[0].mxu0
        %3149 = vmatprep.mubr.bf16.mxu0 0
        %3150 = vmatmul.mubr.bf16.gmra.mrb[0].mxu0 %v2924
        %v3151 = vpop.f32.mrb[0].mxu0
        %v3152 = vadd.f32 0.0, %v3151
        %v3153 = vpop.f32.mrb[0].mxu0
        %v3154 = vpop.f32.mrb[0].mxu0
        %v3155 = vadd.f32 0.0, %v3154
        %v3156 = vpop.f32.mrb[0].mxu0
        %3157 = vmatprep.mubr.bf16.mxu0 0
        %3158 = vmatmul.mubr.bf16.gmra.mrb[0].mxu0 %v2928
        %v3159 = vpop.f32.mrb[0].mxu0
        %v3160 = vadd.f32 0.0, %v3159
        %v3161 = vpop.f32.mrb[0].mxu0
        %v3162 = vpop.f32.mrb[0].mxu0
        %v3163 = vadd.f32 0.0, %v3162
        %v3164 = vpop.f32.mrb[0].mxu0
        %3165 = vmatprep.mubr.bf16.mxu0 0
        %3166 = vmatmul.mubr.bf16.gmra.mrb[0].mxu0 %v2932
        %v3167 = vpop.f32.mrb[0].mxu0
        %v3168 = vadd.f32 0.0, %v3167
        %v3169 = vpop.f32.mrb[0].mxu0
        %v3170 = vpop.f32.mrb[0].mxu0
        %v3171 = vadd.f32 0.0, %v3170
        %v3172 = vpop.f32.mrb[0].mxu0
        %3173 = vmatprep.mubr.bf16.mxu0 0
        %3174 = vmatmul.mubr.bf16.gmra.mrb[0].mxu0 %v2936
        %v3175 = vpop.f32.mrb[0].mxu0
        %v3176 = vadd.f32 0.0, %v3175
        %v3177 = vpop.f32.mrb[0].mxu0
        %v3178 = vpop.f32.mrb[0].mxu0
        %v3179 = vadd.f32 0.0, %v3178
        %v3180 = vpop.f32.mrb[0].mxu0
        %3181 = vmatprep.mubr.bf16.mxu0 0
        %3182 = vmatmul.mubr.bf16.gmra.mrb[0].mxu0 %v2940
        %v3183 = vpop.f32.mrb[0].mxu0
        %v3184 = vadd.f32 0.0, %v3183
        %v3185 = vpop.f32.mrb[0].mxu0
        %v3186 = vpop.f32.mrb[0].mxu0
        %v3187 = vadd.f32 0.0, %v3186
        %v3188 = vpop.f32.mrb[0].mxu0
        %3189 = vmatprep.mubr.bf16.mxu0 0
        %3190 = vmatmul.mubr.bf16.gmra.mrb[0].mxu0 %v2944
        %v3191 = vpop.f32.mrb[0].mxu0
        %v3192 = vadd.f32 0.0, %v3191
        %v3193 = vpop.f32.mrb[0].mxu0
        %v3194 = vpop.f32.mrb[0].mxu0
        %v3195 = vadd.f32 0.0, %v3194
        %v3196 = vpop.f32.mrb[0].mxu0
        %3197 = vmatprep.mubr.bf16.mxu0 0
        %3198 = vmatmul.mubr.bf16.gmra.mrb[0].mxu0 %v2948
        %v3199 = vpop.f32.mrb[0].mxu0
        %v3200 = vadd.f32 0.0, %v3199
        %v3201 = vpop.f32.mrb[0].mxu0
        %v3202 = vpop.f32.mrb[0].mxu0
        %v3203 = vadd.f32 0.0, %v3202
        %v3204 = vpop.f32.mrb[0].mxu0
        %3205 = vmatprep.mubr.bf16.mxu0 0
        %3206 = vmatmul.mubr.bf16.gmra.mrb[0].mxu0 %v2952
        %v3207 = vpop.f32.mrb[0].mxu0
        %v3208 = vadd.f32 0.0, %v3207
        %v3209 = vpop.f32.mrb[0].mxu0
        %v3210 = vpop.f32.mrb[0].mxu0
        %v3211 = vadd.f32 0.0, %v3210
        %v3212 = vpop.f32.mrb[0].mxu0
        %3213 = vmatprep.mubr.bf16.mxu0 0
        %3214 = vmatmul.mubr.bf16.gmra.mrb[0].mxu0 %v2956
        %v3215 = vpop.f32.mrb[0].mxu0
        %v3216 = vadd.f32 0.0, %v3215
        %v3217 = vpop.f32.mrb[0].mxu0
        %v3218 = vpop.f32.mrb[0].mxu0
        %v3219 = vadd.f32 0.0, %v3218
        %v3220 = vpop.f32.mrb[0].mxu0
        %3221 = vmatprep.mubr.bf16.mxu0 0
        %3222 = vmatmul.mubr.bf16.gmra.mrb[0].mxu0 %v2960
        %v3223 = vpop.f32.mrb[0].mxu0
        %v3224 = vadd.f32 0.0, %v3223
        %v3225 = vpop.f32.mrb[0].mxu0
        %v3226 = vpop.f32.mrb[0].mxu0
        %v3227 = vadd.f32 0.0, %v3226
        %v3228 = vpop.f32.mrb[0].mxu0
        %3229 = vmatprep.mubr.bf16.mxu0 0
        %3230 = vmatmul.mubr.bf16.gmra.mrb[0].mxu0 %v2964
        %v3231 = vpop.f32.mrb[0].mxu0
        %v3232 = vadd.f32 0.0, %v3231
        %v3233 = vpop.f32.mrb[0].mxu0
        %v3234 = vpop.f32.mrb[0].mxu0
        %v3235 = vadd.f32 0.0, %v3234
        %v3236 = vpop.f32.mrb[0].mxu0
        %3237 = vmatprep.mubr.bf16.mxu0 0
        %3238 = vmatmul.mubr.bf16.gmra.mrb[0].mxu0 %v2968
        %v3239 = vpop.f32.mrb[0].mxu0
        %v3240 = vadd.f32 0.0, %v3239
        %v3241 = vpop.f32.mrb[0].mxu0
        %v3242 = vpop.f32.mrb[0].mxu0
        %v3243 = vadd.f32 0.0, %v3242
        %v3244 = vpop.f32.mrb[0].mxu0
        %3245 = vmatprep.mubr.bf16.mxu0 0
        %3246 = vmatmul.mubr.bf16.gmra.mrb[0].mxu0 %v2972
        %v3247 = vpop.f32.mrb[0].mxu0
        %v3248 = vadd.f32 0.0, %v3247
        %v3249 = vpop.f32.mrb[0].mxu0
        %v3250 = vpop.f32.mrb[0].mxu0
        %v3251 = vadd.f32 0.0, %v3250
        %v3252 = vpop.f32.mrb[0].mxu0
        %3253 = vmatprep.mubr.bf16.mxu0 0
        %3254 = vmatmul.mubr.bf16.gmra.mrb[0].mxu0 %v2976
        %v3255 = vpop.f32.mrb[0].mxu0
        %v3256 = vadd.f32 0.0, %v3255
        %v3257 = vpop.f32.mrb[0].mxu0
        %v3258 = vpop.f32.mrb[0].mxu0
        %v3259 = vadd.f32 0.0, %v3258
        %v3260 = vpop.f32.mrb[0].mxu0
        %3261 = vmatprep.mubr.bf16.mxu0 0
        %3262 = vmatmul.mubr.bf16.gmra.mrb[0].mxu0 %v2980
        %v3263 = vpop.f32.mrb[0].mxu0
        %v3264 = vadd.f32 0.0, %v3263
        %v3265 = vpop.f32.mrb[0].mxu0
        %v3266 = vpop.f32.mrb[0].mxu0
        %v3267 = vadd.f32 0.0, %v3266
        %v3268 = vpop.f32.mrb[0].mxu0
        %3269 = vmatprep.mubr.bf16.mxu0 0
        %3270 = vmatmul.mubr.bf16.gmra.mrb[0].mxu0 %v2984
        %v3271 = vpop.f32.mrb[0].mxu0
        %v3272 = vadd.f32 0.0, %v3271
        %v3273 = vpop.f32.mrb[0].mxu0
        %v3274 = vpop.f32.mrb[0].mxu0
        %v3275 = vadd.f32 0.0, %v3274
        %v3276 = vpop.f32.mrb[0].mxu0
        %3277 = vmatprep.mubr.bf16.mxu0 0
        %3278 = vmatmul.mubr.bf16.gmra.mrb[0].mxu0 %v2988
        %v3279 = vpop.f32.mrb[0].mxu0
        %v3280 = vadd.f32 0.0, %v3279
        %v3281 = vpop.f32.mrb[0].mxu0
        %v3282 = vpop.f32.mrb[0].mxu0
        %v3283 = vadd.f32 0.0, %v3282
        %v3284 = vpop.f32.mrb[0].mxu0
        %3285 = vmatprep.mubr.bf16.mxu0 0
        %3286 = vmatmul.mubr.bf16.gmra.mrb[0].mxu0 %v2992
        %v3287 = vpop.f32.mrb[0].mxu0
        %v3288 = vadd.f32 0.0, %v3287
        %v3289 = vpop.f32.mrb[0].mxu0
        %v3290 = vpop.f32.mrb[0].mxu0
        %v3291 = vadd.f32 0.0, %v3290
        %v3292 = vpop.f32.mrb[0].mxu0
        %3293 = vmatprep.mubr.bf16.mxu0 0
        %3294 = vmatmul.mubr.bf16.gmra.mrb[0].mxu0 %v2996
        %v3295 = vpop.f32.mrb[0].mxu0
        %v3296 = vadd.f32 0.0, %v3295
        %v3297 = vpop.f32.mrb[0].mxu0
        %v3298 = vpop.f32.mrb[0].mxu0
        %v3299 = vadd.f32 0.0, %v3298
        %v3300 = vpop.f32.mrb[0].mxu0
        %3301 = vmatprep.mubr.bf16.mxu0 0
        %3302 = vmatmul.mubr.bf16.gmra.mrb[0].mxu0 %v3000
        %v3303 = vpop.f32.mrb[0].mxu0
        %v3304 = vadd.f32 0.0, %v3303
        %v3305 = vpop.f32.mrb[0].mxu0
        %v3306 = vpop.f32.mrb[0].mxu0
        %v3307 = vadd.f32 0.0, %v3306
        %v3308 = vpop.f32.mrb[0].mxu0
        %3309 = vmatprep.mubr.bf16.mxu0 0
        %3310 = vmatmul.mubr.bf16.gmra.mrb[0].mxu0 %v3004
        %v3311 = vpop.f32.mrb[0].mxu0
        %v3312 = vadd.f32 0.0, %v3311
        %v3313 = vpop.f32.mrb[0].mxu0
        %v3314 = vpop.f32.mrb[0].mxu0
        %v3315 = vadd.f32 0.0, %v3314
        %v3316 = vpop.f32.mrb[0].mxu0
        %3317 = vmatprep.mubr.bf16.mxu0 0
        %3318 = vmatmul.mubr.bf16.gmra.mrb[0].mxu0 %v3008
        %v3319 = vpop.f32.mrb[0].mxu0
        %v3320 = vadd.f32 0.0, %v3319
        %v3321 = vpop.f32.mrb[0].mxu0
        %v3322 = vpop.f32.mrb[0].mxu0
        %v3323 = vadd.f32 0.0, %v3322
        %v3324 = vpop.f32.mrb[0].mxu0
        %3325 = vmatprep.mubr.bf16.mxu0 0
        %3326 = vmatmul.mubr.bf16.gmra.mrb[0].mxu0 %v3012
        %v3327 = vpop.f32.mrb[0].mxu0
        %v3328 = vadd.f32 0.0, %v3327
        %v3329 = vpop.f32.mrb[0].mxu0
        %v3330 = vpop.f32.mrb[0].mxu0
        %v3331 = vadd.f32 0.0, %v3330
        %v3332 = vpop.f32.mrb[0].mxu0
        %3333 = vmatprep.mubr.bf16.mxu0 0
        %3334 = vmatmul.mubr.bf16.gmra.mrb[0].mxu0 %v3016
        %v3335 = vpop.f32.mrb[0].mxu0
        %v3336 = vadd.f32 0.0, %v3335
        %v3337 = vpop.f32.mrb[0].mxu0
        %v3338 = vpop.f32.mrb[0].mxu0
        %v3339 = vadd.f32 0.0, %v3338
        %v3340 = vpop.f32.mrb[0].mxu0
        %3341 = vmatprep.mubr.bf16.mxu0 0
        %3342 = vmatmul.mubr.bf16.gmra.mrb[0].mxu0 %v3025
        %v3343 = vpop.f32.mrb[0].mxu0
        %v3344 = vadd.f32 0.0, %v3343
        %v3345 = vpop.f32.mrb[0].mxu0
        %v3346 = vpop.f32.mrb[0].mxu0
        %v3347 = vadd.f32 0.0, %v3346
        %v3348 = vpop.f32.mrb[0].mxu0
        %3349 = vdwg.mxu0
        %v3350 = vadd.f32 %v2672, %v3136
        %v3351 = vadd.f32 %v2675, %v3139
        %v3352 = vadd.f32 %v2680, %v3144
        %v3353 = vadd.f32 %v2683, %v3147
        %v3354 = vadd.f32 %v2688, %v3152
        %v3355 = vadd.f32 %v2691, %v3155
        %v3356 = vadd.f32 %v2696, %v3160
        %v3357 = vadd.f32 %v2699, %v3163
        %v3358 = vadd.f32 %v2704, %v3168
        %v3359 = vadd.f32 %v2707, %v3171
        %v3360 = vadd.f32 %v2712, %v3176
        %v3361 = vadd.f32 %v2715, %v3179
        %v3362 = vadd.f32 %v2720, %v3184
        %v3363 = vadd.f32 %v2723, %v3187
        %v3364 = vadd.f32 %v2728, %v3192
        %v3365 = vadd.f32 %v2731, %v3195
        %v3366 = vadd.f32 %v2736, %v3200
        %v3367 = vadd.f32 %v2739, %v3203
        %v3368 = vadd.f32 %v2744, %v3208
        %v3369 = vadd.f32 %v2747, %v3211
        %v3370 = vadd.f32 %v2752, %v3216
        %v3371 = vadd.f32 %v2755, %v3219
        %v3372 = vadd.f32 %v2760, %v3224
        %v3373 = vadd.f32 %v2763, %v3227
        %v3374 = vadd.f32 %v2768, %v3232
        %v3375 = vadd.f32 %v2771, %v3235
        %v3376 = vadd.f32 %v2776, %v3240
        %v3377 = vadd.f32 %v2779, %v3243
        %v3378 = vadd.f32 %v2784, %v3248
        %v3379 = vadd.f32 %v2787, %v3251
        %v3380 = vadd.f32 %v2792, %v3256
        %v3381 = vadd.f32 %v2795, %v3259
        %v3382 = vadd.f32 %v2800, %v3264
        %v3383 = vadd.f32 %v2803, %v3267
        %v3384 = vadd.f32 %v2808, %v3272
        %v3385 = vadd.f32 %v2811, %v3275
        %v3386 = vadd.f32 %v2816, %v3280
        %v3387 = vadd.f32 %v2819, %v3283
        %v3388 = vadd.f32 %v2824, %v3288
        %v3389 = vadd.f32 %v2827, %v3291
        %v3390 = vadd.f32 %v2832, %v3296
        %v3391 = vadd.f32 %v2835, %v3299
        %v3392 = vadd.f32 %v2840, %v3304
        %v3393 = vadd.f32 %v2843, %v3307
        %v3394 = vadd.f32 %v2848, %v3312
        %v3395 = vadd.f32 %v2851, %v3315
        %v3396 = vadd.f32 %v2856, %v3320
        %v3397 = vadd.f32 %v2859, %v3323
        %v3398 = vadd.f32 %v2864, %v3328
        %v3399 = vadd.f32 %v2867, %v3331
        %v3400 = vadd.f32 %v2872, %v3336
        %v3401 = vadd.f32 %v2875, %v3339
        %v3402 = vadd.f32 %v2880, %v3344
        %v3403 = vadd.f32 %v2883, %v3347
        %v3404 = vld [vmem:[#allocation2 + $0x8] sm:$0x80]
        %v3405 = vld [vmem:[#allocation2 + $0x10] sm:$0xff]
        %v3406 = vld [vmem:[#allocation2 + $0x18] sm:$0xff]
        %v3407 = vld [vmem:[#allocation2 + $0x20] sm:$0xff]
        %v3408 = vld [vmem:[#allocation2 + $0x28] sm:$0xff]
        %v3409 = vld [vmem:[#allocation2 + $0x30] sm:$0xff]
        %v3410 = vld [vmem:[#allocation2 + $0x38] sm:$0xff]
        %v3411 = vld [vmem:[#allocation2 + $0x40] sm:$0xff]
        %v3412 = vld [vmem:[#allocation2 + $0x48] sm:$0xff]
        %v3413 = vld [vmem:[#allocation2 + $0x50] sm:$0xff]
        %v3414 = vld [vmem:[#allocation2 + $0x58] sm:$0xff]
        %v3415 = vld [vmem:[#allocation2 + $0x60] sm:$0xff]
        %v3416 = vld [vmem:[#allocation2 + $0x68] sm:$0xff]
        %v3417 = vld [vmem:[#allocation2 + $0x70] sm:$0xff]
        %v3418 = vld [vmem:[#allocation2 + $0x78] sm:$0xff]
        %v3419 = vld [vmem:[#allocation2 + $0x80] sm:$0xff]
        %v3420 = vld [vmem:[#allocation2 + $0x88] sm:$0xff]
        %v3421 = vld [vmem:[#allocation2 + $0x90] sm:$0xff]
        %v3422 = vld [vmem:[#allocation2 + $0x98] sm:$0xff]
        %v3423 = vld [vmem:[#allocation2 + $0xa0] sm:$0xff]
        %v3424 = vld [vmem:[#allocation2 + $0xa8] sm:$0xff]
        %v3425 = vld [vmem:[#allocation2 + $0xb0] sm:$0xff]
        %v3426 = vld [vmem:[#allocation2 + $0xb8] sm:$0xff]
        %v3427 = vld [vmem:[#allocation2 + $0xc0] sm:$0xff]
        %v3428 = vld [vmem:[#allocation2 + $0xc8] sm:$0xff]
        %v3429 = vld [vmem:[#allocation2 + $0xd0] sm:$0xff]
        %v3430 = vld [vmem:[#allocation2 + $0xd8] sm:$0xff]
        %v3431 = vld [vmem:[#allocation2 + $0xe0] sm:$0xff]
        %s3432 = scalar_lea.vmem [#allocation8], 192
        %v3433 = vld [vmem:[%s3432] sm:$0xf]
        %v3434 = vld [vmem:[%s3432 + $0x4] sm:$0xf]
        %v3435 = vld [vmem:[%s3432 + $0x8] sm:$0xf]
        %v3436 = vld [vmem:[%s3432 + $0xc] sm:$0xf]
        %v3437 = vld [vmem:[%s3432 + $0x10] sm:$0xf]
        %v3438 = vld [vmem:[%s3432 + $0x14] sm:$0xf]
        %v3439 = vld [vmem:[%s3432 + $0x18] sm:$0xf]
        %v3440 = vld [vmem:[%s3432 + $0x1c] sm:$0xf]
        %v3441 = vld [vmem:[%s3432 + $0x20] sm:$0xf]
        %v3442 = vld [vmem:[%s3432 + $0x24] sm:$0xf]
        %v3443 = vld [vmem:[%s3432 + $0x28] sm:$0xf]
        %v3444 = vld [vmem:[%s3432 + $0x2c] sm:$0xf]
        %v3445 = vld [vmem:[%s3432 + $0x30] sm:$0xf]
        %v3446 = vld [vmem:[%s3432 + $0x34] sm:$0xf]
        %v3447 = vld [vmem:[%s3432 + $0x38] sm:$0xf]
        %v3448 = vld [vmem:[%s3432 + $0x3c] sm:$0xf]
        %vm3449 = vsmask.f32 256
        %v3451 = vshrl.u32 %v3404, 16
        %v3453 = vrot.slane %v3451, 7
        %v3455 = vshrl.u32 %v3405, 16
        %v3457 = vrot.slane %v3455, 7
        %v3458 = vshll.u32 %v3405, 16
        %v3460 = vor.u32 %v3457, %v3458
        %v3461 = vsel %vm3449, %v3453, %v3460
        %v3463 = vshrl.u32 %v3406, 16
        %v3465 = vrot.slane %v3463, 7
        %v3466 = vshll.u32 %v3406, 16
        %v3468 = vor.u32 %v3465, %v3466
        %v3469 = vsel %vm3449, %v3457, %v3468
        %v3471 = vshrl.u32 %v3407, 16
        %v3473 = vrot.slane %v3471, 7
        %v3474 = vshll.u32 %v3407, 16
        %v3476 = vor.u32 %v3473, %v3474
        %v3477 = vsel %vm3449, %v3465, %v3476
        %v3479 = vshrl.u32 %v3408, 16
        %v3481 = vrot.slane %v3479, 7
        %v3482 = vshll.u32 %v3408, 16
        %v3484 = vor.u32 %v3481, %v3482
        %v3485 = vsel %vm3449, %v3473, %v3484
        %v3487 = vshrl.u32 %v3409, 16
        %v3489 = vrot.slane %v3487, 7
        %v3490 = vshll.u32 %v3409, 16
        %v3492 = vor.u32 %v3489, %v3490
        %v3493 = vsel %vm3449, %v3481, %v3492
        %v3495 = vshrl.u32 %v3410, 16
        %v3497 = vrot.slane %v3495, 7
        %v3498 = vshll.u32 %v3410, 16
        %v3500 = vor.u32 %v3497, %v3498
        %v3501 = vsel %vm3449, %v3489, %v3500
        %v3503 = vshrl.u32 %v3411, 16
        %v3505 = vrot.slane %v3503, 7
        %v3506 = vshll.u32 %v3411, 16
        %v3508 = vor.u32 %v3505, %v3506
        %v3509 = vsel %vm3449, %v3497, %v3508
        %v3511 = vshrl.u32 %v3412, 16
        %v3513 = vrot.slane %v3511, 7
        %v3514 = vshll.u32 %v3412, 16
        %v3516 = vor.u32 %v3513, %v3514
        %v3517 = vsel %vm3449, %v3505, %v3516
        %v3519 = vshrl.u32 %v3413, 16
        %v3521 = vrot.slane %v3519, 7
        %v3522 = vshll.u32 %v3413, 16
        %v3524 = vor.u32 %v3521, %v3522
        %v3525 = vsel %vm3449, %v3513, %v3524
        %v3527 = vshrl.u32 %v3414, 16
        %v3529 = vrot.slane %v3527, 7
        %v3530 = vshll.u32 %v3414, 16
        %v3532 = vor.u32 %v3529, %v3530
        %v3533 = vsel %vm3449, %v3521, %v3532
        %v3535 = vshrl.u32 %v3415, 16
        %v3537 = vrot.slane %v3535, 7
        %v3538 = vshll.u32 %v3415, 16
        %v3540 = vor.u32 %v3537, %v3538
        %v3541 = vsel %vm3449, %v3529, %v3540
        %v3543 = vshrl.u32 %v3416, 16
        %v3545 = vrot.slane %v3543, 7
        %v3546 = vshll.u32 %v3416, 16
        %v3548 = vor.u32 %v3545, %v3546
        %v3549 = vsel %vm3449, %v3537, %v3548
        %v3551 = vshrl.u32 %v3417, 16
        %v3553 = vrot.slane %v3551, 7
        %v3554 = vshll.u32 %v3417, 16
        %v3556 = vor.u32 %v3553, %v3554
        %v3557 = vsel %vm3449, %v3545, %v3556
        %v3559 = vshrl.u32 %v3418, 16
        %v3561 = vrot.slane %v3559, 7
        %v3562 = vshll.u32 %v3418, 16
        %v3564 = vor.u32 %v3561, %v3562
        %v3565 = vsel %vm3449, %v3553, %v3564
        %v3567 = vshrl.u32 %v3419, 16
        %v3569 = vrot.slane %v3567, 7
        %v3570 = vshll.u32 %v3419, 16
        %v3572 = vor.u32 %v3569, %v3570
        %v3573 = vsel %vm3449, %v3561, %v3572
        %v3575 = vshrl.u32 %v3420, 16
        %v3577 = vrot.slane %v3575, 7
        %v3578 = vshll.u32 %v3420, 16
        %v3580 = vor.u32 %v3577, %v3578
        %v3581 = vsel %vm3449, %v3569, %v3580
        %v3583 = vshrl.u32 %v3421, 16
        %v3585 = vrot.slane %v3583, 7
        %v3586 = vshll.u32 %v3421, 16
        %v3588 = vor.u32 %v3585, %v3586
        %v3589 = vsel %vm3449, %v3577, %v3588
        %v3591 = vshrl.u32 %v3422, 16
        %v3593 = vrot.slane %v3591, 7
        %v3594 = vshll.u32 %v3422, 16
        %v3596 = vor.u32 %v3593, %v3594
        %v3597 = vsel %vm3449, %v3585, %v3596
        %v3599 = vshrl.u32 %v3423, 16
        %v3601 = vrot.slane %v3599, 7
        %v3602 = vshll.u32 %v3423, 16
        %v3604 = vor.u32 %v3601, %v3602
        %v3605 = vsel %vm3449, %v3593, %v3604
        %v3607 = vshrl.u32 %v3424, 16
        %v3609 = vrot.slane %v3607, 7
        %v3610 = vshll.u32 %v3424, 16
        %v3612 = vor.u32 %v3609, %v3610
        %v3613 = vsel %vm3449, %v3601, %v3612
        %v3615 = vshrl.u32 %v3425, 16
        %v3617 = vrot.slane %v3615, 7
        %v3618 = vshll.u32 %v3425, 16
        %v3620 = vor.u32 %v3617, %v3618
        %v3621 = vsel %vm3449, %v3609, %v3620
        %v3623 = vshrl.u32 %v3426, 16
        %v3625 = vrot.slane %v3623, 7
        %v3626 = vshll.u32 %v3426, 16
        %v3628 = vor.u32 %v3625, %v3626
        %v3629 = vsel %vm3449, %v3617, %v3628
        %v3631 = vshrl.u32 %v3427, 16
        %v3633 = vrot.slane %v3631, 7
        %v3634 = vshll.u32 %v3427, 16
        %v3636 = vor.u32 %v3633, %v3634
        %v3637 = vsel %vm3449, %v3625, %v3636
        %v3639 = vshrl.u32 %v3428, 16
        %v3641 = vrot.slane %v3639, 7
        %v3642 = vshll.u32 %v3428, 16
        %v3644 = vor.u32 %v3641, %v3642
        %v3645 = vsel %vm3449, %v3633, %v3644
        %v3647 = vshrl.u32 %v3429, 16
        %v3649 = vrot.slane %v3647, 7
        %v3650 = vshll.u32 %v3429, 16
        %v3652 = vor.u32 %v3649, %v3650
        %v3653 = vsel %vm3449, %v3641, %v3652
        %v3655 = vshrl.u32 %v3430, 16
        %v3657 = vrot.slane %v3655, 7
        %v3658 = vshll.u32 %v3430, 16
        %v3660 = vor.u32 %v3657, %v3658
        %v3661 = vsel %vm3449, %v3649, %v3660
        %v3663 = vshrl.u32 %v3431, 16
        %v3665 = vrot.slane %v3663, 7
        %v3666 = vshll.u32 %v3431, 16
        %v3668 = vor.u32 %v3665, %v3666
        %v3669 = vsel %vm3449, %v3657, %v3668
        %v3713 = vunpack.c.l.b16 %v3433
        %v3714 = vunpack.c.l.b16 %v3434
        %v3715 = vunpack.c.l.b16 %v3435
        %v3716 = vunpack.c.l.b16 %v3436
        %v3717 = vunpack.c.l.b16 %v3437
        %v3718 = vunpack.c.l.b16 %v3438
        %v3719 = vunpack.c.l.b16 %v3439
        %v3720 = vunpack.c.l.b16 %v3440
        %v3721 = vunpack.c.l.b16 %v3441
        %v3722 = vunpack.c.l.b16 %v3442
        %v3723 = vunpack.c.l.b16 %v3443
        %v3724 = vunpack.c.l.b16 %v3444
        %v3725 = vunpack.c.l.b16 %v3445
        %v3726 = vunpack.c.l.b16 %v3446
        %v3727 = vunpack.c.l.b16 %v3447
        %v3728 = vunpack.c.l.b16 %v3448
        %v3729 = vpack.c.b16 %v3714, %v3713
        %v3730 = vpack.c.b16 %v3716, %v3715
        %v3731 = vpack.c.b16 %v3718, %v3717
        %v3732 = vpack.c.b16 %v3720, %v3719
        %v3733 = vpack.c.b16 %v3722, %v3721
        %v3734 = vpack.c.b16 %v3724, %v3723
        %v3735 = vpack.c.b16 %v3726, %v3725
        %v3736 = vpack.c.b16 %v3728, %v3727
        %3745 = vmatprep.subr.bf16.mxu0 0
        %3746 = vmatpush1.bf16.msra.mxu0 %v3729
        %3747 = vmatprep.subr.bf16.mxu0 0
        %3748 = vmatpush1.bf16.msra.mxu0 %v3730
        %3749 = vmatprep.subr.bf16.mxu0 0
        %3750 = vmatpush1.bf16.msra.mxu0 %v3731
        %3751 = vmatprep.subr.bf16.mxu0 0
        %3752 = vmatpush1.bf16.msra.mxu0 %v3732
        %3753 = vmatprep.subr.bf16.mxu0 0
        %3754 = vmatpush1.bf16.msra.mxu0 %v3733
        %3755 = vmatprep.subr.bf16.mxu0 0
        %3756 = vmatpush1.bf16.msra.mxu0 %v3734
        %3757 = vmatprep.subr.bf16.mxu0 0
        %3758 = vmatpush1.bf16.msra.mxu0 %v3735
        %3759 = vmatprep.subr.bf16.mxu0 0
        %3760 = vmatpush1.bf16.msra.mxu0 %v3736
        %3761 = vmatprep.subr.bf16.mxu0 0
        %3762 = vmatpush1.bf16.msra.mxu0 0
        %3763 = vmatprep.subr.bf16.mxu0 0
        %3764 = vmatpush1.bf16.msra.mxu0 0
        %3765 = vmatprep.subr.bf16.mxu0 0
        %3766 = vmatpush1.bf16.msra.mxu0 0
        %3767 = vmatprep.subr.bf16.mxu0 0
        %3768 = vmatpush1.bf16.msra.mxu0 0
        %3769 = vmatprep.subr.bf16.mxu0 0
        %3770 = vmatpush1.bf16.msra.mxu0 0
        %3771 = vmatprep.subr.bf16.mxu0 0
        %3772 = vmatpush1.bf16.msra.mxu0 0
        %3773 = vmatprep.subr.bf16.mxu0 0
        %3774 = vmatpush1.bf16.msra.mxu0 0
        %3775 = vmatprep.subr.bf16.mxu0 0
        %3776 = vmatpush1.bf16.msra.mxu0 0
        %3777 = vmatprep.mubr.bf16.mxu0 0
        %3778 = vmatmul.mubr.bf16.gmra.mrb[0].mxu0 %v3461
        %v3779 = vpop.f32.mrb[0].mxu0
        %v3780 = vadd.f32 0.0, %v3779
        %v3781 = vpop.f32.mrb[0].mxu0
        %v3782 = vpop.f32.mrb[0].mxu0
        %v3783 = vadd.f32 0.0, %v3782
        %v3784 = vpop.f32.mrb[0].mxu0
        %3785 = vmatprep.mubr.bf16.mxu0 0
        %3786 = vmatmul.mubr.bf16.gmra.mrb[0].mxu0 %v3469
        %v3787 = vpop.f32.mrb[0].mxu0
        %v3788 = vadd.f32 0.0, %v3787
        %v3789 = vpop.f32.mrb[0].mxu0
        %v3790 = vpop.f32.mrb[0].mxu0
        %v3791 = vadd.f32 0.0, %v3790
        %v3792 = vpop.f32.mrb[0].mxu0
        %3793 = vmatprep.mubr.bf16.mxu0 0
        %3794 = vmatmul.mubr.bf16.gmra.mrb[0].mxu0 %v3477
        %v3795 = vpop.f32.mrb[0].mxu0
        %v3796 = vadd.f32 0.0, %v3795
        %v3797 = vpop.f32.mrb[0].mxu0
        %v3798 = vpop.f32.mrb[0].mxu0
        %v3799 = vadd.f32 0.0, %v3798
        %v3800 = vpop.f32.mrb[0].mxu0
        %3801 = vmatprep.mubr.bf16.mxu0 0
        %3802 = vmatmul.mubr.bf16.gmra.mrb[0].mxu0 %v3485
        %v3803 = vpop.f32.mrb[0].mxu0
        %v3804 = vadd.f32 0.0, %v3803
        %v3805 = vpop.f32.mrb[0].mxu0
        %v3806 = vpop.f32.mrb[0].mxu0
        %v3807 = vadd.f32 0.0, %v3806
        %v3808 = vpop.f32.mrb[0].mxu0
        %3809 = vmatprep.mubr.bf16.mxu0 0
        %3810 = vmatmul.mubr.bf16.gmra.mrb[0].mxu0 %v3493
        %v3811 = vpop.f32.mrb[0].mxu0
        %v3812 = vadd.f32 0.0, %v3811
        %v3813 = vpop.f32.mrb[0].mxu0
        %v3814 = vpop.f32.mrb[0].mxu0
        %v3815 = vadd.f32 0.0, %v3814
        %v3816 = vpop.f32.mrb[0].mxu0
        %3817 = vmatprep.mubr.bf16.mxu0 0
        %3818 = vmatmul.mubr.bf16.gmra.mrb[0].mxu0 %v3501
        %v3819 = vpop.f32.mrb[0].mxu0
        %v3820 = vadd.f32 0.0, %v3819
        %v3821 = vpop.f32.mrb[0].mxu0
        %v3822 = vpop.f32.mrb[0].mxu0
        %v3823 = vadd.f32 0.0, %v3822
        %v3824 = vpop.f32.mrb[0].mxu0
        %3825 = vmatprep.mubr.bf16.mxu0 0
        %3826 = vmatmul.mubr.bf16.gmra.mrb[0].mxu0 %v3509
        %v3827 = vpop.f32.mrb[0].mxu0
        %v3828 = vadd.f32 0.0, %v3827
        %v3829 = vpop.f32.mrb[0].mxu0
        %v3830 = vpop.f32.mrb[0].mxu0
        %v3831 = vadd.f32 0.0, %v3830
        %v3832 = vpop.f32.mrb[0].mxu0
        %3833 = vmatprep.mubr.bf16.mxu0 0
        %3834 = vmatmul.mubr.bf16.gmra.mrb[0].mxu0 %v3517
        %v3835 = vpop.f32.mrb[0].mxu0
        %v3836 = vadd.f32 0.0, %v3835
        %v3837 = vpop.f32.mrb[0].mxu0
        %v3838 = vpop.f32.mrb[0].mxu0
        %v3839 = vadd.f32 0.0, %v3838
        %v3840 = vpop.f32.mrb[0].mxu0
        %3841 = vmatprep.mubr.bf16.mxu0 0
        %3842 = vmatmul.mubr.bf16.gmra.mrb[0].mxu0 %v3525
        %v3843 = vpop.f32.mrb[0].mxu0
        %v3844 = vadd.f32 0.0, %v3843
        %v3845 = vpop.f32.mrb[0].mxu0
        %v3846 = vpop.f32.mrb[0].mxu0
        %v3847 = vadd.f32 0.0, %v3846
        %v3848 = vpop.f32.mrb[0].mxu0
        %3849 = vmatprep.mubr.bf16.mxu0 0
        %3850 = vmatmul.mubr.bf16.gmra.mrb[0].mxu0 %v3533
        %v3851 = vpop.f32.mrb[0].mxu0
        %v3852 = vadd.f32 0.0, %v3851
        %v3853 = vpop.f32.mrb[0].mxu0
        %v3854 = vpop.f32.mrb[0].mxu0
        %v3855 = vadd.f32 0.0, %v3854
        %v3856 = vpop.f32.mrb[0].mxu0
        %3857 = vmatprep.mubr.bf16.mxu0 0
        %3858 = vmatmul.mubr.bf16.gmra.mrb[0].mxu0 %v3541
        %v3859 = vpop.f32.mrb[0].mxu0
        %v3860 = vadd.f32 0.0, %v3859
        %v3861 = vpop.f32.mrb[0].mxu0
        %v3862 = vpop.f32.mrb[0].mxu0
        %v3863 = vadd.f32 0.0, %v3862
        %v3864 = vpop.f32.mrb[0].mxu0
        %3865 = vmatprep.mubr.bf16.mxu0 0
        %3866 = vmatmul.mubr.bf16.gmra.mrb[0].mxu0 %v3549
        %v3867 = vpop.f32.mrb[0].mxu0
        %v3868 = vadd.f32 0.0, %v3867
        %v3869 = vpop.f32.mrb[0].mxu0
        %v3870 = vpop.f32.mrb[0].mxu0
        %v3871 = vadd.f32 0.0, %v3870
        %v3872 = vpop.f32.mrb[0].mxu0
        %3873 = vmatprep.mubr.bf16.mxu0 0
        %3874 = vmatmul.mubr.bf16.gmra.mrb[0].mxu0 %v3557
        %v3875 = vpop.f32.mrb[0].mxu0
        %v3876 = vadd.f32 0.0, %v3875
        %v3877 = vpop.f32.mrb[0].mxu0
        %v3878 = vpop.f32.mrb[0].mxu0
        %v3879 = vadd.f32 0.0, %v3878
        %v3880 = vpop.f32.mrb[0].mxu0
        %3881 = vmatprep.mubr.bf16.mxu0 0
        %3882 = vmatmul.mubr.bf16.gmra.mrb[0].mxu0 %v3565
        %v3883 = vpop.f32.mrb[0].mxu0
        %v3884 = vadd.f32 0.0, %v3883
        %v3885 = vpop.f32.mrb[0].mxu0
        %v3886 = vpop.f32.mrb[0].mxu0
        %v3887 = vadd.f32 0.0, %v3886
        %v3888 = vpop.f32.mrb[0].mxu0
        %3889 = vmatprep.mubr.bf16.mxu0 0
        %3890 = vmatmul.mubr.bf16.gmra.mrb[0].mxu0 %v3573
        %v3891 = vpop.f32.mrb[0].mxu0
        %v3892 = vadd.f32 0.0, %v3891
        %v3893 = vpop.f32.mrb[0].mxu0
        %v3894 = vpop.f32.mrb[0].mxu0
        %v3895 = vadd.f32 0.0, %v3894
        %v3896 = vpop.f32.mrb[0].mxu0
        %3897 = vmatprep.mubr.bf16.mxu0 0
        %3898 = vmatmul.mubr.bf16.gmra.mrb[0].mxu0 %v3581
        %v3899 = vpop.f32.mrb[0].mxu0
        %v3900 = vadd.f32 0.0, %v3899
        %v3901 = vpop.f32.mrb[0].mxu0
        %v3902 = vpop.f32.mrb[0].mxu0
        %v3903 = vadd.f32 0.0, %v3902
        %v3904 = vpop.f32.mrb[0].mxu0
        %3905 = vmatprep.mubr.bf16.mxu0 0
        %3906 = vmatmul.mubr.bf16.gmra.mrb[0].mxu0 %v3589
        %v3907 = vpop.f32.mrb[0].mxu0
        %v3908 = vadd.f32 0.0, %v3907
        %v3909 = vpop.f32.mrb[0].mxu0
        %v3910 = vpop.f32.mrb[0].mxu0
        %v3911 = vadd.f32 0.0, %v3910
        %v3912 = vpop.f32.mrb[0].mxu0
        %3913 = vmatprep.mubr.bf16.mxu0 0
        %3914 = vmatmul.mubr.bf16.gmra.mrb[0].mxu0 %v3597
        %v3915 = vpop.f32.mrb[0].mxu0
        %v3916 = vadd.f32 0.0, %v3915
        %v3917 = vpop.f32.mrb[0].mxu0
        %v3918 = vpop.f32.mrb[0].mxu0
        %v3919 = vadd.f32 0.0, %v3918
        %v3920 = vpop.f32.mrb[0].mxu0
        %3921 = vmatprep.mubr.bf16.mxu0 0
        %3922 = vmatmul.mubr.bf16.gmra.mrb[0].mxu0 %v3605
        %v3923 = vpop.f32.mrb[0].mxu0
        %v3924 = vadd.f32 0.0, %v3923
        %v3925 = vpop.f32.mrb[0].mxu0
        %v3926 = vpop.f32.mrb[0].mxu0
        %v3927 = vadd.f32 0.0, %v3926
        %v3928 = vpop.f32.mrb[0].mxu0
        %3929 = vmatprep.mubr.bf16.mxu0 0
        %3930 = vmatmul.mubr.bf16.gmra.mrb[0].mxu0 %v3613
        %v3931 = vpop.f32.mrb[0].mxu0
        %v3932 = vadd.f32 0.0, %v3931
        %v3933 = vpop.f32.mrb[0].mxu0
        %v3934 = vpop.f32.mrb[0].mxu0
        %v3935 = vadd.f32 0.0, %v3934
        %v3936 = vpop.f32.mrb[0].mxu0
        %3937 = vmatprep.mubr.bf16.mxu0 0
        %3938 = vmatmul.mubr.bf16.gmra.mrb[0].mxu0 %v3621
        %v3939 = vpop.f32.mrb[0].mxu0
        %v3940 = vadd.f32 0.0, %v3939
        %v3941 = vpop.f32.mrb[0].mxu0
        %v3942 = vpop.f32.mrb[0].mxu0
        %v3943 = vadd.f32 0.0, %v3942
        %v3944 = vpop.f32.mrb[0].mxu0
        %3945 = vmatprep.mubr.bf16.mxu0 0
        %3946 = vmatmul.mubr.bf16.gmra.mrb[0].mxu0 %v3629
        %v3947 = vpop.f32.mrb[0].mxu0
        %v3948 = vadd.f32 0.0, %v3947
        %v3949 = vpop.f32.mrb[0].mxu0
        %v3950 = vpop.f32.mrb[0].mxu0
        %v3951 = vadd.f32 0.0, %v3950
        %v3952 = vpop.f32.mrb[0].mxu0
        %3953 = vmatprep.mubr.bf16.mxu0 0
        %3954 = vmatmul.mubr.bf16.gmra.mrb[0].mxu0 %v3637
        %v3955 = vpop.f32.mrb[0].mxu0
        %v3956 = vadd.f32 0.0, %v3955
        %v3957 = vpop.f32.mrb[0].mxu0
        %v3958 = vpop.f32.mrb[0].mxu0
        %v3959 = vadd.f32 0.0, %v3958
        %v3960 = vpop.f32.mrb[0].mxu0
        %3961 = vmatprep.mubr.bf16.mxu0 0
        %3962 = vmatmul.mubr.bf16.gmra.mrb[0].mxu0 %v3645
        %v3963 = vpop.f32.mrb[0].mxu0
        %v3964 = vadd.f32 0.0, %v3963
        %v3965 = vpop.f32.mrb[0].mxu0
        %v3966 = vpop.f32.mrb[0].mxu0
        %v3967 = vadd.f32 0.0, %v3966
        %v3968 = vpop.f32.mrb[0].mxu0
        %3969 = vmatprep.mubr.bf16.mxu0 0
        %3970 = vmatmul.mubr.bf16.gmra.mrb[0].mxu0 %v3653
        %v3971 = vpop.f32.mrb[0].mxu0
        %v3972 = vadd.f32 0.0, %v3971
        %v3973 = vpop.f32.mrb[0].mxu0
        %v3974 = vpop.f32.mrb[0].mxu0
        %v3975 = vadd.f32 0.0, %v3974
        %v3976 = vpop.f32.mrb[0].mxu0
        %3977 = vmatprep.mubr.bf16.mxu0 0
        %3978 = vmatmul.mubr.bf16.gmra.mrb[0].mxu0 %v3661
        %v3979 = vpop.f32.mrb[0].mxu0
        %v3980 = vadd.f32 0.0, %v3979
        %v3981 = vpop.f32.mrb[0].mxu0
        %v3982 = vpop.f32.mrb[0].mxu0
        %v3983 = vadd.f32 0.0, %v3982
        %v3984 = vpop.f32.mrb[0].mxu0
        %3985 = vmatprep.mubr.bf16.mxu0 0
        %3986 = vmatmul.mubr.bf16.gmra.mrb[0].mxu0 %v3669
        %v3987 = vpop.f32.mrb[0].mxu0
        %v3988 = vadd.f32 0.0, %v3987
        %v3989 = vpop.f32.mrb[0].mxu0
        %v3990 = vpop.f32.mrb[0].mxu0
        %v3991 = vadd.f32 0.0, %v3990
        %v3992 = vpop.f32.mrb[0].mxu0
        %3993 = vdwg.mxu0
        %v3994 = vadd.f32 %v3350, %v3780
        %v3995 = vadd.f32 %v3351, %v3783
        %v3996 = vadd.f32 %v3352, %v3788
        %v3997 = vadd.f32 %v3353, %v3791
        %v3998 = vadd.f32 %v3354, %v3796
        %v3999 = vadd.f32 %v3355, %v3799
        %v4000 = vadd.f32 %v3356, %v3804
        %v4001 = vadd.f32 %v3357, %v3807
        %v4002 = vadd.f32 %v3358, %v3812
        %v4003 = vadd.f32 %v3359, %v3815
        %v4004 = vadd.f32 %v3360, %v3820
        %v4005 = vadd.f32 %v3361, %v3823
        %v4006 = vadd.f32 %v3362, %v3828
        %v4007 = vadd.f32 %v3363, %v3831
        %v4008 = vadd.f32 %v3364, %v3836
        %v4009 = vadd.f32 %v3365, %v3839
        %v4010 = vadd.f32 %v3366, %v3844
        %v4011 = vadd.f32 %v3367, %v3847
        %v4012 = vadd.f32 %v3368, %v3852
        %v4013 = vadd.f32 %v3369, %v3855
        %v4014 = vadd.f32 %v3370, %v3860
        %v4015 = vadd.f32 %v3371, %v3863
        %v4016 = vadd.f32 %v3372, %v3868
        %v4017 = vadd.f32 %v3373, %v3871
        %v4018 = vadd.f32 %v3374, %v3876
        %v4019 = vadd.f32 %v3375, %v3879
        %v4020 = vadd.f32 %v3376, %v3884
        %v4021 = vadd.f32 %v3377, %v3887
        %v4022 = vadd.f32 %v3378, %v3892
        %v4023 = vadd.f32 %v3379, %v3895
        %v4024 = vadd.f32 %v3380, %v3900
        %v4025 = vadd.f32 %v3381, %v3903
        %v4026 = vadd.f32 %v3382, %v3908
        %v4027 = vadd.f32 %v3383, %v3911
        %v4028 = vadd.f32 %v3384, %v3916
        %v4029 = vadd.f32 %v3385, %v3919
        %v4030 = vadd.f32 %v3386, %v3924
        %v4031 = vadd.f32 %v3387, %v3927
        %v4032 = vadd.f32 %v3388, %v3932
        %v4033 = vadd.f32 %v3389, %v3935
        %v4034 = vadd.f32 %v3390, %v3940
        %v4035 = vadd.f32 %v3391, %v3943
        %v4036 = vadd.f32 %v3392, %v3948
        %v4037 = vadd.f32 %v3393, %v3951
        %v4038 = vadd.f32 %v3394, %v3956
        %v4039 = vadd.f32 %v3395, %v3959
        %v4040 = vadd.f32 %v3396, %v3964
        %v4041 = vadd.f32 %v3397, %v3967
        %v4042 = vadd.f32 %v3398, %v3972
        %v4043 = vadd.f32 %v3399, %v3975
        %v4044 = vadd.f32 %v3400, %v3980
        %v4045 = vadd.f32 %v3401, %v3983
        %v4046 = vadd.f32 %v3402, %v3988
        %v4047 = vadd.f32 %v3403, %v3991
        %s4048 = scalar_lea.vmem [#allocation8], 256
        %v4049 = vld [vmem:[%s4048] sm:$0xf]
        %v4050 = vld [vmem:[%s4048 + $0x4] sm:$0xf]
        %v4051 = vld [vmem:[%s4048 + $0x8] sm:$0xf]
        %v4052 = vld [vmem:[%s4048 + $0xc] sm:$0xf]
        %v4053 = vld [vmem:[%s4048 + $0x10] sm:$0xf]
        %v4054 = vld [vmem:[%s4048 + $0x14] sm:$0xf]
        %v4055 = vld [vmem:[%s4048 + $0x18] sm:$0xf]
        %v4056 = vld [vmem:[%s4048 + $0x1c] sm:$0xf]
        %v4057 = vld [vmem:[%s4048 + $0x20] sm:$0xf]
        %v4058 = vld [vmem:[%s4048 + $0x24] sm:$0xf]
        %v4059 = vld [vmem:[%s4048 + $0x28] sm:$0xf]
        %v4060 = vld [vmem:[%s4048 + $0x2c] sm:$0xf]
        %v4061 = vld [vmem:[%s4048 + $0x30] sm:$0xf]
        %v4062 = vld [vmem:[%s4048 + $0x34] sm:$0xf]
        %v4063 = vld [vmem:[%s4048 + $0x38] sm:$0xf]
        %v4064 = vld [vmem:[%s4048 + $0x3c] sm:$0xf]
        %v4081 = vunpack.c.l.b16 %v4049
        %v4082 = vunpack.c.l.b16 %v4050
        %v4083 = vunpack.c.l.b16 %v4051
        %v4084 = vunpack.c.l.b16 %v4052
        %v4085 = vunpack.c.l.b16 %v4053
        %v4086 = vunpack.c.l.b16 %v4054
        %v4087 = vunpack.c.l.b16 %v4055
        %v4088 = vunpack.c.l.b16 %v4056
        %v4089 = vunpack.c.l.b16 %v4057
        %v4090 = vunpack.c.l.b16 %v4058
        %v4091 = vunpack.c.l.b16 %v4059
        %v4092 = vunpack.c.l.b16 %v4060
        %v4093 = vunpack.c.l.b16 %v4061
        %v4094 = vunpack.c.l.b16 %v4062
        %v4095 = vunpack.c.l.b16 %v4063
        %v4096 = vunpack.c.l.b16 %v4064
        %v4097 = vpack.c.b16 %v4082, %v4081
        %v4098 = vpack.c.b16 %v4084, %v4083
        %v4099 = vpack.c.b16 %v4086, %v4085
        %v4100 = vpack.c.b16 %v4088, %v4087
        %v4101 = vpack.c.b16 %v4090, %v4089
        %v4102 = vpack.c.b16 %v4092, %v4091
        %v4103 = vpack.c.b16 %v4094, %v4093
        %v4104 = vpack.c.b16 %v4096, %v4095
        %4113 = vmatprep.subr.bf16.mxu0 0
        %4114 = vmatpush1.bf16.msra.mxu0 %v4097
        %4115 = vmatprep.subr.bf16.mxu0 0
        %4116 = vmatpush1.bf16.msra.mxu0 %v4098
        %4117 = vmatprep.subr.bf16.mxu0 0
        %4118 = vmatpush1.bf16.msra.mxu0 %v4099
        %4119 = vmatprep.subr.bf16.mxu0 0
        %4120 = vmatpush1.bf16.msra.mxu0 %v4100
        %4121 = vmatprep.subr.bf16.mxu0 0
        %4122 = vmatpush1.bf16.msra.mxu0 %v4101
        %4123 = vmatprep.subr.bf16.mxu0 0
        %4124 = vmatpush1.bf16.msra.mxu0 %v4102
        %4125 = vmatprep.subr.bf16.mxu0 0
        %4126 = vmatpush1.bf16.msra.mxu0 %v4103
        %4127 = vmatprep.subr.bf16.mxu0 0
        %4128 = vmatpush1.bf16.msra.mxu0 %v4104
        %4129 = vmatprep.subr.bf16.mxu0 0
        %4130 = vmatpush1.bf16.msra.mxu0 0
        %4131 = vmatprep.subr.bf16.mxu0 0
        %4132 = vmatpush1.bf16.msra.mxu0 0
        %4133 = vmatprep.subr.bf16.mxu0 0
        %4134 = vmatpush1.bf16.msra.mxu0 0
        %4135 = vmatprep.subr.bf16.mxu0 0
        %4136 = vmatpush1.bf16.msra.mxu0 0
        %4137 = vmatprep.subr.bf16.mxu0 0
        %4138 = vmatpush1.bf16.msra.mxu0 0
        %4139 = vmatprep.subr.bf16.mxu0 0
        %4140 = vmatpush1.bf16.msra.mxu0 0
        %4141 = vmatprep.subr.bf16.mxu0 0
        %4142 = vmatpush1.bf16.msra.mxu0 0
        %4143 = vmatprep.subr.bf16.mxu0 0
        %4144 = vmatpush1.bf16.msra.mxu0 0
        %4145 = vmatprep.mubr.bf16.mxu0 0
        %4146 = vmatmul.mubr.bf16.gmra.mrb[0].mxu0 %v3405
        %v4147 = vpop.f32.mrb[0].mxu0
        %v4148 = vadd.f32 0.0, %v4147
        %v4149 = vpop.f32.mrb[0].mxu0
        %v4150 = vpop.f32.mrb[0].mxu0
        %v4151 = vadd.f32 0.0, %v4150
        %v4152 = vpop.f32.mrb[0].mxu0
        %4153 = vmatprep.mubr.bf16.mxu0 0
        %4154 = vmatmul.mubr.bf16.gmra.mrb[0].mxu0 %v3406
        %v4155 = vpop.f32.mrb[0].mxu0
        %v4156 = vadd.f32 0.0, %v4155
        %v4157 = vpop.f32.mrb[0].mxu0
        %v4158 = vpop.f32.mrb[0].mxu0
        %v4159 = vadd.f32 0.0, %v4158
        %v4160 = vpop.f32.mrb[0].mxu0
        %4161 = vmatprep.mubr.bf16.mxu0 0
        %4162 = vmatmul.mubr.bf16.gmra.mrb[0].mxu0 %v3407
        %v4163 = vpop.f32.mrb[0].mxu0
        %v4164 = vadd.f32 0.0, %v4163
        %v4165 = vpop.f32.mrb[0].mxu0
        %v4166 = vpop.f32.mrb[0].mxu0
        %v4167 = vadd.f32 0.0, %v4166
        %v4168 = vpop.f32.mrb[0].mxu0
        %4169 = vmatprep.mubr.bf16.mxu0 0
        %4170 = vmatmul.mubr.bf16.gmra.mrb[0].mxu0 %v3408
        %v4171 = vpop.f32.mrb[0].mxu0
        %v4172 = vadd.f32 0.0, %v4171
        %v4173 = vpop.f32.mrb[0].mxu0
        %v4174 = vpop.f32.mrb[0].mxu0
        %v4175 = vadd.f32 0.0, %v4174
        %v4176 = vpop.f32.mrb[0].mxu0
        %4177 = vmatprep.mubr.bf16.mxu0 0
        %4178 = vmatmul.mubr.bf16.gmra.mrb[0].mxu0 %v3409
        %v4179 = vpop.f32.mrb[0].mxu0
        %v4180 = vadd.f32 0.0, %v4179
        %v4181 = vpop.f32.mrb[0].mxu0
        %v4182 = vpop.f32.mrb[0].mxu0
        %v4183 = vadd.f32 0.0, %v4182
        %v4184 = vpop.f32.mrb[0].mxu0
        %4185 = vmatprep.mubr.bf16.mxu0 0
        %4186 = vmatmul.mubr.bf16.gmra.mrb[0].mxu0 %v3410
        %v4187 = vpop.f32.mrb[0].mxu0
        %v4188 = vadd.f32 0.0, %v4187
        %v4189 = vpop.f32.mrb[0].mxu0
        %v4190 = vpop.f32.mrb[0].mxu0
        %v4191 = vadd.f32 0.0, %v4190
        %v4192 = vpop.f32.mrb[0].mxu0
        %4193 = vmatprep.mubr.bf16.mxu0 0
        %4194 = vmatmul.mubr.bf16.gmra.mrb[0].mxu0 %v3411
        %v4195 = vpop.f32.mrb[0].mxu0
        %v4196 = vadd.f32 0.0, %v4195
        %v4197 = vpop.f32.mrb[0].mxu0
        %v4198 = vpop.f32.mrb[0].mxu0
        %v4199 = vadd.f32 0.0, %v4198
        %v4200 = vpop.f32.mrb[0].mxu0
        %4201 = vmatprep.mubr.bf16.mxu0 0
        %4202 = vmatmul.mubr.bf16.gmra.mrb[0].mxu0 %v3412
        %v4203 = vpop.f32.mrb[0].mxu0
        %v4204 = vadd.f32 0.0, %v4203
        %v4205 = vpop.f32.mrb[0].mxu0
        %v4206 = vpop.f32.mrb[0].mxu0
        %v4207 = vadd.f32 0.0, %v4206
        %v4208 = vpop.f32.mrb[0].mxu0
        %4209 = vmatprep.mubr.bf16.mxu0 0
        %4210 = vmatmul.mubr.bf16.gmra.mrb[0].mxu0 %v3413
        %v4211 = vpop.f32.mrb[0].mxu0
        %v4212 = vadd.f32 0.0, %v4211
        %v4213 = vpop.f32.mrb[0].mxu0
        %v4214 = vpop.f32.mrb[0].mxu0
        %v4215 = vadd.f32 0.0, %v4214
        %v4216 = vpop.f32.mrb[0].mxu0
        %4217 = vmatprep.mubr.bf16.mxu0 0
        %4218 = vmatmul.mubr.bf16.gmra.mrb[0].mxu0 %v3414
        %v4219 = vpop.f32.mrb[0].mxu0
        %v4220 = vadd.f32 0.0, %v4219
        %v4221 = vpop.f32.mrb[0].mxu0
        %v4222 = vpop.f32.mrb[0].mxu0
        %v4223 = vadd.f32 0.0, %v4222
        %v4224 = vpop.f32.mrb[0].mxu0
        %4225 = vmatprep.mubr.bf16.mxu0 0
        %4226 = vmatmul.mubr.bf16.gmra.mrb[0].mxu0 %v3415
        %v4227 = vpop.f32.mrb[0].mxu0
        %v4228 = vadd.f32 0.0, %v4227
        %v4229 = vpop.f32.mrb[0].mxu0
        %v4230 = vpop.f32.mrb[0].mxu0
        %v4231 = vadd.f32 0.0, %v4230
        %v4232 = vpop.f32.mrb[0].mxu0
        %4233 = vmatprep.mubr.bf16.mxu0 0
        %4234 = vmatmul.mubr.bf16.gmra.mrb[0].mxu0 %v3416
        %v4235 = vpop.f32.mrb[0].mxu0
        %v4236 = vadd.f32 0.0, %v4235
        %v4237 = vpop.f32.mrb[0].mxu0
        %v4238 = vpop.f32.mrb[0].mxu0
        %v4239 = vadd.f32 0.0, %v4238
        %v4240 = vpop.f32.mrb[0].mxu0
        %4241 = vmatprep.mubr.bf16.mxu0 0
        %4242 = vmatmul.mubr.bf16.gmra.mrb[0].mxu0 %v3417
        %v4243 = vpop.f32.mrb[0].mxu0
        %v4244 = vadd.f32 0.0, %v4243
        %v4245 = vpop.f32.mrb[0].mxu0
        %v4246 = vpop.f32.mrb[0].mxu0
        %v4247 = vadd.f32 0.0, %v4246
        %v4248 = vpop.f32.mrb[0].mxu0
        %4249 = vmatprep.mubr.bf16.mxu0 0
        %4250 = vmatmul.mubr.bf16.gmra.mrb[0].mxu0 %v3418
        %v4251 = vpop.f32.mrb[0].mxu0
        %v4252 = vadd.f32 0.0, %v4251
        %v4253 = vpop.f32.mrb[0].mxu0
        %v4254 = vpop.f32.mrb[0].mxu0
        %v4255 = vadd.f32 0.0, %v4254
        %v4256 = vpop.f32.mrb[0].mxu0
        %4257 = vmatprep.mubr.bf16.mxu0 0
        %4258 = vmatmul.mubr.bf16.gmra.mrb[0].mxu0 %v3419
        %v4259 = vpop.f32.mrb[0].mxu0
        %v4260 = vadd.f32 0.0, %v4259
        %v4261 = vpop.f32.mrb[0].mxu0
        %v4262 = vpop.f32.mrb[0].mxu0
        %v4263 = vadd.f32 0.0, %v4262
        %v4264 = vpop.f32.mrb[0].mxu0
        %4265 = vmatprep.mubr.bf16.mxu0 0
        %4266 = vmatmul.mubr.bf16.gmra.mrb[0].mxu0 %v3420
        %v4267 = vpop.f32.mrb[0].mxu0
        %v4268 = vadd.f32 0.0, %v4267
        %v4269 = vpop.f32.mrb[0].mxu0
        %v4270 = vpop.f32.mrb[0].mxu0
        %v4271 = vadd.f32 0.0, %v4270
        %v4272 = vpop.f32.mrb[0].mxu0
        %4273 = vmatprep.mubr.bf16.mxu0 0
        %4274 = vmatmul.mubr.bf16.gmra.mrb[0].mxu0 %v3421
        %v4275 = vpop.f32.mrb[0].mxu0
        %v4276 = vadd.f32 0.0, %v4275
        %v4277 = vpop.f32.mrb[0].mxu0
        %v4278 = vpop.f32.mrb[0].mxu0
        %v4279 = vadd.f32 0.0, %v4278
        %v4280 = vpop.f32.mrb[0].mxu0
        %4281 = vmatprep.mubr.bf16.mxu0 0
        %4282 = vmatmul.mubr.bf16.gmra.mrb[0].mxu0 %v3422
        %v4283 = vpop.f32.mrb[0].mxu0
        %v4284 = vadd.f32 0.0, %v4283
        %v4285 = vpop.f32.mrb[0].mxu0
        %v4286 = vpop.f32.mrb[0].mxu0
        %v4287 = vadd.f32 0.0, %v4286
        %v4288 = vpop.f32.mrb[0].mxu0
        %4289 = vmatprep.mubr.bf16.mxu0 0
        %4290 = vmatmul.mubr.bf16.gmra.mrb[0].mxu0 %v3423
        %v4291 = vpop.f32.mrb[0].mxu0
        %v4292 = vadd.f32 0.0, %v4291
        %v4293 = vpop.f32.mrb[0].mxu0
        %v4294 = vpop.f32.mrb[0].mxu0
        %v4295 = vadd.f32 0.0, %v4294
        %v4296 = vpop.f32.mrb[0].mxu0
        %4297 = vmatprep.mubr.bf16.mxu0 0
        %4298 = vmatmul.mubr.bf16.gmra.mrb[0].mxu0 %v3424
        %v4299 = vpop.f32.mrb[0].mxu0
        %v4300 = vadd.f32 0.0, %v4299
        %v4301 = vpop.f32.mrb[0].mxu0
        %v4302 = vpop.f32.mrb[0].mxu0
        %v4303 = vadd.f32 0.0, %v4302
        %v4304 = vpop.f32.mrb[0].mxu0
        %4305 = vmatprep.mubr.bf16.mxu0 0
        %4306 = vmatmul.mubr.bf16.gmra.mrb[0].mxu0 %v3425
        %v4307 = vpop.f32.mrb[0].mxu0
        %v4308 = vadd.f32 0.0, %v4307
        %v4309 = vpop.f32.mrb[0].mxu0
        %v4310 = vpop.f32.mrb[0].mxu0
        %v4311 = vadd.f32 0.0, %v4310
        %v4312 = vpop.f32.mrb[0].mxu0
        %4313 = vmatprep.mubr.bf16.mxu0 0
        %4314 = vmatmul.mubr.bf16.gmra.mrb[0].mxu0 %v3426
        %v4315 = vpop.f32.mrb[0].mxu0
        %v4316 = vadd.f32 0.0, %v4315
        %v4317 = vpop.f32.mrb[0].mxu0
        %v4318 = vpop.f32.mrb[0].mxu0
        %v4319 = vadd.f32 0.0, %v4318
        %v4320 = vpop.f32.mrb[0].mxu0
        %4321 = vmatprep.mubr.bf16.mxu0 0
        %4322 = vmatmul.mubr.bf16.gmra.mrb[0].mxu0 %v3427
        %v4323 = vpop.f32.mrb[0].mxu0
        %v4324 = vadd.f32 0.0, %v4323
        %v4325 = vpop.f32.mrb[0].mxu0
        %v4326 = vpop.f32.mrb[0].mxu0
        %v4327 = vadd.f32 0.0, %v4326
        %v4328 = vpop.f32.mrb[0].mxu0
        %4329 = vmatprep.mubr.bf16.mxu0 0
        %4330 = vmatmul.mubr.bf16.gmra.mrb[0].mxu0 %v3428
        %v4331 = vpop.f32.mrb[0].mxu0
        %v4332 = vadd.f32 0.0, %v4331
        %v4333 = vpop.f32.mrb[0].mxu0
        %v4334 = vpop.f32.mrb[0].mxu0
        %v4335 = vadd.f32 0.0, %v4334
        %v4336 = vpop.f32.mrb[0].mxu0
        %4337 = vmatprep.mubr.bf16.mxu0 0
        %4338 = vmatmul.mubr.bf16.gmra.mrb[0].mxu0 %v3429
        %v4339 = vpop.f32.mrb[0].mxu0
        %v4340 = vadd.f32 0.0, %v4339
        %v4341 = vpop.f32.mrb[0].mxu0
        %v4342 = vpop.f32.mrb[0].mxu0
        %v4343 = vadd.f32 0.0, %v4342
        %v4344 = vpop.f32.mrb[0].mxu0
        %4345 = vmatprep.mubr.bf16.mxu0 0
        %4346 = vmatmul.mubr.bf16.gmra.mrb[0].mxu0 %v3430
        %v4347 = vpop.f32.mrb[0].mxu0
        %v4348 = vadd.f32 0.0, %v4347
        %v4349 = vpop.f32.mrb[0].mxu0
        %v4350 = vpop.f32.mrb[0].mxu0
        %v4351 = vadd.f32 0.0, %v4350
        %v4352 = vpop.f32.mrb[0].mxu0
        %4353 = vmatprep.mubr.bf16.mxu0 0
        %4354 = vmatmul.mubr.bf16.gmra.mrb[0].mxu0 %v3431
        %v4355 = vpop.f32.mrb[0].mxu0
        %v4356 = vadd.f32 0.0, %v4355
        %v4357 = vpop.f32.mrb[0].mxu0
        %v4358 = vpop.f32.mrb[0].mxu0
        %v4359 = vadd.f32 0.0, %v4358
        %v4360 = vpop.f32.mrb[0].mxu0
        %4361 = vdwg.mxu0
        %v4362 = vadd.f32 %v3994, %v4148
        %v4363 = vadd.f32 %v3995, %v4151
        %v4364 = vadd.f32 %v3996, %v4156
        %v4365 = vadd.f32 %v3997, %v4159
        %v4366 = vadd.f32 %v3998, %v4164
        %v4367 = vadd.f32 %v3999, %v4167
        %v4368 = vadd.f32 %v4000, %v4172
        %v4369 = vadd.f32 %v4001, %v4175
        %v4370 = vadd.f32 %v4002, %v4180
        %v4371 = vadd.f32 %v4003, %v4183
        %v4372 = vadd.f32 %v4004, %v4188
        %v4373 = vadd.f32 %v4005, %v4191
        %v4374 = vadd.f32 %v4006, %v4196
        %v4375 = vadd.f32 %v4007, %v4199
        %v4376 = vadd.f32 %v4008, %v4204
        %v4377 = vadd.f32 %v4009, %v4207
        %v4378 = vadd.f32 %v4010, %v4212
        %v4379 = vadd.f32 %v4011, %v4215
        %v4380 = vadd.f32 %v4012, %v4220
        %v4381 = vadd.f32 %v4013, %v4223
        %v4382 = vadd.f32 %v4014, %v4228
        %v4383 = vadd.f32 %v4015, %v4231
        %v4384 = vadd.f32 %v4016, %v4236
        %v4385 = vadd.f32 %v4017, %v4239
        %v4386 = vadd.f32 %v4018, %v4244
        %v4387 = vadd.f32 %v4019, %v4247
        %v4388 = vadd.f32 %v4020, %v4252
        %v4389 = vadd.f32 %v4021, %v4255
        %v4390 = vadd.f32 %v4022, %v4260
        %v4391 = vadd.f32 %v4023, %v4263
        %v4392 = vadd.f32 %v4024, %v4268
        %v4393 = vadd.f32 %v4025, %v4271
        %v4394 = vadd.f32 %v4026, %v4276
        %v4395 = vadd.f32 %v4027, %v4279
        %v4396 = vadd.f32 %v4028, %v4284
        %v4397 = vadd.f32 %v4029, %v4287
        %v4398 = vadd.f32 %v4030, %v4292
        %v4399 = vadd.f32 %v4031, %v4295
        %v4400 = vadd.f32 %v4032, %v4300
        %v4401 = vadd.f32 %v4033, %v4303
        %v4402 = vadd.f32 %v4034, %v4308
        %v4403 = vadd.f32 %v4035, %v4311
        %v4404 = vadd.f32 %v4036, %v4316
        %v4405 = vadd.f32 %v4037, %v4319
        %v4406 = vadd.f32 %v4038, %v4324
        %v4407 = vadd.f32 %v4039, %v4327
        %v4408 = vadd.f32 %v4040, %v4332
        %v4409 = vadd.f32 %v4041, %v4335
        %v4410 = vadd.f32 %v4042, %v4340
        %v4411 = vadd.f32 %v4043, %v4343
        %v4412 = vadd.f32 %v4044, %v4348
        %v4413 = vadd.f32 %v4045, %v4351
        %v4414 = vadd.f32 %v4046, %v4356
        %v4415 = vadd.f32 %v4047, %v4359
        %v4416 = vld [vmem:[#allocation2 + $0x10] sm:$0xff]
        %v4417 = vld [vmem:[#allocation2 + $0x18] sm:$0xff]
        %v4418 = vld [vmem:[#allocation2 + $0x20] sm:$0xff]
        %v4419 = vld [vmem:[#allocation2 + $0x28] sm:$0xff]
        %v4420 = vld [vmem:[#allocation2 + $0x30] sm:$0xff]
        %v4421 = vld [vmem:[#allocation2 + $0x38] sm:$0xff]
        %v4422 = vld [vmem:[#allocation2 + $0x40] sm:$0xff]
        %v4423 = vld [vmem:[#allocation2 + $0x48] sm:$0xff]
        %v4424 = vld [vmem:[#allocation2 + $0x50] sm:$0xff]
        %v4425 = vld [vmem:[#allocation2 + $0x58] sm:$0xff]
        %v4426 = vld [vmem:[#allocation2 + $0x60] sm:$0xff]
        %v4427 = vld [vmem:[#allocation2 + $0x68] sm:$0xff]
        %v4428 = vld [vmem:[#allocation2 + $0x70] sm:$0xff]
        %v4429 = vld [vmem:[#allocation2 + $0x78] sm:$0xff]
        %v4430 = vld [vmem:[#allocation2 + $0x80] sm:$0xff]
        %v4431 = vld [vmem:[#allocation2 + $0x88] sm:$0xff]
        %v4432 = vld [vmem:[#allocation2 + $0x90] sm:$0xff]
        %v4433 = vld [vmem:[#allocation2 + $0x98] sm:$0xff]
        %v4434 = vld [vmem:[#allocation2 + $0xa0] sm:$0xff]
        %v4435 = vld [vmem:[#allocation2 + $0xa8] sm:$0xff]
        %v4436 = vld [vmem:[#allocation2 + $0xb0] sm:$0xff]
        %v4437 = vld [vmem:[#allocation2 + $0xb8] sm:$0xff]
        %v4438 = vld [vmem:[#allocation2 + $0xc0] sm:$0xff]
        %v4439 = vld [vmem:[#allocation2 + $0xc8] sm:$0xff]
        %v4440 = vld [vmem:[#allocation2 + $0xd0] sm:$0xff]
        %v4441 = vld [vmem:[#allocation2 + $0xd8] sm:$0xff]
        %v4442 = vld [vmem:[#allocation2 + $0xe0] sm:$0xff]
        %v4443 = vld [vmem:[#allocation2 + $0xe8] sm:$0x1]
        %s4444 = scalar_lea.vmem [#allocation8], 320
        %v4445 = vld [vmem:[%s4444] sm:$0xf]
        %v4446 = vld [vmem:[%s4444 + $0x4] sm:$0xf]
        %v4447 = vld [vmem:[%s4444 + $0x8] sm:$0xf]
        %v4448 = vld [vmem:[%s4444 + $0xc] sm:$0xf]
        %v4449 = vld [vmem:[%s4444 + $0x10] sm:$0xf]
        %v4450 = vld [vmem:[%s4444 + $0x14] sm:$0xf]
        %v4451 = vld [vmem:[%s4444 + $0x18] sm:$0xf]
        %v4452 = vld [vmem:[%s4444 + $0x1c] sm:$0xf]
        %v4453 = vld [vmem:[%s4444 + $0x20] sm:$0xf]
        %v4454 = vld [vmem:[%s4444 + $0x24] sm:$0xf]
        %v4455 = vld [vmem:[%s4444 + $0x28] sm:$0xf]
        %v4456 = vld [vmem:[%s4444 + $0x2c] sm:$0xf]
        %v4457 = vld [vmem:[%s4444 + $0x30] sm:$0xf]
        %v4458 = vld [vmem:[%s4444 + $0x34] sm:$0xf]
        %v4459 = vld [vmem:[%s4444 + $0x38] sm:$0xf]
        %v4460 = vld [vmem:[%s4444 + $0x3c] sm:$0xf]
        %vm4461 = vsmask.f32 7424
        %v4463 = vshrl.u32 %v4416, 16
        %v4465 = vshll.u32 %v4416, 16
        %v4467 = vrot.slane %v4465, 1
        %v4468 = vor.u32 %v4463, %v4467
        %v4470 = vshll.u32 %v4417, 16
        %v4472 = vrot.slane %v4470, 1
        %v4473 = vsel %vm4461, %v4468, %v4472
        %v4474 = vshrl.u32 %v4417, 16
        %v4476 = vor.u32 %v4474, %v4472
        %v4478 = vshll.u32 %v4418, 16
        %v4480 = vrot.slane %v4478, 1
        %v4481 = vsel %vm4461, %v4476, %v4480
        %v4482 = vshrl.u32 %v4418, 16
        %v4484 = vor.u32 %v4482, %v4480
        %v4486 = vshll.u32 %v4419, 16
        %v4488 = vrot.slane %v4486, 1
        %v4489 = vsel %vm4461, %v4484, %v4488
        %v4490 = vshrl.u32 %v4419, 16
        %v4492 = vor.u32 %v4490, %v4488
        %v4494 = vshll.u32 %v4420, 16
        %v4496 = vrot.slane %v4494, 1
        %v4497 = vsel %vm4461, %v4492, %v4496
        %v4498 = vshrl.u32 %v4420, 16
        %v4500 = vor.u32 %v4498, %v4496
        %v4502 = vshll.u32 %v4421, 16
        %v4504 = vrot.slane %v4502, 1
        %v4505 = vsel %vm4461, %v4500, %v4504
        %v4506 = vshrl.u32 %v4421, 16
        %v4508 = vor.u32 %v4506, %v4504
        %v4510 = vshll.u32 %v4422, 16
        %v4512 = vrot.slane %v4510, 1
        %v4513 = vsel %vm4461, %v4508, %v4512
        %v4514 = vshrl.u32 %v4422, 16
        %v4516 = vor.u32 %v4514, %v4512
        %v4518 = vshll.u32 %v4423, 16
        %v4520 = vrot.slane %v4518, 1
        %v4521 = vsel %vm4461, %v4516, %v4520
        %v4522 = vshrl.u32 %v4423, 16
        %v4524 = vor.u32 %v4522, %v4520
        %v4526 = vshll.u32 %v4424, 16
        %v4528 = vrot.slane %v4526, 1
        %v4529 = vsel %vm4461, %v4524, %v4528
        %v4530 = vshrl.u32 %v4424, 16
        %v4532 = vor.u32 %v4530, %v4528
        %v4534 = vshll.u32 %v4425, 16
        %v4536 = vrot.slane %v4534, 1
        %v4537 = vsel %vm4461, %v4532, %v4536
        %v4538 = vshrl.u32 %v4425, 16
        %v4540 = vor.u32 %v4538, %v4536
        %v4542 = vshll.u32 %v4426, 16
        %v4544 = vrot.slane %v4542, 1
        %v4545 = vsel %vm4461, %v4540, %v4544
        %v4546 = vshrl.u32 %v4426, 16
        %v4548 = vor.u32 %v4546, %v4544
        %v4550 = vshll.u32 %v4427, 16
        %v4552 = vrot.slane %v4550, 1
        %v4553 = vsel %vm4461, %v4548, %v4552
        %v4554 = vshrl.u32 %v4427, 16
        %v4556 = vor.u32 %v4554, %v4552
        %v4558 = vshll.u32 %v4428, 16
        %v4560 = vrot.slane %v4558, 1
        %v4561 = vsel %vm4461, %v4556, %v4560
        %v4562 = vshrl.u32 %v4428, 16
        %v4564 = vor.u32 %v4562, %v4560
        %v4566 = vshll.u32 %v4429, 16
        %v4568 = vrot.slane %v4566, 1
        %v4569 = vsel %vm4461, %v4564, %v4568
        %v4570 = vshrl.u32 %v4429, 16
        %v4572 = vor.u32 %v4570, %v4568
        %v4574 = vshll.u32 %v4430, 16
        %v4576 = vrot.slane %v4574, 1
        %v4577 = vsel %vm4461, %v4572, %v4576
        %v4578 = vshrl.u32 %v4430, 16
        %v4580 = vor.u32 %v4578, %v4576
        %v4582 = vshll.u32 %v4431, 16
        %v4584 = vrot.slane %v4582, 1
        %v4585 = vsel %vm4461, %v4580, %v4584
        %v4586 = vshrl.u32 %v4431, 16
        %v4588 = vor.u32 %v4586, %v4584
        %v4590 = vshll.u32 %v4432, 16
        %v4592 = vrot.slane %v4590, 1
        %v4593 = vsel %vm4461, %v4588, %v4592
        %v4594 = vshrl.u32 %v4432, 16
        %v4596 = vor.u32 %v4594, %v4592
        %v4598 = vshll.u32 %v4433, 16
        %v4600 = vrot.slane %v4598, 1
        %v4601 = vsel %vm4461, %v4596, %v4600
        %v4602 = vshrl.u32 %v4433, 16
        %v4604 = vor.u32 %v4602, %v4600
        %v4606 = vshll.u32 %v4434, 16
        %v4608 = vrot.slane %v4606, 1
        %v4609 = vsel %vm4461, %v4604, %v4608
        %v4610 = vshrl.u32 %v4434, 16
        %v4612 = vor.u32 %v4610, %v4608
        %v4614 = vshll.u32 %v4435, 16
        %v4616 = vrot.slane %v4614, 1
        %v4617 = vsel %vm4461, %v4612, %v4616
        %v4618 = vshrl.u32 %v4435, 16
        %v4620 = vor.u32 %v4618, %v4616
        %v4622 = vshll.u32 %v4436, 16
        %v4624 = vrot.slane %v4622, 1
        %v4625 = vsel %vm4461, %v4620, %v4624
        %v4626 = vshrl.u32 %v4436, 16
        %v4628 = vor.u32 %v4626, %v4624
        %v4630 = vshll.u32 %v4437, 16
        %v4632 = vrot.slane %v4630, 1
        %v4633 = vsel %vm4461, %v4628, %v4632
        %v4634 = vshrl.u32 %v4437, 16
        %v4636 = vor.u32 %v4634, %v4632
        %v4638 = vshll.u32 %v4438, 16
        %v4640 = vrot.slane %v4638, 1
        %v4641 = vsel %vm4461, %v4636, %v4640
        %v4642 = vshrl.u32 %v4438, 16
        %v4644 = vor.u32 %v4642, %v4640
        %v4646 = vshll.u32 %v4439, 16
        %v4648 = vrot.slane %v4646, 1
        %v4649 = vsel %vm4461, %v4644, %v4648
        %v4650 = vshrl.u32 %v4439, 16
        %v4652 = vor.u32 %v4650, %v4648
        %v4654 = vshll.u32 %v4440, 16
        %v4656 = vrot.slane %v4654, 1
        %v4657 = vsel %vm4461, %v4652, %v4656
        %v4658 = vshrl.u32 %v4440, 16
        %v4660 = vor.u32 %v4658, %v4656
        %v4662 = vshll.u32 %v4441, 16
        %v4664 = vrot.slane %v4662, 1
        %v4665 = vsel %vm4461, %v4660, %v4664
        %v4666 = vshrl.u32 %v4441, 16
        %v4668 = vor.u32 %v4666, %v4664
        %v4670 = vshll.u32 %v4442, 16
        %v4672 = vrot.slane %v4670, 1
        %v4673 = vsel %vm4461, %v4668, %v4672
        %v4674 = vshrl.u32 %v4442, 16
        %v4676 = vor.u32 %v4674, %v4672
        %v4678 = vshll.u32 %v4443, 16
        %v4680 = vrot.slane %v4678, 1
        %v4681 = vsel %vm4461, %v4676, %v4680
        %v4725 = vunpack.c.l.b16 %v4445
        %v4726 = vunpack.c.l.b16 %v4446
        %v4727 = vunpack.c.l.b16 %v4447
        %v4728 = vunpack.c.l.b16 %v4448
        %v4729 = vunpack.c.l.b16 %v4449
        %v4730 = vunpack.c.l.b16 %v4450
        %v4731 = vunpack.c.l.b16 %v4451
        %v4732 = vunpack.c.l.b16 %v4452
        %v4733 = vunpack.c.l.b16 %v4453
        %v4734 = vunpack.c.l.b16 %v4454
        %v4735 = vunpack.c.l.b16 %v4455
        %v4736 = vunpack.c.l.b16 %v4456
        %v4737 = vunpack.c.l.b16 %v4457
        %v4738 = vunpack.c.l.b16 %v4458
        %v4739 = vunpack.c.l.b16 %v4459
        %v4740 = vunpack.c.l.b16 %v4460
        %v4741 = vpack.c.b16 %v4726, %v4725
        %v4742 = vpack.c.b16 %v4728, %v4727
        %v4743 = vpack.c.b16 %v4730, %v4729
        %v4744 = vpack.c.b16 %v4732, %v4731
        %v4745 = vpack.c.b16 %v4734, %v4733
        %v4746 = vpack.c.b16 %v4736, %v4735
        %v4747 = vpack.c.b16 %v4738, %v4737
        %v4748 = vpack.c.b16 %v4740, %v4739
        %4757 = vmatprep.subr.bf16.mxu0 0
        %4758 = vmatpush1.bf16.msra.mxu0 %v4741
        %4759 = vmatprep.subr.bf16.mxu0 0
        %4760 = vmatpush1.bf16.msra.mxu0 %v4742
        %4761 = vmatprep.subr.bf16.mxu0 0
        %4762 = vmatpush1.bf16.msra.mxu0 %v4743
        %4763 = vmatprep.subr.bf16.mxu0 0
        %4764 = vmatpush1.bf16.msra.mxu0 %v4744
        %4765 = vmatprep.subr.bf16.mxu0 0
        %4766 = vmatpush1.bf16.msra.mxu0 %v4745
        %4767 = vmatprep.subr.bf16.mxu0 0
        %4768 = vmatpush1.bf16.msra.mxu0 %v4746
        %4769 = vmatprep.subr.bf16.mxu0 0
        %4770 = vmatpush1.bf16.msra.mxu0 %v4747
        %4771 = vmatprep.subr.bf16.mxu0 0
        %4772 = vmatpush1.bf16.msra.mxu0 %v4748
        %4773 = vmatprep.subr.bf16.mxu0 0
        %4774 = vmatpush1.bf16.msra.mxu0 0
        %4775 = vmatprep.subr.bf16.mxu0 0
        %4776 = vmatpush1.bf16.msra.mxu0 0
        %4777 = vmatprep.subr.bf16.mxu0 0
        %4778 = vmatpush1.bf16.msra.mxu0 0
        %4779 = vmatprep.subr.bf16.mxu0 0
        %4780 = vmatpush1.bf16.msra.mxu0 0
        %4781 = vmatprep.subr.bf16.mxu0 0
        %4782 = vmatpush1.bf16.msra.mxu0 0
        %4783 = vmatprep.subr.bf16.mxu0 0
        %4784 = vmatpush1.bf16.msra.mxu0 0
        %4785 = vmatprep.subr.bf16.mxu0 0
        %4786 = vmatpush1.bf16.msra.mxu0 0
        %4787 = vmatprep.subr.bf16.mxu0 0
        %4788 = vmatpush1.bf16.msra.mxu0 0
        %4789 = vmatprep.mubr.bf16.mxu0 0
        %4790 = vmatmul.mubr.bf16.gmra.mrb[0].mxu0 %v4473
        %v4791 = vpop.f32.mrb[0].mxu0
        %v4792 = vadd.f32 0.0, %v4791
        %v4793 = vpop.f32.mrb[0].mxu0
        %v4794 = vpop.f32.mrb[0].mxu0
        %v4795 = vadd.f32 0.0, %v4794
        %v4796 = vpop.f32.mrb[0].mxu0
        %4797 = vmatprep.mubr.bf16.mxu0 0
        %4798 = vmatmul.mubr.bf16.gmra.mrb[0].mxu0 %v4481
        %v4799 = vpop.f32.mrb[0].mxu0
        %v4800 = vadd.f32 0.0, %v4799
        %v4801 = vpop.f32.mrb[0].mxu0
        %v4802 = vpop.f32.mrb[0].mxu0
        %v4803 = vadd.f32 0.0, %v4802
        %v4804 = vpop.f32.mrb[0].mxu0
        %4805 = vmatprep.mubr.bf16.mxu0 0
        %4806 = vmatmul.mubr.bf16.gmra.mrb[0].mxu0 %v4489
        %v4807 = vpop.f32.mrb[0].mxu0
        %v4808 = vadd.f32 0.0, %v4807
        %v4809 = vpop.f32.mrb[0].mxu0
        %v4810 = vpop.f32.mrb[0].mxu0
        %v4811 = vadd.f32 0.0, %v4810
        %v4812 = vpop.f32.mrb[0].mxu0
        %4813 = vmatprep.mubr.bf16.mxu0 0
        %4814 = vmatmul.mubr.bf16.gmra.mrb[0].mxu0 %v4497
        %v4815 = vpop.f32.mrb[0].mxu0
        %v4816 = vadd.f32 0.0, %v4815
        %v4817 = vpop.f32.mrb[0].mxu0
        %v4818 = vpop.f32.mrb[0].mxu0
        %v4819 = vadd.f32 0.0, %v4818
        %v4820 = vpop.f32.mrb[0].mxu0
        %4821 = vmatprep.mubr.bf16.mxu0 0
        %4822 = vmatmul.mubr.bf16.gmra.mrb[0].mxu0 %v4505
        %v4823 = vpop.f32.mrb[0].mxu0
        %v4824 = vadd.f32 0.0, %v4823
        %v4825 = vpop.f32.mrb[0].mxu0
        %v4826 = vpop.f32.mrb[0].mxu0
        %v4827 = vadd.f32 0.0, %v4826
        %v4828 = vpop.f32.mrb[0].mxu0
        %4829 = vmatprep.mubr.bf16.mxu0 0
        %4830 = vmatmul.mubr.bf16.gmra.mrb[0].mxu0 %v4513
        %v4831 = vpop.f32.mrb[0].mxu0
        %v4832 = vadd.f32 0.0, %v4831
        %v4833 = vpop.f32.mrb[0].mxu0
        %v4834 = vpop.f32.mrb[0].mxu0
        %v4835 = vadd.f32 0.0, %v4834
        %v4836 = vpop.f32.mrb[0].mxu0
        %4837 = vmatprep.mubr.bf16.mxu0 0
        %4838 = vmatmul.mubr.bf16.gmra.mrb[0].mxu0 %v4521
        %v4839 = vpop.f32.mrb[0].mxu0
        %v4840 = vadd.f32 0.0, %v4839
        %v4841 = vpop.f32.mrb[0].mxu0
        %v4842 = vpop.f32.mrb[0].mxu0
        %v4843 = vadd.f32 0.0, %v4842
        %v4844 = vpop.f32.mrb[0].mxu0
        %4845 = vmatprep.mubr.bf16.mxu0 0
        %4846 = vmatmul.mubr.bf16.gmra.mrb[0].mxu0 %v4529
        %v4847 = vpop.f32.mrb[0].mxu0
        %v4848 = vadd.f32 0.0, %v4847
        %v4849 = vpop.f32.mrb[0].mxu0
        %v4850 = vpop.f32.mrb[0].mxu0
        %v4851 = vadd.f32 0.0, %v4850
        %v4852 = vpop.f32.mrb[0].mxu0
        %4853 = vmatprep.mubr.bf16.mxu0 0
        %4854 = vmatmul.mubr.bf16.gmra.mrb[0].mxu0 %v4537
        %v4855 = vpop.f32.mrb[0].mxu0
        %v4856 = vadd.f32 0.0, %v4855
        %v4857 = vpop.f32.mrb[0].mxu0
        %v4858 = vpop.f32.mrb[0].mxu0
        %v4859 = vadd.f32 0.0, %v4858
        %v4860 = vpop.f32.mrb[0].mxu0
        %4861 = vmatprep.mubr.bf16.mxu0 0
        %4862 = vmatmul.mubr.bf16.gmra.mrb[0].mxu0 %v4545
        %v4863 = vpop.f32.mrb[0].mxu0
        %v4864 = vadd.f32 0.0, %v4863
        %v4865 = vpop.f32.mrb[0].mxu0
        %v4866 = vpop.f32.mrb[0].mxu0
        %v4867 = vadd.f32 0.0, %v4866
        %v4868 = vpop.f32.mrb[0].mxu0
        %4869 = vmatprep.mubr.bf16.mxu0 0
        %4870 = vmatmul.mubr.bf16.gmra.mrb[0].mxu0 %v4553
        %v4871 = vpop.f32.mrb[0].mxu0
        %v4872 = vadd.f32 0.0, %v4871
        %v4873 = vpop.f32.mrb[0].mxu0
        %v4874 = vpop.f32.mrb[0].mxu0
        %v4875 = vadd.f32 0.0, %v4874
        %v4876 = vpop.f32.mrb[0].mxu0
        %4877 = vmatprep.mubr.bf16.mxu0 0
        %4878 = vmatmul.mubr.bf16.gmra.mrb[0].mxu0 %v4561
        %v4879 = vpop.f32.mrb[0].mxu0
        %v4880 = vadd.f32 0.0, %v4879
        %v4881 = vpop.f32.mrb[0].mxu0
        %v4882 = vpop.f32.mrb[0].mxu0
        %v4883 = vadd.f32 0.0, %v4882
        %v4884 = vpop.f32.mrb[0].mxu0
        %4885 = vmatprep.mubr.bf16.mxu0 0
        %4886 = vmatmul.mubr.bf16.gmra.mrb[0].mxu0 %v4569
        %v4887 = vpop.f32.mrb[0].mxu0
        %v4888 = vadd.f32 0.0, %v4887
        %v4889 = vpop.f32.mrb[0].mxu0
        %v4890 = vpop.f32.mrb[0].mxu0
        %v4891 = vadd.f32 0.0, %v4890
        %v4892 = vpop.f32.mrb[0].mxu0
        %4893 = vmatprep.mubr.bf16.mxu0 0
        %4894 = vmatmul.mubr.bf16.gmra.mrb[0].mxu0 %v4577
        %v4895 = vpop.f32.mrb[0].mxu0
        %v4896 = vadd.f32 0.0, %v4895
        %v4897 = vpop.f32.mrb[0].mxu0
        %v4898 = vpop.f32.mrb[0].mxu0
        %v4899 = vadd.f32 0.0, %v4898
        %v4900 = vpop.f32.mrb[0].mxu0
        %4901 = vmatprep.mubr.bf16.mxu0 0
        %4902 = vmatmul.mubr.bf16.gmra.mrb[0].mxu0 %v4585
        %v4903 = vpop.f32.mrb[0].mxu0
        %v4904 = vadd.f32 0.0, %v4903
        %v4905 = vpop.f32.mrb[0].mxu0
        %v4906 = vpop.f32.mrb[0].mxu0
        %v4907 = vadd.f32 0.0, %v4906
        %v4908 = vpop.f32.mrb[0].mxu0
        %4909 = vmatprep.mubr.bf16.mxu0 0
        %4910 = vmatmul.mubr.bf16.gmra.mrb[0].mxu0 %v4593
        %v4911 = vpop.f32.mrb[0].mxu0
        %v4912 = vadd.f32 0.0, %v4911
        %v4913 = vpop.f32.mrb[0].mxu0
        %v4914 = vpop.f32.mrb[0].mxu0
        %v4915 = vadd.f32 0.0, %v4914
        %v4916 = vpop.f32.mrb[0].mxu0
        %4917 = vmatprep.mubr.bf16.mxu0 0
        %4918 = vmatmul.mubr.bf16.gmra.mrb[0].mxu0 %v4601
        %v4919 = vpop.f32.mrb[0].mxu0
        %v4920 = vadd.f32 0.0, %v4919
        %v4921 = vpop.f32.mrb[0].mxu0
        %v4922 = vpop.f32.mrb[0].mxu0
        %v4923 = vadd.f32 0.0, %v4922
        %v4924 = vpop.f32.mrb[0].mxu0
        %4925 = vmatprep.mubr.bf16.mxu0 0
        %4926 = vmatmul.mubr.bf16.gmra.mrb[0].mxu0 %v4609
        %v4927 = vpop.f32.mrb[0].mxu0
        %v4928 = vadd.f32 0.0, %v4927
        %v4929 = vpop.f32.mrb[0].mxu0
        %v4930 = vpop.f32.mrb[0].mxu0
        %v4931 = vadd.f32 0.0, %v4930
        %v4932 = vpop.f32.mrb[0].mxu0
        %4933 = vmatprep.mubr.bf16.mxu0 0
        %4934 = vmatmul.mubr.bf16.gmra.mrb[0].mxu0 %v4617
        %v4935 = vpop.f32.mrb[0].mxu0
        %v4936 = vadd.f32 0.0, %v4935
        %v4937 = vpop.f32.mrb[0].mxu0
        %v4938 = vpop.f32.mrb[0].mxu0
        %v4939 = vadd.f32 0.0, %v4938
        %v4940 = vpop.f32.mrb[0].mxu0
        %4941 = vmatprep.mubr.bf16.mxu0 0
        %4942 = vmatmul.mubr.bf16.gmra.mrb[0].mxu0 %v4625
        %v4943 = vpop.f32.mrb[0].mxu0
        %v4944 = vadd.f32 0.0, %v4943
        %v4945 = vpop.f32.mrb[0].mxu0
        %v4946 = vpop.f32.mrb[0].mxu0
        %v4947 = vadd.f32 0.0, %v4946
        %v4948 = vpop.f32.mrb[0].mxu0
        %4949 = vmatprep.mubr.bf16.mxu0 0
        %4950 = vmatmul.mubr.bf16.gmra.mrb[0].mxu0 %v4633
        %v4951 = vpop.f32.mrb[0].mxu0
        %v4952 = vadd.f32 0.0, %v4951
        %v4953 = vpop.f32.mrb[0].mxu0
        %v4954 = vpop.f32.mrb[0].mxu0
        %v4955 = vadd.f32 0.0, %v4954
        %v4956 = vpop.f32.mrb[0].mxu0
        %4957 = vmatprep.mubr.bf16.mxu0 0
        %4958 = vmatmul.mubr.bf16.gmra.mrb[0].mxu0 %v4641
        %v4959 = vpop.f32.mrb[0].mxu0
        %v4960 = vadd.f32 0.0, %v4959
        %v4961 = vpop.f32.mrb[0].mxu0
        %v4962 = vpop.f32.mrb[0].mxu0
        %v4963 = vadd.f32 0.0, %v4962
        %v4964 = vpop.f32.mrb[0].mxu0
        %4965 = vmatprep.mubr.bf16.mxu0 0
        %4966 = vmatmul.mubr.bf16.gmra.mrb[0].mxu0 %v4649
        %v4967 = vpop.f32.mrb[0].mxu0
        %v4968 = vadd.f32 0.0, %v4967
        %v4969 = vpop.f32.mrb[0].mxu0
        %v4970 = vpop.f32.mrb[0].mxu0
        %v4971 = vadd.f32 0.0, %v4970
        %v4972 = vpop.f32.mrb[0].mxu0
        %4973 = vmatprep.mubr.bf16.mxu0 0
        %4974 = vmatmul.mubr.bf16.gmra.mrb[0].mxu0 %v4657
        %v4975 = vpop.f32.mrb[0].mxu0
        %v4976 = vadd.f32 0.0, %v4975
        %v4977 = vpop.f32.mrb[0].mxu0
        %v4978 = vpop.f32.mrb[0].mxu0
        %v4979 = vadd.f32 0.0, %v4978
        %v4980 = vpop.f32.mrb[0].mxu0
        %4981 = vmatprep.mubr.bf16.mxu0 0
        %4982 = vmatmul.mubr.bf16.gmra.mrb[0].mxu0 %v4665
        %v4983 = vpop.f32.mrb[0].mxu0
        %v4984 = vadd.f32 0.0, %v4983
        %v4985 = vpop.f32.mrb[0].mxu0
        %v4986 = vpop.f32.mrb[0].mxu0
        %v4987 = vadd.f32 0.0, %v4986
        %v4988 = vpop.f32.mrb[0].mxu0
        %4989 = vmatprep.mubr.bf16.mxu0 0
        %4990 = vmatmul.mubr.bf16.gmra.mrb[0].mxu0 %v4673
        %v4991 = vpop.f32.mrb[0].mxu0
        %v4992 = vadd.f32 0.0, %v4991
        %v4993 = vpop.f32.mrb[0].mxu0
        %v4994 = vpop.f32.mrb[0].mxu0
        %v4995 = vadd.f32 0.0, %v4994
        %v4996 = vpop.f32.mrb[0].mxu0
        %4997 = vmatprep.mubr.bf16.mxu0 0
        %4998 = vmatmul.mubr.bf16.gmra.mrb[0].mxu0 %v4681
        %v4999 = vpop.f32.mrb[0].mxu0
        %v5000 = vadd.f32 0.0, %v4999
        %v5001 = vpop.f32.mrb[0].mxu0
        %v5002 = vpop.f32.mrb[0].mxu0
        %v5003 = vadd.f32 0.0, %v5002
        %v5004 = vpop.f32.mrb[0].mxu0
        %5005 = vdwg.mxu0
        %v5006 = vadd.f32 %v4362, %v4792
        %v5007 = vadd.f32 %v4363, %v4795
        %v5008 = vadd.f32 %v4364, %v4800
        %v5009 = vadd.f32 %v4365, %v4803
        %v5010 = vadd.f32 %v4366, %v4808
        %v5011 = vadd.f32 %v4367, %v4811
        %v5012 = vadd.f32 %v4368, %v4816
        %v5013 = vadd.f32 %v4369, %v4819
        %v5014 = vadd.f32 %v4370, %v4824
        %v5015 = vadd.f32 %v4371, %v4827
        %v5016 = vadd.f32 %v4372, %v4832
        %v5017 = vadd.f32 %v4373, %v4835
        %v5018 = vadd.f32 %v4374, %v4840
        %v5019 = vadd.f32 %v4375, %v4843
        %v5020 = vadd.f32 %v4376, %v4848
        %v5021 = vadd.f32 %v4377, %v4851
        %v5022 = vadd.f32 %v4378, %v4856
        %v5023 = vadd.f32 %v4379, %v4859
        %v5024 = vadd.f32 %v4380, %v4864
        %v5025 = vadd.f32 %v4381, %v4867
        %v5026 = vadd.f32 %v4382, %v4872
        %v5027 = vadd.f32 %v4383, %v4875
        %v5028 = vadd.f32 %v4384, %v4880
        %v5029 = vadd.f32 %v4385, %v4883
        %v5030 = vadd.f32 %v4386, %v4888
        %v5031 = vadd.f32 %v4387, %v4891
        %v5032 = vadd.f32 %v4388, %v4896
        %v5033 = vadd.f32 %v4389, %v4899
        %v5034 = vadd.f32 %v4390, %v4904
        %v5035 = vadd.f32 %v4391, %v4907
        %v5036 = vadd.f32 %v4392, %v4912
        %v5037 = vadd.f32 %v4393, %v4915
        %v5038 = vadd.f32 %v4394, %v4920
        %v5039 = vadd.f32 %v4395, %v4923
        %v5040 = vadd.f32 %v4396, %v4928
        %v5041 = vadd.f32 %v4397, %v4931
        %v5042 = vadd.f32 %v4398, %v4936
        %v5043 = vadd.f32 %v4399, %v4939
        %v5044 = vadd.f32 %v4400, %v4944
        %v5045 = vadd.f32 %v4401, %v4947
        %v5046 = vadd.f32 %v4402, %v4952
        %v5047 = vadd.f32 %v4403, %v4955
        %v5048 = vadd.f32 %v4404, %v4960
        %v5049 = vadd.f32 %v4405, %v4963
        %v5050 = vadd.f32 %v4406, %v4968
        %v5051 = vadd.f32 %v4407, %v4971
        %v5052 = vadd.f32 %v4408, %v4976
        %v5053 = vadd.f32 %v4409, %v4979
        %v5054 = vadd.f32 %v4410, %v4984
        %v5055 = vadd.f32 %v4411, %v4987
        %v5056 = vadd.f32 %v4412, %v4992
        %v5057 = vadd.f32 %v4413, %v4995
        %v5058 = vadd.f32 %v4414, %v5000
        %v5059 = vadd.f32 %v4415, %v5003
        %v5060 = vld [vmem:[#allocation2 + $0x18] sm:$0xf8]
        %v5061 = vld [vmem:[#allocation2 + $0x20] sm:$0xff]
        %v5062 = vld [vmem:[#allocation2 + $0x28] sm:$0xff]
        %v5063 = vld [vmem:[#allocation2 + $0x30] sm:$0xff]
        %v5064 = vld [vmem:[#allocation2 + $0x38] sm:$0xff]
        %v5065 = vld [vmem:[#allocation2 + $0x40] sm:$0xff]
        %v5066 = vld [vmem:[#allocation2 + $0x48] sm:$0xff]
        %v5067 = vld [vmem:[#allocation2 + $0x50] sm:$0xff]
        %v5068 = vld [vmem:[#allocation2 + $0x58] sm:$0xff]
        %v5069 = vld [vmem:[#allocation2 + $0x60] sm:$0xff]
        %v5070 = vld [vmem:[#allocation2 + $0x68] sm:$0xff]
        %v5071 = vld [vmem:[#allocation2 + $0x70] sm:$0xff]
        %v5072 = vld [vmem:[#allocation2 + $0x78] sm:$0xff]
        %v5073 = vld [vmem:[#allocation2 + $0x80] sm:$0xff]
        %v5074 = vld [vmem:[#allocation2 + $0x88] sm:$0xff]
        %v5075 = vld [vmem:[#allocation2 + $0x90] sm:$0xff]
        %v5076 = vld [vmem:[#allocation2 + $0x98] sm:$0xff]
        %v5077 = vld [vmem:[#allocation2 + $0xa0] sm:$0xff]
        %v5078 = vld [vmem:[#allocation2 + $0xa8] sm:$0xff]
        %v5079 = vld [vmem:[#allocation2 + $0xb0] sm:$0xff]
        %v5080 = vld [vmem:[#allocation2 + $0xb8] sm:$0xff]
        %v5081 = vld [vmem:[#allocation2 + $0xc0] sm:$0xff]
        %v5082 = vld [vmem:[#allocation2 + $0xc8] sm:$0xff]
        %v5083 = vld [vmem:[#allocation2 + $0xd0] sm:$0xff]
        %v5084 = vld [vmem:[#allocation2 + $0xd8] sm:$0xff]
        %v5085 = vld [vmem:[#allocation2 + $0xe0] sm:$0xff]
        %v5086 = vld [vmem:[#allocation2 + $0xe8] sm:$0xff]
        %v5087 = vld [vmem:[#allocation2 + $0xf0] sm:$0xf]
        %s5088 = scalar_lea.vmem [#allocation8], 384
        %v5089 = vld [vmem:[%s5088] sm:$0xf]
        %v5090 = vld [vmem:[%s5088 + $0x4] sm:$0xf]
        %v5091 = vld [vmem:[%s5088 + $0x8] sm:$0xf]
        %v5092 = vld [vmem:[%s5088 + $0xc] sm:$0xf]
        %v5093 = vld [vmem:[%s5088 + $0x10] sm:$0xf]
        %v5094 = vld [vmem:[%s5088 + $0x14] sm:$0xf]
        %v5095 = vld [vmem:[%s5088 + $0x18] sm:$0xf]
        %v5096 = vld [vmem:[%s5088 + $0x1c] sm:$0xf]
        %v5097 = vld [vmem:[%s5088 + $0x20] sm:$0xf]
        %v5098 = vld [vmem:[%s5088 + $0x24] sm:$0xf]
        %v5099 = vld [vmem:[%s5088 + $0x28] sm:$0xf]
        %v5100 = vld [vmem:[%s5088 + $0x2c] sm:$0xf]
        %v5101 = vld [vmem:[%s5088 + $0x30] sm:$0xf]
        %v5102 = vld [vmem:[%s5088 + $0x34] sm:$0xf]
        %v5103 = vld [vmem:[%s5088 + $0x38] sm:$0xf]
        %v5104 = vld [vmem:[%s5088 + $0x3c] sm:$0xf]
        %v5106 = vshrl.u32 %v5060, 16
        %v5108 = vrot.slane %v5106, 3
        %v5109 = vshll.u32 %v5060, 16
        %v5111 = vrot.slane %v5109, 4
        %v5112 = vor.u32 %v5108, %v5111
        %v5114 = vshrl.u32 %v5061, 16
        %v5116 = vrot.slane %v5114, 3
        %v5117 = vshll.u32 %v5061, 16
        %v5119 = vrot.slane %v5117, 4
        %v5120 = vor.u32 %v5116, %v5119
        %v5121 = vsel %vm2310, %v5112, %v5120
        %v5123 = vshrl.u32 %v5062, 16
        %v5125 = vrot.slane %v5123, 3
        %v5126 = vshll.u32 %v5062, 16
        %v5128 = vrot.slane %v5126, 4
        %v5129 = vor.u32 %v5125, %v5128
        %v5130 = vsel %vm2310, %v5120, %v5129
        %v5132 = vshrl.u32 %v5063, 16
        %v5134 = vrot.slane %v5132, 3
        %v5135 = vshll.u32 %v5063, 16
        %v5137 = vrot.slane %v5135, 4
        %v5138 = vor.u32 %v5134, %v5137
        %v5139 = vsel %vm2310, %v5129, %v5138
        %v5141 = vshrl.u32 %v5064, 16
        %v5143 = vrot.slane %v5141, 3
        %v5144 = vshll.u32 %v5064, 16
        %v5146 = vrot.slane %v5144, 4
        %v5147 = vor.u32 %v5143, %v5146
        %v5148 = vsel %vm2310, %v5138, %v5147
        %v5150 = vshrl.u32 %v5065, 16
        %v5152 = vrot.slane %v5150, 3
        %v5153 = vshll.u32 %v5065, 16
        %v5155 = vrot.slane %v5153, 4
        %v5156 = vor.u32 %v5152, %v5155
        %v5157 = vsel %vm2310, %v5147, %v5156
        %v5159 = vshrl.u32 %v5066, 16
        %v5161 = vrot.slane %v5159, 3
        %v5162 = vshll.u32 %v5066, 16
        %v5164 = vrot.slane %v5162, 4
        %v5165 = vor.u32 %v5161, %v5164
        %v5166 = vsel %vm2310, %v5156, %v5165
        %v5168 = vshrl.u32 %v5067, 16
        %v5170 = vrot.slane %v5168, 3
        %v5171 = vshll.u32 %v5067, 16
        %v5173 = vrot.slane %v5171, 4
        %v5174 = vor.u32 %v5170, %v5173
        %v5175 = vsel %vm2310, %v5165, %v5174
        %v5177 = vshrl.u32 %v5068, 16
        %v5179 = vrot.slane %v5177, 3
        %v5180 = vshll.u32 %v5068, 16
        %v5182 = vrot.slane %v5180, 4
        %v5183 = vor.u32 %v5179, %v5182
        %v5184 = vsel %vm2310, %v5174, %v5183
        %v5186 = vshrl.u32 %v5069, 16
        %v5188 = vrot.slane %v5186, 3
        %v5189 = vshll.u32 %v5069, 16
        %v5191 = vrot.slane %v5189, 4
        %v5192 = vor.u32 %v5188, %v5191
        %v5193 = vsel %vm2310, %v5183, %v5192
        %v5195 = vshrl.u32 %v5070, 16
        %v5197 = vrot.slane %v5195, 3
        %v5198 = vshll.u32 %v5070, 16
        %v5200 = vrot.slane %v5198, 4
        %v5201 = vor.u32 %v5197, %v5200
        %v5202 = vsel %vm2310, %v5192, %v5201
        %v5204 = vshrl.u32 %v5071, 16
        %v5206 = vrot.slane %v5204, 3
        %v5207 = vshll.u32 %v5071, 16
        %v5209 = vrot.slane %v5207, 4
        %v5210 = vor.u32 %v5206, %v5209
        %v5211 = vsel %vm2310, %v5201, %v5210
        %v5213 = vshrl.u32 %v5072, 16
        %v5215 = vrot.slane %v5213, 3
        %v5216 = vshll.u32 %v5072, 16
        %v5218 = vrot.slane %v5216, 4
        %v5219 = vor.u32 %v5215, %v5218
        %v5220 = vsel %vm2310, %v5210, %v5219
        %v5222 = vshrl.u32 %v5073, 16
        %v5224 = vrot.slane %v5222, 3
        %v5225 = vshll.u32 %v5073, 16
        %v5227 = vrot.slane %v5225, 4
        %v5228 = vor.u32 %v5224, %v5227
        %v5229 = vsel %vm2310, %v5219, %v5228
        %v5231 = vshrl.u32 %v5074, 16
        %v5233 = vrot.slane %v5231, 3
        %v5234 = vshll.u32 %v5074, 16
        %v5236 = vrot.slane %v5234, 4
        %v5237 = vor.u32 %v5233, %v5236
        %v5238 = vsel %vm2310, %v5228, %v5237
        %v5240 = vshrl.u32 %v5075, 16
        %v5242 = vrot.slane %v5240, 3
        %v5243 = vshll.u32 %v5075, 16
        %v5245 = vrot.slane %v5243, 4
        %v5246 = vor.u32 %v5242, %v5245
        %v5247 = vsel %vm2310, %v5237, %v5246
        %v5249 = vshrl.u32 %v5076, 16
        %v5251 = vrot.slane %v5249, 3
        %v5252 = vshll.u32 %v5076, 16
        %v5254 = vrot.slane %v5252, 4
        %v5255 = vor.u32 %v5251, %v5254
        %v5256 = vsel %vm2310, %v5246, %v5255
        %v5258 = vshrl.u32 %v5077, 16
        %v5260 = vrot.slane %v5258, 3
        %v5261 = vshll.u32 %v5077, 16
        %v5263 = vrot.slane %v5261, 4
        %v5264 = vor.u32 %v5260, %v5263
        %v5265 = vsel %vm2310, %v5255, %v5264
        %v5267 = vshrl.u32 %v5078, 16
        %v5269 = vrot.slane %v5267, 3
        %v5270 = vshll.u32 %v5078, 16
        %v5272 = vrot.slane %v5270, 4
        %v5273 = vor.u32 %v5269, %v5272
        %v5274 = vsel %vm2310, %v5264, %v5273
        %v5276 = vshrl.u32 %v5079, 16
        %v5278 = vrot.slane %v5276, 3
        %v5279 = vshll.u32 %v5079, 16
        %v5281 = vrot.slane %v5279, 4
        %v5282 = vor.u32 %v5278, %v5281
        %v5283 = vsel %vm2310, %v5273, %v5282
        %v5285 = vshrl.u32 %v5080, 16
        %v5287 = vrot.slane %v5285, 3
        %v5288 = vshll.u32 %v5080, 16
        %v5290 = vrot.slane %v5288, 4
        %v5291 = vor.u32 %v5287, %v5290
        %v5292 = vsel %vm2310, %v5282, %v5291
        %v5294 = vshrl.u32 %v5081, 16
        %v5296 = vrot.slane %v5294, 3
        %v5297 = vshll.u32 %v5081, 16
        %v5299 = vrot.slane %v5297, 4
        %v5300 = vor.u32 %v5296, %v5299
        %v5301 = vsel %vm2310, %v5291, %v5300
        %v5303 = vshrl.u32 %v5082, 16
        %v5305 = vrot.slane %v5303, 3
        %v5306 = vshll.u32 %v5082, 16
        %v5308 = vrot.slane %v5306, 4
        %v5309 = vor.u32 %v5305, %v5308
        %v5310 = vsel %vm2310, %v5300, %v5309
        %v5312 = vshrl.u32 %v5083, 16
        %v5314 = vrot.slane %v5312, 3
        %v5315 = vshll.u32 %v5083, 16
        %v5317 = vrot.slane %v5315, 4
        %v5318 = vor.u32 %v5314, %v5317
        %v5319 = vsel %vm2310, %v5309, %v5318
        %v5321 = vshrl.u32 %v5084, 16
        %v5323 = vrot.slane %v5321, 3
        %v5324 = vshll.u32 %v5084, 16
        %v5326 = vrot.slane %v5324, 4
        %v5327 = vor.u32 %v5323, %v5326
        %v5328 = vsel %vm2310, %v5318, %v5327
        %v5330 = vshrl.u32 %v5085, 16
        %v5332 = vrot.slane %v5330, 3
        %v5333 = vshll.u32 %v5085, 16
        %v5335 = vrot.slane %v5333, 4
        %v5336 = vor.u32 %v5332, %v5335
        %v5337 = vsel %vm2310, %v5327, %v5336
        %v5339 = vshrl.u32 %v5086, 16
        %v5341 = vrot.slane %v5339, 3
        %v5342 = vshll.u32 %v5086, 16
        %v5344 = vrot.slane %v5342, 4
        %v5345 = vor.u32 %v5341, %v5344
        %v5346 = vsel %vm2310, %v5336, %v5345
        %v5348 = vshrl.u32 %v5087, 16
        %v5350 = vrot.slane %v5348, 3
        %v5351 = vshll.u32 %v5087, 16
        %v5353 = vrot.slane %v5351, 4
        %v5354 = vor.u32 %v5350, %v5353
        %v5355 = vsel %vm2310, %v5345, %v5354
        %v5399 = vunpack.c.l.b16 %v5089
        %v5400 = vunpack.c.l.b16 %v5090
        %v5401 = vunpack.c.l.b16 %v5091
        %v5402 = vunpack.c.l.b16 %v5092
        %v5403 = vunpack.c.l.b16 %v5093
        %v5404 = vunpack.c.l.b16 %v5094
        %v5405 = vunpack.c.l.b16 %v5095
        %v5406 = vunpack.c.l.b16 %v5096
        %v5407 = vunpack.c.l.b16 %v5097
        %v5408 = vunpack.c.l.b16 %v5098
        %v5409 = vunpack.c.l.b16 %v5099
        %v5410 = vunpack.c.l.b16 %v5100
        %v5411 = vunpack.c.l.b16 %v5101
        %v5412 = vunpack.c.l.b16 %v5102
        %v5413 = vunpack.c.l.b16 %v5103
        %v5414 = vunpack.c.l.b16 %v5104
        %v5415 = vpack.c.b16 %v5400, %v5399
        %v5416 = vpack.c.b16 %v5402, %v5401
        %v5417 = vpack.c.b16 %v5404, %v5403
        %v5418 = vpack.c.b16 %v5406, %v5405
        %v5419 = vpack.c.b16 %v5408, %v5407
        %v5420 = vpack.c.b16 %v5410, %v5409
        %v5421 = vpack.c.b16 %v5412, %v5411
        %v5422 = vpack.c.b16 %v5414, %v5413
        %5431 = vmatprep.subr.bf16.mxu0 0
        %5432 = vmatpush1.bf16.msra.mxu0 %v5415
        %5433 = vmatprep.subr.bf16.mxu0 0
        %5434 = vmatpush1.bf16.msra.mxu0 %v5416
        %5435 = vmatprep.subr.bf16.mxu0 0
        %5436 = vmatpush1.bf16.msra.mxu0 %v5417
        %5437 = vmatprep.subr.bf16.mxu0 0
        %5438 = vmatpush1.bf16.msra.mxu0 %v5418
        %5439 = vmatprep.subr.bf16.mxu0 0
        %5440 = vmatpush1.bf16.msra.mxu0 %v5419
        %5441 = vmatprep.subr.bf16.mxu0 0
        %5442 = vmatpush1.bf16.msra.mxu0 %v5420
        %5443 = vmatprep.subr.bf16.mxu0 0
        %5444 = vmatpush1.bf16.msra.mxu0 %v5421
        %5445 = vmatprep.subr.bf16.mxu0 0
        %5446 = vmatpush1.bf16.msra.mxu0 %v5422
        %5447 = vmatprep.subr.bf16.mxu0 0
        %5448 = vmatpush1.bf16.msra.mxu0 0
        %5449 = vmatprep.subr.bf16.mxu0 0
        %5450 = vmatpush1.bf16.msra.mxu0 0
        %5451 = vmatprep.subr.bf16.mxu0 0
        %5452 = vmatpush1.bf16.msra.mxu0 0
        %5453 = vmatprep.subr.bf16.mxu0 0
        %5454 = vmatpush1.bf16.msra.mxu0 0
        %5455 = vmatprep.subr.bf16.mxu0 0
        %5456 = vmatpush1.bf16.msra.mxu0 0
        %5457 = vmatprep.subr.bf16.mxu0 0
        %5458 = vmatpush1.bf16.msra.mxu0 0
        %5459 = vmatprep.subr.bf16.mxu0 0
        %5460 = vmatpush1.bf16.msra.mxu0 0
        %5461 = vmatprep.subr.bf16.mxu0 0
        %5462 = vmatpush1.bf16.msra.mxu0 0
        %5463 = vmatprep.mubr.bf16.mxu0 0
        %5464 = vmatmul.mubr.bf16.gmra.mrb[0].mxu0 %v5121
        %v5465 = vpop.f32.mrb[0].mxu0
        %v5466 = vadd.f32 0.0, %v5465
        %v5467 = vpop.f32.mrb[0].mxu0
        %v5468 = vpop.f32.mrb[0].mxu0
        %v5469 = vadd.f32 0.0, %v5468
        %v5470 = vpop.f32.mrb[0].mxu0
        %5471 = vmatprep.mubr.bf16.mxu0 0
        %5472 = vmatmul.mubr.bf16.gmra.mrb[0].mxu0 %v5130
        %v5473 = vpop.f32.mrb[0].mxu0
        %v5474 = vadd.f32 0.0, %v5473
        %v5475 = vpop.f32.mrb[0].mxu0
        %v5476 = vpop.f32.mrb[0].mxu0
        %v5477 = vadd.f32 0.0, %v5476
        %v5478 = vpop.f32.mrb[0].mxu0
        %5479 = vmatprep.mubr.bf16.mxu0 0
        %5480 = vmatmul.mubr.bf16.gmra.mrb[0].mxu0 %v5139
        %v5481 = vpop.f32.mrb[0].mxu0
        %v5482 = vadd.f32 0.0, %v5481
        %v5483 = vpop.f32.mrb[0].mxu0
        %v5484 = vpop.f32.mrb[0].mxu0
        %v5485 = vadd.f32 0.0, %v5484
        %v5486 = vpop.f32.mrb[0].mxu0
        %5487 = vmatprep.mubr.bf16.mxu0 0
        %5488 = vmatmul.mubr.bf16.gmra.mrb[0].mxu0 %v5148
        %v5489 = vpop.f32.mrb[0].mxu0
        %v5490 = vadd.f32 0.0, %v5489
        %v5491 = vpop.f32.mrb[0].mxu0
        %v5492 = vpop.f32.mrb[0].mxu0
        %v5493 = vadd.f32 0.0, %v5492
        %v5494 = vpop.f32.mrb[0].mxu0
        %5495 = vmatprep.mubr.bf16.mxu0 0
        %5496 = vmatmul.mubr.bf16.gmra.mrb[0].mxu0 %v5157
        %v5497 = vpop.f32.mrb[0].mxu0
        %v5498 = vadd.f32 0.0, %v5497
        %v5499 = vpop.f32.mrb[0].mxu0
        %v5500 = vpop.f32.mrb[0].mxu0
        %v5501 = vadd.f32 0.0, %v5500
        %v5502 = vpop.f32.mrb[0].mxu0
        %5503 = vmatprep.mubr.bf16.mxu0 0
        %5504 = vmatmul.mubr.bf16.gmra.mrb[0].mxu0 %v5166
        %v5505 = vpop.f32.mrb[0].mxu0
        %v5506 = vadd.f32 0.0, %v5505
        %v5507 = vpop.f32.mrb[0].mxu0
        %v5508 = vpop.f32.mrb[0].mxu0
        %v5509 = vadd.f32 0.0, %v5508
        %v5510 = vpop.f32.mrb[0].mxu0
        %5511 = vmatprep.mubr.bf16.mxu0 0
        %5512 = vmatmul.mubr.bf16.gmra.mrb[0].mxu0 %v5175
        %v5513 = vpop.f32.mrb[0].mxu0
        %v5514 = vadd.f32 0.0, %v5513
        %v5515 = vpop.f32.mrb[0].mxu0
        %v5516 = vpop.f32.mrb[0].mxu0
        %v5517 = vadd.f32 0.0, %v5516
        %v5518 = vpop.f32.mrb[0].mxu0
        %5519 = vmatprep.mubr.bf16.mxu0 0
        %5520 = vmatmul.mubr.bf16.gmra.mrb[0].mxu0 %v5184
        %v5521 = vpop.f32.mrb[0].mxu0
        %v5522 = vadd.f32 0.0, %v5521
        %v5523 = vpop.f32.mrb[0].mxu0
        %v5524 = vpop.f32.mrb[0].mxu0
        %v5525 = vadd.f32 0.0, %v5524
        %v5526 = vpop.f32.mrb[0].mxu0
        %5527 = vmatprep.mubr.bf16.mxu0 0
        %5528 = vmatmul.mubr.bf16.gmra.mrb[0].mxu0 %v5193
        %v5529 = vpop.f32.mrb[0].mxu0
        %v5530 = vadd.f32 0.0, %v5529
        %v5531 = vpop.f32.mrb[0].mxu0
        %v5532 = vpop.f32.mrb[0].mxu0
        %v5533 = vadd.f32 0.0, %v5532
        %v5534 = vpop.f32.mrb[0].mxu0
        %5535 = vmatprep.mubr.bf16.mxu0 0
        %5536 = vmatmul.mubr.bf16.gmra.mrb[0].mxu0 %v5202
        %v5537 = vpop.f32.mrb[0].mxu0
        %v5538 = vadd.f32 0.0, %v5537
        %v5539 = vpop.f32.mrb[0].mxu0
        %v5540 = vpop.f32.mrb[0].mxu0
        %v5541 = vadd.f32 0.0, %v5540
        %v5542 = vpop.f32.mrb[0].mxu0
        %5543 = vmatprep.mubr.bf16.mxu0 0
        %5544 = vmatmul.mubr.bf16.gmra.mrb[0].mxu0 %v5211
        %v5545 = vpop.f32.mrb[0].mxu0
        %v5546 = vadd.f32 0.0, %v5545
        %v5547 = vpop.f32.mrb[0].mxu0
        %v5548 = vpop.f32.mrb[0].mxu0
        %v5549 = vadd.f32 0.0, %v5548
        %v5550 = vpop.f32.mrb[0].mxu0
        %5551 = vmatprep.mubr.bf16.mxu0 0
        %5552 = vmatmul.mubr.bf16.gmra.mrb[0].mxu0 %v5220
        %v5553 = vpop.f32.mrb[0].mxu0
        %v5554 = vadd.f32 0.0, %v5553
        %v5555 = vpop.f32.mrb[0].mxu0
        %v5556 = vpop.f32.mrb[0].mxu0
        %v5557 = vadd.f32 0.0, %v5556
        %v5558 = vpop.f32.mrb[0].mxu0
        %5559 = vmatprep.mubr.bf16.mxu0 0
        %5560 = vmatmul.mubr.bf16.gmra.mrb[0].mxu0 %v5229
        %v5561 = vpop.f32.mrb[0].mxu0
        %v5562 = vadd.f32 0.0, %v5561
        %v5563 = vpop.f32.mrb[0].mxu0
        %v5564 = vpop.f32.mrb[0].mxu0
        %v5565 = vadd.f32 0.0, %v5564
        %v5566 = vpop.f32.mrb[0].mxu0
        %5567 = vmatprep.mubr.bf16.mxu0 0
        %5568 = vmatmul.mubr.bf16.gmra.mrb[0].mxu0 %v5238
        %v5569 = vpop.f32.mrb[0].mxu0
        %v5570 = vadd.f32 0.0, %v5569
        %v5571 = vpop.f32.mrb[0].mxu0
        %v5572 = vpop.f32.mrb[0].mxu0
        %v5573 = vadd.f32 0.0, %v5572
        %v5574 = vpop.f32.mrb[0].mxu0
        %5575 = vmatprep.mubr.bf16.mxu0 0
        %5576 = vmatmul.mubr.bf16.gmra.mrb[0].mxu0 %v5247
        %v5577 = vpop.f32.mrb[0].mxu0
        %v5578 = vadd.f32 0.0, %v5577
        %v5579 = vpop.f32.mrb[0].mxu0
        %v5580 = vpop.f32.mrb[0].mxu0
        %v5581 = vadd.f32 0.0, %v5580
        %v5582 = vpop.f32.mrb[0].mxu0
        %5583 = vmatprep.mubr.bf16.mxu0 0
        %5584 = vmatmul.mubr.bf16.gmra.mrb[0].mxu0 %v5256
        %v5585 = vpop.f32.mrb[0].mxu0
        %v5586 = vadd.f32 0.0, %v5585
        %v5587 = vpop.f32.mrb[0].mxu0
        %v5588 = vpop.f32.mrb[0].mxu0
        %v5589 = vadd.f32 0.0, %v5588
        %v5590 = vpop.f32.mrb[0].mxu0
        %5591 = vmatprep.mubr.bf16.mxu0 0
        %5592 = vmatmul.mubr.bf16.gmra.mrb[0].mxu0 %v5265
        %v5593 = vpop.f32.mrb[0].mxu0
        %v5594 = vadd.f32 0.0, %v5593
        %v5595 = vpop.f32.mrb[0].mxu0
        %v5596 = vpop.f32.mrb[0].mxu0
        %v5597 = vadd.f32 0.0, %v5596
        %v5598 = vpop.f32.mrb[0].mxu0
        %5599 = vmatprep.mubr.bf16.mxu0 0
        %5600 = vmatmul.mubr.bf16.gmra.mrb[0].mxu0 %v5274
        %v5601 = vpop.f32.mrb[0].mxu0
        %v5602 = vadd.f32 0.0, %v5601
        %v5603 = vpop.f32.mrb[0].mxu0
        %v5604 = vpop.f32.mrb[0].mxu0
        %v5605 = vadd.f32 0.0, %v5604
        %v5606 = vpop.f32.mrb[0].mxu0
        %5607 = vmatprep.mubr.bf16.mxu0 0
        %5608 = vmatmul.mubr.bf16.gmra.mrb[0].mxu0 %v5283
        %v5609 = vpop.f32.mrb[0].mxu0
        %v5610 = vadd.f32 0.0, %v5609
        %v5611 = vpop.f32.mrb[0].mxu0
        %v5612 = vpop.f32.mrb[0].mxu0
        %v5613 = vadd.f32 0.0, %v5612
        %v5614 = vpop.f32.mrb[0].mxu0
        %5615 = vmatprep.mubr.bf16.mxu0 0
        %5616 = vmatmul.mubr.bf16.gmra.mrb[0].mxu0 %v5292
        %v5617 = vpop.f32.mrb[0].mxu0
        %v5618 = vadd.f32 0.0, %v5617
        %v5619 = vpop.f32.mrb[0].mxu0
        %v5620 = vpop.f32.mrb[0].mxu0
        %v5621 = vadd.f32 0.0, %v5620
        %v5622 = vpop.f32.mrb[0].mxu0
        %5623 = vmatprep.mubr.bf16.mxu0 0
        %5624 = vmatmul.mubr.bf16.gmra.mrb[0].mxu0 %v5301
        %v5625 = vpop.f32.mrb[0].mxu0
        %v5626 = vadd.f32 0.0, %v5625
        %v5627 = vpop.f32.mrb[0].mxu0
        %v5628 = vpop.f32.mrb[0].mxu0
        %v5629 = vadd.f32 0.0, %v5628
        %v5630 = vpop.f32.mrb[0].mxu0
        %5631 = vmatprep.mubr.bf16.mxu0 0
        %5632 = vmatmul.mubr.bf16.gmra.mrb[0].mxu0 %v5310
        %v5633 = vpop.f32.mrb[0].mxu0
        %v5634 = vadd.f32 0.0, %v5633
        %v5635 = vpop.f32.mrb[0].mxu0
        %v5636 = vpop.f32.mrb[0].mxu0
        %v5637 = vadd.f32 0.0, %v5636
        %v5638 = vpop.f32.mrb[0].mxu0
        %5639 = vmatprep.mubr.bf16.mxu0 0
        %5640 = vmatmul.mubr.bf16.gmra.mrb[0].mxu0 %v5319
        %v5641 = vpop.f32.mrb[0].mxu0
        %v5642 = vadd.f32 0.0, %v5641
        %v5643 = vpop.f32.mrb[0].mxu0
        %v5644 = vpop.f32.mrb[0].mxu0
        %v5645 = vadd.f32 0.0, %v5644
        %v5646 = vpop.f32.mrb[0].mxu0
        %5647 = vmatprep.mubr.bf16.mxu0 0
        %5648 = vmatmul.mubr.bf16.gmra.mrb[0].mxu0 %v5328
        %v5649 = vpop.f32.mrb[0].mxu0
        %v5650 = vadd.f32 0.0, %v5649
        %v5651 = vpop.f32.mrb[0].mxu0
        %v5652 = vpop.f32.mrb[0].mxu0
        %v5653 = vadd.f32 0.0, %v5652
        %v5654 = vpop.f32.mrb[0].mxu0
        %5655 = vmatprep.mubr.bf16.mxu0 0
        %5656 = vmatmul.mubr.bf16.gmra.mrb[0].mxu0 %v5337
        %v5657 = vpop.f32.mrb[0].mxu0
        %v5658 = vadd.f32 0.0, %v5657
        %v5659 = vpop.f32.mrb[0].mxu0
        %v5660 = vpop.f32.mrb[0].mxu0
        %v5661 = vadd.f32 0.0, %v5660
        %v5662 = vpop.f32.mrb[0].mxu0
        %5663 = vmatprep.mubr.bf16.mxu0 0
        %5664 = vmatmul.mubr.bf16.gmra.mrb[0].mxu0 %v5346
        %v5665 = vpop.f32.mrb[0].mxu0
        %v5666 = vadd.f32 0.0, %v5665
        %v5667 = vpop.f32.mrb[0].mxu0
        %v5668 = vpop.f32.mrb[0].mxu0
        %v5669 = vadd.f32 0.0, %v5668
        %v5670 = vpop.f32.mrb[0].mxu0
        %5671 = vmatprep.mubr.bf16.mxu0 0
        %5672 = vmatmul.mubr.bf16.gmra.mrb[0].mxu0 %v5355
        %v5673 = vpop.f32.mrb[0].mxu0
        %v5674 = vadd.f32 0.0, %v5673
        %v5675 = vpop.f32.mrb[0].mxu0
        %v5676 = vpop.f32.mrb[0].mxu0
        %v5677 = vadd.f32 0.0, %v5676
        %v5678 = vpop.f32.mrb[0].mxu0
        %5679 = vdwg.mxu0
        %v5680 = vadd.f32 %v5006, %v5466
        %v5681 = vadd.f32 %v5007, %v5469
        %v5682 = vadd.f32 %v5008, %v5474
        %v5683 = vadd.f32 %v5009, %v5477
        %v5684 = vadd.f32 %v5010, %v5482
        %v5685 = vadd.f32 %v5011, %v5485
        %v5686 = vadd.f32 %v5012, %v5490
        %v5687 = vadd.f32 %v5013, %v5493
        %v5688 = vadd.f32 %v5014, %v5498
        %v5689 = vadd.f32 %v5015, %v5501
        %v5690 = vadd.f32 %v5016, %v5506
        %v5691 = vadd.f32 %v5017, %v5509
        %v5692 = vadd.f32 %v5018, %v5514
        %v5693 = vadd.f32 %v5019, %v5517
        %v5694 = vadd.f32 %v5020, %v5522
        %v5695 = vadd.f32 %v5021, %v5525
        %v5696 = vadd.f32 %v5022, %v5530
        %v5697 = vadd.f32 %v5023, %v5533
        %v5698 = vadd.f32 %v5024, %v5538
        %v5699 = vadd.f32 %v5025, %v5541
        %v5700 = vadd.f32 %v5026, %v5546
        %v5701 = vadd.f32 %v5027, %v5549
        %v5702 = vadd.f32 %v5028, %v5554
        %v5703 = vadd.f32 %v5029, %v5557
        %v5704 = vadd.f32 %v5030, %v5562
        %v5705 = vadd.f32 %v5031, %v5565
        %v5706 = vadd.f32 %v5032, %v5570
        %v5707 = vadd.f32 %v5033, %v5573
        %v5708 = vadd.f32 %v5034, %v5578
        %v5709 = vadd.f32 %v5035, %v5581
        %v5710 = vadd.f32 %v5036, %v5586
        %v5711 = vadd.f32 %v5037, %v5589
        %v5712 = vadd.f32 %v5038, %v5594
        %v5713 = vadd.f32 %v5039, %v5597
        %v5714 = vadd.f32 %v5040, %v5602
        %v5715 = vadd.f32 %v5041, %v5605
        %v5716 = vadd.f32 %v5042, %v5610
        %v5717 = vadd.f32 %v5043, %v5613
        %v5718 = vadd.f32 %v5044, %v5618
        %v5719 = vadd.f32 %v5045, %v5621
        %v5720 = vadd.f32 %v5046, %v5626
        %v5721 = vadd.f32 %v5047, %v5629
        %v5722 = vadd.f32 %v5048, %v5634
        %v5723 = vadd.f32 %v5049, %v5637
        %v5724 = vadd.f32 %v5050, %v5642
        %v5725 = vadd.f32 %v5051, %v5645
        %v5726 = vadd.f32 %v5052, %v5650
        %v5727 = vadd.f32 %v5053, %v5653
        %v5728 = vadd.f32 %v5054, %v5658
        %v5729 = vadd.f32 %v5055, %v5661
        %v5730 = vadd.f32 %v5056, %v5666
        %v5731 = vadd.f32 %v5057, %v5669
        %v5732 = vadd.f32 %v5058, %v5674
        %v5733 = vadd.f32 %v5059, %v5677
        %v5734 = vld [vmem:[#allocation2 + $0x18] sm:$0xf0]
        %s5735 = scalar_lea.vmem [#allocation8], 448
        %v5736 = vld [vmem:[%s5735] sm:$0xf]
        %v5737 = vld [vmem:[%s5735 + $0x4] sm:$0xf]
        %v5738 = vld [vmem:[%s5735 + $0x8] sm:$0xf]
        %v5739 = vld [vmem:[%s5735 + $0xc] sm:$0xf]
        %v5740 = vld [vmem:[%s5735 + $0x10] sm:$0xf]
        %v5741 = vld [vmem:[%s5735 + $0x14] sm:$0xf]
        %v5742 = vld [vmem:[%s5735 + $0x18] sm:$0xf]
        %v5743 = vld [vmem:[%s5735 + $0x1c] sm:$0xf]
        %v5744 = vld [vmem:[%s5735 + $0x20] sm:$0xf]
        %v5745 = vld [vmem:[%s5735 + $0x24] sm:$0xf]
        %v5746 = vld [vmem:[%s5735 + $0x28] sm:$0xf]
        %v5747 = vld [vmem:[%s5735 + $0x2c] sm:$0xf]
        %v5748 = vld [vmem:[%s5735 + $0x30] sm:$0xf]
        %v5749 = vld [vmem:[%s5735 + $0x34] sm:$0xf]
        %v5750 = vld [vmem:[%s5735 + $0x38] sm:$0xf]
        %v5751 = vld [vmem:[%s5735 + $0x3c] sm:$0xf]
        %v5780 = vrot.slane %v5734, 4
        %v5781 = vrot.slane %v5061, 4
        %v5782 = vsel %vm1930, %v5780, %v5781
        %v5783 = vrot.slane %v5062, 4
        %v5784 = vsel %vm1930, %v5781, %v5783
        %v5785 = vrot.slane %v5063, 4
        %v5786 = vsel %vm1930, %v5783, %v5785
        %v5787 = vrot.slane %v5064, 4
        %v5788 = vsel %vm1930, %v5785, %v5787
        %v5789 = vrot.slane %v5065, 4
        %v5790 = vsel %vm1930, %v5787, %v5789
        %v5791 = vrot.slane %v5066, 4
        %v5792 = vsel %vm1930, %v5789, %v5791
        %v5793 = vrot.slane %v5067, 4
        %v5794 = vsel %vm1930, %v5791, %v5793
        %v5795 = vrot.slane %v5068, 4
        %v5796 = vsel %vm1930, %v5793, %v5795
        %v5797 = vrot.slane %v5069, 4
        %v5798 = vsel %vm1930, %v5795, %v5797
        %v5799 = vrot.slane %v5070, 4
        %v5800 = vsel %vm1930, %v5797, %v5799
        %v5801 = vrot.slane %v5071, 4
        %v5802 = vsel %vm1930, %v5799, %v5801
        %v5803 = vrot.slane %v5072, 4
        %v5804 = vsel %vm1930, %v5801, %v5803
        %v5805 = vrot.slane %v5073, 4
        %v5806 = vsel %vm1930, %v5803, %v5805
        %v5807 = vrot.slane %v5074, 4
        %v5808 = vsel %vm1930, %v5805, %v5807
        %v5809 = vrot.slane %v5075, 4
        %v5810 = vsel %vm1930, %v5807, %v5809
        %v5811 = vrot.slane %v5076, 4
        %v5812 = vsel %vm1930, %v5809, %v5811
        %v5813 = vrot.slane %v5077, 4
        %v5814 = vsel %vm1930, %v5811, %v5813
        %v5815 = vrot.slane %v5078, 4
        %v5816 = vsel %vm1930, %v5813, %v5815
        %v5817 = vrot.slane %v5079, 4
        %v5818 = vsel %vm1930, %v5815, %v5817
        %v5819 = vrot.slane %v5080, 4
        %v5820 = vsel %vm1930, %v5817, %v5819
        %v5821 = vrot.slane %v5081, 4
        %v5822 = vsel %vm1930, %v5819, %v5821
        %v5823 = vrot.slane %v5082, 4
        %v5824 = vsel %vm1930, %v5821, %v5823
        %v5825 = vrot.slane %v5083, 4
        %v5826 = vsel %vm1930, %v5823, %v5825
        %v5827 = vrot.slane %v5084, 4
        %v5828 = vsel %vm1930, %v5825, %v5827
        %v5829 = vrot.slane %v5085, 4
        %v5830 = vsel %vm1930, %v5827, %v5829
        %v5831 = vrot.slane %v5086, 4
        %v5832 = vsel %vm1930, %v5829, %v5831
        %v5833 = vrot.slane %v5087, 4
        %v5834 = vsel %vm1930, %v5831, %v5833
        %v5878 = vunpack.c.l.b16 %v5736
        %v5879 = vunpack.c.l.b16 %v5737
        %v5880 = vunpack.c.l.b16 %v5738
        %v5881 = vunpack.c.l.b16 %v5739
        %v5882 = vunpack.c.l.b16 %v5740
        %v5883 = vunpack.c.l.b16 %v5741
        %v5884 = vunpack.c.l.b16 %v5742
        %v5885 = vunpack.c.l.b16 %v5743
        %v5886 = vunpack.c.l.b16 %v5744
        %v5887 = vunpack.c.l.b16 %v5745
        %v5888 = vunpack.c.l.b16 %v5746
        %v5889 = vunpack.c.l.b16 %v5747
        %v5890 = vunpack.c.l.b16 %v5748
        %v5891 = vunpack.c.l.b16 %v5749
        %v5892 = vunpack.c.l.b16 %v5750
        %v5893 = vunpack.c.l.b16 %v5751
        %v5894 = vpack.c.b16 %v5879, %v5878
        %v5895 = vpack.c.b16 %v5881, %v5880
        %v5896 = vpack.c.b16 %v5883, %v5882
        %v5897 = vpack.c.b16 %v5885, %v5884
        %v5898 = vpack.c.b16 %v5887, %v5886
        %v5899 = vpack.c.b16 %v5889, %v5888
        %v5900 = vpack.c.b16 %v5891, %v5890
        %v5901 = vpack.c.b16 %v5893, %v5892
        %5910 = vmatprep.subr.bf16.mxu0 0
        %5911 = vmatpush1.bf16.msra.mxu0 %v5894
        %5912 = vmatprep.subr.bf16.mxu0 0
        %5913 = vmatpush1.bf16.msra.mxu0 %v5895
        %5914 = vmatprep.subr.bf16.mxu0 0
        %5915 = vmatpush1.bf16.msra.mxu0 %v5896
        %5916 = vmatprep.subr.bf16.mxu0 0
        %5917 = vmatpush1.bf16.msra.mxu0 %v5897
        %5918 = vmatprep.subr.bf16.mxu0 0
        %5919 = vmatpush1.bf16.msra.mxu0 %v5898
        %5920 = vmatprep.subr.bf16.mxu0 0
        %5921 = vmatpush1.bf16.msra.mxu0 %v5899
        %5922 = vmatprep.subr.bf16.mxu0 0
        %5923 = vmatpush1.bf16.msra.mxu0 %v5900
        %5924 = vmatprep.subr.bf16.mxu0 0
        %5925 = vmatpush1.bf16.msra.mxu0 %v5901
        %5926 = vmatprep.subr.bf16.mxu0 0
        %5927 = vmatpush1.bf16.msra.mxu0 0
        %5928 = vmatprep.subr.bf16.mxu0 0
        %5929 = vmatpush1.bf16.msra.mxu0 0
        %5930 = vmatprep.subr.bf16.mxu0 0
        %5931 = vmatpush1.bf16.msra.mxu0 0
        %5932 = vmatprep.subr.bf16.mxu0 0
        %5933 = vmatpush1.bf16.msra.mxu0 0
        %5934 = vmatprep.subr.bf16.mxu0 0
        %5935 = vmatpush1.bf16.msra.mxu0 0
        %5936 = vmatprep.subr.bf16.mxu0 0
        %5937 = vmatpush1.bf16.msra.mxu0 0
        %5938 = vmatprep.subr.bf16.mxu0 0
        %5939 = vmatpush1.bf16.msra.mxu0 0
        %5940 = vmatprep.subr.bf16.mxu0 0
        %5941 = vmatpush1.bf16.msra.mxu0 0
        %5942 = vmatprep.mubr.bf16.mxu0 0
        %5943 = vmatmul.mubr.bf16.gmra.mrb[0].mxu0 %v5782
        %v5944 = vpop.f32.mrb[0].mxu0
        %v5945 = vadd.f32 0.0, %v5944
        %v5946 = vpop.f32.mrb[0].mxu0
        %v5947 = vpop.f32.mrb[0].mxu0
        %v5948 = vadd.f32 0.0, %v5947
        %v5949 = vpop.f32.mrb[0].mxu0
        %5950 = vmatprep.mubr.bf16.mxu0 0
        %5951 = vmatmul.mubr.bf16.gmra.mrb[0].mxu0 %v5784
        %v5952 = vpop.f32.mrb[0].mxu0
        %v5953 = vadd.f32 0.0, %v5952
        %v5954 = vpop.f32.mrb[0].mxu0
        %v5955 = vpop.f32.mrb[0].mxu0
        %v5956 = vadd.f32 0.0, %v5955
        %v5957 = vpop.f32.mrb[0].mxu0
        %5958 = vmatprep.mubr.bf16.mxu0 0
        %5959 = vmatmul.mubr.bf16.gmra.mrb[0].mxu0 %v5786
        %v5960 = vpop.f32.mrb[0].mxu0
        %v5961 = vadd.f32 0.0, %v5960
        %v5962 = vpop.f32.mrb[0].mxu0
        %v5963 = vpop.f32.mrb[0].mxu0
        %v5964 = vadd.f32 0.0, %v5963
        %v5965 = vpop.f32.mrb[0].mxu0
        %5966 = vmatprep.mubr.bf16.mxu0 0
        %5967 = vmatmul.mubr.bf16.gmra.mrb[0].mxu0 %v5788
        %v5968 = vpop.f32.mrb[0].mxu0
        %v5969 = vadd.f32 0.0, %v5968
        %v5970 = vpop.f32.mrb[0].mxu0
        %v5971 = vpop.f32.mrb[0].mxu0
        %v5972 = vadd.f32 0.0, %v5971
        %v5973 = vpop.f32.mrb[0].mxu0
        %5974 = vmatprep.mubr.bf16.mxu0 0
        %5975 = vmatmul.mubr.bf16.gmra.mrb[0].mxu0 %v5790
        %v5976 = vpop.f32.mrb[0].mxu0
        %v5977 = vadd.f32 0.0, %v5976
        %v5978 = vpop.f32.mrb[0].mxu0
        %v5979 = vpop.f32.mrb[0].mxu0
        %v5980 = vadd.f32 0.0, %v5979
        %v5981 = vpop.f32.mrb[0].mxu0
        %5982 = vmatprep.mubr.bf16.mxu0 0
        %5983 = vmatmul.mubr.bf16.gmra.mrb[0].mxu0 %v5792
        %v5984 = vpop.f32.mrb[0].mxu0
        %v5985 = vadd.f32 0.0, %v5984
        %v5986 = vpop.f32.mrb[0].mxu0
        %v5987 = vpop.f32.mrb[0].mxu0
        %v5988 = vadd.f32 0.0, %v5987
        %v5989 = vpop.f32.mrb[0].mxu0
        %5990 = vmatprep.mubr.bf16.mxu0 0
        %5991 = vmatmul.mubr.bf16.gmra.mrb[0].mxu0 %v5794
        %v5992 = vpop.f32.mrb[0].mxu0
        %v5993 = vadd.f32 0.0, %v5992
        %v5994 = vpop.f32.mrb[0].mxu0
        %v5995 = vpop.f32.mrb[0].mxu0
        %v5996 = vadd.f32 0.0, %v5995
        %v5997 = vpop.f32.mrb[0].mxu0
        %5998 = vmatprep.mubr.bf16.mxu0 0
        %5999 = vmatmul.mubr.bf16.gmra.mrb[0].mxu0 %v5796
        %v6000 = vpop.f32.mrb[0].mxu0
        %v6001 = vadd.f32 0.0, %v6000
        %v6002 = vpop.f32.mrb[0].mxu0
        %v6003 = vpop.f32.mrb[0].mxu0
        %v6004 = vadd.f32 0.0, %v6003
        %v6005 = vpop.f32.mrb[0].mxu0
        %6006 = vmatprep.mubr.bf16.mxu0 0
        %6007 = vmatmul.mubr.bf16.gmra.mrb[0].mxu0 %v5798
        %v6008 = vpop.f32.mrb[0].mxu0
        %v6009 = vadd.f32 0.0, %v6008
        %v6010 = vpop.f32.mrb[0].mxu0
        %v6011 = vpop.f32.mrb[0].mxu0
        %v6012 = vadd.f32 0.0, %v6011
        %v6013 = vpop.f32.mrb[0].mxu0
        %6014 = vmatprep.mubr.bf16.mxu0 0
        %6015 = vmatmul.mubr.bf16.gmra.mrb[0].mxu0 %v5800
        %v6016 = vpop.f32.mrb[0].mxu0
        %v6017 = vadd.f32 0.0, %v6016
        %v6018 = vpop.f32.mrb[0].mxu0
        %v6019 = vpop.f32.mrb[0].mxu0
        %v6020 = vadd.f32 0.0, %v6019
        %v6021 = vpop.f32.mrb[0].mxu0
        %6022 = vmatprep.mubr.bf16.mxu0 0
        %6023 = vmatmul.mubr.bf16.gmra.mrb[0].mxu0 %v5802
        %v6024 = vpop.f32.mrb[0].mxu0
        %v6025 = vadd.f32 0.0, %v6024
        %v6026 = vpop.f32.mrb[0].mxu0
        %v6027 = vpop.f32.mrb[0].mxu0
        %v6028 = vadd.f32 0.0, %v6027
        %v6029 = vpop.f32.mrb[0].mxu0
        %6030 = vmatprep.mubr.bf16.mxu0 0
        %6031 = vmatmul.mubr.bf16.gmra.mrb[0].mxu0 %v5804
        %v6032 = vpop.f32.mrb[0].mxu0
        %v6033 = vadd.f32 0.0, %v6032
        %v6034 = vpop.f32.mrb[0].mxu0
        %v6035 = vpop.f32.mrb[0].mxu0
        %v6036 = vadd.f32 0.0, %v6035
        %v6037 = vpop.f32.mrb[0].mxu0
        %6038 = vmatprep.mubr.bf16.mxu0 0
        %6039 = vmatmul.mubr.bf16.gmra.mrb[0].mxu0 %v5806
        %v6040 = vpop.f32.mrb[0].mxu0
        %v6041 = vadd.f32 0.0, %v6040
        %v6042 = vpop.f32.mrb[0].mxu0
        %v6043 = vpop.f32.mrb[0].mxu0
        %v6044 = vadd.f32 0.0, %v6043
        %v6045 = vpop.f32.mrb[0].mxu0
        %6046 = vmatprep.mubr.bf16.mxu0 0
        %6047 = vmatmul.mubr.bf16.gmra.mrb[0].mxu0 %v5808
        %v6048 = vpop.f32.mrb[0].mxu0
        %v6049 = vadd.f32 0.0, %v6048
        %v6050 = vpop.f32.mrb[0].mxu0
        %v6051 = vpop.f32.mrb[0].mxu0
        %v6052 = vadd.f32 0.0, %v6051
        %v6053 = vpop.f32.mrb[0].mxu0
        %6054 = vmatprep.mubr.bf16.mxu0 0
        %6055 = vmatmul.mubr.bf16.gmra.mrb[0].mxu0 %v5810
        %v6056 = vpop.f32.mrb[0].mxu0
        %v6057 = vadd.f32 0.0, %v6056
        %v6058 = vpop.f32.mrb[0].mxu0
        %v6059 = vpop.f32.mrb[0].mxu0
        %v6060 = vadd.f32 0.0, %v6059
        %v6061 = vpop.f32.mrb[0].mxu0
        %6062 = vmatprep.mubr.bf16.mxu0 0
        %6063 = vmatmul.mubr.bf16.gmra.mrb[0].mxu0 %v5812
        %v6064 = vpop.f32.mrb[0].mxu0
        %v6065 = vadd.f32 0.0, %v6064
        %v6066 = vpop.f32.mrb[0].mxu0
        %v6067 = vpop.f32.mrb[0].mxu0
        %v6068 = vadd.f32 0.0, %v6067
        %v6069 = vpop.f32.mrb[0].mxu0
        %6070 = vmatprep.mubr.bf16.mxu0 0
        %6071 = vmatmul.mubr.bf16.gmra.mrb[0].mxu0 %v5814
        %v6072 = vpop.f32.mrb[0].mxu0
        %v6073 = vadd.f32 0.0, %v6072
        %v6074 = vpop.f32.mrb[0].mxu0
        %v6075 = vpop.f32.mrb[0].mxu0
        %v6076 = vadd.f32 0.0, %v6075
        %v6077 = vpop.f32.mrb[0].mxu0
        %6078 = vmatprep.mubr.bf16.mxu0 0
        %6079 = vmatmul.mubr.bf16.gmra.mrb[0].mxu0 %v5816
        %v6080 = vpop.f32.mrb[0].mxu0
        %v6081 = vadd.f32 0.0, %v6080
        %v6082 = vpop.f32.mrb[0].mxu0
        %v6083 = vpop.f32.mrb[0].mxu0
        %v6084 = vadd.f32 0.0, %v6083
        %v6085 = vpop.f32.mrb[0].mxu0
        %6086 = vmatprep.mubr.bf16.mxu0 0
        %6087 = vmatmul.mubr.bf16.gmra.mrb[0].mxu0 %v5818
        %v6088 = vpop.f32.mrb[0].mxu0
        %v6089 = vadd.f32 0.0, %v6088
        %v6090 = vpop.f32.mrb[0].mxu0
        %v6091 = vpop.f32.mrb[0].mxu0
        %v6092 = vadd.f32 0.0, %v6091
        %v6093 = vpop.f32.mrb[0].mxu0
        %6094 = vmatprep.mubr.bf16.mxu0 0
        %6095 = vmatmul.mubr.bf16.gmra.mrb[0].mxu0 %v5820
        %v6096 = vpop.f32.mrb[0].mxu0
        %v6097 = vadd.f32 0.0, %v6096
        %v6098 = vpop.f32.mrb[0].mxu0
        %v6099 = vpop.f32.mrb[0].mxu0
        %v6100 = vadd.f32 0.0, %v6099
        %v6101 = vpop.f32.mrb[0].mxu0
        %6102 = vmatprep.mubr.bf16.mxu0 0
        %6103 = vmatmul.mubr.bf16.gmra.mrb[0].mxu0 %v5822
        %v6104 = vpop.f32.mrb[0].mxu0
        %v6105 = vadd.f32 0.0, %v6104
        %v6106 = vpop.f32.mrb[0].mxu0
        %v6107 = vpop.f32.mrb[0].mxu0
        %v6108 = vadd.f32 0.0, %v6107
        %v6109 = vpop.f32.mrb[0].mxu0
        %6110 = vmatprep.mubr.bf16.mxu0 0
        %6111 = vmatmul.mubr.bf16.gmra.mrb[0].mxu0 %v5824
        %v6112 = vpop.f32.mrb[0].mxu0
        %v6113 = vadd.f32 0.0, %v6112
        %v6114 = vpop.f32.mrb[0].mxu0
        %v6115 = vpop.f32.mrb[0].mxu0
        %v6116 = vadd.f32 0.0, %v6115
        %v6117 = vpop.f32.mrb[0].mxu0
        %6118 = vmatprep.mubr.bf16.mxu0 0
        %6119 = vmatmul.mubr.bf16.gmra.mrb[0].mxu0 %v5826
        %v6120 = vpop.f32.mrb[0].mxu0
        %v6121 = vadd.f32 0.0, %v6120
        %v6122 = vpop.f32.mrb[0].mxu0
        %v6123 = vpop.f32.mrb[0].mxu0
        %v6124 = vadd.f32 0.0, %v6123
        %v6125 = vpop.f32.mrb[0].mxu0
        %6126 = vmatprep.mubr.bf16.mxu0 0
        %6127 = vmatmul.mubr.bf16.gmra.mrb[0].mxu0 %v5828
        %v6128 = vpop.f32.mrb[0].mxu0
        %v6129 = vadd.f32 0.0, %v6128
        %v6130 = vpop.f32.mrb[0].mxu0
        %v6131 = vpop.f32.mrb[0].mxu0
        %v6132 = vadd.f32 0.0, %v6131
        %v6133 = vpop.f32.mrb[0].mxu0
        %6134 = vmatprep.mubr.bf16.mxu0 0
        %6135 = vmatmul.mubr.bf16.gmra.mrb[0].mxu0 %v5830
        %v6136 = vpop.f32.mrb[0].mxu0
        %v6137 = vadd.f32 0.0, %v6136
        %v6138 = vpop.f32.mrb[0].mxu0
        %v6139 = vpop.f32.mrb[0].mxu0
        %v6140 = vadd.f32 0.0, %v6139
        %v6141 = vpop.f32.mrb[0].mxu0
        %6142 = vmatprep.mubr.bf16.mxu0 0
        %6143 = vmatmul.mubr.bf16.gmra.mrb[0].mxu0 %v5832
        %v6144 = vpop.f32.mrb[0].mxu0
        %v6145 = vadd.f32 0.0, %v6144
        %v6146 = vpop.f32.mrb[0].mxu0
        %v6147 = vpop.f32.mrb[0].mxu0
        %v6148 = vadd.f32 0.0, %v6147
        %v6149 = vpop.f32.mrb[0].mxu0
        %6150 = vmatprep.mubr.bf16.mxu0 0
        %6151 = vmatmul.mubr.bf16.gmra.mrb[0].mxu0 %v5834
        %v6152 = vpop.f32.mrb[0].mxu0
        %v6153 = vadd.f32 0.0, %v6152
        %v6154 = vpop.f32.mrb[0].mxu0
        %v6155 = vpop.f32.mrb[0].mxu0
        %v6156 = vadd.f32 0.0, %v6155
        %v6157 = vpop.f32.mrb[0].mxu0
        %6158 = vdwg.mxu0
        %v6159 = vadd.f32 %v5680, %v5945
        %v6160 = vadd.f32 %v5681, %v5948
        %v6161 = vadd.f32 %v5682, %v5953
        %v6162 = vadd.f32 %v5683, %v5956
        %v6163 = vadd.f32 %v5684, %v5961
        %v6164 = vadd.f32 %v5685, %v5964
        %v6165 = vadd.f32 %v5686, %v5969
        %v6166 = vadd.f32 %v5687, %v5972
        %v6167 = vadd.f32 %v5688, %v5977
        %v6168 = vadd.f32 %v5689, %v5980
        %v6169 = vadd.f32 %v5690, %v5985
        %v6170 = vadd.f32 %v5691, %v5988
        %v6171 = vadd.f32 %v5692, %v5993
        %v6172 = vadd.f32 %v5693, %v5996
        %v6173 = vadd.f32 %v5694, %v6001
        %v6174 = vadd.f32 %v5695, %v6004
        %v6175 = vadd.f32 %v5696, %v6009
        %v6176 = vadd.f32 %v5697, %v6012
        %v6177 = vadd.f32 %v5698, %v6017
        %v6178 = vadd.f32 %v5699, %v6020
        %v6179 = vadd.f32 %v5700, %v6025
        %v6180 = vadd.f32 %v5701, %v6028
        %v6181 = vadd.f32 %v5702, %v6033
        %v6182 = vadd.f32 %v5703, %v6036
        %v6183 = vadd.f32 %v5704, %v6041
        %v6184 = vadd.f32 %v5705, %v6044
        %v6185 = vadd.f32 %v5706, %v6049
        %v6186 = vadd.f32 %v5707, %v6052
        %v6187 = vadd.f32 %v5708, %v6057
        %v6188 = vadd.f32 %v5709, %v6060
        %v6189 = vadd.f32 %v5710, %v6065
        %v6190 = vadd.f32 %v5711, %v6068
        %v6191 = vadd.f32 %v5712, %v6073
        %v6192 = vadd.f32 %v5713, %v6076
        %v6193 = vadd.f32 %v5714, %v6081
        %v6194 = vadd.f32 %v5715, %v6084
        %v6195 = vadd.f32 %v5716, %v6089
        %v6196 = vadd.f32 %v5717, %v6092
        %v6197 = vadd.f32 %v5718, %v6097
        %v6198 = vadd.f32 %v5719, %v6100
        %v6199 = vadd.f32 %v5720, %v6105
        %v6200 = vadd.f32 %v5721, %v6108
        %v6201 = vadd.f32 %v5722, %v6113
        %v6202 = vadd.f32 %v5723, %v6116
        %v6203 = vadd.f32 %v5724, %v6121
        %v6204 = vadd.f32 %v5725, %v6124
        %v6205 = vadd.f32 %v5726, %v6129
        %v6206 = vadd.f32 %v5727, %v6132
        %v6207 = vadd.f32 %v5728, %v6137
        %v6208 = vadd.f32 %v5729, %v6140
        %v6209 = vadd.f32 %v5730, %v6145
        %v6210 = vadd.f32 %v5731, %v6148
        %v6211 = vadd.f32 %v5732, %v6153
        %v6212 = vadd.f32 %v5733, %v6156
        %v6213 = vld [vmem:[#allocation2 + $0xf0] sm:$0x1f]
        %s6214 = scalar_lea.vmem [#allocation8], 512
        %v6215 = vld [vmem:[%s6214] sm:$0xf]
        %v6216 = vld [vmem:[%s6214 + $0x4] sm:$0xf]
        %v6217 = vld [vmem:[%s6214 + $0x8] sm:$0xf]
        %v6218 = vld [vmem:[%s6214 + $0xc] sm:$0xf]
        %v6219 = vld [vmem:[%s6214 + $0x10] sm:$0xf]
        %v6220 = vld [vmem:[%s6214 + $0x14] sm:$0xf]
        %v6221 = vld [vmem:[%s6214 + $0x18] sm:$0xf]
        %v6222 = vld [vmem:[%s6214 + $0x1c] sm:$0xf]
        %v6223 = vld [vmem:[%s6214 + $0x20] sm:$0xf]
        %v6224 = vld [vmem:[%s6214 + $0x24] sm:$0xf]
        %v6225 = vld [vmem:[%s6214 + $0x28] sm:$0xf]
        %v6226 = vld [vmem:[%s6214 + $0x2c] sm:$0xf]
        %v6227 = vld [vmem:[%s6214 + $0x30] sm:$0xf]
        %v6228 = vld [vmem:[%s6214 + $0x34] sm:$0xf]
        %v6229 = vld [vmem:[%s6214 + $0x38] sm:$0xf]
        %v6230 = vld [vmem:[%s6214 + $0x3c] sm:$0xf]
        %v6232 = vshrl.u32 %v5734, 16
        %v6234 = vrot.slane %v6232, 4
        %v6235 = vshll.u32 %v5734, 16
        %v6237 = vrot.slane %v6235, 5
        %v6238 = vor.u32 %v6234, %v6237
        %v6239 = vrot.slane %v5114, 4
        %v6240 = vrot.slane %v5117, 5
        %v6241 = vor.u32 %v6239, %v6240
        %v6242 = vsel %vm2904, %v6238, %v6241
        %v6243 = vrot.slane %v5123, 4
        %v6244 = vrot.slane %v5126, 5
        %v6245 = vor.u32 %v6243, %v6244
        %v6246 = vsel %vm2904, %v6241, %v6245
        %v6247 = vrot.slane %v5132, 4
        %v6248 = vrot.slane %v5135, 5
        %v6249 = vor.u32 %v6247, %v6248
        %v6250 = vsel %vm2904, %v6245, %v6249
        %v6251 = vrot.slane %v5141, 4
        %v6252 = vrot.slane %v5144, 5
        %v6253 = vor.u32 %v6251, %v6252
        %v6254 = vsel %vm2904, %v6249, %v6253
        %v6255 = vrot.slane %v5150, 4
        %v6256 = vrot.slane %v5153, 5
        %v6257 = vor.u32 %v6255, %v6256
        %v6258 = vsel %vm2904, %v6253, %v6257
        %v6259 = vrot.slane %v5159, 4
        %v6260 = vrot.slane %v5162, 5
        %v6261 = vor.u32 %v6259, %v6260
        %v6262 = vsel %vm2904, %v6257, %v6261
        %v6263 = vrot.slane %v5168, 4
        %v6264 = vrot.slane %v5171, 5
        %v6265 = vor.u32 %v6263, %v6264
        %v6266 = vsel %vm2904, %v6261, %v6265
        %v6267 = vrot.slane %v5177, 4
        %v6268 = vrot.slane %v5180, 5
        %v6269 = vor.u32 %v6267, %v6268
        %v6270 = vsel %vm2904, %v6265, %v6269
        %v6271 = vrot.slane %v5186, 4
        %v6272 = vrot.slane %v5189, 5
        %v6273 = vor.u32 %v6271, %v6272
        %v6274 = vsel %vm2904, %v6269, %v6273
        %v6275 = vrot.slane %v5195, 4
        %v6276 = vrot.slane %v5198, 5
        %v6277 = vor.u32 %v6275, %v6276
        %v6278 = vsel %vm2904, %v6273, %v6277
        %v6279 = vrot.slane %v5204, 4
        %v6280 = vrot.slane %v5207, 5
        %v6281 = vor.u32 %v6279, %v6280
        %v6282 = vsel %vm2904, %v6277, %v6281
        %v6283 = vrot.slane %v5213, 4
        %v6284 = vrot.slane %v5216, 5
        %v6285 = vor.u32 %v6283, %v6284
        %v6286 = vsel %vm2904, %v6281, %v6285
        %v6287 = vrot.slane %v5222, 4
        %v6288 = vrot.slane %v5225, 5
        %v6289 = vor.u32 %v6287, %v6288
        %v6290 = vsel %vm2904, %v6285, %v6289
        %v6291 = vrot.slane %v5231, 4
        %v6292 = vrot.slane %v5234, 5
        %v6293 = vor.u32 %v6291, %v6292
        %v6294 = vsel %vm2904, %v6289, %v6293
        %v6295 = vrot.slane %v5240, 4
        %v6296 = vrot.slane %v5243, 5
        %v6297 = vor.u32 %v6295, %v6296
        %v6298 = vsel %vm2904, %v6293, %v6297
        %v6299 = vrot.slane %v5249, 4
        %v6300 = vrot.slane %v5252, 5
        %v6301 = vor.u32 %v6299, %v6300
        %v6302 = vsel %vm2904, %v6297, %v6301
        %v6303 = vrot.slane %v5258, 4
        %v6304 = vrot.slane %v5261, 5
        %v6305 = vor.u32 %v6303, %v6304
        %v6306 = vsel %vm2904, %v6301, %v6305
        %v6307 = vrot.slane %v5267, 4
        %v6308 = vrot.slane %v5270, 5
        %v6309 = vor.u32 %v6307, %v6308
        %v6310 = vsel %vm2904, %v6305, %v6309
        %v6311 = vrot.slane %v5276, 4
        %v6312 = vrot.slane %v5279, 5
        %v6313 = vor.u32 %v6311, %v6312
        %v6314 = vsel %vm2904, %v6309, %v6313
        %v6315 = vrot.slane %v5285, 4
        %v6316 = vrot.slane %v5288, 5
        %v6317 = vor.u32 %v6315, %v6316
        %v6318 = vsel %vm2904, %v6313, %v6317
        %v6319 = vrot.slane %v5294, 4
        %v6320 = vrot.slane %v5297, 5
        %v6321 = vor.u32 %v6319, %v6320
        %v6322 = vsel %vm2904, %v6317, %v6321
        %v6323 = vrot.slane %v5303, 4
        %v6324 = vrot.slane %v5306, 5
        %v6325 = vor.u32 %v6323, %v6324
        %v6326 = vsel %vm2904, %v6321, %v6325
        %v6327 = vrot.slane %v5312, 4
        %v6328 = vrot.slane %v5315, 5
        %v6329 = vor.u32 %v6327, %v6328
        %v6330 = vsel %vm2904, %v6325, %v6329
        %v6331 = vrot.slane %v5321, 4
        %v6332 = vrot.slane %v5324, 5
        %v6333 = vor.u32 %v6331, %v6332
        %v6334 = vsel %vm2904, %v6329, %v6333
        %v6335 = vrot.slane %v5330, 4
        %v6336 = vrot.slane %v5333, 5
        %v6337 = vor.u32 %v6335, %v6336
        %v6338 = vsel %vm2904, %v6333, %v6337
        %v6339 = vrot.slane %v5339, 4
        %v6340 = vrot.slane %v5342, 5
        %v6341 = vor.u32 %v6339, %v6340
        %v6342 = vsel %vm2904, %v6337, %v6341
        %v6344 = vshrl.u32 %v6213, 16
        %v6346 = vrot.slane %v6344, 4
        %v6347 = vshll.u32 %v6213, 16
        %v6349 = vrot.slane %v6347, 5
        %v6350 = vor.u32 %v6346, %v6349
        %v6351 = vsel %vm2904, %v6341, %v6350
        %v6395 = vunpack.c.l.b16 %v6215
        %v6396 = vunpack.c.l.b16 %v6216
        %v6397 = vunpack.c.l.b16 %v6217
        %v6398 = vunpack.c.l.b16 %v6218
        %v6399 = vunpack.c.l.b16 %v6219
        %v6400 = vunpack.c.l.b16 %v6220
        %v6401 = vunpack.c.l.b16 %v6221
        %v6402 = vunpack.c.l.b16 %v6222
        %v6403 = vunpack.c.l.b16 %v6223
        %v6404 = vunpack.c.l.b16 %v6224
        %v6405 = vunpack.c.l.b16 %v6225
        %v6406 = vunpack.c.l.b16 %v6226
        %v6407 = vunpack.c.l.b16 %v6227
        %v6408 = vunpack.c.l.b16 %v6228
        %v6409 = vunpack.c.l.b16 %v6229
        %v6410 = vunpack.c.l.b16 %v6230
        %v6411 = vpack.c.b16 %v6396, %v6395
        %v6412 = vpack.c.b16 %v6398, %v6397
        %v6413 = vpack.c.b16 %v6400, %v6399
        %v6414 = vpack.c.b16 %v6402, %v6401
        %v6415 = vpack.c.b16 %v6404, %v6403
        %v6416 = vpack.c.b16 %v6406, %v6405
        %v6417 = vpack.c.b16 %v6408, %v6407
        %v6418 = vpack.c.b16 %v6410, %v6409
        %6427 = vmatprep.subr.bf16.mxu0 0
        %6428 = vmatpush1.bf16.msra.mxu0 %v6411
        %6429 = vmatprep.subr.bf16.mxu0 0
        %6430 = vmatpush1.bf16.msra.mxu0 %v6412
        %6431 = vmatprep.subr.bf16.mxu0 0
        %6432 = vmatpush1.bf16.msra.mxu0 %v6413
        %6433 = vmatprep.subr.bf16.mxu0 0
        %6434 = vmatpush1.bf16.msra.mxu0 %v6414
        %6435 = vmatprep.subr.bf16.mxu0 0
        %6436 = vmatpush1.bf16.msra.mxu0 %v6415
        %6437 = vmatprep.subr.bf16.mxu0 0
        %6438 = vmatpush1.bf16.msra.mxu0 %v6416
        %6439 = vmatprep.subr.bf16.mxu0 0
        %6440 = vmatpush1.bf16.msra.mxu0 %v6417
        %6441 = vmatprep.subr.bf16.mxu0 0
        %6442 = vmatpush1.bf16.msra.mxu0 %v6418
        %6443 = vmatprep.subr.bf16.mxu0 0
        %6444 = vmatpush1.bf16.msra.mxu0 0
        %6445 = vmatprep.subr.bf16.mxu0 0
        %6446 = vmatpush1.bf16.msra.mxu0 0
        %6447 = vmatprep.subr.bf16.mxu0 0
        %6448 = vmatpush1.bf16.msra.mxu0 0
        %6449 = vmatprep.subr.bf16.mxu0 0
        %6450 = vmatpush1.bf16.msra.mxu0 0
        %6451 = vmatprep.subr.bf16.mxu0 0
        %6452 = vmatpush1.bf16.msra.mxu0 0
        %6453 = vmatprep.subr.bf16.mxu0 0
        %6454 = vmatpush1.bf16.msra.mxu0 0
        %6455 = vmatprep.subr.bf16.mxu0 0
        %6456 = vmatpush1.bf16.msra.mxu0 0
        %6457 = vmatprep.subr.bf16.mxu0 0
        %6458 = vmatpush1.bf16.msra.mxu0 0
        %6459 = vmatprep.mubr.bf16.mxu0 0
        %6460 = vmatmul.mubr.bf16.gmra.mrb[0].mxu0 %v6242
        %v6461 = vpop.f32.mrb[0].mxu0
        %v6462 = vadd.f32 0.0, %v6461
        %v6463 = vpop.f32.mrb[0].mxu0
        %v6464 = vpop.f32.mrb[0].mxu0
        %v6465 = vadd.f32 0.0, %v6464
        %v6466 = vpop.f32.mrb[0].mxu0
        %6467 = vmatprep.mubr.bf16.mxu0 0
        %6468 = vmatmul.mubr.bf16.gmra.mrb[0].mxu0 %v6246
        %v6469 = vpop.f32.mrb[0].mxu0
        %v6470 = vadd.f32 0.0, %v6469
        %v6471 = vpop.f32.mrb[0].mxu0
        %v6472 = vpop.f32.mrb[0].mxu0
        %v6473 = vadd.f32 0.0, %v6472
        %v6474 = vpop.f32.mrb[0].mxu0
        %6475 = vmatprep.mubr.bf16.mxu0 0
        %6476 = vmatmul.mubr.bf16.gmra.mrb[0].mxu0 %v6250
        %v6477 = vpop.f32.mrb[0].mxu0
        %v6478 = vadd.f32 0.0, %v6477
        %v6479 = vpop.f32.mrb[0].mxu0
        %v6480 = vpop.f32.mrb[0].mxu0
        %v6481 = vadd.f32 0.0, %v6480
        %v6482 = vpop.f32.mrb[0].mxu0
        %6483 = vmatprep.mubr.bf16.mxu0 0
        %6484 = vmatmul.mubr.bf16.gmra.mrb[0].mxu0 %v6254
        %v6485 = vpop.f32.mrb[0].mxu0
        %v6486 = vadd.f32 0.0, %v6485
        %v6487 = vpop.f32.mrb[0].mxu0
        %v6488 = vpop.f32.mrb[0].mxu0
        %v6489 = vadd.f32 0.0, %v6488
        %v6490 = vpop.f32.mrb[0].mxu0
        %6491 = vmatprep.mubr.bf16.mxu0 0
        %6492 = vmatmul.mubr.bf16.gmra.mrb[0].mxu0 %v6258
        %v6493 = vpop.f32.mrb[0].mxu0
        %v6494 = vadd.f32 0.0, %v6493
        %v6495 = vpop.f32.mrb[0].mxu0
        %v6496 = vpop.f32.mrb[0].mxu0
        %v6497 = vadd.f32 0.0, %v6496
        %v6498 = vpop.f32.mrb[0].mxu0
        %6499 = vmatprep.mubr.bf16.mxu0 0
        %6500 = vmatmul.mubr.bf16.gmra.mrb[0].mxu0 %v6262
        %v6501 = vpop.f32.mrb[0].mxu0
        %v6502 = vadd.f32 0.0, %v6501
        %v6503 = vpop.f32.mrb[0].mxu0
        %v6504 = vpop.f32.mrb[0].mxu0
        %v6505 = vadd.f32 0.0, %v6504
        %v6506 = vpop.f32.mrb[0].mxu0
        %6507 = vmatprep.mubr.bf16.mxu0 0
        %6508 = vmatmul.mubr.bf16.gmra.mrb[0].mxu0 %v6266
        %v6509 = vpop.f32.mrb[0].mxu0
        %v6510 = vadd.f32 0.0, %v6509
        %v6511 = vpop.f32.mrb[0].mxu0
        %v6512 = vpop.f32.mrb[0].mxu0
        %v6513 = vadd.f32 0.0, %v6512
        %v6514 = vpop.f32.mrb[0].mxu0
        %6515 = vmatprep.mubr.bf16.mxu0 0
        %6516 = vmatmul.mubr.bf16.gmra.mrb[0].mxu0 %v6270
        %v6517 = vpop.f32.mrb[0].mxu0
        %v6518 = vadd.f32 0.0, %v6517
        %v6519 = vpop.f32.mrb[0].mxu0
        %v6520 = vpop.f32.mrb[0].mxu0
        %v6521 = vadd.f32 0.0, %v6520
        %v6522 = vpop.f32.mrb[0].mxu0
        %6523 = vmatprep.mubr.bf16.mxu0 0
        %6524 = vmatmul.mubr.bf16.gmra.mrb[0].mxu0 %v6274
        %v6525 = vpop.f32.mrb[0].mxu0
        %v6526 = vadd.f32 0.0, %v6525
        %v6527 = vpop.f32.mrb[0].mxu0
        %v6528 = vpop.f32.mrb[0].mxu0
        %v6529 = vadd.f32 0.0, %v6528
        %v6530 = vpop.f32.mrb[0].mxu0
        %6531 = vmatprep.mubr.bf16.mxu0 0
        %6532 = vmatmul.mubr.bf16.gmra.mrb[0].mxu0 %v6278
        %v6533 = vpop.f32.mrb[0].mxu0
        %v6534 = vadd.f32 0.0, %v6533
        %v6535 = vpop.f32.mrb[0].mxu0
        %v6536 = vpop.f32.mrb[0].mxu0
        %v6537 = vadd.f32 0.0, %v6536
        %v6538 = vpop.f32.mrb[0].mxu0
        %6539 = vmatprep.mubr.bf16.mxu0 0
        %6540 = vmatmul.mubr.bf16.gmra.mrb[0].mxu0 %v6282
        %v6541 = vpop.f32.mrb[0].mxu0
        %v6542 = vadd.f32 0.0, %v6541
        %v6543 = vpop.f32.mrb[0].mxu0
        %v6544 = vpop.f32.mrb[0].mxu0
        %v6545 = vadd.f32 0.0, %v6544
        %v6546 = vpop.f32.mrb[0].mxu0
        %6547 = vmatprep.mubr.bf16.mxu0 0
        %6548 = vmatmul.mubr.bf16.gmra.mrb[0].mxu0 %v6286
        %v6549 = vpop.f32.mrb[0].mxu0
        %v6550 = vadd.f32 0.0, %v6549
        %v6551 = vpop.f32.mrb[0].mxu0
        %v6552 = vpop.f32.mrb[0].mxu0
        %v6553 = vadd.f32 0.0, %v6552
        %v6554 = vpop.f32.mrb[0].mxu0
        %6555 = vmatprep.mubr.bf16.mxu0 0
        %6556 = vmatmul.mubr.bf16.gmra.mrb[0].mxu0 %v6290
        %v6557 = vpop.f32.mrb[0].mxu0
        %v6558 = vadd.f32 0.0, %v6557
        %v6559 = vpop.f32.mrb[0].mxu0
        %v6560 = vpop.f32.mrb[0].mxu0
        %v6561 = vadd.f32 0.0, %v6560
        %v6562 = vpop.f32.mrb[0].mxu0
        %6563 = vmatprep.mubr.bf16.mxu0 0
        %6564 = vmatmul.mubr.bf16.gmra.mrb[0].mxu0 %v6294
        %v6565 = vpop.f32.mrb[0].mxu0
        %v6566 = vadd.f32 0.0, %v6565
        %v6567 = vpop.f32.mrb[0].mxu0
        %v6568 = vpop.f32.mrb[0].mxu0
        %v6569 = vadd.f32 0.0, %v6568
        %v6570 = vpop.f32.mrb[0].mxu0
        %6571 = vmatprep.mubr.bf16.mxu0 0
        %6572 = vmatmul.mubr.bf16.gmra.mrb[0].mxu0 %v6298
        %v6573 = vpop.f32.mrb[0].mxu0
        %v6574 = vadd.f32 0.0, %v6573
        %v6575 = vpop.f32.mrb[0].mxu0
        %v6576 = vpop.f32.mrb[0].mxu0
        %v6577 = vadd.f32 0.0, %v6576
        %v6578 = vpop.f32.mrb[0].mxu0
        %6579 = vmatprep.mubr.bf16.mxu0 0
        %6580 = vmatmul.mubr.bf16.gmra.mrb[0].mxu0 %v6302
        %v6581 = vpop.f32.mrb[0].mxu0
        %v6582 = vadd.f32 0.0, %v6581
        %v6583 = vpop.f32.mrb[0].mxu0
        %v6584 = vpop.f32.mrb[0].mxu0
        %v6585 = vadd.f32 0.0, %v6584
        %v6586 = vpop.f32.mrb[0].mxu0
        %6587 = vmatprep.mubr.bf16.mxu0 0
        %6588 = vmatmul.mubr.bf16.gmra.mrb[0].mxu0 %v6306
        %v6589 = vpop.f32.mrb[0].mxu0
        %v6590 = vadd.f32 0.0, %v6589
        %v6591 = vpop.f32.mrb[0].mxu0
        %v6592 = vpop.f32.mrb[0].mxu0
        %v6593 = vadd.f32 0.0, %v6592
        %v6594 = vpop.f32.mrb[0].mxu0
        %6595 = vmatprep.mubr.bf16.mxu0 0
        %6596 = vmatmul.mubr.bf16.gmra.mrb[0].mxu0 %v6310
        %v6597 = vpop.f32.mrb[0].mxu0
        %v6598 = vadd.f32 0.0, %v6597
        %v6599 = vpop.f32.mrb[0].mxu0
        %v6600 = vpop.f32.mrb[0].mxu0
        %v6601 = vadd.f32 0.0, %v6600
        %v6602 = vpop.f32.mrb[0].mxu0
        %6603 = vmatprep.mubr.bf16.mxu0 0
        %6604 = vmatmul.mubr.bf16.gmra.mrb[0].mxu0 %v6314
        %v6605 = vpop.f32.mrb[0].mxu0
        %v6606 = vadd.f32 0.0, %v6605
        %v6607 = vpop.f32.mrb[0].mxu0
        %v6608 = vpop.f32.mrb[0].mxu0
        %v6609 = vadd.f32 0.0, %v6608
        %v6610 = vpop.f32.mrb[0].mxu0
        %6611 = vmatprep.mubr.bf16.mxu0 0
        %6612 = vmatmul.mubr.bf16.gmra.mrb[0].mxu0 %v6318
        %v6613 = vpop.f32.mrb[0].mxu0
        %v6614 = vadd.f32 0.0, %v6613
        %v6615 = vpop.f32.mrb[0].mxu0
        %v6616 = vpop.f32.mrb[0].mxu0
        %v6617 = vadd.f32 0.0, %v6616
        %v6618 = vpop.f32.mrb[0].mxu0
        %6619 = vmatprep.mubr.bf16.mxu0 0
        %6620 = vmatmul.mubr.bf16.gmra.mrb[0].mxu0 %v6322
        %v6621 = vpop.f32.mrb[0].mxu0
        %v6622 = vadd.f32 0.0, %v6621
        %v6623 = vpop.f32.mrb[0].mxu0
        %v6624 = vpop.f32.mrb[0].mxu0
        %v6625 = vadd.f32 0.0, %v6624
        %v6626 = vpop.f32.mrb[0].mxu0
        %6627 = vmatprep.mubr.bf16.mxu0 0
        %6628 = vmatmul.mubr.bf16.gmra.mrb[0].mxu0 %v6326
        %v6629 = vpop.f32.mrb[0].mxu0
        %v6630 = vadd.f32 0.0, %v6629
        %v6631 = vpop.f32.mrb[0].mxu0
        %v6632 = vpop.f32.mrb[0].mxu0
        %v6633 = vadd.f32 0.0, %v6632
        %v6634 = vpop.f32.mrb[0].mxu0
        %6635 = vmatprep.mubr.bf16.mxu0 0
        %6636 = vmatmul.mubr.bf16.gmra.mrb[0].mxu0 %v6330
        %v6637 = vpop.f32.mrb[0].mxu0
        %v6638 = vadd.f32 0.0, %v6637
        %v6639 = vpop.f32.mrb[0].mxu0
        %v6640 = vpop.f32.mrb[0].mxu0
        %v6641 = vadd.f32 0.0, %v6640
        %v6642 = vpop.f32.mrb[0].mxu0
        %6643 = vmatprep.mubr.bf16.mxu0 0
        %6644 = vmatmul.mubr.bf16.gmra.mrb[0].mxu0 %v6334
        %v6645 = vpop.f32.mrb[0].mxu0
        %v6646 = vadd.f32 0.0, %v6645
        %v6647 = vpop.f32.mrb[0].mxu0
        %v6648 = vpop.f32.mrb[0].mxu0
        %v6649 = vadd.f32 0.0, %v6648
        %v6650 = vpop.f32.mrb[0].mxu0
        %6651 = vmatprep.mubr.bf16.mxu0 0
        %6652 = vmatmul.mubr.bf16.gmra.mrb[0].mxu0 %v6338
        %v6653 = vpop.f32.mrb[0].mxu0
        %v6654 = vadd.f32 0.0, %v6653
        %v6655 = vpop.f32.mrb[0].mxu0
        %v6656 = vpop.f32.mrb[0].mxu0
        %v6657 = vadd.f32 0.0, %v6656
        %v6658 = vpop.f32.mrb[0].mxu0
        %6659 = vmatprep.mubr.bf16.mxu0 0
        %6660 = vmatmul.mubr.bf16.gmra.mrb[0].mxu0 %v6342
        %v6661 = vpop.f32.mrb[0].mxu0
        %v6662 = vadd.f32 0.0, %v6661
        %v6663 = vpop.f32.mrb[0].mxu0
        %v6664 = vpop.f32.mrb[0].mxu0
        %v6665 = vadd.f32 0.0, %v6664
        %v6666 = vpop.f32.mrb[0].mxu0
        %6667 = vmatprep.mubr.bf16.mxu0 0
        %6668 = vmatmul.mubr.bf16.gmra.mrb[0].mxu0 %v6351
        %v6669 = vpop.f32.mrb[0].mxu0
        %v6670 = vadd.f32 0.0, %v6669
        %v6671 = vpop.f32.mrb[0].mxu0
        %v6672 = vpop.f32.mrb[0].mxu0
        %v6673 = vadd.f32 0.0, %v6672
        %v6674 = vpop.f32.mrb[0].mxu0
        %6675 = vdwg.mxu0
        %v6676 = vadd.f32 %v6159, %v6462
        %v6677 = vadd.f32 %v6160, %v6465
        %v6678 = vadd.f32 %v6161, %v6470
        %v6679 = vadd.f32 %v6162, %v6473
        %v6680 = vadd.f32 %v6163, %v6478
        %v6681 = vadd.f32 %v6164, %v6481
        %v6682 = vadd.f32 %v6165, %v6486
        %v6683 = vadd.f32 %v6166, %v6489
        %v6684 = vadd.f32 %v6167, %v6494
        %v6685 = vadd.f32 %v6168, %v6497
        %v6686 = vadd.f32 %v6169, %v6502
        %v6687 = vadd.f32 %v6170, %v6505
        %v6688 = vadd.f32 %v6171, %v6510
        %v6689 = vadd.f32 %v6172, %v6513
        %v6690 = vadd.f32 %v6173, %v6518
        %v6691 = vadd.f32 %v6174, %v6521
        %v6692 = vadd.f32 %v6175, %v6526
        %v6693 = vadd.f32 %v6176, %v6529
        %v6694 = vadd.f32 %v6177, %v6534
        %v6695 = vadd.f32 %v6178, %v6537
        %v6696 = vadd.f32 %v6179, %v6542
        %v6697 = vadd.f32 %v6180, %v6545
        %v6698 = vadd.f32 %v6181, %v6550
        %v6699 = vadd.f32 %v6182, %v6553
        %v6700 = vadd.f32 %v6183, %v6558
        %v6701 = vadd.f32 %v6184, %v6561
        %v6702 = vadd.f32 %v6185, %v6566
        %v6703 = vadd.f32 %v6186, %v6569
        %v6704 = vadd.f32 %v6187, %v6574
        %v6705 = vadd.f32 %v6188, %v6577
        %v6706 = vadd.f32 %v6189, %v6582
        %v6707 = vadd.f32 %v6190, %v6585
        %v6708 = vadd.f32 %v6191, %v6590
        %v6709 = vadd.f32 %v6192, %v6593
        %v6710 = vadd.f32 %v6193, %v6598
        %v6711 = vadd.f32 %v6194, %v6601
        %v6712 = vadd.f32 %v6195, %v6606
        %v6713 = vadd.f32 %v6196, %v6609
        %v6714 = vadd.f32 %v6197, %v6614
        %v6715 = vadd.f32 %v6198, %v6617
        %v6716 = vadd.f32 %v6199, %v6622
        %v6717 = vadd.f32 %v6200, %v6625
        %v6718 = vadd.f32 %v6201, %v6630
        %v6719 = vadd.f32 %v6202, %v6633
        %v6720 = vadd.f32 %v6203, %v6638
        %v6721 = vadd.f32 %v6204, %v6641
        %v6722 = vadd.f32 %v6205, %v6646
        %v6723 = vadd.f32 %v6206, %v6649
        %v6724 = vadd.f32 %v6207, %v6654
        %v6725 = vadd.f32 %v6208, %v6657
        %v6726 = vadd.f32 %v6209, %v6662
        %v6727 = vadd.f32 %v6210, %v6665
        %v6728 = vadd.f32 %v6211, %v6670
        %v6729 = vadd.f32 %v6212, %v6673
        %v6730 = vld [vmem:[%s4] sm:$0x1]
        %v6732 = vlaneseq
        %v6733 = vshrl.u32 %v6732, 7
        %v6734 = vsub.s32 0, %v6733
        %v6735 = vrot.slane %v6730, %v6734
        %v6737 = vadd.f32 %v6676, %v6735
        %v6738 = vadd.f32 %v6677, %v6735
        %v6739 = vadd.f32 %v6678, %v6735
        %v6740 = vadd.f32 %v6679, %v6735
        %v6741 = vadd.f32 %v6680, %v6735
        %v6742 = vadd.f32 %v6681, %v6735
        %v6743 = vadd.f32 %v6682, %v6735
        %v6744 = vadd.f32 %v6683, %v6735
        %v6745 = vadd.f32 %v6684, %v6735
        %v6746 = vadd.f32 %v6685, %v6735
        %v6747 = vadd.f32 %v6686, %v6735
        %v6748 = vadd.f32 %v6687, %v6735
        %v6749 = vadd.f32 %v6688, %v6735
        %v6750 = vadd.f32 %v6689, %v6735
        %v6751 = vadd.f32 %v6690, %v6735
        %v6752 = vadd.f32 %v6691, %v6735
        %v6753 = vadd.f32 %v6692, %v6735
        %v6754 = vadd.f32 %v6693, %v6735
        %v6755 = vadd.f32 %v6694, %v6735
        %v6756 = vadd.f32 %v6695, %v6735
        %v6757 = vadd.f32 %v6696, %v6735
        %v6758 = vadd.f32 %v6697, %v6735
        %v6759 = vadd.f32 %v6698, %v6735
        %v6760 = vadd.f32 %v6699, %v6735
        %v6761 = vadd.f32 %v6700, %v6735
        %v6762 = vadd.f32 %v6701, %v6735
        %v6763 = vadd.f32 %v6702, %v6735
        %v6764 = vadd.f32 %v6703, %v6735
        %v6765 = vadd.f32 %v6704, %v6735
        %v6766 = vadd.f32 %v6705, %v6735
        %v6767 = vadd.f32 %v6706, %v6735
        %v6768 = vadd.f32 %v6707, %v6735
        %v6769 = vadd.f32 %v6708, %v6735
        %v6770 = vadd.f32 %v6709, %v6735
        %v6771 = vadd.f32 %v6710, %v6735
        %v6772 = vadd.f32 %v6711, %v6735
        %v6773 = vadd.f32 %v6712, %v6735
        %v6774 = vadd.f32 %v6713, %v6735
        %v6775 = vadd.f32 %v6714, %v6735
        %v6776 = vadd.f32 %v6715, %v6735
        %v6777 = vadd.f32 %v6716, %v6735
        %v6778 = vadd.f32 %v6717, %v6735
        %v6779 = vadd.f32 %v6718, %v6735
        %v6780 = vadd.f32 %v6719, %v6735
        %v6781 = vadd.f32 %v6720, %v6735
        %v6782 = vadd.f32 %v6721, %v6735
        %v6783 = vadd.f32 %v6722, %v6735
        %v6784 = vadd.f32 %v6723, %v6735
        %v6785 = vadd.f32 %v6724, %v6735
        %v6786 = vadd.f32 %v6725, %v6735
        %v6787 = vadd.f32 %v6726, %v6735
        %v6788 = vadd.f32 %v6727, %v6735
        %v6789 = vadd.f32 %v6728, %v6735
        %v6790 = vadd.f32 %v6729, %v6735
        %v6791 = vmax.f32 %v6737, 0.0
        %v6792 = vmax.f32 %v6738, 0.0
        %v6793 = vmax.f32 %v6739, 0.0
        %v6794 = vmax.f32 %v6740, 0.0
        %v6795 = vmax.f32 %v6741, 0.0
        %v6796 = vmax.f32 %v6742, 0.0
        %v6797 = vmax.f32 %v6743, 0.0
        %v6798 = vmax.f32 %v6744, 0.0
        %v6799 = vmax.f32 %v6745, 0.0
        %v6800 = vmax.f32 %v6746, 0.0
        %v6801 = vmax.f32 %v6747, 0.0
        %v6802 = vmax.f32 %v6748, 0.0
        %v6803 = vmax.f32 %v6749, 0.0
        %v6804 = vmax.f32 %v6750, 0.0
        %v6805 = vmax.f32 %v6751, 0.0
        %v6806 = vmax.f32 %v6752, 0.0
        %v6807 = vmax.f32 %v6753, 0.0
        %v6808 = vmax.f32 %v6754, 0.0
        %v6809 = vmax.f32 %v6755, 0.0
        %v6810 = vmax.f32 %v6756, 0.0
        %v6811 = vmax.f32 %v6757, 0.0
        %v6812 = vmax.f32 %v6758, 0.0
        %v6813 = vmax.f32 %v6759, 0.0
        %v6814 = vmax.f32 %v6760, 0.0
        %v6815 = vmax.f32 %v6761, 0.0
        %v6816 = vmax.f32 %v6762, 0.0
        %v6817 = vmax.f32 %v6763, 0.0
        %v6818 = vmax.f32 %v6764, 0.0
        %v6819 = vmax.f32 %v6765, 0.0
        %v6820 = vmax.f32 %v6766, 0.0
        %v6821 = vmax.f32 %v6767, 0.0
        %v6822 = vmax.f32 %v6768, 0.0
        %v6823 = vmax.f32 %v6769, 0.0
        %v6824 = vmax.f32 %v6770, 0.0
        %v6825 = vmax.f32 %v6771, 0.0
        %v6826 = vmax.f32 %v6772, 0.0
        %v6827 = vmax.f32 %v6773, 0.0
        %v6828 = vmax.f32 %v6774, 0.0
        %v6829 = vmax.f32 %v6775, 0.0
        %v6830 = vmax.f32 %v6776, 0.0
        %v6831 = vmax.f32 %v6777, 0.0
        %v6832 = vmax.f32 %v6778, 0.0
        %v6833 = vmax.f32 %v6779, 0.0
        %v6834 = vmax.f32 %v6780, 0.0
        %v6835 = vmax.f32 %v6781, 0.0
        %v6836 = vmax.f32 %v6782, 0.0
        %v6837 = vmax.f32 %v6783, 0.0
        %v6838 = vmax.f32 %v6784, 0.0
        %v6839 = vmax.f32 %v6785, 0.0
        %v6840 = vmax.f32 %v6786, 0.0
        %v6841 = vmax.f32 %v6787, 0.0
        %v6842 = vmax.f32 %v6788, 0.0
        %v6843 = vmax.f32 %v6789, 0.0
        %v6844 = vmax.f32 %v6790, 0.0
        %v6845 = vpack.c.bf16 %v6792, %v6791
        %v6846 = vpack.c.bf16 %v6794, %v6793
        %v6847 = vpack.c.bf16 %v6796, %v6795
        %v6848 = vpack.c.bf16 %v6798, %v6797
        %v6849 = vpack.c.bf16 %v6800, %v6799
        %v6850 = vpack.c.bf16 %v6802, %v6801
        %v6851 = vpack.c.bf16 %v6804, %v6803
        %v6852 = vpack.c.bf16 %v6806, %v6805
        %v6853 = vpack.c.bf16 %v6808, %v6807
        %v6854 = vpack.c.bf16 %v6810, %v6809
        %v6855 = vpack.c.bf16 %v6812, %v6811
        %v6856 = vpack.c.bf16 %v6814, %v6813
        %v6857 = vpack.c.bf16 %v6816, %v6815
        %v6858 = vpack.c.bf16 %v6818, %v6817
        %v6859 = vpack.c.bf16 %v6820, %v6819
        %v6860 = vpack.c.bf16 %v6822, %v6821
        %v6861 = vpack.c.bf16 %v6824, %v6823
        %v6862 = vpack.c.bf16 %v6826, %v6825
        %v6863 = vpack.c.bf16 %v6828, %v6827
        %v6864 = vpack.c.bf16 %v6830, %v6829
        %v6865 = vpack.c.bf16 %v6832, %v6831
        %v6866 = vpack.c.bf16 %v6834, %v6833
        %v6867 = vpack.c.bf16 %v6836, %v6835
        %v6868 = vpack.c.bf16 %v6838, %v6837
        %v6869 = vpack.c.bf16 %v6840, %v6839
        %v6870 = vpack.c.bf16 %v6842, %v6841
        %v6871 = vpack.c.bf16 %v6844, %v6843
        %v6899 = vunpack.c.l.b16 %v6845
        %v6900 = vunpack.c.h.b16 %v6845
        %v6901 = vunpack.c.l.b16 %v6846
        %v6902 = vunpack.c.h.b16 %v6846
        %v6903 = vunpack.c.l.b16 %v6847
        %v6904 = vunpack.c.h.b16 %v6847
        %v6905 = vunpack.c.l.b16 %v6848
        %v6906 = vunpack.c.h.b16 %v6848
        %v6907 = vunpack.c.l.b16 %v6849
        %v6908 = vunpack.c.h.b16 %v6849
        %v6909 = vunpack.c.l.b16 %v6850
        %v6910 = vunpack.c.h.b16 %v6850
        %v6911 = vunpack.c.l.b16 %v6851
        %v6912 = vunpack.c.h.b16 %v6851
        %v6913 = vunpack.c.l.b16 %v6852
        %v6914 = vunpack.c.h.b16 %v6852
        %v6915 = vunpack.c.l.b16 %v6853
        %v6916 = vunpack.c.h.b16 %v6853
        %v6917 = vunpack.c.l.b16 %v6854
        %v6918 = vunpack.c.h.b16 %v6854
        %v6919 = vunpack.c.l.b16 %v6855
        %v6920 = vunpack.c.h.b16 %v6855
        %v6921 = vunpack.c.l.b16 %v6856
        %v6922 = vunpack.c.h.b16 %v6856
        %v6923 = vunpack.c.l.b16 %v6857
        %v6924 = vunpack.c.h.b16 %v6857
        %v6925 = vunpack.c.l.b16 %v6858
        %v6926 = vunpack.c.h.b16 %v6858
        %v6927 = vunpack.c.l.b16 %v6859
        %v6928 = vunpack.c.h.b16 %v6859
        %v6929 = vunpack.c.l.b16 %v6860
        %v6930 = vunpack.c.h.b16 %v6860
        %v6931 = vunpack.c.l.b16 %v6861
        %v6932 = vunpack.c.h.b16 %v6861
        %v6933 = vunpack.c.l.b16 %v6862
        %v6934 = vunpack.c.h.b16 %v6862
        %v6935 = vunpack.c.l.b16 %v6863
        %v6936 = vunpack.c.h.b16 %v6863
        %v6937 = vunpack.c.l.b16 %v6864
        %v6938 = vunpack.c.h.b16 %v6864
        %v6939 = vunpack.c.l.b16 %v6865
        %v6940 = vunpack.c.h.b16 %v6865
        %v6941 = vunpack.c.l.b16 %v6866
        %v6942 = vunpack.c.h.b16 %v6866
        %v6943 = vunpack.c.l.b16 %v6867
        %v6944 = vunpack.c.h.b16 %v6867
        %v6945 = vunpack.c.l.b16 %v6868
        %v6946 = vunpack.c.h.b16 %v6868
        %v6947 = vunpack.c.l.b16 %v6869
        %v6948 = vunpack.c.h.b16 %v6869
        %v6949 = vunpack.c.l.b16 %v6870
        %v6950 = vunpack.c.h.b16 %v6870
        %v6951 = vunpack.c.l.b16 %v6871
        %v6952 = vunpack.c.h.b16 %v6871
        %v6953 = vpack.c.b16 %v6899, %v6899
        %v6954 = vpack.c.b16 %v6900, %v6900
        %v6955 = vpack.c.b16 %v6901, %v6901
        %v6956 = vpack.c.b16 %v6902, %v6902
        %v6957 = vpack.c.b16 %v6903, %v6903
        %v6958 = vpack.c.b16 %v6904, %v6904
        %v6959 = vpack.c.b16 %v6905, %v6905
        %v6960 = vpack.c.b16 %v6906, %v6906
        %v6961 = vpack.c.b16 %v6907, %v6907
        %v6962 = vpack.c.b16 %v6908, %v6908
        %v6963 = vpack.c.b16 %v6909, %v6909
        %v6964 = vpack.c.b16 %v6910, %v6910
        %v6965 = vpack.c.b16 %v6911, %v6911
        %v6966 = vpack.c.b16 %v6912, %v6912
        %v6967 = vpack.c.b16 %v6913, %v6913
        %v6968 = vpack.c.b16 %v6914, %v6914
        %v6969 = vpack.c.b16 %v6915, %v6915
        %v6970 = vpack.c.b16 %v6916, %v6916
        %v6971 = vpack.c.b16 %v6917, %v6917
        %v6972 = vpack.c.b16 %v6918, %v6918
        %v6973 = vpack.c.b16 %v6919, %v6919
        %v6974 = vpack.c.b16 %v6920, %v6920
        %v6975 = vpack.c.b16 %v6921, %v6921
        %v6976 = vpack.c.b16 %v6922, %v6922
        %v6977 = vpack.c.b16 %v6923, %v6923
        %v6978 = vpack.c.b16 %v6924, %v6924
        %v6979 = vpack.c.b16 %v6925, %v6925
        %v6980 = vpack.c.b16 %v6926, %v6926
        %v6981 = vpack.c.b16 %v6927, %v6927
        %v6982 = vpack.c.b16 %v6928, %v6928
        %v6983 = vpack.c.b16 %v6929, %v6929
        %v6984 = vpack.c.b16 %v6930, %v6930
        %v6985 = vpack.c.b16 %v6931, %v6931
        %v6986 = vpack.c.b16 %v6932, %v6932
        %v6987 = vpack.c.b16 %v6933, %v6933
        %v6988 = vpack.c.b16 %v6934, %v6934
        %v6989 = vpack.c.b16 %v6935, %v6935
        %v6990 = vpack.c.b16 %v6936, %v6936
        %v6991 = vpack.c.b16 %v6937, %v6937
        %v6992 = vpack.c.b16 %v6938, %v6938
        %v6993 = vpack.c.b16 %v6939, %v6939
        %v6994 = vpack.c.b16 %v6940, %v6940
        %v6995 = vpack.c.b16 %v6941, %v6941
        %v6996 = vpack.c.b16 %v6942, %v6942
        %v6997 = vpack.c.b16 %v6943, %v6943
        %v6998 = vpack.c.b16 %v6944, %v6944
        %v6999 = vpack.c.b16 %v6945, %v6945
        %v7000 = vpack.c.b16 %v6946, %v6946
        %v7001 = vpack.c.b16 %v6947, %v6947
        %v7002 = vpack.c.b16 %v6948, %v6948
        %v7003 = vpack.c.b16 %v6949, %v6949
        %v7004 = vpack.c.b16 %v6950, %v6950
        %v7005 = vpack.c.b16 %v6951, %v6951
        %v7006 = vpack.c.b16 %v6952, %v6952
        %7061 = vst [vmem:[%s271] sm:$0xf] %v6953
        %7062 = vst [vmem:[%s271 + $0x4] sm:$0xf] %v6954
        %7063 = vst [vmem:[%s271 + $0x8] sm:$0xf] %v6955
        %7064 = vst [vmem:[%s271 + $0xc] sm:$0xf] %v6956
        %7065 = vst [vmem:[%s271 + $0x10] sm:$0xf] %v6957
        %7066 = vst [vmem:[%s271 + $0x14] sm:$0xf] %v6958
        %7067 = vst [vmem:[%s271 + $0x18] sm:$0xf] %v6959
        %7068 = vst [vmem:[%s271 + $0x1c] sm:$0xf] %v6960
        %7069 = vst [vmem:[%s271 + $0x20] sm:$0xf] %v6961
        %7070 = vst [vmem:[%s271 + $0x24] sm:$0xf] %v6962
        %7071 = vst [vmem:[%s271 + $0x28] sm:$0xf] %v6963
        %7072 = vst [vmem:[%s271 + $0x2c] sm:$0xf] %v6964
        %7073 = vst [vmem:[%s271 + $0x30] sm:$0xf] %v6965
        %7074 = vst [vmem:[%s271 + $0x34] sm:$0xf] %v6966
        %7075 = vst [vmem:[%s271 + $0x38] sm:$0xf] %v6967
        %7076 = vst [vmem:[%s271 + $0x3c] sm:$0xf] %v6968
        %7077 = vst [vmem:[%s271 + $0x40] sm:$0xf] %v6969
        %7078 = vst [vmem:[%s271 + $0x44] sm:$0xf] %v6970
        %7079 = vst [vmem:[%s271 + $0x48] sm:$0xf] %v6971
        %7080 = vst [vmem:[%s271 + $0x4c] sm:$0xf] %v6972
        %7081 = vst [vmem:[%s271 + $0x50] sm:$0xf] %v6973
        %7082 = vst [vmem:[%s271 + $0x54] sm:$0xf] %v6974
        %7083 = vst [vmem:[%s271 + $0x58] sm:$0xf] %v6975
        %7084 = vst [vmem:[%s271 + $0x5c] sm:$0xf] %v6976
        %7085 = vst [vmem:[%s271 + $0x60] sm:$0xf] %v6977
        %7086 = vst [vmem:[%s271 + $0x64] sm:$0xf] %v6978
        %7087 = vst [vmem:[%s271 + $0x68] sm:$0xf] %v6979
        %7088 = vst [vmem:[%s271 + $0x6c] sm:$0xf] %v6980
        %7089 = vst [vmem:[%s271 + $0x70] sm:$0xf] %v6981
        %7090 = vst [vmem:[%s271 + $0x74] sm:$0xf] %v6982
        %7091 = vst [vmem:[%s271 + $0x78] sm:$0xf] %v6983
        %7092 = vst [vmem:[%s271 + $0x7c] sm:$0xf] %v6984
        %7093 = vst [vmem:[%s271 + $0x80] sm:$0xf] %v6985
        %7094 = vst [vmem:[%s271 + $0x84] sm:$0xf] %v6986
        %7095 = vst [vmem:[%s271 + $0x88] sm:$0xf] %v6987
        %7096 = vst [vmem:[%s271 + $0x8c] sm:$0xf] %v6988
        %7097 = vst [vmem:[%s271 + $0x90] sm:$0xf] %v6989
        %7098 = vst [vmem:[%s271 + $0x94] sm:$0xf] %v6990
        %7099 = vst [vmem:[%s271 + $0x98] sm:$0xf] %v6991
        %7100 = vst [vmem:[%s271 + $0x9c] sm:$0xf] %v6992
        %7101 = vst [vmem:[%s271 + $0xa0] sm:$0xf] %v6993
        %7102 = vst [vmem:[%s271 + $0xa4] sm:$0xf] %v6994
        %7103 = vst [vmem:[%s271 + $0xa8] sm:$0xf] %v6995
        %7104 = vst [vmem:[%s271 + $0xac] sm:$0xf] %v6996
        %7105 = vst [vmem:[%s271 + $0xb0] sm:$0xf] %v6997
        %7106 = vst [vmem:[%s271 + $0xb4] sm:$0xf] %v6998
        %7107 = vst [vmem:[%s271 + $0xb8] sm:$0xf] %v6999
        %7108 = vst [vmem:[%s271 + $0xbc] sm:$0xf] %v7000
        %7109 = vst [vmem:[%s271 + $0xc0] sm:$0xf] %v7001
        %7110 = vst [vmem:[%s271 + $0xc4] sm:$0xf] %v7002
        %7111 = vst [vmem:[%s271 + $0xc8] sm:$0xf] %v7003
        %7112 = vst [vmem:[%s271 + $0xcc] sm:$0xf] %v7004
        %7113 = vst [vmem:[%s271 + $0xd0] sm:$0xf] %v7005
        %7114 = vst [vmem:[%s271 + $0xd4] sm:$0xf] %v7006
        %s7115 = sand.u32 %s141, 1
        %s7116 = scalar_lea.sflag [#allocation5], %s7115
        %s7117 = sand.u32 %s141, 1
        %s7118 = smul.addr %s7117, 216
        %s7119 = scalar_lea.vmem [#allocation9], %s7118
        // Predicated region
        $region53: #{tpu_custom_call.1} parent=39 // pred_check
          %p7120 = pneg %p151
        $region54: #{tpu_custom_call.1} parent=39 // pred_check_branch
          %7122 = sbr.rel (%p7120) target = $region56
        $region55: #{tpu_custom_call.1} parent=39 // pred_region
          %s7124 = ssub.s32 3456, 3456
          %7125 = vsyncadd %s7116, %s7124
          %s7126 = smul.addr %s23, 54
          %s7127 = smul.addr %s7126, 64
          %s7128 = scalar_lea.hbm %s5, %s7127
          %s7129 = sshll.u32 %s7119, 4
          %s7130 = int_to_ptr.vmem [resolvable:$true] %s7129
          %7135 = dma.vmem_to_hbm [thread:$0]  %s7130, 3456, %s7128, %s7116, 64, 64, 4
        $region56: #{tpu_custom_call.1} parent=39 // pred_fallthru
          _
      $region40: #{tpu_custom_call.1} parent=5 // pred_fallthru
        _
      %p7136 = scmp.le.s32.totalorder 2, %s18
      // Predicated region
      $region57: #{tpu_custom_call.1} parent=5 // pred_check
        %p7137 = pneg %p7136
      $region58: #{tpu_custom_call.1} parent=5 // pred_check_branch
        %7139 = sbr.rel (%p7137) target = $region60
      $region59: #{tpu_custom_call.1} parent=5 // pred_region
        %s7140 = ssub.s32 %s18, 2
        // Predicated region
        $region61: #{tpu_custom_call.1} parent=59 // pred_check
          %p7141 = pneg %p157
        $region62: #{tpu_custom_call.1} parent=59 // pred_check_branch
          %7143 = sbr.rel (%p7141) target = $region64
        $region63: #{tpu_custom_call.1} parent=59 // pred_region
          %s7144 = sand.u32 %s142, 1
          %s7145 = scalar_lea.sflag [#allocation5], %s7144
          %s7146 = sand.u32 %s142, 1
          %s7147 = smul.addr %s7146, 216
          %s7148 = scalar_lea.vmem [#allocation9], %s7147
          %7149 = dma.done %s7145, 3456
        $region64: #{tpu_custom_call.1} parent=59 // pred_fallthru
          _
      $region60: #{tpu_custom_call.1} parent=5 // pred_fallthru
        _
    $region6: #{tpu_custom_call.1} parent=1 // loop_footer
      %s22 = sadd.s32 1, %s18
    $region7: #{tpu_custom_call.1} parent=1 // loop_footer_branch
      %17 = sbr.rel target = $region3
    $region8: #{tpu_custom_call.1} parent=1 // loop_exit
      _
    %7150 = vsyncpa [#allocation4], 1
    %s7151 = scalar_lea.sflag [#allocation4], 1
    %7152 = vsyncpa %s7151, 1
    %7153 = vsyncpa [#allocation7], 1
    %7154 = vsyncpa [#allocation5], 1
    %s7155 = scalar_lea.sflag [#allocation5], 1
    %7156 = vsyncpa %s7155, 1

</llo_original>
